<compile_context>
chip_gen: v5e
topology: v5e:2x2
jax: 0.10.0
libtpu: 0.0.40
codegen_flags: <defaults>
</compile_context>

<pallas_src>
import functools

import jax
import jax.numpy as jnp
from jax import lax
from jax.experimental import pallas as pl
from jax.experimental.pallas import tpu as pltpu

EPS = 1e-5
NEG_SLOPE = 0.1  # LeakyReLU(0.1)
LANE = 128


def _round_up(x, m):
    return (x + m - 1) // m * m


def _bn_lrelu(z, gamma, beta, inv_rows):
    """Training-mode BatchNorm2d (biased variance, two-pass) + LeakyReLU(0.1)."""
    mean = jnp.sum(z, axis=0, keepdims=True) * inv_rows
    d = z - mean
    var = jnp.sum(d * d, axis=0, keepdims=True) * inv_rows
    y = d * (lax.rsqrt(var + EPS) * gamma) + beta
    return jnp.where(y > 0, y, NEG_SLOPE * y)


def _row_shift(y, s, rows):
    """z[r, :] = y[(r + s) % rows, :] (wrap rows are masked out by the caller)."""
    if s % rows == 0:
        return y
    return pltpu.roll(y, (-s) % rows, axis=0)  # XLU sublane rotate


def _hw_indices(rows, width, H, W):
    """Per-element image coordinates (h, w) of each row, at full lane width."""
    r = lax.broadcasted_iota(jnp.int32, (rows, width), 0)
    h = (r >> (W.bit_length() - 1)) & (H - 1)   # H, W are powers of two
    w = r & (W - 1)
    return h, w


def _conv3x3_packed(y, w_ref, C, H, W, extra=None):
    """3x3 'SAME' conv with taps lane-packed at true-channel granularity.

    y: (R, 128) f32 with channels in lanes [0, C) and zeros elsewhere;
    9*C (+ shortcut channels) <= 128.  Each tap is a pltpu.roll row shift,
    lane-rolled into its slot [t*C, t*C+C); disjoint lane ranges make the adds
    equivalent to a concat.  One full-width iota mask zeroes out-of-image
    taps, then a single K<=128 bf16 MXU matmul mixes everything (optionally
    with the 1x1 shortcut input appended at lane offset 9*C).
    """
    R, L = y.shape
    slab = None
    t = 0
    for dy in (-1, 0, 1):
        for dx in (-1, 0, 1):
            tap = _row_shift(y, dy * W + dx, R)
            if t:
                tap = pltpu.roll(tap, t * C, axis=1)  # place at lanes [t*C, t*C+C)
            slab = tap if slab is None else slab + tap
            t += 1

    # Tap validity mask, fully in-kernel (no width-1 lane broadcasts, no DMA):
    # lane -> tap index via a compare staircase (no vector integer division),
    # row  -> (h, w) via shift/and.
    h, w = _hw_indices(R, L, H, W)
    l_idx = lax.broadcasted_iota(jnp.int32, (R, L), 1)
    tap_id = (l_idx >= C).astype(jnp.int32)
    for k in range(2, 9):
        tap_id = tap_id + (l_idx >= k * C).astype(jnp.int32)
    dy_l = (tap_id >= 3).astype(jnp.int32) + (tap_id >= 6).astype(jnp.int32) - 1
    dx_l = tap_id - 3 * (dy_l + 1) - 1
    hh = h + dy_l
    ww = w + dx_l
    valid = (hh >= 0) & (hh < H) & (ww >= 0) & (ww < W)
    slab = jnp.where(valid, slab, 0.0)

    if extra is not None:  # folded 1x1 shortcut input (always valid, unmasked)
        slab = slab + pltpu.roll(extra, 9 * C, axis=1)

    return jnp.dot(slab.astype(jnp.bfloat16), w_ref[...],
                   preferred_element_type=jnp.float32)


def _conv3x3_accum(y, w_ref, G, H, W, n_out, extra=None, extra_width=0):
    """Large-channel fallback: 9 accumulating K=G matmuls, no big tap slab."""
    R = y.shape[0]
    h, w = _hw_indices(R, G, H, W)
    acc = jnp.zeros((R, n_out), jnp.float32)
    t = 0
    for dy in (-1, 0, 1):
        for dx in (-1, 0, 1):
            tap = _row_shift(y, dy * W + dx, R)
            if dy or dx:  # center tap is always valid -> skip its mask
                valid = (h + dy >= 0) & (h + dy < H) & (w + dx >= 0) & (w + dx < W)
                tap = jnp.where(valid, tap, 0.0)
            acc = acc + jnp.dot(tap.astype(jnp.bfloat16),
                                w_ref[t * G:(t + 1) * G, :],
                                preferred_element_type=jnp.float32)
            t += 1
    if extra is not None:  # folded 1x1 shortcut
        acc = acc + jnp.dot(extra.astype(jnp.bfloat16),
                            w_ref[9 * G:9 * G + extra_width, :],
                            preferred_element_type=jnp.float32)
    return acc


def residual_block_kernel(x_ref, w1_ref, wc_ref, b1_ref, b2s_ref,
                          g1_ref, be1_ref, g2_ref, be2_ref, out_ref,
                          *, H, W, G1, G2, packed1, packed2):
    # x_ref: (R, Cp) f32 input slab
    # w1_ref: (K1, Cop) bf16 tap-packed conv1 weights
    # wc_ref: (K2, Cop) bf16 conv2 taps + 1x1 shortcut stacked along K
    # b1/b2s/g*/be*: (1, C) f32 rows (b2s = conv2 bias + shortcut bias, folded)
    x = x_ref[...]
    inv_rows = 1.0 / x.shape[0]
    n_out = out_ref.shape[1]

    # --- b1: BatchNorm2d(in_ch) + LeakyReLU(0.1) ---
    y1 = _bn_lrelu(x, g1_ref[...], be1_ref[...], inv_rows)

    # --- c1: Conv2d(in_ch, out_ch, k=3, pad=1) ---
    if packed1:
        a1 = _conv3x3_packed(y1, w1_ref, G1, H, W)
    else:
        a1 = _conv3x3_accum(y1, w1_ref, G1, H, W, n_out)
    a1 = a1 + b1_ref[...]

    # --- b2: BatchNorm2d(out_ch) + LeakyReLU(0.1) ---
    y2 = _bn_lrelu(a1, g2_ref[...], be2_ref[...], inv_rows)

    # --- c2 + folded 1x1 shortcut: one MXU launch ---
    if packed2:
        a2 = _conv3x3_packed(y2, wc_ref, G2, H, W, extra=x)
    else:
        a2 = _conv3x3_accum(y2, wc_ref, G2, H, W, n_out,
                            extra=x, extra_width=x.shape[1])

    # TODO(synk): emit bf16 here if downstream accepts it (halves HBM
    # writeback); kept f32 to match the PyTorch module's output dtype.
    out_ref[...] = a2 + b2s_ref[...]


def _pack_weights(w3_oihw, ws_oihw, G, K, cout_p):
    """Tap-stack a 3x3 conv (+ optional 1x1 shortcut) into one (K, cout_p) bf16
    matmul operand; tap t = ky*3+kx rows start at t*G, shortcut rows at 9*G."""
    O, I = w3_oihw.shape[:2]
    taps = jnp.transpose(w3_oihw.astype(jnp.float32), (2, 3, 1, 0)).reshape(9, I, O)
    wp = jnp.zeros((K, cout_p), jnp.float32)
    for t in range(9):
        wp = wp.at[t * G:t * G + I, :O].set(taps[t])
    if ws_oihw is not None:
        Os, Is = ws_oihw.shape[:2]
        wp = wp.at[9 * G:9 * G + Is, :Os].set(
            ws_oihw[:, :, 0, 0].astype(jnp.float32).T)
    return wp.astype(jnp.bfloat16)


def residual_block_forward(x_nchw, p):
    N, Cin, H, W = x_nchw.shape
    Cout = p["w1"].shape[0]
    if (H & (H - 1)) or (W & (W - 1)):
        # TODO(synk): general H/W needs a div/mod (or host-precomputed) mask path.
        raise NotImplementedError("in-kernel masks assume power-of-two H and W")

    R = N * H * W
    Cp = _round_up(Cin, LANE)     # lane-padded input channels
    Cop = _round_up(Cout, LANE)   # lane-padded output channels

    # Lane-pack taps at true-channel granularity whenever the whole K fits in
    # one 128-lane block; otherwise fall back to 128-aligned accumulating taps.
    packed1 = 9 * Cin <= LANE
    packed2 = 9 * Cout + Cin <= LANE
    G1 = Cin if packed1 else Cp
    G2 = Cout if packed2 else Cop
    K1 = LANE if packed1 else 9 * G1
    K2 = LANE if packed2 else 9 * G2 + Cp

    # NCHW -> NHWC -> (rows, Cin), zero-pad channels to a full 128-lane block.
    x2d = jnp.transpose(x_nchw, (0, 2, 3, 1)).reshape(R, Cin).astype(jnp.float32)
    x2d = jnp.pad(x2d, ((0, 0), (0, Cp - Cin)))

    w1 = _pack_weights(p["w1"], None, G1, K1, Cop)
    wc = _pack_weights(p["w2"], p["ws"], G2, K2, Cop)  # conv2 taps + shortcut

    def rowvec(v, cp):
        v = v.astype(jnp.float32).reshape(1, -1)
        return jnp.pad(v, ((0, 0), (0, cp - v.shape[1])))

    b1 = rowvec(p["b1"], Cop)
    b2s = rowvec(p["b2"] + p["bs"], Cop)       # folded conv2 + shortcut biases
    g1, be1 = rowvec(p["g1"], Cp), rowvec(p["be1"], Cp)
    g2, be2 = rowvec(p["g2"], Cop), rowvec(p["be2"], Cop)

    # VMEM budget gated by generation: ~75% of per-core VMEM (v7x 64 MiB/TC,
    # v6e/v5e 128 MiB), capped to keep pipelining headroom.
    try:
        vmem_cap = int(pltpu.get_tpu_info().vmem_capacity_bytes)
    except Exception:
        vmem_cap = 0
    if vmem_cap <= 0:
        vmem_cap = 64 * 1024 * 1024
    vmem_limit = min(vmem_cap * 3 // 4, 112 * 1024 * 1024)

    args = (x2d, w1, wc, b1, b2s, g1, be1, g2, be2)
    vmem = pl.BlockSpec(memory_space=pltpu.MemorySpace.VMEM)

    out2d = pl.pallas_call(
        functools.partial(residual_block_kernel, H=H, W=W, G1=G1, G2=G2,
                          packed1=packed1, packed2=packed2),
        out_shape=jax.ShapeDtypeStruct((R, Cop), jnp.float32),
        in_specs=[vmem] * len(args),
        out_specs=vmem,
        compiler_params=pltpu.CompilerParams(vmem_limit_bytes=vmem_limit),
    )(*args)

    # (rows, Cop) -> drop lane padding -> NHWC -> NCHW
    out = out2d[:, :Cout].reshape(N, H, W, Cout)
    return jnp.transpose(out, (0, 3, 1, 2))


def init_params(key, in_ch, out_ch):
    ks = jax.random.split(key, 10)
    return {
        "w1": 0.1 * jax.random.normal(ks[0], (out_ch, in_ch, 3, 3), jnp.float32),
        "b1": 0.1 * jax.random.normal(ks[1], (out_ch,), jnp.float32),
        "w2": 0.1 * jax.random.normal(ks[2], (out_ch, out_ch, 3, 3), jnp.float32),
        "b2": 0.1 * jax.random.normal(ks[3], (out_ch,), jnp.float32),
        "ws": 0.1 * jax.random.normal(ks[4], (out_ch, in_ch, 1, 1), jnp.float32),
        "bs": 0.1 * jax.random.normal(ks[5], (out_ch,), jnp.float32),
        "g1": 1.0 + 0.1 * jax.random.normal(ks[6], (in_ch,), jnp.float32),
        "be1": 0.1 * jax.random.normal(ks[7], (in_ch,), jnp.float32),
        "g2": 1.0 + 0.1 * jax.random.normal(ks[8], (out_ch,), jnp.float32),
        "be2": 0.1 * jax.random.normal(ks[9], (out_ch,), jnp.float32),
    }


def reference_forward(x, p):
    """Plain-JAX reference mirroring the PyTorch module (training-mode BN)."""
    def bn_lrelu(x, g, b):
        mean = jnp.mean(x, axis=(0, 2, 3), keepdims=True)
        var = jnp.mean((x - mean) ** 2, axis=(0, 2, 3), keepdims=True)
        y = (x - mean) / jnp.sqrt(var + EPS) * g[None, :, None, None] + b[None, :, None, None]
        return jnp.where(y > 0, y, NEG_SLOPE * y)

    dn = ("NCHW", "OIHW", "NCHW")
    y = bn_lrelu(x, p["g1"], p["be1"])
    y = lax.conv_general_dilated(y, p["w1"], (1, 1), "SAME",
                                 dimension_numbers=dn) + p["b1"][None, :, None, None]
    y = bn_lrelu(y, p["g2"], p["be2"])
    y = lax.conv_general_dilated(y, p["w2"], (1, 1), "SAME",
                                 dimension_numbers=dn) + p["b2"][None, :, None, None]
    s = lax.conv_general_dilated(x, p["ws"], (1, 1), "SAME",
                                 dimension_numbers=dn) + p["bs"][None, :, None, None]
    return y + s


if __name__ == "__main__":
    key = jax.random.PRNGKey(0)
    kx, kp = jax.random.split(key)
    N, Cin, Cout, H, W = 2, 4, 8, 16, 16

    x = jax.random.normal(kx, (N, Cin, H, W), jnp.float32)
    params = init_params(kp, Cin, Cout)

    out = residual_block_forward(x, params)
    out = jax.block_until_ready(out)

    assert out.shape == (N, Cout, H, W), out.shape
    ref = reference_forward(x, params)
    max_err = float(jnp.max(jnp.abs(out - ref)))
    # bf16 MXU inputs (f32 accumulation) -> small numeric noise vs f32 reference.
    assert max_err < 5e-2, f"max abs error vs reference too large: {max_err}"

    print("KERNEL_OK")
</pallas_src>

<mosaic_0001>
module attributes {stable_mosaic.version = 11 : i64} {
  func.func @residual_block_kernel(%arg0: memref<512x128xf32, #tpu.memory_space<vmem>>, %arg1: memref<128x128xbf16, #tpu.memory_space<vmem>>, %arg2: memref<128x128xbf16, #tpu.memory_space<vmem>>, %arg3: memref<1x128xf32, #tpu.memory_space<vmem>>, %arg4: memref<1x128xf32, #tpu.memory_space<vmem>>, %arg5: memref<1x128xf32, #tpu.memory_space<vmem>>, %arg6: memref<1x128xf32, #tpu.memory_space<vmem>>, %arg7: memref<1x128xf32, #tpu.memory_space<vmem>>, %arg8: memref<1x128xf32, #tpu.memory_space<vmem>>, %arg9: memref<512x128xf32, #tpu.memory_space<vmem>>) attributes {dimension_semantics = [], scalar_prefetch = 0 : i64, scratch_operands = 0 : i64, tpu.core_type = #tpu.core_type<tc>} {
    %c0 = arith.constant 0 : index
    %c0_0 = arith.constant 0 : index
    %0 = vector.load %arg0[%c0, %c0_0] : memref<512x128xf32, #tpu.memory_space<vmem>>, vector<512x128xf32>
    %c0_1 = arith.constant 0 : index
    %c0_2 = arith.constant 0 : index
    %1 = vector.load %arg5[%c0_1, %c0_2] : memref<1x128xf32, #tpu.memory_space<vmem>>, vector<1x128xf32>
    %c0_3 = arith.constant 0 : index
    %c0_4 = arith.constant 0 : index
    %2 = vector.load %arg6[%c0_3, %c0_4] : memref<1x128xf32, #tpu.memory_space<vmem>>, vector<1x128xf32>
    %cst = arith.constant dense<0.000000e+00> : vector<128xf32>
    %3 = vector.multi_reduction <add>, %0, %cst [0] : vector<512x128xf32> to vector<128xf32>
    %4 = vector.shape_cast %3 : vector<128xf32> to vector<1x128xf32>
    %cst_5 = arith.constant 0.001953125 : f32
    %5 = vector.broadcast %cst_5 : f32 to vector<1x128xf32>
    %6 = arith.mulf %4, %5 : vector<1x128xf32>
    %7 = vector.broadcast %6 : vector<1x128xf32> to vector<512x128xf32>
    %8 = arith.subf %0, %7 : vector<512x128xf32>
    %9 = arith.mulf %8, %8 : vector<512x128xf32>
    %cst_6 = arith.constant dense<0.000000e+00> : vector<128xf32>
    %10 = vector.multi_reduction <add>, %9, %cst_6 [0] : vector<512x128xf32> to vector<128xf32>
    %11 = vector.shape_cast %10 : vector<128xf32> to vector<1x128xf32>
    %cst_7 = arith.constant 0.001953125 : f32
    %12 = vector.broadcast %cst_7 : f32 to vector<1x128xf32>
    %13 = arith.mulf %11, %12 : vector<1x128xf32>
    %cst_8 = arith.constant 9.99999974E-6 : f32
    %14 = vector.broadcast %cst_8 : f32 to vector<1x128xf32>
    %15 = arith.addf %13, %14 : vector<1x128xf32>
    %16 = math.rsqrt %15 : vector<1x128xf32>
    %17 = arith.mulf %16, %1 : vector<1x128xf32>
    %18 = vector.broadcast %17 : vector<1x128xf32> to vector<512x128xf32>
    %19 = arith.mulf %8, %18 : vector<512x128xf32>
    %20 = vector.broadcast %2 : vector<1x128xf32> to vector<512x128xf32>
    %21 = arith.addf %19, %20 : vector<512x128xf32>
    %cst_9 = arith.constant 0.000000e+00 : f32
    %22 = vector.broadcast %cst_9 : f32 to vector<512x128xf32>
    %23 = arith.cmpf ogt, %21, %22 : vector<512x128xf32>
    %cst_10 = arith.constant 1.000000e-01 : f32
    %24 = vector.broadcast %cst_10 : f32 to vector<512x128xf32>
    %25 = arith.mulf %24, %21 : vector<512x128xf32>
    %26 = arith.select %23, %21, %25 : vector<512x128xi1>, vector<512x128xf32>
    %c17_i32 = arith.constant 17 : i32
    %27 = tpu.dynamic_rotate %26 by %c17_i32 dim 0 : vector<512x128xf32>, i32 -> vector<512x128xf32>
    %c16_i32 = arith.constant 16 : i32
    %28 = tpu.dynamic_rotate %26 by %c16_i32 dim 0 : vector<512x128xf32>, i32 -> vector<512x128xf32>
    %c4_i32 = arith.constant 4 : i32
    %29 = tpu.dynamic_rotate %28 by %c4_i32 dim 1 : vector<512x128xf32>, i32 -> vector<512x128xf32>
    %30 = arith.addf %27, %29 : vector<512x128xf32>
    %c15_i32 = arith.constant 15 : i32
    %31 = tpu.dynamic_rotate %26 by %c15_i32 dim 0 : vector<512x128xf32>, i32 -> vector<512x128xf32>
    %c8_i32 = arith.constant 8 : i32
    %32 = tpu.dynamic_rotate %31 by %c8_i32 dim 1 : vector<512x128xf32>, i32 -> vector<512x128xf32>
    %33 = arith.addf %30, %32 : vector<512x128xf32>
    %c1_i32 = arith.constant 1 : i32
    %34 = tpu.dynamic_rotate %26 by %c1_i32 dim 0 : vector<512x128xf32>, i32 -> vector<512x128xf32>
    %c12_i32 = arith.constant 12 : i32
    %35 = tpu.dynamic_rotate %34 by %c12_i32 dim 1 : vector<512x128xf32>, i32 -> vector<512x128xf32>
    %36 = arith.addf %33, %35 : vector<512x128xf32>
    %c16_i32_11 = arith.constant 16 : i32
    %37 = tpu.dynamic_rotate %26 by %c16_i32_11 dim 1 : vector<512x128xf32>, i32 -> vector<512x128xf32>
    %38 = arith.addf %36, %37 : vector<512x128xf32>
    %c511_i32 = arith.constant 511 : i32
    %39 = tpu.dynamic_rotate %26 by %c511_i32 dim 0 : vector<512x128xf32>, i32 -> vector<512x128xf32>
    %c20_i32 = arith.constant 20 : i32
    %40 = tpu.dynamic_rotate %39 by %c20_i32 dim 1 : vector<512x128xf32>, i32 -> vector<512x128xf32>
    %41 = arith.addf %38, %40 : vector<512x128xf32>
    %c497_i32 = arith.constant 497 : i32
    %42 = tpu.dynamic_rotate %26 by %c497_i32 dim 0 : vector<512x128xf32>, i32 -> vector<512x128xf32>
    %c24_i32 = arith.constant 24 : i32
    %43 = tpu.dynamic_rotate %42 by %c24_i32 dim 1 : vector<512x128xf32>, i32 -> vector<512x128xf32>
    %44 = arith.addf %41, %43 : vector<512x128xf32>
    %c496_i32 = arith.constant 496 : i32
    %45 = tpu.dynamic_rotate %26 by %c496_i32 dim 0 : vector<512x128xf32>, i32 -> vector<512x128xf32>
    %c28_i32 = arith.constant 28 : i32
    %46 = tpu.dynamic_rotate %45 by %c28_i32 dim 1 : vector<512x128xf32>, i32 -> vector<512x128xf32>
    %47 = arith.addf %44, %46 : vector<512x128xf32>
    %c495_i32 = arith.constant 495 : i32
    %48 = tpu.dynamic_rotate %26 by %c495_i32 dim 0 : vector<512x128xf32>, i32 -> vector<512x128xf32>
    %c32_i32 = arith.constant 32 : i32
    %49 = tpu.dynamic_rotate %48 by %c32_i32 dim 1 : vector<512x128xf32>, i32 -> vector<512x128xf32>
    %50 = arith.addf %47, %49 : vector<512x128xf32>
    %51 = tpu.iota {dimensions = array<i32: 0>} : vector<512x128xi32>
    %c4_i32_12 = arith.constant 4 : i32
    %52 = vector.broadcast %c4_i32_12 : i32 to vector<512x128xi32>
    %53 = arith.shrsi %51, %52 : vector<512x128xi32>
    %c15_i32_13 = arith.constant 15 : i32
    %54 = vector.broadcast %c15_i32_13 : i32 to vector<512x128xi32>
    %55 = arith.andi %53, %54 : vector<512x128xi32>
    %c15_i32_14 = arith.constant 15 : i32
    %56 = vector.broadcast %c15_i32_14 : i32 to vector<512x128xi32>
    %57 = arith.andi %51, %56 : vector<512x128xi32>
    %58 = tpu.iota {dimensions = array<i32: 1>} : vector<512x128xi32>
    %c4_i32_15 = arith.constant 4 : i32
    %59 = vector.broadcast %c4_i32_15 : i32 to vector<512x128xi32>
    %60 = arith.cmpi sge, %58, %59 : vector<512x128xi32>
    %61 = arith.extui %60 : vector<512x128xi1> to vector<512x128xi32>
    %c8_i32_16 = arith.constant 8 : i32
    %62 = vector.broadcast %c8_i32_16 : i32 to vector<512x128xi32>
    %63 = arith.cmpi sge, %58, %62 : vector<512x128xi32>
    %64 = arith.extui %63 : vector<512x128xi1> to vector<512x128xi32>
    %65 = arith.addi %61, %64 : vector<512x128xi32>
    %c12_i32_17 = arith.constant 12 : i32
    %66 = vector.broadcast %c12_i32_17 : i32 to vector<512x128xi32>
    %67 = arith.cmpi sge, %58, %66 : vector<512x128xi32>
    %68 = arith.extui %67 : vector<512x128xi1> to vector<512x128xi32>
    %69 = arith.addi %65, %68 : vector<512x128xi32>
    %c16_i32_18 = arith.constant 16 : i32
    %70 = vector.broadcast %c16_i32_18 : i32 to vector<512x128xi32>
    %71 = arith.cmpi sge, %58, %70 : vector<512x128xi32>
    %72 = arith.extui %71 : vector<512x128xi1> to vector<512x128xi32>
    %73 = arith.addi %69, %72 : vector<512x128xi32>
    %c20_i32_19 = arith.constant 20 : i32
    %74 = vector.broadcast %c20_i32_19 : i32 to vector<512x128xi32>
    %75 = arith.cmpi sge, %58, %74 : vector<512x128xi32>
    %76 = arith.extui %75 : vector<512x128xi1> to vector<512x128xi32>
    %77 = arith.addi %73, %76 : vector<512x128xi32>
    %c24_i32_20 = arith.constant 24 : i32
    %78 = vector.broadcast %c24_i32_20 : i32 to vector<512x128xi32>
    %79 = arith.cmpi sge, %58, %78 : vector<512x128xi32>
    %80 = arith.extui %79 : vector<512x128xi1> to vector<512x128xi32>
    %81 = arith.addi %77, %80 : vector<512x128xi32>
    %c28_i32_21 = arith.constant 28 : i32
    %82 = vector.broadcast %c28_i32_21 : i32 to vector<512x128xi32>
    %83 = arith.cmpi sge, %58, %82 : vector<512x128xi32>
    %84 = arith.extui %83 : vector<512x128xi1> to vector<512x128xi32>
    %85 = arith.addi %81, %84 : vector<512x128xi32>
    %c32_i32_22 = arith.constant 32 : i32
    %86 = vector.broadcast %c32_i32_22 : i32 to vector<512x128xi32>
    %87 = arith.cmpi sge, %58, %86 : vector<512x128xi32>
    %88 = arith.extui %87 : vector<512x128xi1> to vector<512x128xi32>
    %89 = arith.addi %85, %88 : vector<512x128xi32>
    %c3_i32 = arith.constant 3 : i32
    %90 = vector.broadcast %c3_i32 : i32 to vector<512x128xi32>
    %91 = arith.cmpi sge, %89, %90 : vector<512x128xi32>
    %92 = arith.extui %91 : vector<512x128xi1> to vector<512x128xi32>
    %c6_i32 = arith.constant 6 : i32
    %93 = vector.broadcast %c6_i32 : i32 to vector<512x128xi32>
    %94 = arith.cmpi sge, %89, %93 : vector<512x128xi32>
    %95 = arith.extui %94 : vector<512x128xi1> to vector<512x128xi32>
    %96 = arith.addi %92, %95 : vector<512x128xi32>
    %c1_i32_23 = arith.constant 1 : i32
    %97 = vector.broadcast %c1_i32_23 : i32 to vector<512x128xi32>
    %98 = arith.subi %96, %97 : vector<512x128xi32>
    %c1_i32_24 = arith.constant 1 : i32
    %99 = vector.broadcast %c1_i32_24 : i32 to vector<512x128xi32>
    %100 = arith.addi %98, %99 : vector<512x128xi32>
    %c3_i32_25 = arith.constant 3 : i32
    %101 = vector.broadcast %c3_i32_25 : i32 to vector<512x128xi32>
    %102 = arith.muli %101, %100 : vector<512x128xi32>
    %103 = arith.subi %89, %102 : vector<512x128xi32>
    %c1_i32_26 = arith.constant 1 : i32
    %104 = vector.broadcast %c1_i32_26 : i32 to vector<512x128xi32>
    %105 = arith.subi %103, %104 : vector<512x128xi32>
    %106 = arith.addi %55, %98 : vector<512x128xi32>
    %107 = arith.addi %57, %105 : vector<512x128xi32>
    %c0_i32 = arith.constant 0 : i32
    %108 = vector.broadcast %c0_i32 : i32 to vector<512x128xi32>
    %109 = arith.cmpi sge, %106, %108 : vector<512x128xi32>
    %c16_i32_27 = arith.constant 16 : i32
    %110 = vector.broadcast %c16_i32_27 : i32 to vector<512x128xi32>
    %111 = arith.cmpi slt, %106, %110 : vector<512x128xi32>
    %112 = arith.andi %109, %111 : vector<512x128xi1>
    %c0_i32_28 = arith.constant 0 : i32
    %113 = vector.broadcast %c0_i32_28 : i32 to vector<512x128xi32>
    %114 = arith.cmpi sge, %107, %113 : vector<512x128xi32>
    %115 = arith.andi %112, %114 : vector<512x128xi1>
    %c16_i32_29 = arith.constant 16 : i32
    %116 = vector.broadcast %c16_i32_29 : i32 to vector<512x128xi32>
    %117 = arith.cmpi slt, %107, %116 : vector<512x128xi32>
    %118 = arith.andi %115, %117 : vector<512x128xi1>
    %cst_30 = arith.constant 0.000000e+00 : f32
    %119 = vector.broadcast %cst_30 : f32 to vector<512x128xf32>
    %120 = arith.select %118, %50, %119 : vector<512x128xi1>, vector<512x128xf32>
    %121 = arith.truncf %120 : vector<512x128xf32> to vector<512x128xbf16>
    %c0_31 = arith.constant 0 : index
    %c0_32 = arith.constant 0 : index
    %122 = vector.load %arg1[%c0_31, %c0_32] : memref<128x128xbf16, #tpu.memory_space<vmem>>, vector<128x128xbf16>
    %cst_33 = arith.constant dense<0.000000e+00> : vector<512x128xf32>
    %123 = tpu.matmul %121, %122, %cst_33 {dimension_numbers = #tpu.dot_dimension_numbers<[1], [0], [0], [1], [0, 0, 1, 1], [], []>} : vector<512x128xbf16>, vector<128x128xbf16>, vector<512x128xf32> -> vector<512x128xf32>
    %c0_34 = arith.constant 0 : index
    %c0_35 = arith.constant 0 : index
    %124 = vector.load %arg3[%c0_34, %c0_35] : memref<1x128xf32, #tpu.memory_space<vmem>>, vector<1x128xf32>
    %125 = vector.broadcast %124 : vector<1x128xf32> to vector<512x128xf32>
    %126 = arith.addf %123, %125 : vector<512x128xf32>
    %c0_36 = arith.constant 0 : index
    %c0_37 = arith.constant 0 : index
    %127 = vector.load %arg7[%c0_36, %c0_37] : memref<1x128xf32, #tpu.memory_space<vmem>>, vector<1x128xf32>
    %c0_38 = arith.constant 0 : index
    %c0_39 = arith.constant 0 : index
    %128 = vector.load %arg8[%c0_38, %c0_39] : memref<1x128xf32, #tpu.memory_space<vmem>>, vector<1x128xf32>
    %cst_40 = arith.constant dense<0.000000e+00> : vector<128xf32>
    %129 = vector.multi_reduction <add>, %126, %cst_40 [0] : vector<512x128xf32> to vector<128xf32>
    %130 = vector.shape_cast %129 : vector<128xf32> to vector<1x128xf32>
    %cst_41 = arith.constant 0.001953125 : f32
    %131 = vector.broadcast %cst_41 : f32 to vector<1x128xf32>
    %132 = arith.mulf %130, %131 : vector<1x128xf32>
    %133 = vector.broadcast %132 : vector<1x128xf32> to vector<512x128xf32>
    %134 = arith.subf %126, %133 : vector<512x128xf32>
    %135 = arith.mulf %134, %134 : vector<512x128xf32>
    %cst_42 = arith.constant dense<0.000000e+00> : vector<128xf32>
    %136 = vector.multi_reduction <add>, %135, %cst_42 [0] : vector<512x128xf32> to vector<128xf32>
    %137 = vector.shape_cast %136 : vector<128xf32> to vector<1x128xf32>
    %cst_43 = arith.constant 0.001953125 : f32
    %138 = vector.broadcast %cst_43 : f32 to vector<1x128xf32>
    %139 = arith.mulf %137, %138 : vector<1x128xf32>
    %cst_44 = arith.constant 9.99999974E-6 : f32
    %140 = vector.broadcast %cst_44 : f32 to vector<1x128xf32>
    %141 = arith.addf %139, %140 : vector<1x128xf32>
    %142 = math.rsqrt %141 : vector<1x128xf32>
    %143 = arith.mulf %142, %127 : vector<1x128xf32>
    %144 = vector.broadcast %143 : vector<1x128xf32> to vector<512x128xf32>
    %145 = arith.mulf %134, %144 : vector<512x128xf32>
    %146 = vector.broadcast %128 : vector<1x128xf32> to vector<512x128xf32>
    %147 = arith.addf %145, %146 : vector<512x128xf32>
    %cst_45 = arith.constant 0.000000e+00 : f32
    %148 = vector.broadcast %cst_45 : f32 to vector<512x128xf32>
    %149 = arith.cmpf ogt, %147, %148 : vector<512x128xf32>
    %cst_46 = arith.constant 1.000000e-01 : f32
    %150 = vector.broadcast %cst_46 : f32 to vector<512x128xf32>
    %151 = arith.mulf %150, %147 : vector<512x128xf32>
    %152 = arith.select %149, %147, %151 : vector<512x128xi1>, vector<512x128xf32>
    %c17_i32_47 = arith.constant 17 : i32
    %153 = tpu.dynamic_rotate %152 by %c17_i32_47 dim 0 : vector<512x128xf32>, i32 -> vector<512x128xf32>
    %c16_i32_48 = arith.constant 16 : i32
    %154 = tpu.dynamic_rotate %152 by %c16_i32_48 dim 0 : vector<512x128xf32>, i32 -> vector<512x128xf32>
    %c8_i32_49 = arith.constant 8 : i32
    %155 = tpu.dynamic_rotate %154 by %c8_i32_49 dim 1 : vector<512x128xf32>, i32 -> vector<512x128xf32>
    %156 = arith.addf %153, %155 : vector<512x128xf32>
    %c15_i32_50 = arith.constant 15 : i32
    %157 = tpu.dynamic_rotate %152 by %c15_i32_50 dim 0 : vector<512x128xf32>, i32 -> vector<512x128xf32>
    %c16_i32_51 = arith.constant 16 : i32
    %158 = tpu.dynamic_rotate %157 by %c16_i32_51 dim 1 : vector<512x128xf32>, i32 -> vector<512x128xf32>
    %159 = arith.addf %156, %158 : vector<512x128xf32>
    %c1_i32_52 = arith.constant 1 : i32
    %160 = tpu.dynamic_rotate %152 by %c1_i32_52 dim 0 : vector<512x128xf32>, i32 -> vector<512x128xf32>
    %c24_i32_53 = arith.constant 24 : i32
    %161 = tpu.dynamic_rotate %160 by %c24_i32_53 dim 1 : vector<512x128xf32>, i32 -> vector<512x128xf32>
    %162 = arith.addf %159, %161 : vector<512x128xf32>
    %c32_i32_54 = arith.constant 32 : i32
    %163 = tpu.dynamic_rotate %152 by %c32_i32_54 dim 1 : vector<512x128xf32>, i32 -> vector<512x128xf32>
    %164 = arith.addf %162, %163 : vector<512x128xf32>
    %c511_i32_55 = arith.constant 511 : i32
    %165 = tpu.dynamic_rotate %152 by %c511_i32_55 dim 0 : vector<512x128xf32>, i32 -> vector<512x128xf32>
    %c40_i32 = arith.constant 40 : i32
    %166 = tpu.dynamic_rotate %165 by %c40_i32 dim 1 : vector<512x128xf32>, i32 -> vector<512x128xf32>
    %167 = arith.addf %164, %166 : vector<512x128xf32>
    %c497_i32_56 = arith.constant 497 : i32
    %168 = tpu.dynamic_rotate %152 by %c497_i32_56 dim 0 : vector<512x128xf32>, i32 -> vector<512x128xf32>
    %c48_i32 = arith.constant 48 : i32
    %169 = tpu.dynamic_rotate %168 by %c48_i32 dim 1 : vector<512x128xf32>, i32 -> vector<512x128xf32>
    %170 = arith.addf %167, %169 : vector<512x128xf32>
    %c496_i32_57 = arith.constant 496 : i32
    %171 = tpu.dynamic_rotate %152 by %c496_i32_57 dim 0 : vector<512x128xf32>, i32 -> vector<512x128xf32>
    %c56_i32 = arith.constant 56 : i32
    %172 = tpu.dynamic_rotate %171 by %c56_i32 dim 1 : vector<512x128xf32>, i32 -> vector<512x128xf32>
    %173 = arith.addf %170, %172 : vector<512x128xf32>
    %c495_i32_58 = arith.constant 495 : i32
    %174 = tpu.dynamic_rotate %152 by %c495_i32_58 dim 0 : vector<512x128xf32>, i32 -> vector<512x128xf32>
    %c64_i32 = arith.constant 64 : i32
    %175 = tpu.dynamic_rotate %174 by %c64_i32 dim 1 : vector<512x128xf32>, i32 -> vector<512x128xf32>
    %176 = arith.addf %173, %175 : vector<512x128xf32>
    %177 = tpu.iota {dimensions = array<i32: 0>} : vector<512x128xi32>
    %c4_i32_59 = arith.constant 4 : i32
    %178 = vector.broadcast %c4_i32_59 : i32 to vector<512x128xi32>
    %179 = arith.shrsi %177, %178 : vector<512x128xi32>
    %c15_i32_60 = arith.constant 15 : i32
    %180 = vector.broadcast %c15_i32_60 : i32 to vector<512x128xi32>
    %181 = arith.andi %179, %180 : vector<512x128xi32>
    %c15_i32_61 = arith.constant 15 : i32
    %182 = vector.broadcast %c15_i32_61 : i32 to vector<512x128xi32>
    %183 = arith.andi %177, %182 : vector<512x128xi32>
    %184 = tpu.iota {dimensions = array<i32: 1>} : vector<512x128xi32>
    %c8_i32_62 = arith.constant 8 : i32
    %185 = vector.broadcast %c8_i32_62 : i32 to vector<512x128xi32>
    %186 = arith.cmpi sge, %184, %185 : vector<512x128xi32>
    %187 = arith.extui %186 : vector<512x128xi1> to vector<512x128xi32>
    %c16_i32_63 = arith.constant 16 : i32
    %188 = vector.broadcast %c16_i32_63 : i32 to vector<512x128xi32>
    %189 = arith.cmpi sge, %184, %188 : vector<512x128xi32>
    %190 = arith.extui %189 : vector<512x128xi1> to vector<512x128xi32>
    %191 = arith.addi %187, %190 : vector<512x128xi32>
    %c24_i32_64 = arith.constant 24 : i32
    %192 = vector.broadcast %c24_i32_64 : i32 to vector<512x128xi32>
    %193 = arith.cmpi sge, %184, %192 : vector<512x128xi32>
    %194 = arith.extui %193 : vector<512x128xi1> to vector<512x128xi32>
    %195 = arith.addi %191, %194 : vector<512x128xi32>
    %c32_i32_65 = arith.constant 32 : i32
    %196 = vector.broadcast %c32_i32_65 : i32 to vector<512x128xi32>
    %197 = arith.cmpi sge, %184, %196 : vector<512x128xi32>
    %198 = arith.extui %197 : vector<512x128xi1> to vector<512x128xi32>
    %199 = arith.addi %195, %198 : vector<512x128xi32>
    %c40_i32_66 = arith.constant 40 : i32
    %200 = vector.broadcast %c40_i32_66 : i32 to vector<512x128xi32>
    %201 = arith.cmpi sge, %184, %200 : vector<512x128xi32>
    %202 = arith.extui %201 : vector<512x128xi1> to vector<512x128xi32>
    %203 = arith.addi %199, %202 : vector<512x128xi32>
    %c48_i32_67 = arith.constant 48 : i32
    %204 = vector.broadcast %c48_i32_67 : i32 to vector<512x128xi32>
    %205 = arith.cmpi sge, %184, %204 : vector<512x128xi32>
    %206 = arith.extui %205 : vector<512x128xi1> to vector<512x128xi32>
    %207 = arith.addi %203, %206 : vector<512x128xi32>
    %c56_i32_68 = arith.constant 56 : i32
    %208 = vector.broadcast %c56_i32_68 : i32 to vector<512x128xi32>
    %209 = arith.cmpi sge, %184, %208 : vector<512x128xi32>
    %210 = arith.extui %209 : vector<512x128xi1> to vector<512x128xi32>
    %211 = arith.addi %207, %210 : vector<512x128xi32>
    %c64_i32_69 = arith.constant 64 : i32
    %212 = vector.broadcast %c64_i32_69 : i32 to vector<512x128xi32>
    %213 = arith.cmpi sge, %184, %212 : vector<512x128xi32>
    %214 = arith.extui %213 : vector<512x128xi1> to vector<512x128xi32>
    %215 = arith.addi %211, %214 : vector<512x128xi32>
    %c3_i32_70 = arith.constant 3 : i32
    %216 = vector.broadcast %c3_i32_70 : i32 to vector<512x128xi32>
    %217 = arith.cmpi sge, %215, %216 : vector<512x128xi32>
    %218 = arith.extui %217 : vector<512x128xi1> to vector<512x128xi32>
    %c6_i32_71 = arith.constant 6 : i32
    %219 = vector.broadcast %c6_i32_71 : i32 to vector<512x128xi32>
    %220 = arith.cmpi sge, %215, %219 : vector<512x128xi32>
    %221 = arith.extui %220 : vector<512x128xi1> to vector<512x128xi32>
    %222 = arith.addi %218, %221 : vector<512x128xi32>
    %c1_i32_72 = arith.constant 1 : i32
    %223 = vector.broadcast %c1_i32_72 : i32 to vector<512x128xi32>
    %224 = arith.subi %222, %223 : vector<512x128xi32>
    %c1_i32_73 = arith.constant 1 : i32
    %225 = vector.broadcast %c1_i32_73 : i32 to vector<512x128xi32>
    %226 = arith.addi %224, %225 : vector<512x128xi32>
    %c3_i32_74 = arith.constant 3 : i32
    %227 = vector.broadcast %c3_i32_74 : i32 to vector<512x128xi32>
    %228 = arith.muli %227, %226 : vector<512x128xi32>
    %229 = arith.subi %215, %228 : vector<512x128xi32>
    %c1_i32_75 = arith.constant 1 : i32
    %230 = vector.broadcast %c1_i32_75 : i32 to vector<512x128xi32>
    %231 = arith.subi %229, %230 : vector<512x128xi32>
    %232 = arith.addi %181, %224 : vector<512x128xi32>
    %233 = arith.addi %183, %231 : vector<512x128xi32>
    %c0_i32_76 = arith.constant 0 : i32
    %234 = vector.broadcast %c0_i32_76 : i32 to vector<512x128xi32>
    %235 = arith.cmpi sge, %232, %234 : vector<512x128xi32>
    %c16_i32_77 = arith.constant 16 : i32
    %236 = vector.broadcast %c16_i32_77 : i32 to vector<512x128xi32>
    %237 = arith.cmpi slt, %232, %236 : vector<512x128xi32>
    %238 = arith.andi %235, %237 : vector<512x128xi1>
    %c0_i32_78 = arith.constant 0 : i32
    %239 = vector.broadcast %c0_i32_78 : i32 to vector<512x128xi32>
    %240 = arith.cmpi sge, %233, %239 : vector<512x128xi32>
    %241 = arith.andi %238, %240 : vector<512x128xi1>
    %c16_i32_79 = arith.constant 16 : i32
    %242 = vector.broadcast %c16_i32_79 : i32 to vector<512x128xi32>
    %243 = arith.cmpi slt, %233, %242 : vector<512x128xi32>
    %244 = arith.andi %241, %243 : vector<512x128xi1>
    %cst_80 = arith.constant 0.000000e+00 : f32
    %245 = vector.broadcast %cst_80 : f32 to vector<512x128xf32>
    %246 = arith.select %244, %176, %245 : vector<512x128xi1>, vector<512x128xf32>
    %c72_i32 = arith.constant 72 : i32
    %247 = tpu.dynamic_rotate %0 by %c72_i32 dim 1 : vector<512x128xf32>, i32 -> vector<512x128xf32>
    %248 = arith.addf %246, %247 : vector<512x128xf32>
    %249 = arith.truncf %248 : vector<512x128xf32> to vector<512x128xbf16>
    %c0_81 = arith.constant 0 : index
    %c0_82 = arith.constant 0 : index
    %250 = vector.load %arg2[%c0_81, %c0_82] : memref<128x128xbf16, #tpu.memory_space<vmem>>, vector<128x128xbf16>
    %cst_83 = arith.constant dense<0.000000e+00> : vector<512x128xf32>
    %251 = tpu.matmul %249, %250, %cst_83 {dimension_numbers = #tpu.dot_dimension_numbers<[1], [0], [0], [1], [0, 0, 1, 1], [], []>} : vector<512x128xbf16>, vector<128x128xbf16>, vector<512x128xf32> -> vector<512x128xf32>
    %c0_84 = arith.constant 0 : index
    %c0_85 = arith.constant 0 : index
    %252 = vector.load %arg4[%c0_84, %c0_85] : memref<1x128xf32, #tpu.memory_space<vmem>>, vector<1x128xf32>
    %253 = vector.broadcast %252 : vector<1x128xf32> to vector<512x128xf32>
    %254 = arith.addf %251, %253 : vector<512x128xf32>
    %c0_86 = arith.constant 0 : index
    %c0_87 = arith.constant 0 : index
    %255 = vector.load %arg9[%c0_86, %c0_87] : memref<512x128xf32, #tpu.memory_space<vmem>>, vector<512x128xf32>
    tpu.vector_store %arg9[%c0_86, %c0_87], %254 {strides = array<i32>} : memref<512x128xf32, #tpu.memory_space<vmem>>, vector<512x128xf32>,
    return
  }
}

</mosaic_0001>

<llo_original>
// kernel: tpu_custom_call.1
$region0: #{tpu_custom_call.1}
  #allocation0 [shape = 'u32[]', space=smem, size = 0x4, offset = 0x4, fixed_abs, tag = 'smem constant byte address 0x4 - core index']
  #allocation1 [shape = 'u32[72,128]{1,0:T(1,128)}', space=vmem, size = 0x9000, scoped, tag = 'internal scratch']
  %s0 = inlined_call_operand.hbm [shape: f32[512,128], index: 0, kind: input, shape index: {}]
  %s1 = inlined_call_operand.hbm [shape: bf16[128,128], index: 1, kind: input, shape index: {}]
  %s2 = inlined_call_operand.hbm [shape: bf16[128,128], index: 2, kind: input, shape index: {}]
  %s3 = inlined_call_operand.vmem [shape: f32[1,128], index: 3, kind: input, shape index: {}]
  %s4 = inlined_call_operand.vmem [shape: f32[1,128], index: 4, kind: input, shape index: {}]
  %s5 = inlined_call_operand.vmem [shape: f32[1,128], index: 5, kind: input, shape index: {}]
  %s6 = inlined_call_operand.vmem [shape: f32[1,128], index: 6, kind: input, shape index: {}]
  %s7 = inlined_call_operand.vmem [shape: f32[1,128], index: 7, kind: input, shape index: {}]
  %s8 = inlined_call_operand.vmem [shape: f32[1,128], index: 8, kind: input, shape index: {}]
  %s9 = inlined_call_operand.hbm [shape: f32[512,128], index: 9, kind: output, shape index: {}]
  %s10 = sld [smem:[#allocation0]]
  $region58: #{tpu_custom_call.1} parent=0
    _
  %s12 = ssub.s32 1, %s10
  %s13 = scalar_select 0, %s12, %s10
  $region1: #{tpu_custom_call.1} parent=0
    #allocation2 [shape = 'u8[262144]{0}', space=vmem, size = 0x40000, scoped, tag = 'input window, operand 0, single buffered']
    #allocation3 [shape = 's32[1]{0}', space=sflag, size = 0x4, scoped, tag = 'scoped memory for tpu_custom_call.1']
    #allocation4 [shape = 's32[1]{0}', space=sflag, size = 0x4, scoped, tag = 'scoped memory for tpu_custom_call.1']
    #allocation5 [shape = 'u8[32768]{0}', space=vmem, size = 0x8000, scoped, tag = 'input window, operand 1, single buffered']
    #allocation6 [shape = 's32[1]{0}', space=sflag, size = 0x4, scoped, tag = 'scoped memory for tpu_custom_call.1']
    #allocation7 [shape = 'u8[32768]{0}', space=vmem, size = 0x8000, scoped, tag = 'input window, operand 2, single buffered']
    #allocation8 [shape = 'u8[262144]{0}', space=vmem, size = 0x40000, scoped, tag = 'output window, operand 0, single buffered']
    %14 = vsyncpa [#allocation3], 0
    %15 = vsyncpa [#allocation6], 0
    %16 = vsyncpa [#allocation4], 0
    // Predicated region
    $region2: #{tpu_custom_call.1} parent=1 // pred_check
      _
    $region3: #{tpu_custom_call.1} parent=1 // pred_check_branch
      %18 = sbr.rel (0) target = $region5
    $region4: #{tpu_custom_call.1} parent=1 // pred_region
      %20 = vsyncadd [#allocation3], 0
      %s21 = sshll.u32 %s0, 4
      %s22 = int_to_ptr.hbm [resolvable:$true] %s21
      %s23 = sshll.u32 [#allocation2], 4
      %s24 = int_to_ptr.vmem [resolvable:$true] %s23
      %29 = dma.hbm_to_vmem [thread:$0]  %s22, 8192, %s24, [#allocation3], 128, 128, 8
    $region5: #{tpu_custom_call.1} parent=1 // pred_fallthru
      _
    // Predicated region
    $region6: #{tpu_custom_call.1} parent=1 // pred_check
      _
    $region7: #{tpu_custom_call.1} parent=1 // pred_check_branch
      %31 = sbr.rel (0) target = $region9
    $region8: #{tpu_custom_call.1} parent=1 // pred_region
      %33 = vsyncadd [#allocation6], 0
      %s34 = sshll.u32 %s1, 4
      %s35 = int_to_ptr.hbm [resolvable:$true] %s34
      %s36 = sshll.u32 [#allocation5], 4
      %s37 = int_to_ptr.vmem [resolvable:$true] %s36
      %42 = dma.hbm_to_vmem [thread:$0]  %s35, 1024, %s37, [#allocation6], 64, 64, 4
    $region9: #{tpu_custom_call.1} parent=1 // pred_fallthru
      _
    // Predicated region
    $region10: #{tpu_custom_call.1} parent=1 // pred_check
      _
    $region11: #{tpu_custom_call.1} parent=1 // pred_check_branch
      %44 = sbr.rel (0) target = $region13
    $region12: #{tpu_custom_call.1} parent=1 // pred_region
      %46 = vsyncadd [#allocation6], 0
      %s47 = sshll.u32 %s2, 4
      %s48 = int_to_ptr.hbm [resolvable:$true] %s47
      %s49 = sshll.u32 [#allocation7], 4
      %s50 = int_to_ptr.vmem [resolvable:$true] %s49
      %55 = dma.hbm_to_vmem [thread:$0]  %s48, 1024, %s50, [#allocation6], 64, 64, 4
    $region13: #{tpu_custom_call.1} parent=1 // pred_fallthru
      _
    // Predicated region
    $region14: #{tpu_custom_call.1} parent=1 // pred_check
      _
    $region15: #{tpu_custom_call.1} parent=1 // pred_check_branch
      %57 = sbr.rel (0) target = $region17
    $region16: #{tpu_custom_call.1} parent=1 // pred_region
      _
    $region17: #{tpu_custom_call.1} parent=1 // pred_fallthru
      _
    // Predicated region
    $region18: #{tpu_custom_call.1} parent=1 // pred_check
      _
    $region19: #{tpu_custom_call.1} parent=1 // pred_check_branch
      %59 = sbr.rel (0) target = $region21
    $region20: #{tpu_custom_call.1} parent=1 // pred_region
      _
    $region21: #{tpu_custom_call.1} parent=1 // pred_fallthru
      _
    // Predicated region
    $region22: #{tpu_custom_call.1} parent=1 // pred_check
      _
    $region23: #{tpu_custom_call.1} parent=1 // pred_check_branch
      %61 = sbr.rel (0) target = $region25
    $region24: #{tpu_custom_call.1} parent=1 // pred_region
      _
    $region25: #{tpu_custom_call.1} parent=1 // pred_fallthru
      _
    // Predicated region
    $region26: #{tpu_custom_call.1} parent=1 // pred_check
      _
    $region27: #{tpu_custom_call.1} parent=1 // pred_check_branch
      %63 = sbr.rel (0) target = $region29
    $region28: #{tpu_custom_call.1} parent=1 // pred_region
      _
    $region29: #{tpu_custom_call.1} parent=1 // pred_fallthru
      _
    // Predicated region
    $region30: #{tpu_custom_call.1} parent=1 // pred_check
      _
    $region31: #{tpu_custom_call.1} parent=1 // pred_check_branch
      %65 = sbr.rel (0) target = $region33
    $region32: #{tpu_custom_call.1} parent=1 // pred_region
      _
    $region33: #{tpu_custom_call.1} parent=1 // pred_fallthru
      _
    // Predicated region
    $region34: #{tpu_custom_call.1} parent=1 // pred_check
      _
    $region35: #{tpu_custom_call.1} parent=1 // pred_check_branch
      %67 = sbr.rel (0) target = $region37
    $region36: #{tpu_custom_call.1} parent=1 // pred_region
      _
    $region37: #{tpu_custom_call.1} parent=1 // pred_fallthru
      _
    // Predicated region
    $region38: #{tpu_custom_call.1} parent=1 // pred_check
      _
    $region39: #{tpu_custom_call.1} parent=1 // pred_check_branch
      %69 = sbr.rel (0) target = $region41
    $region40: #{tpu_custom_call.1} parent=1 // pred_region
      %71 = dma.done [#allocation3], 8192
    $region41: #{tpu_custom_call.1} parent=1 // pred_fallthru
      _
    // Predicated region
    $region42: #{tpu_custom_call.1} parent=1 // pred_check
      _
    $region43: #{tpu_custom_call.1} parent=1 // pred_check_branch
      %73 = sbr.rel (0) target = $region45
    $region44: #{tpu_custom_call.1} parent=1 // pred_region
      %75 = dma.done [#allocation6], 1024
    $region45: #{tpu_custom_call.1} parent=1 // pred_fallthru
      _
    // Predicated region
    $region46: #{tpu_custom_call.1} parent=1 // pred_check
      _
    $region47: #{tpu_custom_call.1} parent=1 // pred_check_branch
      %77 = sbr.rel (0) target = $region49
    $region48: #{tpu_custom_call.1} parent=1 // pred_region
      %79 = dma.done [#allocation6], 1024
    $region49: #{tpu_custom_call.1} parent=1 // pred_fallthru
      _
    %v80 = vld [vmem:[#allocation2] sm:$0xff]
    %v81 = vld [vmem:[#allocation2 + $0x8] sm:$0xff]
    %v82 = vld [vmem:[#allocation2 + $0x10] sm:$0xff]
    %v83 = vld [vmem:[#allocation2 + $0x18] sm:$0xff]
    %v84 = vld [vmem:[#allocation2 + $0x20] sm:$0xff]
    %v85 = vld [vmem:[#allocation2 + $0x28] sm:$0xff]
    %v86 = vld [vmem:[#allocation2 + $0x30] sm:$0xff]
    %v87 = vld [vmem:[#allocation2 + $0x38] sm:$0xff]
    %v88 = vld [vmem:[#allocation2 + $0x40] sm:$0xff]
    %v89 = vld [vmem:[#allocation2 + $0x48] sm:$0xff]
    %v90 = vld [vmem:[#allocation2 + $0x50] sm:$0xff]
    %v91 = vld [vmem:[#allocation2 + $0x58] sm:$0xff]
    %v92 = vld [vmem:[#allocation2 + $0x60] sm:$0xff]
    %v93 = vld [vmem:[#allocation2 + $0x68] sm:$0xff]
    %v94 = vld [vmem:[#allocation2 + $0x70] sm:$0xff]
    %v95 = vld [vmem:[#allocation2 + $0x78] sm:$0xff]
    %v96 = vld [vmem:[#allocation2 + $0x80] sm:$0xff]
    %v97 = vld [vmem:[#allocation2 + $0x88] sm:$0xff]
    %v98 = vld [vmem:[#allocation2 + $0x90] sm:$0xff]
    %v99 = vld [vmem:[#allocation2 + $0x98] sm:$0xff]
    %v100 = vld [vmem:[#allocation2 + $0xa0] sm:$0xff]
    %v101 = vld [vmem:[#allocation2 + $0xa8] sm:$0xff]
    %v102 = vld [vmem:[#allocation2 + $0xb0] sm:$0xff]
    %v103 = vld [vmem:[#allocation2 + $0xb8] sm:$0xff]
    %v104 = vld [vmem:[#allocation2 + $0xc0] sm:$0xff]
    %v105 = vld [vmem:[#allocation2 + $0xc8] sm:$0xff]
    %v106 = vld [vmem:[#allocation2 + $0xd0] sm:$0xff]
    %v107 = vld [vmem:[#allocation2 + $0xd8] sm:$0xff]
    %v108 = vld [vmem:[#allocation2 + $0xe0] sm:$0xff]
    %v109 = vld [vmem:[#allocation2 + $0xe8] sm:$0xff]
    %v110 = vld [vmem:[#allocation2 + $0xf0] sm:$0xff]
    %v111 = vld [vmem:[#allocation2 + $0xf8] sm:$0xff]
    %v112 = vld [vmem:[#allocation2 + $0x100] sm:$0xff]
    %v113 = vld [vmem:[#allocation2 + $0x108] sm:$0xff]
    %v114 = vld [vmem:[#allocation2 + $0x110] sm:$0xff]
    %v115 = vld [vmem:[#allocation2 + $0x118] sm:$0xff]
    %v116 = vld [vmem:[#allocation2 + $0x120] sm:$0xff]
    %v117 = vld [vmem:[#allocation2 + $0x128] sm:$0xff]
    %v118 = vld [vmem:[#allocation2 + $0x130] sm:$0xff]
    %v119 = vld [vmem:[#allocation2 + $0x138] sm:$0xff]
    %v120 = vld [vmem:[#allocation2 + $0x140] sm:$0xff]
    %v121 = vld [vmem:[#allocation2 + $0x148] sm:$0xff]
    %v122 = vld [vmem:[#allocation2 + $0x150] sm:$0xff]
    %v123 = vld [vmem:[#allocation2 + $0x158] sm:$0xff]
    %v124 = vld [vmem:[#allocation2 + $0x160] sm:$0xff]
    %v125 = vld [vmem:[#allocation2 + $0x168] sm:$0xff]
    %v126 = vld [vmem:[#allocation2 + $0x170] sm:$0xff]
    %v127 = vld [vmem:[#allocation2 + $0x178] sm:$0xff]
    %v128 = vld [vmem:[#allocation2 + $0x180] sm:$0xff]
    %v129 = vld [vmem:[#allocation2 + $0x188] sm:$0xff]
    %v130 = vld [vmem:[#allocation2 + $0x190] sm:$0xff]
    %v131 = vld [vmem:[#allocation2 + $0x198] sm:$0xff]
    %v132 = vld [vmem:[#allocation2 + $0x1a0] sm:$0xff]
    %v133 = vld [vmem:[#allocation2 + $0x1a8] sm:$0xff]
    %v134 = vld [vmem:[#allocation2 + $0x1b0] sm:$0xff]
    %v135 = vld [vmem:[#allocation2 + $0x1b8] sm:$0xff]
    %v136 = vld [vmem:[#allocation2 + $0x1c0] sm:$0xff]
    %v137 = vld [vmem:[#allocation2 + $0x1c8] sm:$0xff]
    %v138 = vld [vmem:[#allocation2 + $0x1d0] sm:$0xff]
    %v139 = vld [vmem:[#allocation2 + $0x1d8] sm:$0xff]
    %v140 = vld [vmem:[#allocation2 + $0x1e0] sm:$0xff]
    %v141 = vld [vmem:[#allocation2 + $0x1e8] sm:$0xff]
    %v142 = vld [vmem:[#allocation2 + $0x1f0] sm:$0xff]
    %v143 = vld [vmem:[#allocation2 + $0x1f8] sm:$0xff]
    %v144 = vld [vmem:[%s5] sm:$0x1]
    %v145 = vld [vmem:[%s6] sm:$0x1]
    %v146 = vadd.f32 %v80, %v81
    %v147 = vadd.f32 %v146, %v82
    %v148 = vadd.f32 %v147, %v83
    %v149 = vadd.f32 %v148, %v84
    %v150 = vadd.f32 %v149, %v85
    %v151 = vadd.f32 %v150, %v86
    %v152 = vadd.f32 %v151, %v87
    %v153 = vadd.f32 %v152, %v88
    %v154 = vadd.f32 %v153, %v89
    %v155 = vadd.f32 %v154, %v90
    %v156 = vadd.f32 %v155, %v91
    %v157 = vadd.f32 %v156, %v92
    %v158 = vadd.f32 %v157, %v93
    %v159 = vadd.f32 %v158, %v94
    %v160 = vadd.f32 %v159, %v95
    %v161 = vadd.f32 %v160, %v96
    %v162 = vadd.f32 %v161, %v97
    %v163 = vadd.f32 %v162, %v98
    %v164 = vadd.f32 %v163, %v99
    %v165 = vadd.f32 %v164, %v100
    %v166 = vadd.f32 %v165, %v101
    %v167 = vadd.f32 %v166, %v102
    %v168 = vadd.f32 %v167, %v103
    %v169 = vadd.f32 %v168, %v104
    %v170 = vadd.f32 %v169, %v105
    %v171 = vadd.f32 %v170, %v106
    %v172 = vadd.f32 %v171, %v107
    %v173 = vadd.f32 %v172, %v108
    %v174 = vadd.f32 %v173, %v109
    %v175 = vadd.f32 %v174, %v110
    %v176 = vadd.f32 %v175, %v111
    %v177 = vadd.f32 %v176, %v112
    %v178 = vadd.f32 %v177, %v113
    %v179 = vadd.f32 %v178, %v114
    %v180 = vadd.f32 %v179, %v115
    %v181 = vadd.f32 %v180, %v116
    %v182 = vadd.f32 %v181, %v117
    %v183 = vadd.f32 %v182, %v118
    %v184 = vadd.f32 %v183, %v119
    %v185 = vadd.f32 %v184, %v120
    %v186 = vadd.f32 %v185, %v121
    %v187 = vadd.f32 %v186, %v122
    %v188 = vadd.f32 %v187, %v123
    %v189 = vadd.f32 %v188, %v124
    %v190 = vadd.f32 %v189, %v125
    %v191 = vadd.f32 %v190, %v126
    %v192 = vadd.f32 %v191, %v127
    %v193 = vadd.f32 %v192, %v128
    %v194 = vadd.f32 %v193, %v129
    %v195 = vadd.f32 %v194, %v130
    %v196 = vadd.f32 %v195, %v131
    %v197 = vadd.f32 %v196, %v132
    %v198 = vadd.f32 %v197, %v133
    %v199 = vadd.f32 %v198, %v134
    %v200 = vadd.f32 %v199, %v135
    %v201 = vadd.f32 %v200, %v136
    %v202 = vadd.f32 %v201, %v137
    %v203 = vadd.f32 %v202, %v138
    %v204 = vadd.f32 %v203, %v139
    %v205 = vadd.f32 %v204, %v140
    %v206 = vadd.f32 %v205, %v141
    %v207 = vadd.f32 %v206, %v142
    %v208 = vadd.f32 %v207, %v143
    %v209 = vrot.slane %v208, 4
    %v210 = vadd.f32 %v208, %v209
    %v211 = vrot.slane %v210, 2
    %v212 = vadd.f32 %v210, %v211
    %v213 = vrot.slane %v212, 1
    %v214 = vadd.f32 %v212, %v213
    %v215 = vmul.f32 %v214, 0.001953125
    %v216 = vsub.f32 %v80, %v215
    %v217 = vsub.f32 %v81, %v215
    %v218 = vsub.f32 %v82, %v215
    %v219 = vsub.f32 %v83, %v215
    %v220 = vsub.f32 %v84, %v215
    %v221 = vsub.f32 %v85, %v215
    %v222 = vsub.f32 %v86, %v215
    %v223 = vsub.f32 %v87, %v215
    %v224 = vsub.f32 %v88, %v215
    %v225 = vsub.f32 %v89, %v215
    %v226 = vsub.f32 %v90, %v215
    %v227 = vsub.f32 %v91, %v215
    %v228 = vsub.f32 %v92, %v215
    %v229 = vsub.f32 %v93, %v215
    %v230 = vsub.f32 %v94, %v215
    %v231 = vsub.f32 %v95, %v215
    %v232 = vsub.f32 %v96, %v215
    %v233 = vsub.f32 %v97, %v215
    %v234 = vsub.f32 %v98, %v215
    %v235 = vsub.f32 %v99, %v215
    %v236 = vsub.f32 %v100, %v215
    %v237 = vsub.f32 %v101, %v215
    %v238 = vsub.f32 %v102, %v215
    %v239 = vsub.f32 %v103, %v215
    %v240 = vsub.f32 %v104, %v215
    %v241 = vsub.f32 %v105, %v215
    %v242 = vsub.f32 %v106, %v215
    %v243 = vsub.f32 %v107, %v215
    %v244 = vsub.f32 %v108, %v215
    %v245 = vsub.f32 %v109, %v215
    %v246 = vsub.f32 %v110, %v215
    %v247 = vsub.f32 %v111, %v215
    %v248 = vsub.f32 %v112, %v215
    %v249 = vsub.f32 %v113, %v215
    %v250 = vsub.f32 %v114, %v215
    %v251 = vsub.f32 %v115, %v215
    %v252 = vsub.f32 %v116, %v215
    %v253 = vsub.f32 %v117, %v215
    %v254 = vsub.f32 %v118, %v215
    %v255 = vsub.f32 %v119, %v215
    %v256 = vsub.f32 %v120, %v215
    %v257 = vsub.f32 %v121, %v215
    %v258 = vsub.f32 %v122, %v215
    %v259 = vsub.f32 %v123, %v215
    %v260 = vsub.f32 %v124, %v215
    %v261 = vsub.f32 %v125, %v215
    %v262 = vsub.f32 %v126, %v215
    %v263 = vsub.f32 %v127, %v215
    %v264 = vsub.f32 %v128, %v215
    %v265 = vsub.f32 %v129, %v215
    %v266 = vsub.f32 %v130, %v215
    %v267 = vsub.f32 %v131, %v215
    %v268 = vsub.f32 %v132, %v215
    %v269 = vsub.f32 %v133, %v215
    %v270 = vsub.f32 %v134, %v215
    %v271 = vsub.f32 %v135, %v215
    %v272 = vsub.f32 %v136, %v215
    %v273 = vsub.f32 %v137, %v215
    %v274 = vsub.f32 %v138, %v215
    %v275 = vsub.f32 %v139, %v215
    %v276 = vsub.f32 %v140, %v215
    %v277 = vsub.f32 %v141, %v215
    %v278 = vsub.f32 %v142, %v215
    %v279 = vsub.f32 %v143, %v215
    %v280 = vmul.f32 %v216, %v216
    %v281 = vmul.f32 %v217, %v217
    %v282 = vmul.f32 %v218, %v218
    %v283 = vmul.f32 %v219, %v219
    %v284 = vmul.f32 %v220, %v220
    %v285 = vmul.f32 %v221, %v221
    %v286 = vmul.f32 %v222, %v222
    %v287 = vmul.f32 %v223, %v223
    %v288 = vmul.f32 %v224, %v224
    %v289 = vmul.f32 %v225, %v225
    %v290 = vmul.f32 %v226, %v226
    %v291 = vmul.f32 %v227, %v227
    %v292 = vmul.f32 %v228, %v228
    %v293 = vmul.f32 %v229, %v229
    %v294 = vmul.f32 %v230, %v230
    %v295 = vmul.f32 %v231, %v231
    %v296 = vmul.f32 %v232, %v232
    %v297 = vmul.f32 %v233, %v233
    %v298 = vmul.f32 %v234, %v234
    %v299 = vmul.f32 %v235, %v235
    %v300 = vmul.f32 %v236, %v236
    %v301 = vmul.f32 %v237, %v237
    %v302 = vmul.f32 %v238, %v238
    %v303 = vmul.f32 %v239, %v239
    %v304 = vmul.f32 %v240, %v240
    %v305 = vmul.f32 %v241, %v241
    %v306 = vmul.f32 %v242, %v242
    %v307 = vmul.f32 %v243, %v243
    %v308 = vmul.f32 %v244, %v244
    %v309 = vmul.f32 %v245, %v245
    %v310 = vmul.f32 %v246, %v246
    %v311 = vmul.f32 %v247, %v247
    %v312 = vmul.f32 %v248, %v248
    %v313 = vmul.f32 %v249, %v249
    %v314 = vmul.f32 %v250, %v250
    %v315 = vmul.f32 %v251, %v251
    %v316 = vmul.f32 %v252, %v252
    %v317 = vmul.f32 %v253, %v253
    %v318 = vmul.f32 %v254, %v254
    %v319 = vmul.f32 %v255, %v255
    %v320 = vmul.f32 %v256, %v256
    %v321 = vmul.f32 %v257, %v257
    %v322 = vmul.f32 %v258, %v258
    %v323 = vmul.f32 %v259, %v259
    %v324 = vmul.f32 %v260, %v260
    %v325 = vmul.f32 %v261, %v261
    %v326 = vmul.f32 %v262, %v262
    %v327 = vmul.f32 %v263, %v263
    %v328 = vmul.f32 %v264, %v264
    %v329 = vmul.f32 %v265, %v265
    %v330 = vmul.f32 %v266, %v266
    %v331 = vmul.f32 %v267, %v267
    %v332 = vmul.f32 %v268, %v268
    %v333 = vmul.f32 %v269, %v269
    %v334 = vmul.f32 %v270, %v270
    %v335 = vmul.f32 %v271, %v271
    %v336 = vmul.f32 %v272, %v272
    %v337 = vmul.f32 %v273, %v273
    %v338 = vmul.f32 %v274, %v274
    %v339 = vmul.f32 %v275, %v275
    %v340 = vmul.f32 %v276, %v276
    %v341 = vmul.f32 %v277, %v277
    %v342 = vmul.f32 %v278, %v278
    %v343 = vmul.f32 %v279, %v279
    %v344 = vadd.f32 %v280, %v281
    %v345 = vadd.f32 %v344, %v282
    %v346 = vadd.f32 %v345, %v283
    %v347 = vadd.f32 %v346, %v284
    %v348 = vadd.f32 %v347, %v285
    %v349 = vadd.f32 %v348, %v286
    %v350 = vadd.f32 %v349, %v287
    %v351 = vadd.f32 %v350, %v288
    %v352 = vadd.f32 %v351, %v289
    %v353 = vadd.f32 %v352, %v290
    %v354 = vadd.f32 %v353, %v291
    %v355 = vadd.f32 %v354, %v292
    %v356 = vadd.f32 %v355, %v293
    %v357 = vadd.f32 %v356, %v294
    %v358 = vadd.f32 %v357, %v295
    %v359 = vadd.f32 %v358, %v296
    %v360 = vadd.f32 %v359, %v297
    %v361 = vadd.f32 %v360, %v298
    %v362 = vadd.f32 %v361, %v299
    %v363 = vadd.f32 %v362, %v300
    %v364 = vadd.f32 %v363, %v301
    %v365 = vadd.f32 %v364, %v302
    %v366 = vadd.f32 %v365, %v303
    %v367 = vadd.f32 %v366, %v304
    %v368 = vadd.f32 %v367, %v305
    %v369 = vadd.f32 %v368, %v306
    %v370 = vadd.f32 %v369, %v307
    %v371 = vadd.f32 %v370, %v308
    %v372 = vadd.f32 %v371, %v309
    %v373 = vadd.f32 %v372, %v310
    %v374 = vadd.f32 %v373, %v311
    %v375 = vadd.f32 %v374, %v312
    %v376 = vadd.f32 %v375, %v313
    %v377 = vadd.f32 %v376, %v314
    %v378 = vadd.f32 %v377, %v315
    %v379 = vadd.f32 %v378, %v316
    %v380 = vadd.f32 %v379, %v317
    %v381 = vadd.f32 %v380, %v318
    %v382 = vadd.f32 %v381, %v319
    %v383 = vadd.f32 %v382, %v320
    %v384 = vadd.f32 %v383, %v321
    %v385 = vadd.f32 %v384, %v322
    %v386 = vadd.f32 %v385, %v323
    %v387 = vadd.f32 %v386, %v324
    %v388 = vadd.f32 %v387, %v325
    %v389 = vadd.f32 %v388, %v326
    %v390 = vadd.f32 %v389, %v327
    %v391 = vadd.f32 %v390, %v328
    %v392 = vadd.f32 %v391, %v329
    %v393 = vadd.f32 %v392, %v330
    %v394 = vadd.f32 %v393, %v331
    %v395 = vadd.f32 %v394, %v332
    %v396 = vadd.f32 %v395, %v333
    %v397 = vadd.f32 %v396, %v334
    %v398 = vadd.f32 %v397, %v335
    %v399 = vadd.f32 %v398, %v336
    %v400 = vadd.f32 %v399, %v337
    %v401 = vadd.f32 %v400, %v338
    %v402 = vadd.f32 %v401, %v339
    %v403 = vadd.f32 %v402, %v340
    %v404 = vadd.f32 %v403, %v341
    %v405 = vadd.f32 %v404, %v342
    %v406 = vadd.f32 %v405, %v343
    %v407 = vrot.slane %v406, 4
    %v408 = vadd.f32 %v406, %v407
    %v409 = vrot.slane %v408, 2
    %v410 = vadd.f32 %v408, %v409
    %v411 = vrot.slane %v410, 1
    %v412 = vadd.f32 %v410, %v411
    %v413 = vmul.f32 %v412, 0.001953125
    %v414 = vadd.f32 %v413, 1e-05
    %v415 = vrsqrt.pop %v414
    %v416 = vmul.f32 %v415, %v414
    %v417 = vmul.f32 %v416, %v415
    %v418 = vmul.f32 0.5, %v417
    %v419 = vsub.f32 1.5, %v418
    %v420 = vmul.f32 %v415, %v419
    %vm421 = vweird.f32 %v414
    %vm422 = vweird.f32 %v415
    %vm423 = vmor %vm421, %vm422
    %v424 = vsel %vm423, %v415, %v420
    %v425 = vmul.f32 %v424, %v144
    %v426 = vperm.slane %v425, 0
    %v427 = vmul.f32 %v216, %v426
    %v428 = vmul.f32 %v217, %v426
    %v429 = vmul.f32 %v218, %v426
    %v430 = vmul.f32 %v219, %v426
    %v431 = vmul.f32 %v220, %v426
    %v432 = vmul.f32 %v221, %v426
    %v433 = vmul.f32 %v222, %v426
    %v434 = vmul.f32 %v223, %v426
    %v435 = vmul.f32 %v224, %v426
    %v436 = vmul.f32 %v225, %v426
    %v437 = vmul.f32 %v226, %v426
    %v438 = vmul.f32 %v227, %v426
    %v439 = vmul.f32 %v228, %v426
    %v440 = vmul.f32 %v229, %v426
    %v441 = vmul.f32 %v230, %v426
    %v442 = vmul.f32 %v231, %v426
    %v443 = vmul.f32 %v232, %v426
    %v444 = vmul.f32 %v233, %v426
    %v445 = vmul.f32 %v234, %v426
    %v446 = vmul.f32 %v235, %v426
    %v447 = vmul.f32 %v236, %v426
    %v448 = vmul.f32 %v237, %v426
    %v449 = vmul.f32 %v238, %v426
    %v450 = vmul.f32 %v239, %v426
    %v451 = vmul.f32 %v240, %v426
    %v452 = vmul.f32 %v241, %v426
    %v453 = vmul.f32 %v242, %v426
    %v454 = vmul.f32 %v243, %v426
    %v455 = vmul.f32 %v244, %v426
    %v456 = vmul.f32 %v245, %v426
    %v457 = vmul.f32 %v246, %v426
    %v458 = vmul.f32 %v247, %v426
    %v459 = vmul.f32 %v248, %v426
    %v460 = vmul.f32 %v249, %v426
    %v461 = vmul.f32 %v250, %v426
    %v462 = vmul.f32 %v251, %v426
    %v463 = vmul.f32 %v252, %v426
    %v464 = vmul.f32 %v253, %v426
    %v465 = vmul.f32 %v254, %v426
    %v466 = vmul.f32 %v255, %v426
    %v467 = vmul.f32 %v256, %v426
    %v468 = vmul.f32 %v257, %v426
    %v469 = vmul.f32 %v258, %v426
    %v470 = vmul.f32 %v259, %v426
    %v471 = vmul.f32 %v260, %v426
    %v472 = vmul.f32 %v261, %v426
    %v473 = vmul.f32 %v262, %v426
    %v474 = vmul.f32 %v263, %v426
    %v475 = vmul.f32 %v264, %v426
    %v476 = vmul.f32 %v265, %v426
    %v477 = vmul.f32 %v266, %v426
    %v478 = vmul.f32 %v267, %v426
    %v479 = vmul.f32 %v268, %v426
    %v480 = vmul.f32 %v269, %v426
    %v481 = vmul.f32 %v270, %v426
    %v482 = vmul.f32 %v271, %v426
    %v483 = vmul.f32 %v272, %v426
    %v484 = vmul.f32 %v273, %v426
    %v485 = vmul.f32 %v274, %v426
    %v486 = vmul.f32 %v275, %v426
    %v487 = vmul.f32 %v276, %v426
    %v488 = vmul.f32 %v277, %v426
    %v489 = vmul.f32 %v278, %v426
    %v490 = vmul.f32 %v279, %v426
    %v492 = vperm.slane %v145, 0
    %v494 = vadd.f32 %v427, %v492
    %v495 = vadd.f32 %v428, %v492
    %v496 = vadd.f32 %v429, %v492
    %v497 = vadd.f32 %v430, %v492
    %v498 = vadd.f32 %v431, %v492
    %v499 = vadd.f32 %v432, %v492
    %v500 = vadd.f32 %v433, %v492
    %v501 = vadd.f32 %v434, %v492
    %v502 = vadd.f32 %v435, %v492
    %v503 = vadd.f32 %v436, %v492
    %v504 = vadd.f32 %v437, %v492
    %v505 = vadd.f32 %v438, %v492
    %v506 = vadd.f32 %v439, %v492
    %v507 = vadd.f32 %v440, %v492
    %v508 = vadd.f32 %v441, %v492
    %v509 = vadd.f32 %v442, %v492
    %v510 = vadd.f32 %v443, %v492
    %v511 = vadd.f32 %v444, %v492
    %v512 = vadd.f32 %v445, %v492
    %v513 = vadd.f32 %v446, %v492
    %v514 = vadd.f32 %v447, %v492
    %v515 = vadd.f32 %v448, %v492
    %v516 = vadd.f32 %v449, %v492
    %v517 = vadd.f32 %v450, %v492
    %v518 = vadd.f32 %v451, %v492
    %v519 = vadd.f32 %v452, %v492
    %v520 = vadd.f32 %v453, %v492
    %v521 = vadd.f32 %v454, %v492
    %v522 = vadd.f32 %v455, %v492
    %v523 = vadd.f32 %v456, %v492
    %v524 = vadd.f32 %v457, %v492
    %v525 = vadd.f32 %v458, %v492
    %v526 = vadd.f32 %v459, %v492
    %v527 = vadd.f32 %v460, %v492
    %v528 = vadd.f32 %v461, %v492
    %v529 = vadd.f32 %v462, %v492
    %v530 = vadd.f32 %v463, %v492
    %v531 = vadd.f32 %v464, %v492
    %v532 = vadd.f32 %v465, %v492
    %v533 = vadd.f32 %v466, %v492
    %v534 = vadd.f32 %v467, %v492
    %v535 = vadd.f32 %v468, %v492
    %v536 = vadd.f32 %v469, %v492
    %v537 = vadd.f32 %v470, %v492
    %v538 = vadd.f32 %v471, %v492
    %v539 = vadd.f32 %v472, %v492
    %v540 = vadd.f32 %v473, %v492
    %v541 = vadd.f32 %v474, %v492
    %v542 = vadd.f32 %v475, %v492
    %v543 = vadd.f32 %v476, %v492
    %v544 = vadd.f32 %v477, %v492
    %v545 = vadd.f32 %v478, %v492
    %v546 = vadd.f32 %v479, %v492
    %v547 = vadd.f32 %v480, %v492
    %v548 = vadd.f32 %v481, %v492
    %v549 = vadd.f32 %v482, %v492
    %v550 = vadd.f32 %v483, %v492
    %v551 = vadd.f32 %v484, %v492
    %v552 = vadd.f32 %v485, %v492
    %v553 = vadd.f32 %v486, %v492
    %v554 = vadd.f32 %v487, %v492
    %v555 = vadd.f32 %v488, %v492
    %v556 = vadd.f32 %v489, %v492
    %v557 = vadd.f32 %v490, %v492
    %vm558 = vcmp.gt.f32.partialorder %v494, 0.0
    %vm559 = vcmp.gt.f32.partialorder %v495, 0.0
    %vm560 = vcmp.gt.f32.partialorder %v496, 0.0
    %vm561 = vcmp.gt.f32.partialorder %v497, 0.0
    %vm562 = vcmp.gt.f32.partialorder %v498, 0.0
    %vm563 = vcmp.gt.f32.partialorder %v499, 0.0
    %vm564 = vcmp.gt.f32.partialorder %v500, 0.0
    %vm565 = vcmp.gt.f32.partialorder %v501, 0.0
    %vm566 = vcmp.gt.f32.partialorder %v502, 0.0
    %vm567 = vcmp.gt.f32.partialorder %v503, 0.0
    %vm568 = vcmp.gt.f32.partialorder %v504, 0.0
    %vm569 = vcmp.gt.f32.partialorder %v505, 0.0
    %vm570 = vcmp.gt.f32.partialorder %v506, 0.0
    %vm571 = vcmp.gt.f32.partialorder %v507, 0.0
    %vm572 = vcmp.gt.f32.partialorder %v508, 0.0
    %vm573 = vcmp.gt.f32.partialorder %v509, 0.0
    %vm574 = vcmp.gt.f32.partialorder %v510, 0.0
    %vm575 = vcmp.gt.f32.partialorder %v511, 0.0
    %vm576 = vcmp.gt.f32.partialorder %v512, 0.0
    %vm577 = vcmp.gt.f32.partialorder %v513, 0.0
    %vm578 = vcmp.gt.f32.partialorder %v514, 0.0
    %vm579 = vcmp.gt.f32.partialorder %v515, 0.0
    %vm580 = vcmp.gt.f32.partialorder %v516, 0.0
    %vm581 = vcmp.gt.f32.partialorder %v517, 0.0
    %vm582 = vcmp.gt.f32.partialorder %v518, 0.0
    %vm583 = vcmp.gt.f32.partialorder %v519, 0.0
    %vm584 = vcmp.gt.f32.partialorder %v520, 0.0
    %vm585 = vcmp.gt.f32.partialorder %v521, 0.0
    %vm586 = vcmp.gt.f32.partialorder %v522, 0.0
    %vm587 = vcmp.gt.f32.partialorder %v523, 0.0
    %vm588 = vcmp.gt.f32.partialorder %v524, 0.0
    %vm589 = vcmp.gt.f32.partialorder %v525, 0.0
    %vm590 = vcmp.gt.f32.partialorder %v526, 0.0
    %vm591 = vcmp.gt.f32.partialorder %v527, 0.0
    %vm592 = vcmp.gt.f32.partialorder %v528, 0.0
    %vm593 = vcmp.gt.f32.partialorder %v529, 0.0
    %vm594 = vcmp.gt.f32.partialorder %v530, 0.0
    %vm595 = vcmp.gt.f32.partialorder %v531, 0.0
    %vm596 = vcmp.gt.f32.partialorder %v532, 0.0
    %vm597 = vcmp.gt.f32.partialorder %v533, 0.0
    %vm598 = vcmp.gt.f32.partialorder %v534, 0.0
    %vm599 = vcmp.gt.f32.partialorder %v535, 0.0
    %vm600 = vcmp.gt.f32.partialorder %v536, 0.0
    %vm601 = vcmp.gt.f32.partialorder %v537, 0.0
    %vm602 = vcmp.gt.f32.partialorder %v538, 0.0
    %vm603 = vcmp.gt.f32.partialorder %v539, 0.0
    %vm604 = vcmp.gt.f32.partialorder %v540, 0.0
    %vm605 = vcmp.gt.f32.partialorder %v541, 0.0
    %vm606 = vcmp.gt.f32.partialorder %v542, 0.0
    %vm607 = vcmp.gt.f32.partialorder %v543, 0.0
    %vm608 = vcmp.gt.f32.partialorder %v544, 0.0
    %vm609 = vcmp.gt.f32.partialorder %v545, 0.0
    %vm610 = vcmp.gt.f32.partialorder %v546, 0.0
    %vm611 = vcmp.gt.f32.partialorder %v547, 0.0
    %vm612 = vcmp.gt.f32.partialorder %v548, 0.0
    %vm613 = vcmp.gt.f32.partialorder %v549, 0.0
    %vm614 = vcmp.gt.f32.partialorder %v550, 0.0
    %vm615 = vcmp.gt.f32.partialorder %v551, 0.0
    %vm616 = vcmp.gt.f32.partialorder %v552, 0.0
    %vm617 = vcmp.gt.f32.partialorder %v553, 0.0
    %vm618 = vcmp.gt.f32.partialorder %v554, 0.0
    %vm619 = vcmp.gt.f32.partialorder %v555, 0.0
    %vm620 = vcmp.gt.f32.partialorder %v556, 0.0
    %vm621 = vcmp.gt.f32.partialorder %v557, 0.0
    %v622 = vmul.f32 %v494, 0.1
    %v623 = vmul.f32 %v495, 0.1
    %v624 = vmul.f32 %v496, 0.1
    %v625 = vmul.f32 %v497, 0.1
    %v626 = vmul.f32 %v498, 0.1
    %v627 = vmul.f32 %v499, 0.1
    %v628 = vmul.f32 %v500, 0.1
    %v629 = vmul.f32 %v501, 0.1
    %v630 = vmul.f32 %v502, 0.1
    %v631 = vmul.f32 %v503, 0.1
    %v632 = vmul.f32 %v504, 0.1
    %v633 = vmul.f32 %v505, 0.1
    %v634 = vmul.f32 %v506, 0.1
    %v635 = vmul.f32 %v507, 0.1
    %v636 = vmul.f32 %v508, 0.1
    %v637 = vmul.f32 %v509, 0.1
    %v638 = vmul.f32 %v510, 0.1
    %v639 = vmul.f32 %v511, 0.1
    %v640 = vmul.f32 %v512, 0.1
    %v641 = vmul.f32 %v513, 0.1
    %v642 = vmul.f32 %v514, 0.1
    %v643 = vmul.f32 %v515, 0.1
    %v644 = vmul.f32 %v516, 0.1
    %v645 = vmul.f32 %v517, 0.1
    %v646 = vmul.f32 %v518, 0.1
    %v647 = vmul.f32 %v519, 0.1
    %v648 = vmul.f32 %v520, 0.1
    %v649 = vmul.f32 %v521, 0.1
    %v650 = vmul.f32 %v522, 0.1
    %v651 = vmul.f32 %v523, 0.1
    %v652 = vmul.f32 %v524, 0.1
    %v653 = vmul.f32 %v525, 0.1
    %v654 = vmul.f32 %v526, 0.1
    %v655 = vmul.f32 %v527, 0.1
    %v656 = vmul.f32 %v528, 0.1
    %v657 = vmul.f32 %v529, 0.1
    %v658 = vmul.f32 %v530, 0.1
    %v659 = vmul.f32 %v531, 0.1
    %v660 = vmul.f32 %v532, 0.1
    %v661 = vmul.f32 %v533, 0.1
    %v662 = vmul.f32 %v534, 0.1
    %v663 = vmul.f32 %v535, 0.1
    %v664 = vmul.f32 %v536, 0.1
    %v665 = vmul.f32 %v537, 0.1
    %v666 = vmul.f32 %v538, 0.1
    %v667 = vmul.f32 %v539, 0.1
    %v668 = vmul.f32 %v540, 0.1
    %v669 = vmul.f32 %v541, 0.1
    %v670 = vmul.f32 %v542, 0.1
    %v671 = vmul.f32 %v543, 0.1
    %v672 = vmul.f32 %v544, 0.1
    %v673 = vmul.f32 %v545, 0.1
    %v674 = vmul.f32 %v546, 0.1
    %v675 = vmul.f32 %v547, 0.1
    %v676 = vmul.f32 %v548, 0.1
    %v677 = vmul.f32 %v549, 0.1
    %v678 = vmul.f32 %v550, 0.1
    %v679 = vmul.f32 %v551, 0.1
    %v680 = vmul.f32 %v552, 0.1
    %v681 = vmul.f32 %v553, 0.1
    %v682 = vmul.f32 %v554, 0.1
    %v683 = vmul.f32 %v555, 0.1
    %v684 = vmul.f32 %v556, 0.1
    %v685 = vmul.f32 %v557, 0.1
    %v686 = vsel %vm558, %v494, %v622
    %v687 = vsel %vm559, %v495, %v623
    %v688 = vsel %vm560, %v496, %v624
    %v689 = vsel %vm561, %v497, %v625
    %v690 = vsel %vm562, %v498, %v626
    %v691 = vsel %vm563, %v499, %v627
    %v692 = vsel %vm564, %v500, %v628
    %v693 = vsel %vm565, %v501, %v629
    %v694 = vsel %vm566, %v502, %v630
    %v695 = vsel %vm567, %v503, %v631
    %v696 = vsel %vm568, %v504, %v632
    %v697 = vsel %vm569, %v505, %v633
    %v698 = vsel %vm570, %v506, %v634
    %v699 = vsel %vm571, %v507, %v635
    %v700 = vsel %vm572, %v508, %v636
    %v701 = vsel %vm573, %v509, %v637
    %v702 = vsel %vm574, %v510, %v638
    %v703 = vsel %vm575, %v511, %v639
    %v704 = vsel %vm576, %v512, %v640
    %v705 = vsel %vm577, %v513, %v641
    %v706 = vsel %vm578, %v514, %v642
    %v707 = vsel %vm579, %v515, %v643
    %v708 = vsel %vm580, %v516, %v644
    %v709 = vsel %vm581, %v517, %v645
    %v710 = vsel %vm582, %v518, %v646
    %v711 = vsel %vm583, %v519, %v647
    %v712 = vsel %vm584, %v520, %v648
    %v713 = vsel %vm585, %v521, %v649
    %v714 = vsel %vm586, %v522, %v650
    %v715 = vsel %vm587, %v523, %v651
    %v716 = vsel %vm588, %v524, %v652
    %v717 = vsel %vm589, %v525, %v653
    %v718 = vsel %vm590, %v526, %v654
    %v719 = vsel %vm591, %v527, %v655
    %v720 = vsel %vm592, %v528, %v656
    %v721 = vsel %vm593, %v529, %v657
    %v722 = vsel %vm594, %v530, %v658
    %v723 = vsel %vm595, %v531, %v659
    %v724 = vsel %vm596, %v532, %v660
    %v725 = vsel %vm597, %v533, %v661
    %v726 = vsel %vm598, %v534, %v662
    %v727 = vsel %vm599, %v535, %v663
    %v728 = vsel %vm600, %v536, %v664
    %v729 = vsel %vm601, %v537, %v665
    %v730 = vsel %vm602, %v538, %v666
    %v731 = vsel %vm603, %v539, %v667
    %v732 = vsel %vm604, %v540, %v668
    %v733 = vsel %vm605, %v541, %v669
    %v734 = vsel %vm606, %v542, %v670
    %v735 = vsel %vm607, %v543, %v671
    %v736 = vsel %vm608, %v544, %v672
    %v737 = vsel %vm609, %v545, %v673
    %v738 = vsel %vm610, %v546, %v674
    %v739 = vsel %vm611, %v547, %v675
    %v740 = vsel %vm612, %v548, %v676
    %v741 = vsel %vm613, %v549, %v677
    %v742 = vsel %vm614, %v550, %v678
    %v743 = vsel %vm615, %v551, %v679
    %v744 = vsel %vm616, %v552, %v680
    %v745 = vsel %vm617, %v553, %v681
    %v746 = vsel %vm618, %v554, %v682
    %v747 = vsel %vm619, %v555, %v683
    %v748 = vsel %vm620, %v556, %v684
    %v749 = vsel %vm621, %v557, %v685
    %v750 = vrot.slane %v686, 7
    %v751 = vrot.slane %v687, 7
    %v752 = vrot.slane %v688, 7
    %v753 = vrot.slane %v689, 7
    %v754 = vrot.slane %v690, 7
    %v755 = vrot.slane %v691, 7
    %v756 = vrot.slane %v692, 7
    %v757 = vrot.slane %v693, 7
    %v758 = vrot.slane %v694, 7
    %v759 = vrot.slane %v695, 7
    %v760 = vrot.slane %v696, 7
    %v761 = vrot.slane %v697, 7
    %v762 = vrot.slane %v698, 7
    %v763 = vrot.slane %v699, 7
    %v764 = vrot.slane %v700, 7
    %v765 = vrot.slane %v701, 7
    %v766 = vrot.slane %v702, 7
    %v767 = vrot.slane %v703, 7
    %v768 = vrot.slane %v704, 7
    %v769 = vrot.slane %v705, 7
    %v770 = vrot.slane %v706, 7
    %v771 = vrot.slane %v707, 7
    %v772 = vrot.slane %v708, 7
    %v773 = vrot.slane %v709, 7
    %v774 = vrot.slane %v710, 7
    %v775 = vrot.slane %v711, 7
    %v776 = vrot.slane %v712, 7
    %v777 = vrot.slane %v713, 7
    %v778 = vrot.slane %v714, 7
    %v779 = vrot.slane %v715, 7
    %v780 = vrot.slane %v716, 7
    %v781 = vrot.slane %v717, 7
    %v782 = vrot.slane %v718, 7
    %v783 = vrot.slane %v719, 7
    %v784 = vrot.slane %v720, 7
    %v785 = vrot.slane %v721, 7
    %v786 = vrot.slane %v722, 7
    %v787 = vrot.slane %v723, 7
    %v788 = vrot.slane %v724, 7
    %v789 = vrot.slane %v725, 7
    %v790 = vrot.slane %v726, 7
    %v791 = vrot.slane %v727, 7
    %v792 = vrot.slane %v728, 7
    %v793 = vrot.slane %v729, 7
    %v794 = vrot.slane %v730, 7
    %v795 = vrot.slane %v731, 7
    %v796 = vrot.slane %v732, 7
    %v797 = vrot.slane %v733, 7
    %v798 = vrot.slane %v734, 7
    %v799 = vrot.slane %v735, 7
    %v800 = vrot.slane %v736, 7
    %v801 = vrot.slane %v737, 7
    %v802 = vrot.slane %v738, 7
    %v803 = vrot.slane %v739, 7
    %v804 = vrot.slane %v740, 7
    %v805 = vrot.slane %v741, 7
    %v806 = vrot.slane %v742, 7
    %v807 = vrot.slane %v743, 7
    %v808 = vrot.slane %v744, 7
    %v809 = vrot.slane %v745, 7
    %v810 = vrot.slane %v746, 7
    %v811 = vrot.slane %v747, 7
    %v812 = vrot.slane %v748, 7
    %v813 = vrot.slane %v749, 7
    %v814 = vlaneseq
    %v815 = vshrl.u32 %v814, 7
    %vm816 = vcmp.lt.s32.totalorder %v815, 1
    %v817 = vsel %vm816, %v812, %v813
    %v818 = vsel %vm816, %v811, %v812
    %v819 = vsel %vm816, %v810, %v811
    %v820 = vsel %vm816, %v809, %v810
    %v821 = vsel %vm816, %v808, %v809
    %v822 = vsel %vm816, %v807, %v808
    %v823 = vsel %vm816, %v806, %v807
    %v824 = vsel %vm816, %v805, %v806
    %v825 = vsel %vm816, %v804, %v805
    %v826 = vsel %vm816, %v803, %v804
    %v827 = vsel %vm816, %v802, %v803
    %v828 = vsel %vm816, %v801, %v802
    %v829 = vsel %vm816, %v800, %v801
    %v830 = vsel %vm816, %v799, %v800
    %v831 = vsel %vm816, %v798, %v799
    %v832 = vsel %vm816, %v797, %v798
    %v833 = vsel %vm816, %v796, %v797
    %v834 = vsel %vm816, %v795, %v796
    %v835 = vsel %vm816, %v794, %v795
    %v836 = vsel %vm816, %v793, %v794
    %v837 = vsel %vm816, %v792, %v793
    %v838 = vsel %vm816, %v791, %v792
    %v839 = vsel %vm816, %v790, %v791
    %v840 = vsel %vm816, %v789, %v790
    %v841 = vsel %vm816, %v788, %v789
    %v842 = vsel %vm816, %v787, %v788
    %v843 = vsel %vm816, %v786, %v787
    %v844 = vsel %vm816, %v785, %v786
    %v845 = vsel %vm816, %v784, %v785
    %v846 = vsel %vm816, %v783, %v784
    %v847 = vsel %vm816, %v782, %v783
    %v848 = vsel %vm816, %v781, %v782
    %v849 = vsel %vm816, %v780, %v781
    %v850 = vsel %vm816, %v779, %v780
    %v851 = vsel %vm816, %v778, %v779
    %v852 = vsel %vm816, %v777, %v778
    %v853 = vsel %vm816, %v776, %v777
    %v854 = vsel %vm816, %v775, %v776
    %v855 = vsel %vm816, %v774, %v775
    %v856 = vsel %vm816, %v773, %v774
    %v857 = vsel %vm816, %v772, %v773
    %v858 = vsel %vm816, %v771, %v772
    %v859 = vsel %vm816, %v770, %v771
    %v860 = vsel %vm816, %v769, %v770
    %v861 = vsel %vm816, %v768, %v769
    %v862 = vsel %vm816, %v767, %v768
    %v863 = vsel %vm816, %v766, %v767
    %v864 = vsel %vm816, %v765, %v766
    %v865 = vsel %vm816, %v764, %v765
    %v866 = vsel %vm816, %v763, %v764
    %v867 = vsel %vm816, %v762, %v763
    %v868 = vsel %vm816, %v761, %v762
    %v869 = vsel %vm816, %v760, %v761
    %v870 = vsel %vm816, %v759, %v760
    %v871 = vsel %vm816, %v758, %v759
    %v872 = vsel %vm816, %v757, %v758
    %v873 = vsel %vm816, %v756, %v757
    %v874 = vsel %vm816, %v755, %v756
    %v875 = vsel %vm816, %v754, %v755
    %v876 = vsel %vm816, %v753, %v754
    %v877 = vsel %vm816, %v752, %v753
    %v878 = vsel %vm816, %v751, %v752
    %v879 = vsel %vm816, %v750, %v751
    %v880 = vsel %vm816, %v813, %v750
    %881 = vrot.lane.b32.xlu0 %v748, 4
    %v882 = vpop.permute.xlu0 %881
    %883 = vrot.lane.b32.xlu0 %v749, 4
    %v884 = vpop.permute.xlu0 %883
    %885 = vrot.lane.b32.xlu0 %v686, 4
    %v886 = vpop.permute.xlu0 %885
    %887 = vrot.lane.b32.xlu0 %v687, 4
    %v888 = vpop.permute.xlu0 %887
    %889 = vrot.lane.b32.xlu0 %v688, 4
    %v890 = vpop.permute.xlu0 %889
    %891 = vrot.lane.b32.xlu0 %v689, 4
    %v892 = vpop.permute.xlu0 %891
    %893 = vrot.lane.b32.xlu0 %v690, 4
    %v894 = vpop.permute.xlu0 %893
    %895 = vrot.lane.b32.xlu0 %v691, 4
    %v896 = vpop.permute.xlu0 %895
    %897 = vrot.lane.b32.xlu0 %v692, 4
    %v898 = vpop.permute.xlu0 %897
    %899 = vrot.lane.b32.xlu0 %v693, 4
    %v900 = vpop.permute.xlu0 %899
    %901 = vrot.lane.b32.xlu0 %v694, 4
    %v902 = vpop.permute.xlu0 %901
    %903 = vrot.lane.b32.xlu0 %v695, 4
    %v904 = vpop.permute.xlu0 %903
    %905 = vrot.lane.b32.xlu0 %v696, 4
    %v906 = vpop.permute.xlu0 %905
    %907 = vrot.lane.b32.xlu0 %v697, 4
    %v908 = vpop.permute.xlu0 %907
    %909 = vrot.lane.b32.xlu0 %v698, 4
    %v910 = vpop.permute.xlu0 %909
    %911 = vrot.lane.b32.xlu0 %v699, 4
    %v912 = vpop.permute.xlu0 %911
    %913 = vrot.lane.b32.xlu0 %v700, 4
    %v914 = vpop.permute.xlu0 %913
    %915 = vrot.lane.b32.xlu0 %v701, 4
    %v916 = vpop.permute.xlu0 %915
    %917 = vrot.lane.b32.xlu0 %v702, 4
    %v918 = vpop.permute.xlu0 %917
    %919 = vrot.lane.b32.xlu0 %v703, 4
    %v920 = vpop.permute.xlu0 %919
    %921 = vrot.lane.b32.xlu0 %v704, 4
    %v922 = vpop.permute.xlu0 %921
    %923 = vrot.lane.b32.xlu0 %v705, 4
    %v924 = vpop.permute.xlu0 %923
    %925 = vrot.lane.b32.xlu0 %v706, 4
    %v926 = vpop.permute.xlu0 %925
    %927 = vrot.lane.b32.xlu0 %v707, 4
    %v928 = vpop.permute.xlu0 %927
    %929 = vrot.lane.b32.xlu0 %v708, 4
    %v930 = vpop.permute.xlu0 %929
    %931 = vrot.lane.b32.xlu0 %v709, 4
    %v932 = vpop.permute.xlu0 %931
    %933 = vrot.lane.b32.xlu0 %v710, 4
    %v934 = vpop.permute.xlu0 %933
    %935 = vrot.lane.b32.xlu0 %v711, 4
    %v936 = vpop.permute.xlu0 %935
    %937 = vrot.lane.b32.xlu0 %v712, 4
    %v938 = vpop.permute.xlu0 %937
    %939 = vrot.lane.b32.xlu0 %v713, 4
    %v940 = vpop.permute.xlu0 %939
    %941 = vrot.lane.b32.xlu0 %v714, 4
    %v942 = vpop.permute.xlu0 %941
    %943 = vrot.lane.b32.xlu0 %v715, 4
    %v944 = vpop.permute.xlu0 %943
    %945 = vrot.lane.b32.xlu0 %v716, 4
    %v946 = vpop.permute.xlu0 %945
    %947 = vrot.lane.b32.xlu0 %v717, 4
    %v948 = vpop.permute.xlu0 %947
    %949 = vrot.lane.b32.xlu0 %v718, 4
    %v950 = vpop.permute.xlu0 %949
    %951 = vrot.lane.b32.xlu0 %v719, 4
    %v952 = vpop.permute.xlu0 %951
    %953 = vrot.lane.b32.xlu0 %v720, 4
    %v954 = vpop.permute.xlu0 %953
    %955 = vrot.lane.b32.xlu0 %v721, 4
    %v956 = vpop.permute.xlu0 %955
    %957 = vrot.lane.b32.xlu0 %v722, 4
    %v958 = vpop.permute.xlu0 %957
    %959 = vrot.lane.b32.xlu0 %v723, 4
    %v960 = vpop.permute.xlu0 %959
    %961 = vrot.lane.b32.xlu0 %v724, 4
    %v962 = vpop.permute.xlu0 %961
    %963 = vrot.lane.b32.xlu0 %v725, 4
    %v964 = vpop.permute.xlu0 %963
    %965 = vrot.lane.b32.xlu0 %v726, 4
    %v966 = vpop.permute.xlu0 %965
    %967 = vrot.lane.b32.xlu0 %v727, 4
    %v968 = vpop.permute.xlu0 %967
    %969 = vrot.lane.b32.xlu0 %v728, 4
    %v970 = vpop.permute.xlu0 %969
    %971 = vrot.lane.b32.xlu0 %v729, 4
    %v972 = vpop.permute.xlu0 %971
    %973 = vrot.lane.b32.xlu0 %v730, 4
    %v974 = vpop.permute.xlu0 %973
    %975 = vrot.lane.b32.xlu0 %v731, 4
    %v976 = vpop.permute.xlu0 %975
    %977 = vrot.lane.b32.xlu0 %v732, 4
    %v978 = vpop.permute.xlu0 %977
    %979 = vrot.lane.b32.xlu0 %v733, 4
    %v980 = vpop.permute.xlu0 %979
    %981 = vrot.lane.b32.xlu0 %v734, 4
    %v982 = vpop.permute.xlu0 %981
    %983 = vrot.lane.b32.xlu0 %v735, 4
    %v984 = vpop.permute.xlu0 %983
    %985 = vrot.lane.b32.xlu0 %v736, 4
    %v986 = vpop.permute.xlu0 %985
    %987 = vrot.lane.b32.xlu0 %v737, 4
    %v988 = vpop.permute.xlu0 %987
    %989 = vrot.lane.b32.xlu0 %v738, 4
    %v990 = vpop.permute.xlu0 %989
    %991 = vrot.lane.b32.xlu0 %v739, 4
    %v992 = vpop.permute.xlu0 %991
    %993 = vrot.lane.b32.xlu0 %v740, 4
    %v994 = vpop.permute.xlu0 %993
    %995 = vrot.lane.b32.xlu0 %v741, 4
    %v996 = vpop.permute.xlu0 %995
    %997 = vrot.lane.b32.xlu0 %v742, 4
    %v998 = vpop.permute.xlu0 %997
    %999 = vrot.lane.b32.xlu0 %v743, 4
    %v1000 = vpop.permute.xlu0 %999
    %1001 = vrot.lane.b32.xlu0 %v744, 4
    %v1002 = vpop.permute.xlu0 %1001
    %1003 = vrot.lane.b32.xlu0 %v745, 4
    %v1004 = vpop.permute.xlu0 %1003
    %1005 = vrot.lane.b32.xlu0 %v746, 4
    %v1006 = vpop.permute.xlu0 %1005
    %1007 = vrot.lane.b32.xlu0 %v747, 4
    %v1008 = vpop.permute.xlu0 %1007
    %v1009 = vadd.f32 %v818, %v882
    %v1010 = vadd.f32 %v817, %v884
    %v1011 = vadd.f32 %v880, %v886
    %v1012 = vadd.f32 %v879, %v888
    %v1013 = vadd.f32 %v878, %v890
    %v1014 = vadd.f32 %v877, %v892
    %v1015 = vadd.f32 %v876, %v894
    %v1016 = vadd.f32 %v875, %v896
    %v1017 = vadd.f32 %v874, %v898
    %v1018 = vadd.f32 %v873, %v900
    %v1019 = vadd.f32 %v872, %v902
    %v1020 = vadd.f32 %v871, %v904
    %v1021 = vadd.f32 %v870, %v906
    %v1022 = vadd.f32 %v869, %v908
    %v1023 = vadd.f32 %v868, %v910
    %v1024 = vadd.f32 %v867, %v912
    %v1025 = vadd.f32 %v866, %v914
    %v1026 = vadd.f32 %v865, %v916
    %v1027 = vadd.f32 %v864, %v918
    %v1028 = vadd.f32 %v863, %v920
    %v1029 = vadd.f32 %v862, %v922
    %v1030 = vadd.f32 %v861, %v924
    %v1031 = vadd.f32 %v860, %v926
    %v1032 = vadd.f32 %v859, %v928
    %v1033 = vadd.f32 %v858, %v930
    %v1034 = vadd.f32 %v857, %v932
    %v1035 = vadd.f32 %v856, %v934
    %v1036 = vadd.f32 %v855, %v936
    %v1037 = vadd.f32 %v854, %v938
    %v1038 = vadd.f32 %v853, %v940
    %v1039 = vadd.f32 %v852, %v942
    %v1040 = vadd.f32 %v851, %v944
    %v1041 = vadd.f32 %v850, %v946
    %v1042 = vadd.f32 %v849, %v948
    %v1043 = vadd.f32 %v848, %v950
    %v1044 = vadd.f32 %v847, %v952
    %v1045 = vadd.f32 %v846, %v954
    %v1046 = vadd.f32 %v845, %v956
    %v1047 = vadd.f32 %v844, %v958
    %v1048 = vadd.f32 %v843, %v960
    %v1049 = vadd.f32 %v842, %v962
    %v1050 = vadd.f32 %v841, %v964
    %v1051 = vadd.f32 %v840, %v966
    %v1052 = vadd.f32 %v839, %v968
    %v1053 = vadd.f32 %v838, %v970
    %v1054 = vadd.f32 %v837, %v972
    %v1055 = vadd.f32 %v836, %v974
    %v1056 = vadd.f32 %v835, %v976
    %v1057 = vadd.f32 %v834, %v978
    %v1058 = vadd.f32 %v833, %v980
    %v1059 = vadd.f32 %v832, %v982
    %v1060 = vadd.f32 %v831, %v984
    %v1061 = vadd.f32 %v830, %v986
    %v1062 = vadd.f32 %v829, %v988
    %v1063 = vadd.f32 %v828, %v990
    %v1064 = vadd.f32 %v827, %v992
    %v1065 = vadd.f32 %v826, %v994
    %v1066 = vadd.f32 %v825, %v996
    %v1067 = vadd.f32 %v824, %v998
    %v1068 = vadd.f32 %v823, %v1000
    %v1069 = vadd.f32 %v822, %v1002
    %v1070 = vadd.f32 %v821, %v1004
    %v1071 = vadd.f32 %v820, %v1006
    %v1072 = vadd.f32 %v819, %v1008
    %v1073 = vrot.slane %v686, 1
    %v1074 = vrot.slane %v687, 1
    %v1075 = vrot.slane %v688, 1
    %v1076 = vrot.slane %v689, 1
    %v1077 = vrot.slane %v690, 1
    %v1078 = vrot.slane %v691, 1
    %v1079 = vrot.slane %v692, 1
    %v1080 = vrot.slane %v693, 1
    %v1081 = vrot.slane %v694, 1
    %v1082 = vrot.slane %v695, 1
    %v1083 = vrot.slane %v696, 1
    %v1084 = vrot.slane %v697, 1
    %v1085 = vrot.slane %v698, 1
    %v1086 = vrot.slane %v699, 1
    %v1087 = vrot.slane %v700, 1
    %v1088 = vrot.slane %v701, 1
    %v1089 = vrot.slane %v702, 1
    %v1090 = vrot.slane %v703, 1
    %v1091 = vrot.slane %v704, 1
    %v1092 = vrot.slane %v705, 1
    %v1093 = vrot.slane %v706, 1
    %v1094 = vrot.slane %v707, 1
    %v1095 = vrot.slane %v708, 1
    %v1096 = vrot.slane %v709, 1
    %v1097 = vrot.slane %v710, 1
    %v1098 = vrot.slane %v711, 1
    %v1099 = vrot.slane %v712, 1
    %v1100 = vrot.slane %v713, 1
    %v1101 = vrot.slane %v714, 1
    %v1102 = vrot.slane %v715, 1
    %v1103 = vrot.slane %v716, 1
    %v1104 = vrot.slane %v717, 1
    %v1105 = vrot.slane %v718, 1
    %v1106 = vrot.slane %v719, 1
    %v1107 = vrot.slane %v720, 1
    %v1108 = vrot.slane %v721, 1
    %v1109 = vrot.slane %v722, 1
    %v1110 = vrot.slane %v723, 1
    %v1111 = vrot.slane %v724, 1
    %v1112 = vrot.slane %v725, 1
    %v1113 = vrot.slane %v726, 1
    %v1114 = vrot.slane %v727, 1
    %v1115 = vrot.slane %v728, 1
    %v1116 = vrot.slane %v729, 1
    %v1117 = vrot.slane %v730, 1
    %v1118 = vrot.slane %v731, 1
    %v1119 = vrot.slane %v732, 1
    %v1120 = vrot.slane %v733, 1
    %v1121 = vrot.slane %v734, 1
    %v1122 = vrot.slane %v735, 1
    %v1123 = vrot.slane %v736, 1
    %v1124 = vrot.slane %v737, 1
    %v1125 = vrot.slane %v738, 1
    %v1126 = vrot.slane %v739, 1
    %v1127 = vrot.slane %v740, 1
    %v1128 = vrot.slane %v741, 1
    %v1129 = vrot.slane %v742, 1
    %v1130 = vrot.slane %v743, 1
    %v1131 = vrot.slane %v744, 1
    %v1132 = vrot.slane %v745, 1
    %v1133 = vrot.slane %v746, 1
    %v1134 = vrot.slane %v747, 1
    %v1135 = vrot.slane %v748, 1
    %v1136 = vrot.slane %v749, 1
    %vm1137 = vcmp.lt.s32.totalorder %v815, 7
    %v1138 = vsel %vm1137, %v1135, %v1136
    %v1139 = vsel %vm1137, %v1134, %v1135
    %v1140 = vsel %vm1137, %v1133, %v1134
    %v1141 = vsel %vm1137, %v1132, %v1133
    %v1142 = vsel %vm1137, %v1131, %v1132
    %v1143 = vsel %vm1137, %v1130, %v1131
    %v1144 = vsel %vm1137, %v1129, %v1130
    %v1145 = vsel %vm1137, %v1128, %v1129
    %v1146 = vsel %vm1137, %v1127, %v1128
    %v1147 = vsel %vm1137, %v1126, %v1127
    %v1148 = vsel %vm1137, %v1125, %v1126
    %v1149 = vsel %vm1137, %v1124, %v1125
    %v1150 = vsel %vm1137, %v1123, %v1124
    %v1151 = vsel %vm1137, %v1122, %v1123
    %v1152 = vsel %vm1137, %v1121, %v1122
    %v1153 = vsel %vm1137, %v1120, %v1121
    %v1154 = vsel %vm1137, %v1119, %v1120
    %v1155 = vsel %vm1137, %v1118, %v1119
    %v1156 = vsel %vm1137, %v1117, %v1118
    %v1157 = vsel %vm1137, %v1116, %v1117
    %v1158 = vsel %vm1137, %v1115, %v1116
    %v1159 = vsel %vm1137, %v1114, %v1115
    %v1160 = vsel %vm1137, %v1113, %v1114
    %v1161 = vsel %vm1137, %v1112, %v1113
    %v1162 = vsel %vm1137, %v1111, %v1112
    %v1163 = vsel %vm1137, %v1110, %v1111
    %v1164 = vsel %vm1137, %v1109, %v1110
    %v1165 = vsel %vm1137, %v1108, %v1109
    %v1166 = vsel %vm1137, %v1107, %v1108
    %v1167 = vsel %vm1137, %v1106, %v1107
    %v1168 = vsel %vm1137, %v1105, %v1106
    %v1169 = vsel %vm1137, %v1104, %v1105
    %v1170 = vsel %vm1137, %v1103, %v1104
    %v1171 = vsel %vm1137, %v1102, %v1103
    %v1172 = vsel %vm1137, %v1101, %v1102
    %v1173 = vsel %vm1137, %v1100, %v1101
    %v1174 = vsel %vm1137, %v1099, %v1100
    %v1175 = vsel %vm1137, %v1098, %v1099
    %v1176 = vsel %vm1137, %v1097, %v1098
    %v1177 = vsel %vm1137, %v1096, %v1097
    %v1178 = vsel %vm1137, %v1095, %v1096
    %v1179 = vsel %vm1137, %v1094, %v1095
    %v1180 = vsel %vm1137, %v1093, %v1094
    %v1181 = vsel %vm1137, %v1092, %v1093
    %v1182 = vsel %vm1137, %v1091, %v1092
    %v1183 = vsel %vm1137, %v1090, %v1091
    %v1184 = vsel %vm1137, %v1089, %v1090
    %v1185 = vsel %vm1137, %v1088, %v1089
    %v1186 = vsel %vm1137, %v1087, %v1088
    %v1187 = vsel %vm1137, %v1086, %v1087
    %v1188 = vsel %vm1137, %v1085, %v1086
    %v1189 = vsel %vm1137, %v1084, %v1085
    %v1190 = vsel %vm1137, %v1083, %v1084
    %v1191 = vsel %vm1137, %v1082, %v1083
    %v1192 = vsel %vm1137, %v1081, %v1082
    %v1193 = vsel %vm1137, %v1080, %v1081
    %v1194 = vsel %vm1137, %v1079, %v1080
    %v1195 = vsel %vm1137, %v1078, %v1079
    %v1196 = vsel %vm1137, %v1077, %v1078
    %v1197 = vsel %vm1137, %v1076, %v1077
    %v1198 = vsel %vm1137, %v1075, %v1076
    %v1199 = vsel %vm1137, %v1074, %v1075
    %v1200 = vsel %vm1137, %v1073, %v1074
    %v1201 = vsel %vm1137, %v1136, %v1073
    %1202 = vrot.lane.b32.xlu0 %v1138, 8
    %v1203 = vpop.permute.xlu0 %1202
    %1204 = vrot.lane.b32.xlu0 %v1201, 8
    %v1205 = vpop.permute.xlu0 %1204
    %1206 = vrot.lane.b32.xlu0 %v1200, 8
    %v1207 = vpop.permute.xlu0 %1206
    %1208 = vrot.lane.b32.xlu0 %v1199, 8
    %v1209 = vpop.permute.xlu0 %1208
    %1210 = vrot.lane.b32.xlu0 %v1198, 8
    %v1211 = vpop.permute.xlu0 %1210
    %1212 = vrot.lane.b32.xlu0 %v1197, 8
    %v1213 = vpop.permute.xlu0 %1212
    %1214 = vrot.lane.b32.xlu0 %v1196, 8
    %v1215 = vpop.permute.xlu0 %1214
    %1216 = vrot.lane.b32.xlu0 %v1195, 8
    %v1217 = vpop.permute.xlu0 %1216
    %1218 = vrot.lane.b32.xlu0 %v1194, 8
    %v1219 = vpop.permute.xlu0 %1218
    %1220 = vrot.lane.b32.xlu0 %v1193, 8
    %v1221 = vpop.permute.xlu0 %1220
    %1222 = vrot.lane.b32.xlu0 %v1192, 8
    %v1223 = vpop.permute.xlu0 %1222
    %1224 = vrot.lane.b32.xlu0 %v1191, 8
    %v1225 = vpop.permute.xlu0 %1224
    %1226 = vrot.lane.b32.xlu0 %v1190, 8
    %v1227 = vpop.permute.xlu0 %1226
    %1228 = vrot.lane.b32.xlu0 %v1189, 8
    %v1229 = vpop.permute.xlu0 %1228
    %1230 = vrot.lane.b32.xlu0 %v1188, 8
    %v1231 = vpop.permute.xlu0 %1230
    %1232 = vrot.lane.b32.xlu0 %v1187, 8
    %v1233 = vpop.permute.xlu0 %1232
    %1234 = vrot.lane.b32.xlu0 %v1186, 8
    %v1235 = vpop.permute.xlu0 %1234
    %1236 = vrot.lane.b32.xlu0 %v1185, 8
    %v1237 = vpop.permute.xlu0 %1236
    %1238 = vrot.lane.b32.xlu0 %v1184, 8
    %v1239 = vpop.permute.xlu0 %1238
    %1240 = vrot.lane.b32.xlu0 %v1183, 8
    %v1241 = vpop.permute.xlu0 %1240
    %1242 = vrot.lane.b32.xlu0 %v1182, 8
    %v1243 = vpop.permute.xlu0 %1242
    %1244 = vrot.lane.b32.xlu0 %v1181, 8
    %v1245 = vpop.permute.xlu0 %1244
    %1246 = vrot.lane.b32.xlu0 %v1180, 8
    %v1247 = vpop.permute.xlu0 %1246
    %1248 = vrot.lane.b32.xlu0 %v1179, 8
    %v1249 = vpop.permute.xlu0 %1248
    %1250 = vrot.lane.b32.xlu0 %v1178, 8
    %v1251 = vpop.permute.xlu0 %1250
    %1252 = vrot.lane.b32.xlu0 %v1177, 8
    %v1253 = vpop.permute.xlu0 %1252
    %1254 = vrot.lane.b32.xlu0 %v1176, 8
    %v1255 = vpop.permute.xlu0 %1254
    %1256 = vrot.lane.b32.xlu0 %v1175, 8
    %v1257 = vpop.permute.xlu0 %1256
    %1258 = vrot.lane.b32.xlu0 %v1174, 8
    %v1259 = vpop.permute.xlu0 %1258
    %1260 = vrot.lane.b32.xlu0 %v1173, 8
    %v1261 = vpop.permute.xlu0 %1260
    %1262 = vrot.lane.b32.xlu0 %v1172, 8
    %v1263 = vpop.permute.xlu0 %1262
    %1264 = vrot.lane.b32.xlu0 %v1171, 8
    %v1265 = vpop.permute.xlu0 %1264
    %1266 = vrot.lane.b32.xlu0 %v1170, 8
    %v1267 = vpop.permute.xlu0 %1266
    %1268 = vrot.lane.b32.xlu0 %v1169, 8
    %v1269 = vpop.permute.xlu0 %1268
    %1270 = vrot.lane.b32.xlu0 %v1168, 8
    %v1271 = vpop.permute.xlu0 %1270
    %1272 = vrot.lane.b32.xlu0 %v1167, 8
    %v1273 = vpop.permute.xlu0 %1272
    %1274 = vrot.lane.b32.xlu0 %v1166, 8
    %v1275 = vpop.permute.xlu0 %1274
    %1276 = vrot.lane.b32.xlu0 %v1165, 8
    %v1277 = vpop.permute.xlu0 %1276
    %1278 = vrot.lane.b32.xlu0 %v1164, 8
    %v1279 = vpop.permute.xlu0 %1278
    %1280 = vrot.lane.b32.xlu0 %v1163, 8
    %v1281 = vpop.permute.xlu0 %1280
    %1282 = vrot.lane.b32.xlu0 %v1162, 8
    %v1283 = vpop.permute.xlu0 %1282
    %1284 = vrot.lane.b32.xlu0 %v1161, 8
    %v1285 = vpop.permute.xlu0 %1284
    %1286 = vrot.lane.b32.xlu0 %v1160, 8
    %v1287 = vpop.permute.xlu0 %1286
    %1288 = vrot.lane.b32.xlu0 %v1159, 8
    %v1289 = vpop.permute.xlu0 %1288
    %1290 = vrot.lane.b32.xlu0 %v1158, 8
    %v1291 = vpop.permute.xlu0 %1290
    %1292 = vrot.lane.b32.xlu0 %v1157, 8
    %v1293 = vpop.permute.xlu0 %1292
    %1294 = vrot.lane.b32.xlu0 %v1156, 8
    %v1295 = vpop.permute.xlu0 %1294
    %1296 = vrot.lane.b32.xlu0 %v1155, 8
    %v1297 = vpop.permute.xlu0 %1296
    %1298 = vrot.lane.b32.xlu0 %v1154, 8
    %v1299 = vpop.permute.xlu0 %1298
    %1300 = vrot.lane.b32.xlu0 %v1153, 8
    %v1301 = vpop.permute.xlu0 %1300
    %1302 = vrot.lane.b32.xlu0 %v1152, 8
    %v1303 = vpop.permute.xlu0 %1302
    %1304 = vrot.lane.b32.xlu0 %v1151, 8
    %v1305 = vpop.permute.xlu0 %1304
    %1306 = vrot.lane.b32.xlu0 %v1150, 8
    %v1307 = vpop.permute.xlu0 %1306
    %1308 = vrot.lane.b32.xlu0 %v1149, 8
    %v1309 = vpop.permute.xlu0 %1308
    %1310 = vrot.lane.b32.xlu0 %v1148, 8
    %v1311 = vpop.permute.xlu0 %1310
    %1312 = vrot.lane.b32.xlu0 %v1147, 8
    %v1313 = vpop.permute.xlu0 %1312
    %1314 = vrot.lane.b32.xlu0 %v1146, 8
    %v1315 = vpop.permute.xlu0 %1314
    %1316 = vrot.lane.b32.xlu0 %v1145, 8
    %v1317 = vpop.permute.xlu0 %1316
    %1318 = vrot.lane.b32.xlu0 %v1144, 8
    %v1319 = vpop.permute.xlu0 %1318
    %1320 = vrot.lane.b32.xlu0 %v1143, 8
    %v1321 = vpop.permute.xlu0 %1320
    %1322 = vrot.lane.b32.xlu0 %v1142, 8
    %v1323 = vpop.permute.xlu0 %1322
    %1324 = vrot.lane.b32.xlu0 %v1141, 8
    %v1325 = vpop.permute.xlu0 %1324
    %1326 = vrot.lane.b32.xlu0 %v1140, 8
    %v1327 = vpop.permute.xlu0 %1326
    %1328 = vrot.lane.b32.xlu0 %v1139, 8
    %v1329 = vpop.permute.xlu0 %1328
    %v1330 = vadd.f32 %v1009, %v1203
    %v1331 = vadd.f32 %v1010, %v1205
    %v1332 = vadd.f32 %v1011, %v1207
    %v1333 = vadd.f32 %v1012, %v1209
    %v1334 = vadd.f32 %v1013, %v1211
    %v1335 = vadd.f32 %v1014, %v1213
    %v1336 = vadd.f32 %v1015, %v1215
    %v1337 = vadd.f32 %v1016, %v1217
    %v1338 = vadd.f32 %v1017, %v1219
    %v1339 = vadd.f32 %v1018, %v1221
    %v1340 = vadd.f32 %v1019, %v1223
    %v1341 = vadd.f32 %v1020, %v1225
    %v1342 = vadd.f32 %v1021, %v1227
    %v1343 = vadd.f32 %v1022, %v1229
    %v1344 = vadd.f32 %v1023, %v1231
    %v1345 = vadd.f32 %v1024, %v1233
    %v1346 = vadd.f32 %v1025, %v1235
    %v1347 = vadd.f32 %v1026, %v1237
    %v1348 = vadd.f32 %v1027, %v1239
    %v1349 = vadd.f32 %v1028, %v1241
    %v1350 = vadd.f32 %v1029, %v1243
    %v1351 = vadd.f32 %v1030, %v1245
    %v1352 = vadd.f32 %v1031, %v1247
    %v1353 = vadd.f32 %v1032, %v1249
    %v1354 = vadd.f32 %v1033, %v1251
    %v1355 = vadd.f32 %v1034, %v1253
    %v1356 = vadd.f32 %v1035, %v1255
    %v1357 = vadd.f32 %v1036, %v1257
    %v1358 = vadd.f32 %v1037, %v1259
    %v1359 = vadd.f32 %v1038, %v1261
    %v1360 = vadd.f32 %v1039, %v1263
    %v1361 = vadd.f32 %v1040, %v1265
    %v1362 = vadd.f32 %v1041, %v1267
    %v1363 = vadd.f32 %v1042, %v1269
    %v1364 = vadd.f32 %v1043, %v1271
    %v1365 = vadd.f32 %v1044, %v1273
    %v1366 = vadd.f32 %v1045, %v1275
    %v1367 = vadd.f32 %v1046, %v1277
    %v1368 = vadd.f32 %v1047, %v1279
    %v1369 = vadd.f32 %v1048, %v1281
    %v1370 = vadd.f32 %v1049, %v1283
    %v1371 = vadd.f32 %v1050, %v1285
    %v1372 = vadd.f32 %v1051, %v1287
    %v1373 = vadd.f32 %v1052, %v1289
    %v1374 = vadd.f32 %v1053, %v1291
    %v1375 = vadd.f32 %v1054, %v1293
    %v1376 = vadd.f32 %v1055, %v1295
    %v1377 = vadd.f32 %v1056, %v1297
    %v1378 = vadd.f32 %v1057, %v1299
    %v1379 = vadd.f32 %v1058, %v1301
    %v1380 = vadd.f32 %v1059, %v1303
    %v1381 = vadd.f32 %v1060, %v1305
    %v1382 = vadd.f32 %v1061, %v1307
    %v1383 = vadd.f32 %v1062, %v1309
    %v1384 = vadd.f32 %v1063, %v1311
    %v1385 = vadd.f32 %v1064, %v1313
    %v1386 = vadd.f32 %v1065, %v1315
    %v1387 = vadd.f32 %v1066, %v1317
    %v1388 = vadd.f32 %v1067, %v1319
    %v1389 = vadd.f32 %v1068, %v1321
    %v1390 = vadd.f32 %v1069, %v1323
    %v1391 = vadd.f32 %v1070, %v1325
    %v1392 = vadd.f32 %v1071, %v1327
    %v1393 = vadd.f32 %v1072, %v1329
    %1394 = vrot.lane.b32.xlu0 %v880, 12
    %v1395 = vpop.permute.xlu0 %1394
    %1396 = vrot.lane.b32.xlu0 %v879, 12
    %v1397 = vpop.permute.xlu0 %1396
    %1398 = vrot.lane.b32.xlu0 %v878, 12
    %v1399 = vpop.permute.xlu0 %1398
    %1400 = vrot.lane.b32.xlu0 %v877, 12
    %v1401 = vpop.permute.xlu0 %1400
    %1402 = vrot.lane.b32.xlu0 %v876, 12
    %v1403 = vpop.permute.xlu0 %1402
    %1404 = vrot.lane.b32.xlu0 %v875, 12
    %v1405 = vpop.permute.xlu0 %1404
    %1406 = vrot.lane.b32.xlu0 %v874, 12
    %v1407 = vpop.permute.xlu0 %1406
    %1408 = vrot.lane.b32.xlu0 %v873, 12
    %v1409 = vpop.permute.xlu0 %1408
    %1410 = vrot.lane.b32.xlu0 %v872, 12
    %v1411 = vpop.permute.xlu0 %1410
    %1412 = vrot.lane.b32.xlu0 %v871, 12
    %v1413 = vpop.permute.xlu0 %1412
    %1414 = vrot.lane.b32.xlu0 %v870, 12
    %v1415 = vpop.permute.xlu0 %1414
    %1416 = vrot.lane.b32.xlu0 %v869, 12
    %v1417 = vpop.permute.xlu0 %1416
    %1418 = vrot.lane.b32.xlu0 %v868, 12
    %v1419 = vpop.permute.xlu0 %1418
    %1420 = vrot.lane.b32.xlu0 %v867, 12
    %v1421 = vpop.permute.xlu0 %1420
    %1422 = vrot.lane.b32.xlu0 %v866, 12
    %v1423 = vpop.permute.xlu0 %1422
    %1424 = vrot.lane.b32.xlu0 %v865, 12
    %v1425 = vpop.permute.xlu0 %1424
    %1426 = vrot.lane.b32.xlu0 %v864, 12
    %v1427 = vpop.permute.xlu0 %1426
    %1428 = vrot.lane.b32.xlu0 %v863, 12
    %v1429 = vpop.permute.xlu0 %1428
    %1430 = vrot.lane.b32.xlu0 %v862, 12
    %v1431 = vpop.permute.xlu0 %1430
    %1432 = vrot.lane.b32.xlu0 %v861, 12
    %v1433 = vpop.permute.xlu0 %1432
    %1434 = vrot.lane.b32.xlu0 %v860, 12
    %v1435 = vpop.permute.xlu0 %1434
    %1436 = vrot.lane.b32.xlu0 %v859, 12
    %v1437 = vpop.permute.xlu0 %1436
    %1438 = vrot.lane.b32.xlu0 %v858, 12
    %v1439 = vpop.permute.xlu0 %1438
    %1440 = vrot.lane.b32.xlu0 %v857, 12
    %v1441 = vpop.permute.xlu0 %1440
    %1442 = vrot.lane.b32.xlu0 %v856, 12
    %v1443 = vpop.permute.xlu0 %1442
    %1444 = vrot.lane.b32.xlu0 %v855, 12
    %v1445 = vpop.permute.xlu0 %1444
    %1446 = vrot.lane.b32.xlu0 %v854, 12
    %v1447 = vpop.permute.xlu0 %1446
    %1448 = vrot.lane.b32.xlu0 %v853, 12
    %v1449 = vpop.permute.xlu0 %1448
    %1450 = vrot.lane.b32.xlu0 %v852, 12
    %v1451 = vpop.permute.xlu0 %1450
    %1452 = vrot.lane.b32.xlu0 %v851, 12
    %v1453 = vpop.permute.xlu0 %1452
    %1454 = vrot.lane.b32.xlu0 %v850, 12
    %v1455 = vpop.permute.xlu0 %1454
    %1456 = vrot.lane.b32.xlu0 %v849, 12
    %v1457 = vpop.permute.xlu0 %1456
    %1458 = vrot.lane.b32.xlu0 %v848, 12
    %v1459 = vpop.permute.xlu0 %1458
    %1460 = vrot.lane.b32.xlu0 %v847, 12
    %v1461 = vpop.permute.xlu0 %1460
    %1462 = vrot.lane.b32.xlu0 %v846, 12
    %v1463 = vpop.permute.xlu0 %1462
    %1464 = vrot.lane.b32.xlu0 %v845, 12
    %v1465 = vpop.permute.xlu0 %1464
    %1466 = vrot.lane.b32.xlu0 %v844, 12
    %v1467 = vpop.permute.xlu0 %1466
    %1468 = vrot.lane.b32.xlu0 %v843, 12
    %v1469 = vpop.permute.xlu0 %1468
    %1470 = vrot.lane.b32.xlu0 %v842, 12
    %v1471 = vpop.permute.xlu0 %1470
    %1472 = vrot.lane.b32.xlu0 %v841, 12
    %v1473 = vpop.permute.xlu0 %1472
    %1474 = vrot.lane.b32.xlu0 %v840, 12
    %v1475 = vpop.permute.xlu0 %1474
    %1476 = vrot.lane.b32.xlu0 %v839, 12
    %v1477 = vpop.permute.xlu0 %1476
    %1478 = vrot.lane.b32.xlu0 %v838, 12
    %v1479 = vpop.permute.xlu0 %1478
    %1480 = vrot.lane.b32.xlu0 %v837, 12
    %v1481 = vpop.permute.xlu0 %1480
    %1482 = vrot.lane.b32.xlu0 %v836, 12
    %v1483 = vpop.permute.xlu0 %1482
    %1484 = vrot.lane.b32.xlu0 %v835, 12
    %v1485 = vpop.permute.xlu0 %1484
    %1486 = vrot.lane.b32.xlu0 %v834, 12
    %v1487 = vpop.permute.xlu0 %1486
    %1488 = vrot.lane.b32.xlu0 %v833, 12
    %v1489 = vpop.permute.xlu0 %1488
    %1490 = vrot.lane.b32.xlu0 %v832, 12
    %v1491 = vpop.permute.xlu0 %1490
    %1492 = vrot.lane.b32.xlu0 %v831, 12
    %v1493 = vpop.permute.xlu0 %1492
    %1494 = vrot.lane.b32.xlu0 %v830, 12
    %v1495 = vpop.permute.xlu0 %1494
    %1496 = vrot.lane.b32.xlu0 %v829, 12
    %v1497 = vpop.permute.xlu0 %1496
    %1498 = vrot.lane.b32.xlu0 %v828, 12
    %v1499 = vpop.permute.xlu0 %1498
    %1500 = vrot.lane.b32.xlu0 %v827, 12
    %v1501 = vpop.permute.xlu0 %1500
    %1502 = vrot.lane.b32.xlu0 %v826, 12
    %v1503 = vpop.permute.xlu0 %1502
    %1504 = vrot.lane.b32.xlu0 %v825, 12
    %v1505 = vpop.permute.xlu0 %1504
    %1506 = vrot.lane.b32.xlu0 %v824, 12
    %v1507 = vpop.permute.xlu0 %1506
    %1508 = vrot.lane.b32.xlu0 %v823, 12
    %v1509 = vpop.permute.xlu0 %1508
    %1510 = vrot.lane.b32.xlu0 %v822, 12
    %v1511 = vpop.permute.xlu0 %1510
    %1512 = vrot.lane.b32.xlu0 %v821, 12
    %v1513 = vpop.permute.xlu0 %1512
    %1514 = vrot.lane.b32.xlu0 %v820, 12
    %v1515 = vpop.permute.xlu0 %1514
    %1516 = vrot.lane.b32.xlu0 %v819, 12
    %v1517 = vpop.permute.xlu0 %1516
    %1518 = vrot.lane.b32.xlu0 %v818, 12
    %v1519 = vpop.permute.xlu0 %1518
    %1520 = vrot.lane.b32.xlu0 %v817, 12
    %v1521 = vpop.permute.xlu0 %1520
    %v1522 = vadd.f32 %v1330, %v1395
    %v1523 = vadd.f32 %v1331, %v1397
    %v1524 = vadd.f32 %v1332, %v1399
    %v1525 = vadd.f32 %v1333, %v1401
    %v1526 = vadd.f32 %v1334, %v1403
    %v1527 = vadd.f32 %v1335, %v1405
    %v1528 = vadd.f32 %v1336, %v1407
    %v1529 = vadd.f32 %v1337, %v1409
    %v1530 = vadd.f32 %v1338, %v1411
    %v1531 = vadd.f32 %v1339, %v1413
    %v1532 = vadd.f32 %v1340, %v1415
    %v1533 = vadd.f32 %v1341, %v1417
    %v1534 = vadd.f32 %v1342, %v1419
    %v1535 = vadd.f32 %v1343, %v1421
    %v1536 = vadd.f32 %v1344, %v1423
    %v1537 = vadd.f32 %v1345, %v1425
    %v1538 = vadd.f32 %v1346, %v1427
    %v1539 = vadd.f32 %v1347, %v1429
    %v1540 = vadd.f32 %v1348, %v1431
    %v1541 = vadd.f32 %v1349, %v1433
    %v1542 = vadd.f32 %v1350, %v1435
    %v1543 = vadd.f32 %v1351, %v1437
    %v1544 = vadd.f32 %v1352, %v1439
    %v1545 = vadd.f32 %v1353, %v1441
    %v1546 = vadd.f32 %v1354, %v1443
    %v1547 = vadd.f32 %v1355, %v1445
    %v1548 = vadd.f32 %v1356, %v1447
    %v1549 = vadd.f32 %v1357, %v1449
    %v1550 = vadd.f32 %v1358, %v1451
    %v1551 = vadd.f32 %v1359, %v1453
    %v1552 = vadd.f32 %v1360, %v1455
    %v1553 = vadd.f32 %v1361, %v1457
    %v1554 = vadd.f32 %v1362, %v1459
    %v1555 = vadd.f32 %v1363, %v1461
    %v1556 = vadd.f32 %v1364, %v1463
    %v1557 = vadd.f32 %v1365, %v1465
    %v1558 = vadd.f32 %v1366, %v1467
    %v1559 = vadd.f32 %v1367, %v1469
    %v1560 = vadd.f32 %v1368, %v1471
    %v1561 = vadd.f32 %v1369, %v1473
    %v1562 = vadd.f32 %v1370, %v1475
    %v1563 = vadd.f32 %v1371, %v1477
    %v1564 = vadd.f32 %v1372, %v1479
    %v1565 = vadd.f32 %v1373, %v1481
    %v1566 = vadd.f32 %v1374, %v1483
    %v1567 = vadd.f32 %v1375, %v1485
    %v1568 = vadd.f32 %v1376, %v1487
    %v1569 = vadd.f32 %v1377, %v1489
    %v1570 = vadd.f32 %v1378, %v1491
    %v1571 = vadd.f32 %v1379, %v1493
    %v1572 = vadd.f32 %v1380, %v1495
    %v1573 = vadd.f32 %v1381, %v1497
    %v1574 = vadd.f32 %v1382, %v1499
    %v1575 = vadd.f32 %v1383, %v1501
    %v1576 = vadd.f32 %v1384, %v1503
    %v1577 = vadd.f32 %v1385, %v1505
    %v1578 = vadd.f32 %v1386, %v1507
    %v1579 = vadd.f32 %v1387, %v1509
    %v1580 = vadd.f32 %v1388, %v1511
    %v1581 = vadd.f32 %v1389, %v1513
    %v1582 = vadd.f32 %v1390, %v1515
    %v1583 = vadd.f32 %v1391, %v1517
    %v1584 = vadd.f32 %v1392, %v1519
    %v1585 = vadd.f32 %v1393, %v1521
    %1586 = vrot.lane.b32.xlu0 %v686, 16
    %v1587 = vpop.permute.xlu0 %1586
    %1588 = vrot.lane.b32.xlu0 %v687, 16
    %v1589 = vpop.permute.xlu0 %1588
    %1590 = vrot.lane.b32.xlu0 %v688, 16
    %v1591 = vpop.permute.xlu0 %1590
    %1592 = vrot.lane.b32.xlu0 %v689, 16
    %v1593 = vpop.permute.xlu0 %1592
    %1594 = vrot.lane.b32.xlu0 %v690, 16
    %v1595 = vpop.permute.xlu0 %1594
    %1596 = vrot.lane.b32.xlu0 %v691, 16
    %v1597 = vpop.permute.xlu0 %1596
    %1598 = vrot.lane.b32.xlu0 %v692, 16
    %v1599 = vpop.permute.xlu0 %1598
    %1600 = vrot.lane.b32.xlu0 %v693, 16
    %v1601 = vpop.permute.xlu0 %1600
    %1602 = vrot.lane.b32.xlu0 %v694, 16
    %v1603 = vpop.permute.xlu0 %1602
    %1604 = vrot.lane.b32.xlu0 %v695, 16
    %v1605 = vpop.permute.xlu0 %1604
    %1606 = vrot.lane.b32.xlu0 %v696, 16
    %v1607 = vpop.permute.xlu0 %1606
    %1608 = vrot.lane.b32.xlu0 %v697, 16
    %v1609 = vpop.permute.xlu0 %1608
    %1610 = vrot.lane.b32.xlu0 %v698, 16
    %v1611 = vpop.permute.xlu0 %1610
    %1612 = vrot.lane.b32.xlu0 %v699, 16
    %v1613 = vpop.permute.xlu0 %1612
    %1614 = vrot.lane.b32.xlu0 %v700, 16
    %v1615 = vpop.permute.xlu0 %1614
    %1616 = vrot.lane.b32.xlu0 %v701, 16
    %v1617 = vpop.permute.xlu0 %1616
    %1618 = vrot.lane.b32.xlu0 %v702, 16
    %v1619 = vpop.permute.xlu0 %1618
    %1620 = vrot.lane.b32.xlu0 %v703, 16
    %v1621 = vpop.permute.xlu0 %1620
    %1622 = vrot.lane.b32.xlu0 %v704, 16
    %v1623 = vpop.permute.xlu0 %1622
    %1624 = vrot.lane.b32.xlu0 %v705, 16
    %v1625 = vpop.permute.xlu0 %1624
    %1626 = vrot.lane.b32.xlu0 %v706, 16
    %v1627 = vpop.permute.xlu0 %1626
    %1628 = vrot.lane.b32.xlu0 %v707, 16
    %v1629 = vpop.permute.xlu0 %1628
    %1630 = vrot.lane.b32.xlu0 %v708, 16
    %v1631 = vpop.permute.xlu0 %1630
    %1632 = vrot.lane.b32.xlu0 %v709, 16
    %v1633 = vpop.permute.xlu0 %1632
    %1634 = vrot.lane.b32.xlu0 %v710, 16
    %v1635 = vpop.permute.xlu0 %1634
    %1636 = vrot.lane.b32.xlu0 %v711, 16
    %v1637 = vpop.permute.xlu0 %1636
    %1638 = vrot.lane.b32.xlu0 %v712, 16
    %v1639 = vpop.permute.xlu0 %1638
    %1640 = vrot.lane.b32.xlu0 %v713, 16
    %v1641 = vpop.permute.xlu0 %1640
    %1642 = vrot.lane.b32.xlu0 %v714, 16
    %v1643 = vpop.permute.xlu0 %1642
    %1644 = vrot.lane.b32.xlu0 %v715, 16
    %v1645 = vpop.permute.xlu0 %1644
    %1646 = vrot.lane.b32.xlu0 %v716, 16
    %v1647 = vpop.permute.xlu0 %1646
    %1648 = vrot.lane.b32.xlu0 %v717, 16
    %v1649 = vpop.permute.xlu0 %1648
    %1650 = vrot.lane.b32.xlu0 %v718, 16
    %v1651 = vpop.permute.xlu0 %1650
    %1652 = vrot.lane.b32.xlu0 %v719, 16
    %v1653 = vpop.permute.xlu0 %1652
    %1654 = vrot.lane.b32.xlu0 %v720, 16
    %v1655 = vpop.permute.xlu0 %1654
    %1656 = vrot.lane.b32.xlu0 %v721, 16
    %v1657 = vpop.permute.xlu0 %1656
    %1658 = vrot.lane.b32.xlu0 %v722, 16
    %v1659 = vpop.permute.xlu0 %1658
    %1660 = vrot.lane.b32.xlu0 %v723, 16
    %v1661 = vpop.permute.xlu0 %1660
    %1662 = vrot.lane.b32.xlu0 %v724, 16
    %v1663 = vpop.permute.xlu0 %1662
    %1664 = vrot.lane.b32.xlu0 %v725, 16
    %v1665 = vpop.permute.xlu0 %1664
    %1666 = vrot.lane.b32.xlu0 %v726, 16
    %v1667 = vpop.permute.xlu0 %1666
    %1668 = vrot.lane.b32.xlu0 %v727, 16
    %v1669 = vpop.permute.xlu0 %1668
    %1670 = vrot.lane.b32.xlu0 %v728, 16
    %v1671 = vpop.permute.xlu0 %1670
    %1672 = vrot.lane.b32.xlu0 %v729, 16
    %v1673 = vpop.permute.xlu0 %1672
    %1674 = vrot.lane.b32.xlu0 %v730, 16
    %v1675 = vpop.permute.xlu0 %1674
    %1676 = vrot.lane.b32.xlu0 %v731, 16
    %v1677 = vpop.permute.xlu0 %1676
    %1678 = vrot.lane.b32.xlu0 %v732, 16
    %v1679 = vpop.permute.xlu0 %1678
    %1680 = vrot.lane.b32.xlu0 %v733, 16
    %v1681 = vpop.permute.xlu0 %1680
    %1682 = vrot.lane.b32.xlu0 %v734, 16
    %v1683 = vpop.permute.xlu0 %1682
    %1684 = vrot.lane.b32.xlu0 %v735, 16
    %v1685 = vpop.permute.xlu0 %1684
    %1686 = vrot.lane.b32.xlu0 %v736, 16
    %v1687 = vpop.permute.xlu0 %1686
    %1688 = vrot.lane.b32.xlu0 %v737, 16
    %v1689 = vpop.permute.xlu0 %1688
    %1690 = vrot.lane.b32.xlu0 %v738, 16
    %v1691 = vpop.permute.xlu0 %1690
    %1692 = vrot.lane.b32.xlu0 %v739, 16
    %v1693 = vpop.permute.xlu0 %1692
    %1694 = vrot.lane.b32.xlu0 %v740, 16
    %v1695 = vpop.permute.xlu0 %1694
    %1696 = vrot.lane.b32.xlu0 %v741, 16
    %v1697 = vpop.permute.xlu0 %1696
    %1698 = vrot.lane.b32.xlu0 %v742, 16
    %v1699 = vpop.permute.xlu0 %1698
    %1700 = vrot.lane.b32.xlu0 %v743, 16
    %v1701 = vpop.permute.xlu0 %1700
    %1702 = vrot.lane.b32.xlu0 %v744, 16
    %v1703 = vpop.permute.xlu0 %1702
    %1704 = vrot.lane.b32.xlu0 %v745, 16
    %v1705 = vpop.permute.xlu0 %1704
    %1706 = vrot.lane.b32.xlu0 %v746, 16
    %v1707 = vpop.permute.xlu0 %1706
    %1708 = vrot.lane.b32.xlu0 %v747, 16
    %v1709 = vpop.permute.xlu0 %1708
    %1710 = vrot.lane.b32.xlu0 %v748, 16
    %v1711 = vpop.permute.xlu0 %1710
    %1712 = vrot.lane.b32.xlu0 %v749, 16
    %v1713 = vpop.permute.xlu0 %1712
    %v1714 = vadd.f32 %v1522, %v1587
    %v1715 = vadd.f32 %v1523, %v1589
    %v1716 = vadd.f32 %v1524, %v1591
    %v1717 = vadd.f32 %v1525, %v1593
    %v1718 = vadd.f32 %v1526, %v1595
    %v1719 = vadd.f32 %v1527, %v1597
    %v1720 = vadd.f32 %v1528, %v1599
    %v1721 = vadd.f32 %v1529, %v1601
    %v1722 = vadd.f32 %v1530, %v1603
    %v1723 = vadd.f32 %v1531, %v1605
    %v1724 = vadd.f32 %v1532, %v1607
    %v1725 = vadd.f32 %v1533, %v1609
    %v1726 = vadd.f32 %v1534, %v1611
    %v1727 = vadd.f32 %v1535, %v1613
    %v1728 = vadd.f32 %v1536, %v1615
    %v1729 = vadd.f32 %v1537, %v1617
    %v1730 = vadd.f32 %v1538, %v1619
    %v1731 = vadd.f32 %v1539, %v1621
    %v1732 = vadd.f32 %v1540, %v1623
    %v1733 = vadd.f32 %v1541, %v1625
    %v1734 = vadd.f32 %v1542, %v1627
    %v1735 = vadd.f32 %v1543, %v1629
    %v1736 = vadd.f32 %v1544, %v1631
    %v1737 = vadd.f32 %v1545, %v1633
    %v1738 = vadd.f32 %v1546, %v1635
    %v1739 = vadd.f32 %v1547, %v1637
    %v1740 = vadd.f32 %v1548, %v1639
    %v1741 = vadd.f32 %v1549, %v1641
    %v1742 = vadd.f32 %v1550, %v1643
    %v1743 = vadd.f32 %v1551, %v1645
    %v1744 = vadd.f32 %v1552, %v1647
    %v1745 = vadd.f32 %v1553, %v1649
    %v1746 = vadd.f32 %v1554, %v1651
    %v1747 = vadd.f32 %v1555, %v1653
    %v1748 = vadd.f32 %v1556, %v1655
    %v1749 = vadd.f32 %v1557, %v1657
    %v1750 = vadd.f32 %v1558, %v1659
    %v1751 = vadd.f32 %v1559, %v1661
    %v1752 = vadd.f32 %v1560, %v1663
    %v1753 = vadd.f32 %v1561, %v1665
    %v1754 = vadd.f32 %v1562, %v1667
    %v1755 = vadd.f32 %v1563, %v1669
    %v1756 = vadd.f32 %v1564, %v1671
    %v1757 = vadd.f32 %v1565, %v1673
    %v1758 = vadd.f32 %v1566, %v1675
    %v1759 = vadd.f32 %v1567, %v1677
    %v1760 = vadd.f32 %v1568, %v1679
    %v1761 = vadd.f32 %v1569, %v1681
    %v1762 = vadd.f32 %v1570, %v1683
    %v1763 = vadd.f32 %v1571, %v1685
    %v1764 = vadd.f32 %v1572, %v1687
    %v1765 = vadd.f32 %v1573, %v1689
    %v1766 = vadd.f32 %v1574, %v1691
    %v1767 = vadd.f32 %v1575, %v1693
    %v1768 = vadd.f32 %v1576, %v1695
    %v1769 = vadd.f32 %v1577, %v1697
    %v1770 = vadd.f32 %v1578, %v1699
    %v1771 = vadd.f32 %v1579, %v1701
    %v1772 = vadd.f32 %v1580, %v1703
    %v1773 = vadd.f32 %v1581, %v1705
    %v1774 = vadd.f32 %v1582, %v1707
    %v1775 = vadd.f32 %v1583, %v1709
    %v1776 = vadd.f32 %v1584, %v1711
    %v1777 = vadd.f32 %v1585, %v1713
    %1778 = vrot.lane.b32.xlu0 %v1200, 20
    %v1779 = vpop.permute.xlu0 %1778
    %1780 = vrot.lane.b32.xlu0 %v1199, 20
    %v1781 = vpop.permute.xlu0 %1780
    %1782 = vrot.lane.b32.xlu0 %v1198, 20
    %v1783 = vpop.permute.xlu0 %1782
    %1784 = vrot.lane.b32.xlu0 %v1197, 20
    %v1785 = vpop.permute.xlu0 %1784
    %1786 = vrot.lane.b32.xlu0 %v1196, 20
    %v1787 = vpop.permute.xlu0 %1786
    %1788 = vrot.lane.b32.xlu0 %v1195, 20
    %v1789 = vpop.permute.xlu0 %1788
    %1790 = vrot.lane.b32.xlu0 %v1194, 20
    %v1791 = vpop.permute.xlu0 %1790
    %1792 = vrot.lane.b32.xlu0 %v1193, 20
    %v1793 = vpop.permute.xlu0 %1792
    %1794 = vrot.lane.b32.xlu0 %v1192, 20
    %v1795 = vpop.permute.xlu0 %1794
    %1796 = vrot.lane.b32.xlu0 %v1191, 20
    %v1797 = vpop.permute.xlu0 %1796
    %1798 = vrot.lane.b32.xlu0 %v1190, 20
    %v1799 = vpop.permute.xlu0 %1798
    %1800 = vrot.lane.b32.xlu0 %v1189, 20
    %v1801 = vpop.permute.xlu0 %1800
    %1802 = vrot.lane.b32.xlu0 %v1188, 20
    %v1803 = vpop.permute.xlu0 %1802
    %1804 = vrot.lane.b32.xlu0 %v1187, 20
    %v1805 = vpop.permute.xlu0 %1804
    %1806 = vrot.lane.b32.xlu0 %v1186, 20
    %v1807 = vpop.permute.xlu0 %1806
    %1808 = vrot.lane.b32.xlu0 %v1185, 20
    %v1809 = vpop.permute.xlu0 %1808
    %1810 = vrot.lane.b32.xlu0 %v1184, 20
    %v1811 = vpop.permute.xlu0 %1810
    %1812 = vrot.lane.b32.xlu0 %v1183, 20
    %v1813 = vpop.permute.xlu0 %1812
    %1814 = vrot.lane.b32.xlu0 %v1182, 20
    %v1815 = vpop.permute.xlu0 %1814
    %1816 = vrot.lane.b32.xlu0 %v1181, 20
    %v1817 = vpop.permute.xlu0 %1816
    %1818 = vrot.lane.b32.xlu0 %v1180, 20
    %v1819 = vpop.permute.xlu0 %1818
    %1820 = vrot.lane.b32.xlu0 %v1179, 20
    %v1821 = vpop.permute.xlu0 %1820
    %1822 = vrot.lane.b32.xlu0 %v1178, 20
    %v1823 = vpop.permute.xlu0 %1822
    %1824 = vrot.lane.b32.xlu0 %v1177, 20
    %v1825 = vpop.permute.xlu0 %1824
    %1826 = vrot.lane.b32.xlu0 %v1176, 20
    %v1827 = vpop.permute.xlu0 %1826
    %1828 = vrot.lane.b32.xlu0 %v1175, 20
    %v1829 = vpop.permute.xlu0 %1828
    %1830 = vrot.lane.b32.xlu0 %v1174, 20
    %v1831 = vpop.permute.xlu0 %1830
    %1832 = vrot.lane.b32.xlu0 %v1173, 20
    %v1833 = vpop.permute.xlu0 %1832
    %1834 = vrot.lane.b32.xlu0 %v1172, 20
    %v1835 = vpop.permute.xlu0 %1834
    %1836 = vrot.lane.b32.xlu0 %v1171, 20
    %v1837 = vpop.permute.xlu0 %1836
    %1838 = vrot.lane.b32.xlu0 %v1170, 20
    %v1839 = vpop.permute.xlu0 %1838
    %1840 = vrot.lane.b32.xlu0 %v1169, 20
    %v1841 = vpop.permute.xlu0 %1840
    %1842 = vrot.lane.b32.xlu0 %v1168, 20
    %v1843 = vpop.permute.xlu0 %1842
    %1844 = vrot.lane.b32.xlu0 %v1167, 20
    %v1845 = vpop.permute.xlu0 %1844
    %1846 = vrot.lane.b32.xlu0 %v1166, 20
    %v1847 = vpop.permute.xlu0 %1846
    %1848 = vrot.lane.b32.xlu0 %v1165, 20
    %v1849 = vpop.permute.xlu0 %1848
    %1850 = vrot.lane.b32.xlu0 %v1164, 20
    %v1851 = vpop.permute.xlu0 %1850
    %1852 = vrot.lane.b32.xlu0 %v1163, 20
    %v1853 = vpop.permute.xlu0 %1852
    %1854 = vrot.lane.b32.xlu0 %v1162, 20
    %v1855 = vpop.permute.xlu0 %1854
    %1856 = vrot.lane.b32.xlu0 %v1161, 20
    %v1857 = vpop.permute.xlu0 %1856
    %1858 = vrot.lane.b32.xlu0 %v1160, 20
    %v1859 = vpop.permute.xlu0 %1858
    %1860 = vrot.lane.b32.xlu0 %v1159, 20
    %v1861 = vpop.permute.xlu0 %1860
    %1862 = vrot.lane.b32.xlu0 %v1158, 20
    %v1863 = vpop.permute.xlu0 %1862
    %1864 = vrot.lane.b32.xlu0 %v1157, 20
    %v1865 = vpop.permute.xlu0 %1864
    %1866 = vrot.lane.b32.xlu0 %v1156, 20
    %v1867 = vpop.permute.xlu0 %1866
    %1868 = vrot.lane.b32.xlu0 %v1155, 20
    %v1869 = vpop.permute.xlu0 %1868
    %1870 = vrot.lane.b32.xlu0 %v1154, 20
    %v1871 = vpop.permute.xlu0 %1870
    %1872 = vrot.lane.b32.xlu0 %v1153, 20
    %v1873 = vpop.permute.xlu0 %1872
    %1874 = vrot.lane.b32.xlu0 %v1152, 20
    %v1875 = vpop.permute.xlu0 %1874
    %1876 = vrot.lane.b32.xlu0 %v1151, 20
    %v1877 = vpop.permute.xlu0 %1876
    %1878 = vrot.lane.b32.xlu0 %v1150, 20
    %v1879 = vpop.permute.xlu0 %1878
    %1880 = vrot.lane.b32.xlu0 %v1149, 20
    %v1881 = vpop.permute.xlu0 %1880
    %1882 = vrot.lane.b32.xlu0 %v1148, 20
    %v1883 = vpop.permute.xlu0 %1882
    %1884 = vrot.lane.b32.xlu0 %v1147, 20
    %v1885 = vpop.permute.xlu0 %1884
    %1886 = vrot.lane.b32.xlu0 %v1146, 20
    %v1887 = vpop.permute.xlu0 %1886
    %1888 = vrot.lane.b32.xlu0 %v1145, 20
    %v1889 = vpop.permute.xlu0 %1888
    %1890 = vrot.lane.b32.xlu0 %v1144, 20
    %v1891 = vpop.permute.xlu0 %1890
    %1892 = vrot.lane.b32.xlu0 %v1143, 20
    %v1893 = vpop.permute.xlu0 %1892
    %1894 = vrot.lane.b32.xlu0 %v1142, 20
    %v1895 = vpop.permute.xlu0 %1894
    %1896 = vrot.lane.b32.xlu0 %v1141, 20
    %v1897 = vpop.permute.xlu0 %1896
    %1898 = vrot.lane.b32.xlu0 %v1140, 20
    %v1899 = vpop.permute.xlu0 %1898
    %1900 = vrot.lane.b32.xlu0 %v1139, 20
    %v1901 = vpop.permute.xlu0 %1900
    %1902 = vrot.lane.b32.xlu0 %v1138, 20
    %v1903 = vpop.permute.xlu0 %1902
    %1904 = vrot.lane.b32.xlu0 %v1201, 20
    %v1905 = vpop.permute.xlu0 %1904
    %v1906 = vadd.f32 %v1714, %v1779
    %v1907 = vadd.f32 %v1715, %v1781
    %v1908 = vadd.f32 %v1716, %v1783
    %v1909 = vadd.f32 %v1717, %v1785
    %v1910 = vadd.f32 %v1718, %v1787
    %v1911 = vadd.f32 %v1719, %v1789
    %v1912 = vadd.f32 %v1720, %v1791
    %v1913 = vadd.f32 %v1721, %v1793
    %v1914 = vadd.f32 %v1722, %v1795
    %v1915 = vadd.f32 %v1723, %v1797
    %v1916 = vadd.f32 %v1724, %v1799
    %v1917 = vadd.f32 %v1725, %v1801
    %v1918 = vadd.f32 %v1726, %v1803
    %v1919 = vadd.f32 %v1727, %v1805
    %v1920 = vadd.f32 %v1728, %v1807
    %v1921 = vadd.f32 %v1729, %v1809
    %v1922 = vadd.f32 %v1730, %v1811
    %v1923 = vadd.f32 %v1731, %v1813
    %v1924 = vadd.f32 %v1732, %v1815
    %v1925 = vadd.f32 %v1733, %v1817
    %v1926 = vadd.f32 %v1734, %v1819
    %v1927 = vadd.f32 %v1735, %v1821
    %v1928 = vadd.f32 %v1736, %v1823
    %v1929 = vadd.f32 %v1737, %v1825
    %v1930 = vadd.f32 %v1738, %v1827
    %v1931 = vadd.f32 %v1739, %v1829
    %v1932 = vadd.f32 %v1740, %v1831
    %v1933 = vadd.f32 %v1741, %v1833
    %v1934 = vadd.f32 %v1742, %v1835
    %v1935 = vadd.f32 %v1743, %v1837
    %v1936 = vadd.f32 %v1744, %v1839
    %v1937 = vadd.f32 %v1745, %v1841
    %v1938 = vadd.f32 %v1746, %v1843
    %v1939 = vadd.f32 %v1747, %v1845
    %v1940 = vadd.f32 %v1748, %v1847
    %v1941 = vadd.f32 %v1749, %v1849
    %v1942 = vadd.f32 %v1750, %v1851
    %v1943 = vadd.f32 %v1751, %v1853
    %v1944 = vadd.f32 %v1752, %v1855
    %v1945 = vadd.f32 %v1753, %v1857
    %v1946 = vadd.f32 %v1754, %v1859
    %v1947 = vadd.f32 %v1755, %v1861
    %v1948 = vadd.f32 %v1756, %v1863
    %v1949 = vadd.f32 %v1757, %v1865
    %v1950 = vadd.f32 %v1758, %v1867
    %v1951 = vadd.f32 %v1759, %v1869
    %v1952 = vadd.f32 %v1760, %v1871
    %v1953 = vadd.f32 %v1761, %v1873
    %v1954 = vadd.f32 %v1762, %v1875
    %v1955 = vadd.f32 %v1763, %v1877
    %v1956 = vadd.f32 %v1764, %v1879
    %v1957 = vadd.f32 %v1765, %v1881
    %v1958 = vadd.f32 %v1766, %v1883
    %v1959 = vadd.f32 %v1767, %v1885
    %v1960 = vadd.f32 %v1768, %v1887
    %v1961 = vadd.f32 %v1769, %v1889
    %v1962 = vadd.f32 %v1770, %v1891
    %v1963 = vadd.f32 %v1771, %v1893
    %v1964 = vadd.f32 %v1772, %v1895
    %v1965 = vadd.f32 %v1773, %v1897
    %v1966 = vadd.f32 %v1774, %v1899
    %v1967 = vadd.f32 %v1775, %v1901
    %v1968 = vadd.f32 %v1776, %v1903
    %v1969 = vadd.f32 %v1777, %v1905
    %1970 = vrot.lane.b32.xlu0 %v878, 24
    %v1971 = vpop.permute.xlu0 %1970
    %1972 = vrot.lane.b32.xlu0 %v877, 24
    %v1973 = vpop.permute.xlu0 %1972
    %1974 = vrot.lane.b32.xlu0 %v876, 24
    %v1975 = vpop.permute.xlu0 %1974
    %1976 = vrot.lane.b32.xlu0 %v875, 24
    %v1977 = vpop.permute.xlu0 %1976
    %1978 = vrot.lane.b32.xlu0 %v874, 24
    %v1979 = vpop.permute.xlu0 %1978
    %1980 = vrot.lane.b32.xlu0 %v873, 24
    %v1981 = vpop.permute.xlu0 %1980
    %1982 = vrot.lane.b32.xlu0 %v872, 24
    %v1983 = vpop.permute.xlu0 %1982
    %1984 = vrot.lane.b32.xlu0 %v871, 24
    %v1985 = vpop.permute.xlu0 %1984
    %1986 = vrot.lane.b32.xlu0 %v870, 24
    %v1987 = vpop.permute.xlu0 %1986
    %1988 = vrot.lane.b32.xlu0 %v869, 24
    %v1989 = vpop.permute.xlu0 %1988
    %1990 = vrot.lane.b32.xlu0 %v868, 24
    %v1991 = vpop.permute.xlu0 %1990
    %1992 = vrot.lane.b32.xlu0 %v867, 24
    %v1993 = vpop.permute.xlu0 %1992
    %1994 = vrot.lane.b32.xlu0 %v866, 24
    %v1995 = vpop.permute.xlu0 %1994
    %1996 = vrot.lane.b32.xlu0 %v865, 24
    %v1997 = vpop.permute.xlu0 %1996
    %1998 = vrot.lane.b32.xlu0 %v864, 24
    %v1999 = vpop.permute.xlu0 %1998
    %2000 = vrot.lane.b32.xlu0 %v863, 24
    %v2001 = vpop.permute.xlu0 %2000
    %2002 = vrot.lane.b32.xlu0 %v862, 24
    %v2003 = vpop.permute.xlu0 %2002
    %2004 = vrot.lane.b32.xlu0 %v861, 24
    %v2005 = vpop.permute.xlu0 %2004
    %2006 = vrot.lane.b32.xlu0 %v860, 24
    %v2007 = vpop.permute.xlu0 %2006
    %2008 = vrot.lane.b32.xlu0 %v859, 24
    %v2009 = vpop.permute.xlu0 %2008
    %2010 = vrot.lane.b32.xlu0 %v858, 24
    %v2011 = vpop.permute.xlu0 %2010
    %2012 = vrot.lane.b32.xlu0 %v857, 24
    %v2013 = vpop.permute.xlu0 %2012
    %2014 = vrot.lane.b32.xlu0 %v856, 24
    %v2015 = vpop.permute.xlu0 %2014
    %2016 = vrot.lane.b32.xlu0 %v855, 24
    %v2017 = vpop.permute.xlu0 %2016
    %2018 = vrot.lane.b32.xlu0 %v854, 24
    %v2019 = vpop.permute.xlu0 %2018
    %2020 = vrot.lane.b32.xlu0 %v853, 24
    %v2021 = vpop.permute.xlu0 %2020
    %2022 = vrot.lane.b32.xlu0 %v852, 24
    %v2023 = vpop.permute.xlu0 %2022
    %2024 = vrot.lane.b32.xlu0 %v851, 24
    %v2025 = vpop.permute.xlu0 %2024
    %2026 = vrot.lane.b32.xlu0 %v850, 24
    %v2027 = vpop.permute.xlu0 %2026
    %2028 = vrot.lane.b32.xlu0 %v849, 24
    %v2029 = vpop.permute.xlu0 %2028
    %2030 = vrot.lane.b32.xlu0 %v848, 24
    %v2031 = vpop.permute.xlu0 %2030
    %2032 = vrot.lane.b32.xlu0 %v847, 24
    %v2033 = vpop.permute.xlu0 %2032
    %2034 = vrot.lane.b32.xlu0 %v846, 24
    %v2035 = vpop.permute.xlu0 %2034
    %2036 = vrot.lane.b32.xlu0 %v845, 24
    %v2037 = vpop.permute.xlu0 %2036
    %2038 = vrot.lane.b32.xlu0 %v844, 24
    %v2039 = vpop.permute.xlu0 %2038
    %2040 = vrot.lane.b32.xlu0 %v843, 24
    %v2041 = vpop.permute.xlu0 %2040
    %2042 = vrot.lane.b32.xlu0 %v842, 24
    %v2043 = vpop.permute.xlu0 %2042
    %2044 = vrot.lane.b32.xlu0 %v841, 24
    %v2045 = vpop.permute.xlu0 %2044
    %2046 = vrot.lane.b32.xlu0 %v840, 24
    %v2047 = vpop.permute.xlu0 %2046
    %2048 = vrot.lane.b32.xlu0 %v839, 24
    %v2049 = vpop.permute.xlu0 %2048
    %2050 = vrot.lane.b32.xlu0 %v838, 24
    %v2051 = vpop.permute.xlu0 %2050
    %2052 = vrot.lane.b32.xlu0 %v837, 24
    %v2053 = vpop.permute.xlu0 %2052
    %2054 = vrot.lane.b32.xlu0 %v836, 24
    %v2055 = vpop.permute.xlu0 %2054
    %2056 = vrot.lane.b32.xlu0 %v835, 24
    %v2057 = vpop.permute.xlu0 %2056
    %2058 = vrot.lane.b32.xlu0 %v834, 24
    %v2059 = vpop.permute.xlu0 %2058
    %2060 = vrot.lane.b32.xlu0 %v833, 24
    %v2061 = vpop.permute.xlu0 %2060
    %2062 = vrot.lane.b32.xlu0 %v832, 24
    %v2063 = vpop.permute.xlu0 %2062
    %2064 = vrot.lane.b32.xlu0 %v831, 24
    %v2065 = vpop.permute.xlu0 %2064
    %2066 = vrot.lane.b32.xlu0 %v830, 24
    %v2067 = vpop.permute.xlu0 %2066
    %2068 = vrot.lane.b32.xlu0 %v829, 24
    %v2069 = vpop.permute.xlu0 %2068
    %2070 = vrot.lane.b32.xlu0 %v828, 24
    %v2071 = vpop.permute.xlu0 %2070
    %2072 = vrot.lane.b32.xlu0 %v827, 24
    %v2073 = vpop.permute.xlu0 %2072
    %2074 = vrot.lane.b32.xlu0 %v826, 24
    %v2075 = vpop.permute.xlu0 %2074
    %2076 = vrot.lane.b32.xlu0 %v825, 24
    %v2077 = vpop.permute.xlu0 %2076
    %2078 = vrot.lane.b32.xlu0 %v824, 24
    %v2079 = vpop.permute.xlu0 %2078
    %2080 = vrot.lane.b32.xlu0 %v823, 24
    %v2081 = vpop.permute.xlu0 %2080
    %2082 = vrot.lane.b32.xlu0 %v822, 24
    %v2083 = vpop.permute.xlu0 %2082
    %2084 = vrot.lane.b32.xlu0 %v821, 24
    %v2085 = vpop.permute.xlu0 %2084
    %2086 = vrot.lane.b32.xlu0 %v820, 24
    %v2087 = vpop.permute.xlu0 %2086
    %2088 = vrot.lane.b32.xlu0 %v819, 24
    %v2089 = vpop.permute.xlu0 %2088
    %2090 = vrot.lane.b32.xlu0 %v818, 24
    %v2091 = vpop.permute.xlu0 %2090
    %2092 = vrot.lane.b32.xlu0 %v817, 24
    %v2093 = vpop.permute.xlu0 %2092
    %2094 = vrot.lane.b32.xlu0 %v880, 24
    %v2095 = vpop.permute.xlu0 %2094
    %2096 = vrot.lane.b32.xlu0 %v879, 24
    %v2097 = vpop.permute.xlu0 %2096
    %v2098 = vadd.f32 %v1906, %v1971
    %v2099 = vadd.f32 %v1907, %v1973
    %v2100 = vadd.f32 %v1908, %v1975
    %v2101 = vadd.f32 %v1909, %v1977
    %v2102 = vadd.f32 %v1910, %v1979
    %v2103 = vadd.f32 %v1911, %v1981
    %v2104 = vadd.f32 %v1912, %v1983
    %v2105 = vadd.f32 %v1913, %v1985
    %v2106 = vadd.f32 %v1914, %v1987
    %v2107 = vadd.f32 %v1915, %v1989
    %v2108 = vadd.f32 %v1916, %v1991
    %v2109 = vadd.f32 %v1917, %v1993
    %v2110 = vadd.f32 %v1918, %v1995
    %v2111 = vadd.f32 %v1919, %v1997
    %v2112 = vadd.f32 %v1920, %v1999
    %v2113 = vadd.f32 %v1921, %v2001
    %v2114 = vadd.f32 %v1922, %v2003
    %v2115 = vadd.f32 %v1923, %v2005
    %v2116 = vadd.f32 %v1924, %v2007
    %v2117 = vadd.f32 %v1925, %v2009
    %v2118 = vadd.f32 %v1926, %v2011
    %v2119 = vadd.f32 %v1927, %v2013
    %v2120 = vadd.f32 %v1928, %v2015
    %v2121 = vadd.f32 %v1929, %v2017
    %v2122 = vadd.f32 %v1930, %v2019
    %v2123 = vadd.f32 %v1931, %v2021
    %v2124 = vadd.f32 %v1932, %v2023
    %v2125 = vadd.f32 %v1933, %v2025
    %v2126 = vadd.f32 %v1934, %v2027
    %v2127 = vadd.f32 %v1935, %v2029
    %v2128 = vadd.f32 %v1936, %v2031
    %v2129 = vadd.f32 %v1937, %v2033
    %v2130 = vadd.f32 %v1938, %v2035
    %v2131 = vadd.f32 %v1939, %v2037
    %v2132 = vadd.f32 %v1940, %v2039
    %v2133 = vadd.f32 %v1941, %v2041
    %v2134 = vadd.f32 %v1942, %v2043
    %v2135 = vadd.f32 %v1943, %v2045
    %v2136 = vadd.f32 %v1944, %v2047
    %v2137 = vadd.f32 %v1945, %v2049
    %v2138 = vadd.f32 %v1946, %v2051
    %v2139 = vadd.f32 %v1947, %v2053
    %v2140 = vadd.f32 %v1948, %v2055
    %v2141 = vadd.f32 %v1949, %v2057
    %v2142 = vadd.f32 %v1950, %v2059
    %v2143 = vadd.f32 %v1951, %v2061
    %v2144 = vadd.f32 %v1952, %v2063
    %v2145 = vadd.f32 %v1953, %v2065
    %v2146 = vadd.f32 %v1954, %v2067
    %v2147 = vadd.f32 %v1955, %v2069
    %v2148 = vadd.f32 %v1956, %v2071
    %v2149 = vadd.f32 %v1957, %v2073
    %v2150 = vadd.f32 %v1958, %v2075
    %v2151 = vadd.f32 %v1959, %v2077
    %v2152 = vadd.f32 %v1960, %v2079
    %v2153 = vadd.f32 %v1961, %v2081
    %v2154 = vadd.f32 %v1962, %v2083
    %v2155 = vadd.f32 %v1963, %v2085
    %v2156 = vadd.f32 %v1964, %v2087
    %v2157 = vadd.f32 %v1965, %v2089
    %v2158 = vadd.f32 %v1966, %v2091
    %v2159 = vadd.f32 %v1967, %v2093
    %v2160 = vadd.f32 %v1968, %v2095
    %v2161 = vadd.f32 %v1969, %v2097
    %2162 = vrot.lane.b32.xlu0 %v688, 28
    %v2163 = vpop.permute.xlu0 %2162
    %2164 = vrot.lane.b32.xlu0 %v689, 28
    %v2165 = vpop.permute.xlu0 %2164
    %2166 = vrot.lane.b32.xlu0 %v690, 28
    %v2167 = vpop.permute.xlu0 %2166
    %2168 = vrot.lane.b32.xlu0 %v691, 28
    %v2169 = vpop.permute.xlu0 %2168
    %2170 = vrot.lane.b32.xlu0 %v692, 28
    %v2171 = vpop.permute.xlu0 %2170
    %2172 = vrot.lane.b32.xlu0 %v693, 28
    %v2173 = vpop.permute.xlu0 %2172
    %2174 = vrot.lane.b32.xlu0 %v694, 28
    %v2175 = vpop.permute.xlu0 %2174
    %2176 = vrot.lane.b32.xlu0 %v695, 28
    %v2177 = vpop.permute.xlu0 %2176
    %2178 = vrot.lane.b32.xlu0 %v696, 28
    %v2179 = vpop.permute.xlu0 %2178
    %2180 = vrot.lane.b32.xlu0 %v697, 28
    %v2181 = vpop.permute.xlu0 %2180
    %2182 = vrot.lane.b32.xlu0 %v698, 28
    %v2183 = vpop.permute.xlu0 %2182
    %2184 = vrot.lane.b32.xlu0 %v699, 28
    %v2185 = vpop.permute.xlu0 %2184
    %2186 = vrot.lane.b32.xlu0 %v700, 28
    %v2187 = vpop.permute.xlu0 %2186
    %2188 = vrot.lane.b32.xlu0 %v701, 28
    %v2189 = vpop.permute.xlu0 %2188
    %2190 = vrot.lane.b32.xlu0 %v702, 28
    %v2191 = vpop.permute.xlu0 %2190
    %2192 = vrot.lane.b32.xlu0 %v703, 28
    %v2193 = vpop.permute.xlu0 %2192
    %2194 = vrot.lane.b32.xlu0 %v704, 28
    %v2195 = vpop.permute.xlu0 %2194
    %2196 = vrot.lane.b32.xlu0 %v705, 28
    %v2197 = vpop.permute.xlu0 %2196
    %2198 = vrot.lane.b32.xlu0 %v706, 28
    %v2199 = vpop.permute.xlu0 %2198
    %2200 = vrot.lane.b32.xlu0 %v707, 28
    %v2201 = vpop.permute.xlu0 %2200
    %2202 = vrot.lane.b32.xlu0 %v708, 28
    %v2203 = vpop.permute.xlu0 %2202
    %2204 = vrot.lane.b32.xlu0 %v709, 28
    %v2205 = vpop.permute.xlu0 %2204
    %2206 = vrot.lane.b32.xlu0 %v710, 28
    %v2207 = vpop.permute.xlu0 %2206
    %2208 = vrot.lane.b32.xlu0 %v711, 28
    %v2209 = vpop.permute.xlu0 %2208
    %2210 = vrot.lane.b32.xlu0 %v712, 28
    %v2211 = vpop.permute.xlu0 %2210
    %2212 = vrot.lane.b32.xlu0 %v713, 28
    %v2213 = vpop.permute.xlu0 %2212
    %2214 = vrot.lane.b32.xlu0 %v714, 28
    %v2215 = vpop.permute.xlu0 %2214
    %2216 = vrot.lane.b32.xlu0 %v715, 28
    %v2217 = vpop.permute.xlu0 %2216
    %2218 = vrot.lane.b32.xlu0 %v716, 28
    %v2219 = vpop.permute.xlu0 %2218
    %2220 = vrot.lane.b32.xlu0 %v717, 28
    %v2221 = vpop.permute.xlu0 %2220
    %2222 = vrot.lane.b32.xlu0 %v718, 28
    %v2223 = vpop.permute.xlu0 %2222
    %2224 = vrot.lane.b32.xlu0 %v719, 28
    %v2225 = vpop.permute.xlu0 %2224
    %2226 = vrot.lane.b32.xlu0 %v720, 28
    %v2227 = vpop.permute.xlu0 %2226
    %2228 = vrot.lane.b32.xlu0 %v721, 28
    %v2229 = vpop.permute.xlu0 %2228
    %2230 = vrot.lane.b32.xlu0 %v722, 28
    %v2231 = vpop.permute.xlu0 %2230
    %2232 = vrot.lane.b32.xlu0 %v723, 28
    %v2233 = vpop.permute.xlu0 %2232
    %2234 = vrot.lane.b32.xlu0 %v724, 28
    %v2235 = vpop.permute.xlu0 %2234
    %2236 = vrot.lane.b32.xlu0 %v725, 28
    %v2237 = vpop.permute.xlu0 %2236
    %2238 = vrot.lane.b32.xlu0 %v726, 28
    %v2239 = vpop.permute.xlu0 %2238
    %2240 = vrot.lane.b32.xlu0 %v727, 28
    %v2241 = vpop.permute.xlu0 %2240
    %2242 = vrot.lane.b32.xlu0 %v728, 28
    %v2243 = vpop.permute.xlu0 %2242
    %2244 = vrot.lane.b32.xlu0 %v729, 28
    %v2245 = vpop.permute.xlu0 %2244
    %2246 = vrot.lane.b32.xlu0 %v730, 28
    %v2247 = vpop.permute.xlu0 %2246
    %2248 = vrot.lane.b32.xlu0 %v731, 28
    %v2249 = vpop.permute.xlu0 %2248
    %2250 = vrot.lane.b32.xlu0 %v732, 28
    %v2251 = vpop.permute.xlu0 %2250
    %2252 = vrot.lane.b32.xlu0 %v733, 28
    %v2253 = vpop.permute.xlu0 %2252
    %2254 = vrot.lane.b32.xlu0 %v734, 28
    %v2255 = vpop.permute.xlu0 %2254
    %2256 = vrot.lane.b32.xlu0 %v735, 28
    %v2257 = vpop.permute.xlu0 %2256
    %2258 = vrot.lane.b32.xlu0 %v736, 28
    %v2259 = vpop.permute.xlu0 %2258
    %2260 = vrot.lane.b32.xlu0 %v737, 28
    %v2261 = vpop.permute.xlu0 %2260
    %2262 = vrot.lane.b32.xlu0 %v738, 28
    %v2263 = vpop.permute.xlu0 %2262
    %2264 = vrot.lane.b32.xlu0 %v739, 28
    %v2265 = vpop.permute.xlu0 %2264
    %2266 = vrot.lane.b32.xlu0 %v740, 28
    %v2267 = vpop.permute.xlu0 %2266
    %2268 = vrot.lane.b32.xlu0 %v741, 28
    %v2269 = vpop.permute.xlu0 %2268
    %2270 = vrot.lane.b32.xlu0 %v742, 28
    %v2271 = vpop.permute.xlu0 %2270
    %2272 = vrot.lane.b32.xlu0 %v743, 28
    %v2273 = vpop.permute.xlu0 %2272
    %2274 = vrot.lane.b32.xlu0 %v744, 28
    %v2275 = vpop.permute.xlu0 %2274
    %2276 = vrot.lane.b32.xlu0 %v745, 28
    %v2277 = vpop.permute.xlu0 %2276
    %2278 = vrot.lane.b32.xlu0 %v746, 28
    %v2279 = vpop.permute.xlu0 %2278
    %2280 = vrot.lane.b32.xlu0 %v747, 28
    %v2281 = vpop.permute.xlu0 %2280
    %2282 = vrot.lane.b32.xlu0 %v748, 28
    %v2283 = vpop.permute.xlu0 %2282
    %2284 = vrot.lane.b32.xlu0 %v749, 28
    %v2285 = vpop.permute.xlu0 %2284
    %2286 = vrot.lane.b32.xlu0 %v686, 28
    %v2287 = vpop.permute.xlu0 %2286
    %2288 = vrot.lane.b32.xlu0 %v687, 28
    %v2289 = vpop.permute.xlu0 %2288
    %v2290 = vadd.f32 %v2098, %v2163
    %v2291 = vadd.f32 %v2099, %v2165
    %v2292 = vadd.f32 %v2100, %v2167
    %v2293 = vadd.f32 %v2101, %v2169
    %v2294 = vadd.f32 %v2102, %v2171
    %v2295 = vadd.f32 %v2103, %v2173
    %v2296 = vadd.f32 %v2104, %v2175
    %v2297 = vadd.f32 %v2105, %v2177
    %v2298 = vadd.f32 %v2106, %v2179
    %v2299 = vadd.f32 %v2107, %v2181
    %v2300 = vadd.f32 %v2108, %v2183
    %v2301 = vadd.f32 %v2109, %v2185
    %v2302 = vadd.f32 %v2110, %v2187
    %v2303 = vadd.f32 %v2111, %v2189
    %v2304 = vadd.f32 %v2112, %v2191
    %v2305 = vadd.f32 %v2113, %v2193
    %v2306 = vadd.f32 %v2114, %v2195
    %v2307 = vadd.f32 %v2115, %v2197
    %v2308 = vadd.f32 %v2116, %v2199
    %v2309 = vadd.f32 %v2117, %v2201
    %v2310 = vadd.f32 %v2118, %v2203
    %v2311 = vadd.f32 %v2119, %v2205
    %v2312 = vadd.f32 %v2120, %v2207
    %v2313 = vadd.f32 %v2121, %v2209
    %v2314 = vadd.f32 %v2122, %v2211
    %v2315 = vadd.f32 %v2123, %v2213
    %v2316 = vadd.f32 %v2124, %v2215
    %v2317 = vadd.f32 %v2125, %v2217
    %v2318 = vadd.f32 %v2126, %v2219
    %v2319 = vadd.f32 %v2127, %v2221
    %v2320 = vadd.f32 %v2128, %v2223
    %v2321 = vadd.f32 %v2129, %v2225
    %v2322 = vadd.f32 %v2130, %v2227
    %v2323 = vadd.f32 %v2131, %v2229
    %v2324 = vadd.f32 %v2132, %v2231
    %v2325 = vadd.f32 %v2133, %v2233
    %v2326 = vadd.f32 %v2134, %v2235
    %v2327 = vadd.f32 %v2135, %v2237
    %v2328 = vadd.f32 %v2136, %v2239
    %v2329 = vadd.f32 %v2137, %v2241
    %v2330 = vadd.f32 %v2138, %v2243
    %v2331 = vadd.f32 %v2139, %v2245
    %v2332 = vadd.f32 %v2140, %v2247
    %v2333 = vadd.f32 %v2141, %v2249
    %v2334 = vadd.f32 %v2142, %v2251
    %v2335 = vadd.f32 %v2143, %v2253
    %v2336 = vadd.f32 %v2144, %v2255
    %v2337 = vadd.f32 %v2145, %v2257
    %v2338 = vadd.f32 %v2146, %v2259
    %v2339 = vadd.f32 %v2147, %v2261
    %v2340 = vadd.f32 %v2148, %v2263
    %v2341 = vadd.f32 %v2149, %v2265
    %v2342 = vadd.f32 %v2150, %v2267
    %v2343 = vadd.f32 %v2151, %v2269
    %v2344 = vadd.f32 %v2152, %v2271
    %v2345 = vadd.f32 %v2153, %v2273
    %v2346 = vadd.f32 %v2154, %v2275
    %v2347 = vadd.f32 %v2155, %v2277
    %v2348 = vadd.f32 %v2156, %v2279
    %v2349 = vadd.f32 %v2157, %v2281
    %v2350 = vadd.f32 %v2158, %v2283
    %v2351 = vadd.f32 %v2159, %v2285
    %v2352 = vadd.f32 %v2160, %v2287
    %v2353 = vadd.f32 %v2161, %v2289
    %2354 = vrot.lane.b32.xlu0 %v1198, 32
    %v2355 = vpop.permute.xlu0 %2354
    %2356 = vrot.lane.b32.xlu0 %v1197, 32
    %v2357 = vpop.permute.xlu0 %2356
    %2358 = vrot.lane.b32.xlu0 %v1196, 32
    %v2359 = vpop.permute.xlu0 %2358
    %2360 = vrot.lane.b32.xlu0 %v1195, 32
    %v2361 = vpop.permute.xlu0 %2360
    %2362 = vrot.lane.b32.xlu0 %v1194, 32
    %v2363 = vpop.permute.xlu0 %2362
    %2364 = vrot.lane.b32.xlu0 %v1193, 32
    %v2365 = vpop.permute.xlu0 %2364
    %2366 = vrot.lane.b32.xlu0 %v1192, 32
    %v2367 = vpop.permute.xlu0 %2366
    %2368 = vrot.lane.b32.xlu0 %v1191, 32
    %v2369 = vpop.permute.xlu0 %2368
    %2370 = vrot.lane.b32.xlu0 %v1190, 32
    %v2371 = vpop.permute.xlu0 %2370
    %2372 = vrot.lane.b32.xlu0 %v1189, 32
    %v2373 = vpop.permute.xlu0 %2372
    %2374 = vrot.lane.b32.xlu0 %v1188, 32
    %v2375 = vpop.permute.xlu0 %2374
    %2376 = vrot.lane.b32.xlu0 %v1187, 32
    %v2377 = vpop.permute.xlu0 %2376
    %2378 = vrot.lane.b32.xlu0 %v1186, 32
    %v2379 = vpop.permute.xlu0 %2378
    %2380 = vrot.lane.b32.xlu0 %v1185, 32
    %v2381 = vpop.permute.xlu0 %2380
    %2382 = vrot.lane.b32.xlu0 %v1184, 32
    %v2383 = vpop.permute.xlu0 %2382
    %2384 = vrot.lane.b32.xlu0 %v1183, 32
    %v2385 = vpop.permute.xlu0 %2384
    %2386 = vrot.lane.b32.xlu0 %v1182, 32
    %v2387 = vpop.permute.xlu0 %2386
    %2388 = vrot.lane.b32.xlu0 %v1181, 32
    %v2389 = vpop.permute.xlu0 %2388
    %2390 = vrot.lane.b32.xlu0 %v1180, 32
    %v2391 = vpop.permute.xlu0 %2390
    %2392 = vrot.lane.b32.xlu0 %v1179, 32
    %v2393 = vpop.permute.xlu0 %2392
    %2394 = vrot.lane.b32.xlu0 %v1178, 32
    %v2395 = vpop.permute.xlu0 %2394
    %2396 = vrot.lane.b32.xlu0 %v1177, 32
    %v2397 = vpop.permute.xlu0 %2396
    %2398 = vrot.lane.b32.xlu0 %v1176, 32
    %v2399 = vpop.permute.xlu0 %2398
    %2400 = vrot.lane.b32.xlu0 %v1175, 32
    %v2401 = vpop.permute.xlu0 %2400
    %2402 = vrot.lane.b32.xlu0 %v1174, 32
    %v2403 = vpop.permute.xlu0 %2402
    %2404 = vrot.lane.b32.xlu0 %v1173, 32
    %v2405 = vpop.permute.xlu0 %2404
    %2406 = vrot.lane.b32.xlu0 %v1172, 32
    %v2407 = vpop.permute.xlu0 %2406
    %2408 = vrot.lane.b32.xlu0 %v1171, 32
    %v2409 = vpop.permute.xlu0 %2408
    %2410 = vrot.lane.b32.xlu0 %v1170, 32
    %v2411 = vpop.permute.xlu0 %2410
    %2412 = vrot.lane.b32.xlu0 %v1169, 32
    %v2413 = vpop.permute.xlu0 %2412
    %2414 = vrot.lane.b32.xlu0 %v1168, 32
    %v2415 = vpop.permute.xlu0 %2414
    %2416 = vrot.lane.b32.xlu0 %v1167, 32
    %v2417 = vpop.permute.xlu0 %2416
    %2418 = vrot.lane.b32.xlu0 %v1166, 32
    %v2419 = vpop.permute.xlu0 %2418
    %2420 = vrot.lane.b32.xlu0 %v1165, 32
    %v2421 = vpop.permute.xlu0 %2420
    %2422 = vrot.lane.b32.xlu0 %v1164, 32
    %v2423 = vpop.permute.xlu0 %2422
    %2424 = vrot.lane.b32.xlu0 %v1163, 32
    %v2425 = vpop.permute.xlu0 %2424
    %2426 = vrot.lane.b32.xlu0 %v1162, 32
    %v2427 = vpop.permute.xlu0 %2426
    %2428 = vrot.lane.b32.xlu0 %v1161, 32
    %v2429 = vpop.permute.xlu0 %2428
    %2430 = vrot.lane.b32.xlu0 %v1160, 32
    %v2431 = vpop.permute.xlu0 %2430
    %2432 = vrot.lane.b32.xlu0 %v1159, 32
    %v2433 = vpop.permute.xlu0 %2432
    %2434 = vrot.lane.b32.xlu0 %v1158, 32
    %v2435 = vpop.permute.xlu0 %2434
    %2436 = vrot.lane.b32.xlu0 %v1157, 32
    %v2437 = vpop.permute.xlu0 %2436
    %2438 = vrot.lane.b32.xlu0 %v1156, 32
    %v2439 = vpop.permute.xlu0 %2438
    %2440 = vrot.lane.b32.xlu0 %v1155, 32
    %v2441 = vpop.permute.xlu0 %2440
    %2442 = vrot.lane.b32.xlu0 %v1154, 32
    %v2443 = vpop.permute.xlu0 %2442
    %2444 = vrot.lane.b32.xlu0 %v1153, 32
    %v2445 = vpop.permute.xlu0 %2444
    %2446 = vrot.lane.b32.xlu0 %v1152, 32
    %v2447 = vpop.permute.xlu0 %2446
    %2448 = vrot.lane.b32.xlu0 %v1151, 32
    %v2449 = vpop.permute.xlu0 %2448
    %2450 = vrot.lane.b32.xlu0 %v1150, 32
    %v2451 = vpop.permute.xlu0 %2450
    %2452 = vrot.lane.b32.xlu0 %v1149, 32
    %v2453 = vpop.permute.xlu0 %2452
    %2454 = vrot.lane.b32.xlu0 %v1148, 32
    %v2455 = vpop.permute.xlu0 %2454
    %2456 = vrot.lane.b32.xlu0 %v1147, 32
    %v2457 = vpop.permute.xlu0 %2456
    %2458 = vrot.lane.b32.xlu0 %v1146, 32
    %v2459 = vpop.permute.xlu0 %2458
    %2460 = vrot.lane.b32.xlu0 %v1145, 32
    %v2461 = vpop.permute.xlu0 %2460
    %2462 = vrot.lane.b32.xlu0 %v1144, 32
    %v2463 = vpop.permute.xlu0 %2462
    %2464 = vrot.lane.b32.xlu0 %v1143, 32
    %v2465 = vpop.permute.xlu0 %2464
    %2466 = vrot.lane.b32.xlu0 %v1142, 32
    %v2467 = vpop.permute.xlu0 %2466
    %2468 = vrot.lane.b32.xlu0 %v1141, 32
    %v2469 = vpop.permute.xlu0 %2468
    %2470 = vrot.lane.b32.xlu0 %v1140, 32
    %v2471 = vpop.permute.xlu0 %2470
    %2472 = vrot.lane.b32.xlu0 %v1139, 32
    %v2473 = vpop.permute.xlu0 %2472
    %2474 = vrot.lane.b32.xlu0 %v1138, 32
    %v2475 = vpop.permute.xlu0 %2474
    %2476 = vrot.lane.b32.xlu0 %v1201, 32
    %v2477 = vpop.permute.xlu0 %2476
    %2478 = vrot.lane.b32.xlu0 %v1200, 32
    %v2479 = vpop.permute.xlu0 %2478
    %2480 = vrot.lane.b32.xlu0 %v1199, 32
    %v2481 = vpop.permute.xlu0 %2480
    %v2482 = vadd.f32 %v2290, %v2355
    %v2483 = vadd.f32 %v2291, %v2357
    %v2484 = vadd.f32 %v2292, %v2359
    %v2485 = vadd.f32 %v2293, %v2361
    %v2486 = vadd.f32 %v2294, %v2363
    %v2487 = vadd.f32 %v2295, %v2365
    %v2488 = vadd.f32 %v2296, %v2367
    %v2489 = vadd.f32 %v2297, %v2369
    %v2490 = vadd.f32 %v2298, %v2371
    %v2491 = vadd.f32 %v2299, %v2373
    %v2492 = vadd.f32 %v2300, %v2375
    %v2493 = vadd.f32 %v2301, %v2377
    %v2494 = vadd.f32 %v2302, %v2379
    %v2495 = vadd.f32 %v2303, %v2381
    %v2496 = vadd.f32 %v2304, %v2383
    %v2497 = vadd.f32 %v2305, %v2385
    %v2498 = vadd.f32 %v2306, %v2387
    %v2499 = vadd.f32 %v2307, %v2389
    %v2500 = vadd.f32 %v2308, %v2391
    %v2501 = vadd.f32 %v2309, %v2393
    %v2502 = vadd.f32 %v2310, %v2395
    %v2503 = vadd.f32 %v2311, %v2397
    %v2504 = vadd.f32 %v2312, %v2399
    %v2505 = vadd.f32 %v2313, %v2401
    %v2506 = vadd.f32 %v2314, %v2403
    %v2507 = vadd.f32 %v2315, %v2405
    %v2508 = vadd.f32 %v2316, %v2407
    %v2509 = vadd.f32 %v2317, %v2409
    %v2510 = vadd.f32 %v2318, %v2411
    %v2511 = vadd.f32 %v2319, %v2413
    %v2512 = vadd.f32 %v2320, %v2415
    %v2513 = vadd.f32 %v2321, %v2417
    %v2514 = vadd.f32 %v2322, %v2419
    %v2515 = vadd.f32 %v2323, %v2421
    %v2516 = vadd.f32 %v2324, %v2423
    %v2517 = vadd.f32 %v2325, %v2425
    %v2518 = vadd.f32 %v2326, %v2427
    %v2519 = vadd.f32 %v2327, %v2429
    %v2520 = vadd.f32 %v2328, %v2431
    %v2521 = vadd.f32 %v2329, %v2433
    %v2522 = vadd.f32 %v2330, %v2435
    %v2523 = vadd.f32 %v2331, %v2437
    %v2524 = vadd.f32 %v2332, %v2439
    %v2525 = vadd.f32 %v2333, %v2441
    %v2526 = vadd.f32 %v2334, %v2443
    %v2527 = vadd.f32 %v2335, %v2445
    %v2528 = vadd.f32 %v2336, %v2447
    %v2529 = vadd.f32 %v2337, %v2449
    %v2530 = vadd.f32 %v2338, %v2451
    %v2531 = vadd.f32 %v2339, %v2453
    %v2532 = vadd.f32 %v2340, %v2455
    %v2533 = vadd.f32 %v2341, %v2457
    %v2534 = vadd.f32 %v2342, %v2459
    %v2535 = vadd.f32 %v2343, %v2461
    %v2536 = vadd.f32 %v2344, %v2463
    %v2537 = vadd.f32 %v2345, %v2465
    %v2538 = vadd.f32 %v2346, %v2467
    %v2539 = vadd.f32 %v2347, %v2469
    %v2540 = vadd.f32 %v2348, %v2471
    %v2541 = vadd.f32 %v2349, %v2473
    %v2542 = vadd.f32 %v2350, %v2475
    %v2543 = vadd.f32 %v2351, %v2477
    %v2544 = vadd.f32 %v2352, %v2479
    %v2545 = vadd.f32 %v2353, %v2481
    %v2546 = vadd.s32 %v815, 8
    %v2547 = vadd.s32 %v815, 16
    %v2548 = vadd.s32 %v815, 24
    %v2549 = vadd.s32 %v815, 32
    %v2550 = vadd.s32 %v815, 40
    %v2551 = vadd.s32 %v815, 48
    %v2552 = vadd.s32 %v815, 56
    %v2553 = vadd.s32 %v815, 64
    %v2554 = vadd.s32 %v815, 72
    %v2555 = vadd.s32 %v815, 80
    %v2556 = vadd.s32 %v815, 88
    %v2557 = vadd.s32 %v815, 96
    %v2558 = vadd.s32 %v815, 104
    %v2559 = vadd.s32 %v815, 112
    %v2560 = vadd.s32 %v815, 120
    %v2561 = vadd.s32 %v815, 128
    %v2562 = vadd.s32 %v815, 136
    %v2563 = vadd.s32 %v815, 144
    %v2564 = vadd.s32 %v815, 152
    %v2565 = vadd.s32 %v815, 160
    %v2566 = vadd.s32 %v815, 168
    %v2567 = vadd.s32 %v815, 176
    %v2568 = vadd.s32 %v815, 184
    %v2569 = vadd.s32 %v815, 192
    %v2570 = vadd.s32 %v815, 200
    %v2571 = vadd.s32 %v815, 208
    %v2572 = vadd.s32 %v815, 216
    %v2573 = vadd.s32 %v815, 224
    %v2574 = vadd.s32 %v815, 232
    %v2575 = vadd.s32 %v815, 240
    %v2576 = vadd.s32 %v815, 248
    %v2577 = vadd.s32 %v815, 256
    %v2578 = vadd.s32 %v815, 264
    %v2579 = vadd.s32 %v815, 272
    %v2580 = vadd.s32 %v815, 280
    %v2581 = vadd.s32 %v815, 288
    %v2582 = vadd.s32 %v815, 296
    %v2583 = vadd.s32 %v815, 304
    %v2584 = vadd.s32 %v815, 312
    %v2585 = vadd.s32 %v815, 320
    %v2586 = vadd.s32 %v815, 328
    %v2587 = vadd.s32 %v815, 336
    %v2588 = vadd.s32 %v815, 344
    %v2589 = vadd.s32 %v815, 352
    %v2590 = vadd.s32 %v815, 360
    %v2591 = vadd.s32 %v815, 368
    %v2592 = vadd.s32 %v815, 376
    %v2593 = vadd.s32 %v815, 384
    %v2594 = vadd.s32 %v815, 392
    %v2595 = vadd.s32 %v815, 400
    %v2596 = vadd.s32 %v815, 408
    %v2597 = vadd.s32 %v815, 416
    %v2598 = vadd.s32 %v815, 424
    %v2599 = vadd.s32 %v815, 432
    %v2600 = vadd.s32 %v815, 440
    %v2601 = vadd.s32 %v815, 448
    %v2602 = vadd.s32 %v815, 456
    %v2603 = vadd.s32 %v815, 464
    %v2604 = vadd.s32 %v815, 472
    %v2605 = vadd.s32 %v815, 480
    %v2606 = vadd.s32 %v815, 488
    %v2607 = vadd.s32 %v815, 496
    %v2608 = vadd.s32 %v815, 504
    %v2609 = vshra.s32 %v815, 4
    %v2610 = vshra.s32 %v2546, 4
    %v2611 = vshra.s32 %v2547, 4
    %v2612 = vshra.s32 %v2548, 4
    %v2613 = vshra.s32 %v2549, 4
    %v2614 = vshra.s32 %v2550, 4
    %v2615 = vshra.s32 %v2551, 4
    %v2616 = vshra.s32 %v2552, 4
    %v2617 = vshra.s32 %v2553, 4
    %v2618 = vshra.s32 %v2554, 4
    %v2619 = vshra.s32 %v2555, 4
    %v2620 = vshra.s32 %v2556, 4
    %v2621 = vshra.s32 %v2557, 4
    %v2622 = vshra.s32 %v2558, 4
    %v2623 = vshra.s32 %v2559, 4
    %v2624 = vshra.s32 %v2560, 4
    %v2625 = vshra.s32 %v2561, 4
    %v2626 = vshra.s32 %v2562, 4
    %v2627 = vshra.s32 %v2563, 4
    %v2628 = vshra.s32 %v2564, 4
    %v2629 = vshra.s32 %v2565, 4
    %v2630 = vshra.s32 %v2566, 4
    %v2631 = vshra.s32 %v2567, 4
    %v2632 = vshra.s32 %v2568, 4
    %v2633 = vshra.s32 %v2569, 4
    %v2634 = vshra.s32 %v2570, 4
    %v2635 = vshra.s32 %v2571, 4
    %v2636 = vshra.s32 %v2572, 4
    %v2637 = vshra.s32 %v2573, 4
    %v2638 = vshra.s32 %v2574, 4
    %v2639 = vshra.s32 %v2575, 4
    %v2640 = vshra.s32 %v2576, 4
    %v2641 = vshra.s32 %v2577, 4
    %v2642 = vshra.s32 %v2578, 4
    %v2643 = vshra.s32 %v2579, 4
    %v2644 = vshra.s32 %v2580, 4
    %v2645 = vshra.s32 %v2581, 4
    %v2646 = vshra.s32 %v2582, 4
    %v2647 = vshra.s32 %v2583, 4
    %v2648 = vshra.s32 %v2584, 4
    %v2649 = vshra.s32 %v2585, 4
    %v2650 = vshra.s32 %v2586, 4
    %v2651 = vshra.s32 %v2587, 4
    %v2652 = vshra.s32 %v2588, 4
    %v2653 = vshra.s32 %v2589, 4
    %v2654 = vshra.s32 %v2590, 4
    %v2655 = vshra.s32 %v2591, 4
    %v2656 = vshra.s32 %v2592, 4
    %v2657 = vshra.s32 %v2593, 4
    %v2658 = vshra.s32 %v2594, 4
    %v2659 = vshra.s32 %v2595, 4
    %v2660 = vshra.s32 %v2596, 4
    %v2661 = vshra.s32 %v2597, 4
    %v2662 = vshra.s32 %v2598, 4
    %v2663 = vshra.s32 %v2599, 4
    %v2664 = vshra.s32 %v2600, 4
    %v2665 = vshra.s32 %v2601, 4
    %v2666 = vshra.s32 %v2602, 4
    %v2667 = vshra.s32 %v2603, 4
    %v2668 = vshra.s32 %v2604, 4
    %v2669 = vshra.s32 %v2605, 4
    %v2670 = vshra.s32 %v2606, 4
    %v2671 = vshra.s32 %v2607, 4
    %v2672 = vshra.s32 %v2608, 4
    %v2673 = vand.u32 %v2609, 15
    %v2674 = vand.u32 %v2610, 15
    %v2675 = vand.u32 %v2611, 15
    %v2676 = vand.u32 %v2612, 15
    %v2677 = vand.u32 %v2613, 15
    %v2678 = vand.u32 %v2614, 15
    %v2679 = vand.u32 %v2615, 15
    %v2680 = vand.u32 %v2616, 15
    %v2681 = vand.u32 %v2617, 15
    %v2682 = vand.u32 %v2618, 15
    %v2683 = vand.u32 %v2619, 15
    %v2684 = vand.u32 %v2620, 15
    %v2685 = vand.u32 %v2621, 15
    %v2686 = vand.u32 %v2622, 15
    %v2687 = vand.u32 %v2623, 15
    %v2688 = vand.u32 %v2624, 15
    %v2689 = vand.u32 %v2625, 15
    %v2690 = vand.u32 %v2626, 15
    %v2691 = vand.u32 %v2627, 15
    %v2692 = vand.u32 %v2628, 15
    %v2693 = vand.u32 %v2629, 15
    %v2694 = vand.u32 %v2630, 15
    %v2695 = vand.u32 %v2631, 15
    %v2696 = vand.u32 %v2632, 15
    %v2697 = vand.u32 %v2633, 15
    %v2698 = vand.u32 %v2634, 15
    %v2699 = vand.u32 %v2635, 15
    %v2700 = vand.u32 %v2636, 15
    %v2701 = vand.u32 %v2637, 15
    %v2702 = vand.u32 %v2638, 15
    %v2703 = vand.u32 %v2639, 15
    %v2704 = vand.u32 %v2640, 15
    %v2705 = vand.u32 %v2641, 15
    %v2706 = vand.u32 %v2642, 15
    %v2707 = vand.u32 %v2643, 15
    %v2708 = vand.u32 %v2644, 15
    %v2709 = vand.u32 %v2645, 15
    %v2710 = vand.u32 %v2646, 15
    %v2711 = vand.u32 %v2647, 15
    %v2712 = vand.u32 %v2648, 15
    %v2713 = vand.u32 %v2649, 15
    %v2714 = vand.u32 %v2650, 15
    %v2715 = vand.u32 %v2651, 15
    %v2716 = vand.u32 %v2652, 15
    %v2717 = vand.u32 %v2653, 15
    %v2718 = vand.u32 %v2654, 15
    %v2719 = vand.u32 %v2655, 15
    %v2720 = vand.u32 %v2656, 15
    %v2721 = vand.u32 %v2657, 15
    %v2722 = vand.u32 %v2658, 15
    %v2723 = vand.u32 %v2659, 15
    %v2724 = vand.u32 %v2660, 15
    %v2725 = vand.u32 %v2661, 15
    %v2726 = vand.u32 %v2662, 15
    %v2727 = vand.u32 %v2663, 15
    %v2728 = vand.u32 %v2664, 15
    %v2729 = vand.u32 %v2665, 15
    %v2730 = vand.u32 %v2666, 15
    %v2731 = vand.u32 %v2667, 15
    %v2732 = vand.u32 %v2668, 15
    %v2733 = vand.u32 %v2669, 15
    %v2734 = vand.u32 %v2670, 15
    %v2735 = vand.u32 %v2671, 15
    %v2736 = vand.u32 %v2672, 15
    %v2737 = vand.u32 %v815, 15
    %v2738 = vand.u32 %v2546, 15
    %v2739 = vand.u32 %v2547, 15
    %v2740 = vand.u32 %v2548, 15
    %v2741 = vand.u32 %v2549, 15
    %v2742 = vand.u32 %v2550, 15
    %v2743 = vand.u32 %v2551, 15
    %v2744 = vand.u32 %v2552, 15
    %v2745 = vand.u32 %v2553, 15
    %v2746 = vand.u32 %v2554, 15
    %v2747 = vand.u32 %v2555, 15
    %v2748 = vand.u32 %v2556, 15
    %v2749 = vand.u32 %v2557, 15
    %v2750 = vand.u32 %v2558, 15
    %v2751 = vand.u32 %v2559, 15
    %v2752 = vand.u32 %v2560, 15
    %v2753 = vand.u32 %v2561, 15
    %v2754 = vand.u32 %v2562, 15
    %v2755 = vand.u32 %v2563, 15
    %v2756 = vand.u32 %v2564, 15
    %v2757 = vand.u32 %v2565, 15
    %v2758 = vand.u32 %v2566, 15
    %v2759 = vand.u32 %v2567, 15
    %v2760 = vand.u32 %v2568, 15
    %v2761 = vand.u32 %v2569, 15
    %v2762 = vand.u32 %v2570, 15
    %v2763 = vand.u32 %v2571, 15
    %v2764 = vand.u32 %v2572, 15
    %v2765 = vand.u32 %v2573, 15
    %v2766 = vand.u32 %v2574, 15
    %v2767 = vand.u32 %v2575, 15
    %v2768 = vand.u32 %v2576, 15
    %v2769 = vand.u32 %v2577, 15
    %v2770 = vand.u32 %v2578, 15
    %v2771 = vand.u32 %v2579, 15
    %v2772 = vand.u32 %v2580, 15
    %v2773 = vand.u32 %v2581, 15
    %v2774 = vand.u32 %v2582, 15
    %v2775 = vand.u32 %v2583, 15
    %v2776 = vand.u32 %v2584, 15
    %v2777 = vand.u32 %v2585, 15
    %v2778 = vand.u32 %v2586, 15
    %v2779 = vand.u32 %v2587, 15
    %v2780 = vand.u32 %v2588, 15
    %v2781 = vand.u32 %v2589, 15
    %v2782 = vand.u32 %v2590, 15
    %v2783 = vand.u32 %v2591, 15
    %v2784 = vand.u32 %v2592, 15
    %v2785 = vand.u32 %v2593, 15
    %v2786 = vand.u32 %v2594, 15
    %v2787 = vand.u32 %v2595, 15
    %v2788 = vand.u32 %v2596, 15
    %v2789 = vand.u32 %v2597, 15
    %v2790 = vand.u32 %v2598, 15
    %v2791 = vand.u32 %v2599, 15
    %v2792 = vand.u32 %v2600, 15
    %v2793 = vand.u32 %v2601, 15
    %v2794 = vand.u32 %v2602, 15
    %v2795 = vand.u32 %v2603, 15
    %v2796 = vand.u32 %v2604, 15
    %v2797 = vand.u32 %v2605, 15
    %v2798 = vand.u32 %v2606, 15
    %v2799 = vand.u32 %v2607, 15
    %v2800 = vand.u32 %v2608, 15
    %v2801 = vlaneseq
    %v2802 = vand.u32 %v2801, 127
    %vm2803 = vcmp.ge.s32.totalorder %v2802, 4
    %v2804 = vsel %vm2803, 1, 0
    %vm2805 = vcmp.ge.s32.totalorder %v2802, 8
    %v2806 = vsel %vm2805, 1, 0
    %v2807 = vadd.s32 %v2804, %v2806
    %vm2808 = vcmp.ge.s32.totalorder %v2802, 12
    %v2809 = vsel %vm2808, 1, 0
    %v2810 = vadd.s32 %v2807, %v2809
    %vm2811 = vcmp.ge.s32.totalorder %v2802, 16
    %v2812 = vsel %vm2811, 1, 0
    %v2813 = vadd.s32 %v2810, %v2812
    %vm2814 = vcmp.ge.s32.totalorder %v2802, 20
    %v2815 = vsel %vm2814, 1, 0
    %v2816 = vadd.s32 %v2813, %v2815
    %vm2817 = vcmp.ge.s32.totalorder %v2802, 24
    %v2818 = vsel %vm2817, 1, 0
    %v2819 = vadd.s32 %v2816, %v2818
    %vm2820 = vcmp.ge.s32.totalorder %v2802, 28
    %v2821 = vsel %vm2820, 1, 0
    %v2822 = vadd.s32 %v2819, %v2821
    %vm2823 = vcmp.ge.s32.totalorder %v2802, 32
    %v2824 = vsel %vm2823, 1, 0
    %v2825 = vadd.s32 %v2822, %v2824
    %vm2826 = vcmp.ge.s32.totalorder %v2825, 3
    %v2827 = vsel %vm2826, 1, 0
    %vm2828 = vcmp.ge.s32.totalorder %v2825, 6
    %v2829 = vsel %vm2828, 1, 0
    %v2830 = vadd.s32 %v2827, %v2829
    %v2831 = vsub.s32 %v2830, 1
    %v2832 = vmul.u32 %v2830, 3
    %v2833 = vsub.s32 %v2825, %v2832
    %v2834 = vsub.s32 %v2833, 1
    %v2835 = vadd.s32 %v2673, %v2831
    %v2836 = vadd.s32 %v2674, %v2831
    %v2837 = vadd.s32 %v2675, %v2831
    %v2838 = vadd.s32 %v2676, %v2831
    %v2839 = vadd.s32 %v2677, %v2831
    %v2840 = vadd.s32 %v2678, %v2831
    %v2841 = vadd.s32 %v2679, %v2831
    %v2842 = vadd.s32 %v2680, %v2831
    %v2843 = vadd.s32 %v2681, %v2831
    %v2844 = vadd.s32 %v2682, %v2831
    %v2845 = vadd.s32 %v2683, %v2831
    %v2846 = vadd.s32 %v2684, %v2831
    %v2847 = vadd.s32 %v2685, %v2831
    %v2848 = vadd.s32 %v2686, %v2831
    %v2849 = vadd.s32 %v2687, %v2831
    %v2850 = vadd.s32 %v2688, %v2831
    %v2851 = vadd.s32 %v2689, %v2831
    %v2852 = vadd.s32 %v2690, %v2831
    %v2853 = vadd.s32 %v2691, %v2831
    %v2854 = vadd.s32 %v2692, %v2831
    %v2855 = vadd.s32 %v2693, %v2831
    %v2856 = vadd.s32 %v2694, %v2831
    %v2857 = vadd.s32 %v2695, %v2831
    %v2858 = vadd.s32 %v2696, %v2831
    %v2859 = vadd.s32 %v2697, %v2831
    %v2860 = vadd.s32 %v2698, %v2831
    %v2861 = vadd.s32 %v2699, %v2831
    %v2862 = vadd.s32 %v2700, %v2831
    %v2863 = vadd.s32 %v2701, %v2831
    %v2864 = vadd.s32 %v2702, %v2831
    %v2865 = vadd.s32 %v2703, %v2831
    %v2866 = vadd.s32 %v2704, %v2831
    %v2867 = vadd.s32 %v2705, %v2831
    %v2868 = vadd.s32 %v2706, %v2831
    %v2869 = vadd.s32 %v2707, %v2831
    %v2870 = vadd.s32 %v2708, %v2831
    %v2871 = vadd.s32 %v2709, %v2831
    %v2872 = vadd.s32 %v2710, %v2831
    %v2873 = vadd.s32 %v2711, %v2831
    %v2874 = vadd.s32 %v2712, %v2831
    %v2875 = vadd.s32 %v2713, %v2831
    %v2876 = vadd.s32 %v2714, %v2831
    %v2877 = vadd.s32 %v2715, %v2831
    %v2878 = vadd.s32 %v2716, %v2831
    %v2879 = vadd.s32 %v2717, %v2831
    %v2880 = vadd.s32 %v2718, %v2831
    %v2881 = vadd.s32 %v2719, %v2831
    %v2882 = vadd.s32 %v2720, %v2831
    %v2883 = vadd.s32 %v2721, %v2831
    %v2884 = vadd.s32 %v2722, %v2831
    %v2885 = vadd.s32 %v2723, %v2831
    %v2886 = vadd.s32 %v2724, %v2831
    %v2887 = vadd.s32 %v2725, %v2831
    %v2888 = vadd.s32 %v2726, %v2831
    %v2889 = vadd.s32 %v2727, %v2831
    %v2890 = vadd.s32 %v2728, %v2831
    %v2891 = vadd.s32 %v2729, %v2831
    %v2892 = vadd.s32 %v2730, %v2831
    %v2893 = vadd.s32 %v2731, %v2831
    %v2894 = vadd.s32 %v2732, %v2831
    %v2895 = vadd.s32 %v2733, %v2831
    %v2896 = vadd.s32 %v2734, %v2831
    %v2897 = vadd.s32 %v2735, %v2831
    %v2898 = vadd.s32 %v2736, %v2831
    %v2899 = vadd.s32 %v2737, %v2834
    %v2900 = vadd.s32 %v2738, %v2834
    %v2901 = vadd.s32 %v2739, %v2834
    %v2902 = vadd.s32 %v2740, %v2834
    %v2903 = vadd.s32 %v2741, %v2834
    %v2904 = vadd.s32 %v2742, %v2834
    %v2905 = vadd.s32 %v2743, %v2834
    %v2906 = vadd.s32 %v2744, %v2834
    %v2907 = vadd.s32 %v2745, %v2834
    %v2908 = vadd.s32 %v2746, %v2834
    %v2909 = vadd.s32 %v2747, %v2834
    %v2910 = vadd.s32 %v2748, %v2834
    %v2911 = vadd.s32 %v2749, %v2834
    %v2912 = vadd.s32 %v2750, %v2834
    %v2913 = vadd.s32 %v2751, %v2834
    %v2914 = vadd.s32 %v2752, %v2834
    %v2915 = vadd.s32 %v2753, %v2834
    %v2916 = vadd.s32 %v2754, %v2834
    %v2917 = vadd.s32 %v2755, %v2834
    %v2918 = vadd.s32 %v2756, %v2834
    %v2919 = vadd.s32 %v2757, %v2834
    %v2920 = vadd.s32 %v2758, %v2834
    %v2921 = vadd.s32 %v2759, %v2834
    %v2922 = vadd.s32 %v2760, %v2834
    %v2923 = vadd.s32 %v2761, %v2834
    %v2924 = vadd.s32 %v2762, %v2834
    %v2925 = vadd.s32 %v2763, %v2834
    %v2926 = vadd.s32 %v2764, %v2834
    %v2927 = vadd.s32 %v2765, %v2834
    %v2928 = vadd.s32 %v2766, %v2834
    %v2929 = vadd.s32 %v2767, %v2834
    %v2930 = vadd.s32 %v2768, %v2834
    %v2931 = vadd.s32 %v2769, %v2834
    %v2932 = vadd.s32 %v2770, %v2834
    %v2933 = vadd.s32 %v2771, %v2834
    %v2934 = vadd.s32 %v2772, %v2834
    %v2935 = vadd.s32 %v2773, %v2834
    %v2936 = vadd.s32 %v2774, %v2834
    %v2937 = vadd.s32 %v2775, %v2834
    %v2938 = vadd.s32 %v2776, %v2834
    %v2939 = vadd.s32 %v2777, %v2834
    %v2940 = vadd.s32 %v2778, %v2834
    %v2941 = vadd.s32 %v2779, %v2834
    %v2942 = vadd.s32 %v2780, %v2834
    %v2943 = vadd.s32 %v2781, %v2834
    %v2944 = vadd.s32 %v2782, %v2834
    %v2945 = vadd.s32 %v2783, %v2834
    %v2946 = vadd.s32 %v2784, %v2834
    %v2947 = vadd.s32 %v2785, %v2834
    %v2948 = vadd.s32 %v2786, %v2834
    %v2949 = vadd.s32 %v2787, %v2834
    %v2950 = vadd.s32 %v2788, %v2834
    %v2951 = vadd.s32 %v2789, %v2834
    %v2952 = vadd.s32 %v2790, %v2834
    %v2953 = vadd.s32 %v2791, %v2834
    %v2954 = vadd.s32 %v2792, %v2834
    %v2955 = vadd.s32 %v2793, %v2834
    %v2956 = vadd.s32 %v2794, %v2834
    %v2957 = vadd.s32 %v2795, %v2834
    %v2958 = vadd.s32 %v2796, %v2834
    %v2959 = vadd.s32 %v2797, %v2834
    %v2960 = vadd.s32 %v2798, %v2834
    %v2961 = vadd.s32 %v2799, %v2834
    %v2962 = vadd.s32 %v2800, %v2834
    %vm2963 = vcmp.ge.s32.totalorder %v2835, 0
    %vm2964 = vcmp.ge.s32.totalorder %v2836, 0
    %vm2965 = vcmp.ge.s32.totalorder %v2837, 0
    %vm2966 = vcmp.ge.s32.totalorder %v2838, 0
    %vm2967 = vcmp.ge.s32.totalorder %v2839, 0
    %vm2968 = vcmp.ge.s32.totalorder %v2840, 0
    %vm2969 = vcmp.ge.s32.totalorder %v2841, 0
    %vm2970 = vcmp.ge.s32.totalorder %v2842, 0
    %vm2971 = vcmp.ge.s32.totalorder %v2843, 0
    %vm2972 = vcmp.ge.s32.totalorder %v2844, 0
    %vm2973 = vcmp.ge.s32.totalorder %v2845, 0
    %vm2974 = vcmp.ge.s32.totalorder %v2846, 0
    %vm2975 = vcmp.ge.s32.totalorder %v2847, 0
    %vm2976 = vcmp.ge.s32.totalorder %v2848, 0
    %vm2977 = vcmp.ge.s32.totalorder %v2849, 0
    %vm2978 = vcmp.ge.s32.totalorder %v2850, 0
    %vm2979 = vcmp.ge.s32.totalorder %v2851, 0
    %vm2980 = vcmp.ge.s32.totalorder %v2852, 0
    %vm2981 = vcmp.ge.s32.totalorder %v2853, 0
    %vm2982 = vcmp.ge.s32.totalorder %v2854, 0
    %vm2983 = vcmp.ge.s32.totalorder %v2855, 0
    %vm2984 = vcmp.ge.s32.totalorder %v2856, 0
    %vm2985 = vcmp.ge.s32.totalorder %v2857, 0
    %vm2986 = vcmp.ge.s32.totalorder %v2858, 0
    %vm2987 = vcmp.ge.s32.totalorder %v2859, 0
    %vm2988 = vcmp.ge.s32.totalorder %v2860, 0
    %vm2989 = vcmp.ge.s32.totalorder %v2861, 0
    %vm2990 = vcmp.ge.s32.totalorder %v2862, 0
    %vm2991 = vcmp.ge.s32.totalorder %v2863, 0
    %vm2992 = vcmp.ge.s32.totalorder %v2864, 0
    %vm2993 = vcmp.ge.s32.totalorder %v2865, 0
    %vm2994 = vcmp.ge.s32.totalorder %v2866, 0
    %vm2995 = vcmp.ge.s32.totalorder %v2867, 0
    %vm2996 = vcmp.ge.s32.totalorder %v2868, 0
    %vm2997 = vcmp.ge.s32.totalorder %v2869, 0
    %vm2998 = vcmp.ge.s32.totalorder %v2870, 0
    %vm2999 = vcmp.ge.s32.totalorder %v2871, 0
    %vm3000 = vcmp.ge.s32.totalorder %v2872, 0
    %vm3001 = vcmp.ge.s32.totalorder %v2873, 0
    %vm3002 = vcmp.ge.s32.totalorder %v2874, 0
    %vm3003 = vcmp.ge.s32.totalorder %v2875, 0
    %vm3004 = vcmp.ge.s32.totalorder %v2876, 0
    %vm3005 = vcmp.ge.s32.totalorder %v2877, 0
    %vm3006 = vcmp.ge.s32.totalorder %v2878, 0
    %vm3007 = vcmp.ge.s32.totalorder %v2879, 0
    %vm3008 = vcmp.ge.s32.totalorder %v2880, 0
    %vm3009 = vcmp.ge.s32.totalorder %v2881, 0
    %vm3010 = vcmp.ge.s32.totalorder %v2882, 0
    %vm3011 = vcmp.ge.s32.totalorder %v2883, 0
    %vm3012 = vcmp.ge.s32.totalorder %v2884, 0
    %vm3013 = vcmp.ge.s32.totalorder %v2885, 0
    %vm3014 = vcmp.ge.s32.totalorder %v2886, 0
    %vm3015 = vcmp.ge.s32.totalorder %v2887, 0
    %vm3016 = vcmp.ge.s32.totalorder %v2888, 0
    %vm3017 = vcmp.ge.s32.totalorder %v2889, 0
    %vm3018 = vcmp.ge.s32.totalorder %v2890, 0
    %vm3019 = vcmp.ge.s32.totalorder %v2891, 0
    %vm3020 = vcmp.ge.s32.totalorder %v2892, 0
    %vm3021 = vcmp.ge.s32.totalorder %v2893, 0
    %vm3022 = vcmp.ge.s32.totalorder %v2894, 0
    %vm3023 = vcmp.ge.s32.totalorder %v2895, 0
    %vm3024 = vcmp.ge.s32.totalorder %v2896, 0
    %vm3025 = vcmp.ge.s32.totalorder %v2897, 0
    %vm3026 = vcmp.ge.s32.totalorder %v2898, 0
    %vm3027 = vcmp.lt.s32.totalorder %v2835, 16
    %vm3028 = vcmp.lt.s32.totalorder %v2836, 16
    %vm3029 = vcmp.lt.s32.totalorder %v2837, 16
    %vm3030 = vcmp.lt.s32.totalorder %v2838, 16
    %vm3031 = vcmp.lt.s32.totalorder %v2839, 16
    %vm3032 = vcmp.lt.s32.totalorder %v2840, 16
    %vm3033 = vcmp.lt.s32.totalorder %v2841, 16
    %vm3034 = vcmp.lt.s32.totalorder %v2842, 16
    %vm3035 = vcmp.lt.s32.totalorder %v2843, 16
    %vm3036 = vcmp.lt.s32.totalorder %v2844, 16
    %vm3037 = vcmp.lt.s32.totalorder %v2845, 16
    %vm3038 = vcmp.lt.s32.totalorder %v2846, 16
    %vm3039 = vcmp.lt.s32.totalorder %v2847, 16
    %vm3040 = vcmp.lt.s32.totalorder %v2848, 16
    %vm3041 = vcmp.lt.s32.totalorder %v2849, 16
    %vm3042 = vcmp.lt.s32.totalorder %v2850, 16
    %vm3043 = vcmp.lt.s32.totalorder %v2851, 16
    %vm3044 = vcmp.lt.s32.totalorder %v2852, 16
    %vm3045 = vcmp.lt.s32.totalorder %v2853, 16
    %vm3046 = vcmp.lt.s32.totalorder %v2854, 16
    %vm3047 = vcmp.lt.s32.totalorder %v2855, 16
    %vm3048 = vcmp.lt.s32.totalorder %v2856, 16
    %vm3049 = vcmp.lt.s32.totalorder %v2857, 16
    %vm3050 = vcmp.lt.s32.totalorder %v2858, 16
    %vm3051 = vcmp.lt.s32.totalorder %v2859, 16
    %vm3052 = vcmp.lt.s32.totalorder %v2860, 16
    %vm3053 = vcmp.lt.s32.totalorder %v2861, 16
    %vm3054 = vcmp.lt.s32.totalorder %v2862, 16
    %vm3055 = vcmp.lt.s32.totalorder %v2863, 16
    %vm3056 = vcmp.lt.s32.totalorder %v2864, 16
    %vm3057 = vcmp.lt.s32.totalorder %v2865, 16
    %vm3058 = vcmp.lt.s32.totalorder %v2866, 16
    %vm3059 = vcmp.lt.s32.totalorder %v2867, 16
    %vm3060 = vcmp.lt.s32.totalorder %v2868, 16
    %vm3061 = vcmp.lt.s32.totalorder %v2869, 16
    %vm3062 = vcmp.lt.s32.totalorder %v2870, 16
    %vm3063 = vcmp.lt.s32.totalorder %v2871, 16
    %vm3064 = vcmp.lt.s32.totalorder %v2872, 16
    %vm3065 = vcmp.lt.s32.totalorder %v2873, 16
    %vm3066 = vcmp.lt.s32.totalorder %v2874, 16
    %vm3067 = vcmp.lt.s32.totalorder %v2875, 16
    %vm3068 = vcmp.lt.s32.totalorder %v2876, 16
    %vm3069 = vcmp.lt.s32.totalorder %v2877, 16
    %vm3070 = vcmp.lt.s32.totalorder %v2878, 16
    %vm3071 = vcmp.lt.s32.totalorder %v2879, 16
    %vm3072 = vcmp.lt.s32.totalorder %v2880, 16
    %vm3073 = vcmp.lt.s32.totalorder %v2881, 16
    %vm3074 = vcmp.lt.s32.totalorder %v2882, 16
    %vm3075 = vcmp.lt.s32.totalorder %v2883, 16
    %vm3076 = vcmp.lt.s32.totalorder %v2884, 16
    %vm3077 = vcmp.lt.s32.totalorder %v2885, 16
    %vm3078 = vcmp.lt.s32.totalorder %v2886, 16
    %vm3079 = vcmp.lt.s32.totalorder %v2887, 16
    %vm3080 = vcmp.lt.s32.totalorder %v2888, 16
    %vm3081 = vcmp.lt.s32.totalorder %v2889, 16
    %vm3082 = vcmp.lt.s32.totalorder %v2890, 16
    %vm3083 = vcmp.lt.s32.totalorder %v2891, 16
    %vm3084 = vcmp.lt.s32.totalorder %v2892, 16
    %vm3085 = vcmp.lt.s32.totalorder %v2893, 16
    %vm3086 = vcmp.lt.s32.totalorder %v2894, 16
    %vm3087 = vcmp.lt.s32.totalorder %v2895, 16
    %vm3088 = vcmp.lt.s32.totalorder %v2896, 16
    %vm3089 = vcmp.lt.s32.totalorder %v2897, 16
    %vm3090 = vcmp.lt.s32.totalorder %v2898, 16
    %vm3091 = vmand %vm2963, %vm3027
    %vm3092 = vmand %vm2964, %vm3028
    %vm3093 = vmand %vm2965, %vm3029
    %vm3094 = vmand %vm2966, %vm3030
    %vm3095 = vmand %vm2967, %vm3031
    %vm3096 = vmand %vm2968, %vm3032
    %vm3097 = vmand %vm2969, %vm3033
    %vm3098 = vmand %vm2970, %vm3034
    %vm3099 = vmand %vm2971, %vm3035
    %vm3100 = vmand %vm2972, %vm3036
    %vm3101 = vmand %vm2973, %vm3037
    %vm3102 = vmand %vm2974, %vm3038
    %vm3103 = vmand %vm2975, %vm3039
    %vm3104 = vmand %vm2976, %vm3040
    %vm3105 = vmand %vm2977, %vm3041
    %vm3106 = vmand %vm2978, %vm3042
    %vm3107 = vmand %vm2979, %vm3043
    %vm3108 = vmand %vm2980, %vm3044
    %vm3109 = vmand %vm2981, %vm3045
    %vm3110 = vmand %vm2982, %vm3046
    %vm3111 = vmand %vm2983, %vm3047
    %vm3112 = vmand %vm2984, %vm3048
    %vm3113 = vmand %vm2985, %vm3049
    %vm3114 = vmand %vm2986, %vm3050
    %vm3115 = vmand %vm2987, %vm3051
    %vm3116 = vmand %vm2988, %vm3052
    %vm3117 = vmand %vm2989, %vm3053
    %vm3118 = vmand %vm2990, %vm3054
    %vm3119 = vmand %vm2991, %vm3055
    %vm3120 = vmand %vm2992, %vm3056
    %vm3121 = vmand %vm2993, %vm3057
    %vm3122 = vmand %vm2994, %vm3058
    %vm3123 = vmand %vm2995, %vm3059
    %vm3124 = vmand %vm2996, %vm3060
    %vm3125 = vmand %vm2997, %vm3061
    %vm3126 = vmand %vm2998, %vm3062
    %vm3127 = vmand %vm2999, %vm3063
    %vm3128 = vmand %vm3000, %vm3064
    %vm3129 = vmand %vm3001, %vm3065
    %vm3130 = vmand %vm3002, %vm3066
    %vm3131 = vmand %vm3003, %vm3067
    %vm3132 = vmand %vm3004, %vm3068
    %vm3133 = vmand %vm3005, %vm3069
    %vm3134 = vmand %vm3006, %vm3070
    %vm3135 = vmand %vm3007, %vm3071
    %vm3136 = vmand %vm3008, %vm3072
    %vm3137 = vmand %vm3009, %vm3073
    %vm3138 = vmand %vm3010, %vm3074
    %vm3139 = vmand %vm3011, %vm3075
    %vm3140 = vmand %vm3012, %vm3076
    %vm3141 = vmand %vm3013, %vm3077
    %vm3142 = vmand %vm3014, %vm3078
    %vm3143 = vmand %vm3015, %vm3079
    %vm3144 = vmand %vm3016, %vm3080
    %vm3145 = vmand %vm3017, %vm3081
    %vm3146 = vmand %vm3018, %vm3082
    %vm3147 = vmand %vm3019, %vm3083
    %vm3148 = vmand %vm3020, %vm3084
    %vm3149 = vmand %vm3021, %vm3085
    %vm3150 = vmand %vm3022, %vm3086
    %vm3151 = vmand %vm3023, %vm3087
    %vm3152 = vmand %vm3024, %vm3088
    %vm3153 = vmand %vm3025, %vm3089
    %vm3154 = vmand %vm3026, %vm3090
    %vm3155 = vcmp.ge.s32.totalorder %v2899, 0
    %vm3156 = vcmp.ge.s32.totalorder %v2900, 0
    %vm3157 = vcmp.ge.s32.totalorder %v2901, 0
    %vm3158 = vcmp.ge.s32.totalorder %v2902, 0
    %vm3159 = vcmp.ge.s32.totalorder %v2903, 0
    %vm3160 = vcmp.ge.s32.totalorder %v2904, 0
    %vm3161 = vcmp.ge.s32.totalorder %v2905, 0
    %vm3162 = vcmp.ge.s32.totalorder %v2906, 0
    %vm3163 = vcmp.ge.s32.totalorder %v2907, 0
    %vm3164 = vcmp.ge.s32.totalorder %v2908, 0
    %vm3165 = vcmp.ge.s32.totalorder %v2909, 0
    %vm3166 = vcmp.ge.s32.totalorder %v2910, 0
    %vm3167 = vcmp.ge.s32.totalorder %v2911, 0
    %vm3168 = vcmp.ge.s32.totalorder %v2912, 0
    %vm3169 = vcmp.ge.s32.totalorder %v2913, 0
    %vm3170 = vcmp.ge.s32.totalorder %v2914, 0
    %vm3171 = vcmp.ge.s32.totalorder %v2915, 0
    %vm3172 = vcmp.ge.s32.totalorder %v2916, 0
    %vm3173 = vcmp.ge.s32.totalorder %v2917, 0
    %vm3174 = vcmp.ge.s32.totalorder %v2918, 0
    %vm3175 = vcmp.ge.s32.totalorder %v2919, 0
    %vm3176 = vcmp.ge.s32.totalorder %v2920, 0
    %vm3177 = vcmp.ge.s32.totalorder %v2921, 0
    %vm3178 = vcmp.ge.s32.totalorder %v2922, 0
    %vm3179 = vcmp.ge.s32.totalorder %v2923, 0
    %vm3180 = vcmp.ge.s32.totalorder %v2924, 0
    %vm3181 = vcmp.ge.s32.totalorder %v2925, 0
    %vm3182 = vcmp.ge.s32.totalorder %v2926, 0
    %vm3183 = vcmp.ge.s32.totalorder %v2927, 0
    %vm3184 = vcmp.ge.s32.totalorder %v2928, 0
    %vm3185 = vcmp.ge.s32.totalorder %v2929, 0
    %vm3186 = vcmp.ge.s32.totalorder %v2930, 0
    %vm3187 = vcmp.ge.s32.totalorder %v2931, 0
    %vm3188 = vcmp.ge.s32.totalorder %v2932, 0
    %vm3189 = vcmp.ge.s32.totalorder %v2933, 0
    %vm3190 = vcmp.ge.s32.totalorder %v2934, 0
    %vm3191 = vcmp.ge.s32.totalorder %v2935, 0
    %vm3192 = vcmp.ge.s32.totalorder %v2936, 0
    %vm3193 = vcmp.ge.s32.totalorder %v2937, 0
    %vm3194 = vcmp.ge.s32.totalorder %v2938, 0
    %vm3195 = vcmp.ge.s32.totalorder %v2939, 0
    %vm3196 = vcmp.ge.s32.totalorder %v2940, 0
    %vm3197 = vcmp.ge.s32.totalorder %v2941, 0
    %vm3198 = vcmp.ge.s32.totalorder %v2942, 0
    %vm3199 = vcmp.ge.s32.totalorder %v2943, 0
    %vm3200 = vcmp.ge.s32.totalorder %v2944, 0
    %vm3201 = vcmp.ge.s32.totalorder %v2945, 0
    %vm3202 = vcmp.ge.s32.totalorder %v2946, 0
    %vm3203 = vcmp.ge.s32.totalorder %v2947, 0
    %vm3204 = vcmp.ge.s32.totalorder %v2948, 0
    %vm3205 = vcmp.ge.s32.totalorder %v2949, 0
    %vm3206 = vcmp.ge.s32.totalorder %v2950, 0
    %vm3207 = vcmp.ge.s32.totalorder %v2951, 0
    %vm3208 = vcmp.ge.s32.totalorder %v2952, 0
    %vm3209 = vcmp.ge.s32.totalorder %v2953, 0
    %vm3210 = vcmp.ge.s32.totalorder %v2954, 0
    %vm3211 = vcmp.ge.s32.totalorder %v2955, 0
    %vm3212 = vcmp.ge.s32.totalorder %v2956, 0
    %vm3213 = vcmp.ge.s32.totalorder %v2957, 0
    %vm3214 = vcmp.ge.s32.totalorder %v2958, 0
    %vm3215 = vcmp.ge.s32.totalorder %v2959, 0
    %vm3216 = vcmp.ge.s32.totalorder %v2960, 0
    %vm3217 = vcmp.ge.s32.totalorder %v2961, 0
    %vm3218 = vcmp.ge.s32.totalorder %v2962, 0
    %vm3219 = vmand %vm3091, %vm3155
    %vm3220 = vmand %vm3092, %vm3156
    %vm3221 = vmand %vm3093, %vm3157
    %vm3222 = vmand %vm3094, %vm3158
    %vm3223 = vmand %vm3095, %vm3159
    %vm3224 = vmand %vm3096, %vm3160
    %vm3225 = vmand %vm3097, %vm3161
    %vm3226 = vmand %vm3098, %vm3162
    %vm3227 = vmand %vm3099, %vm3163
    %vm3228 = vmand %vm3100, %vm3164
    %vm3229 = vmand %vm3101, %vm3165
    %vm3230 = vmand %vm3102, %vm3166
    %vm3231 = vmand %vm3103, %vm3167
    %vm3232 = vmand %vm3104, %vm3168
    %vm3233 = vmand %vm3105, %vm3169
    %vm3234 = vmand %vm3106, %vm3170
    %vm3235 = vmand %vm3107, %vm3171
    %vm3236 = vmand %vm3108, %vm3172
    %vm3237 = vmand %vm3109, %vm3173
    %vm3238 = vmand %vm3110, %vm3174
    %vm3239 = vmand %vm3111, %vm3175
    %vm3240 = vmand %vm3112, %vm3176
    %vm3241 = vmand %vm3113, %vm3177
    %vm3242 = vmand %vm3114, %vm3178
    %vm3243 = vmand %vm3115, %vm3179
    %vm3244 = vmand %vm3116, %vm3180
    %vm3245 = vmand %vm3117, %vm3181
    %vm3246 = vmand %vm3118, %vm3182
    %vm3247 = vmand %vm3119, %vm3183
    %vm3248 = vmand %vm3120, %vm3184
    %vm3249 = vmand %vm3121, %vm3185
    %vm3250 = vmand %vm3122, %vm3186
    %vm3251 = vmand %vm3123, %vm3187
    %vm3252 = vmand %vm3124, %vm3188
    %vm3253 = vmand %vm3125, %vm3189
    %vm3254 = vmand %vm3126, %vm3190
    %vm3255 = vmand %vm3127, %vm3191
    %vm3256 = vmand %vm3128, %vm3192
    %vm3257 = vmand %vm3129, %vm3193
    %vm3258 = vmand %vm3130, %vm3194
    %vm3259 = vmand %vm3131, %vm3195
    %vm3260 = vmand %vm3132, %vm3196
    %vm3261 = vmand %vm3133, %vm3197
    %vm3262 = vmand %vm3134, %vm3198
    %vm3263 = vmand %vm3135, %vm3199
    %vm3264 = vmand %vm3136, %vm3200
    %vm3265 = vmand %vm3137, %vm3201
    %vm3266 = vmand %vm3138, %vm3202
    %vm3267 = vmand %vm3139, %vm3203
    %vm3268 = vmand %vm3140, %vm3204
    %vm3269 = vmand %vm3141, %vm3205
    %vm3270 = vmand %vm3142, %vm3206
    %vm3271 = vmand %vm3143, %vm3207
    %vm3272 = vmand %vm3144, %vm3208
    %vm3273 = vmand %vm3145, %vm3209
    %vm3274 = vmand %vm3146, %vm3210
    %vm3275 = vmand %vm3147, %vm3211
    %vm3276 = vmand %vm3148, %vm3212
    %vm3277 = vmand %vm3149, %vm3213
    %vm3278 = vmand %vm3150, %vm3214
    %vm3279 = vmand %vm3151, %vm3215
    %vm3280 = vmand %vm3152, %vm3216
    %vm3281 = vmand %vm3153, %vm3217
    %vm3282 = vmand %vm3154, %vm3218
    %vm3283 = vcmp.lt.s32.totalorder %v2899, 16
    %vm3284 = vcmp.lt.s32.totalorder %v2900, 16
    %vm3285 = vcmp.lt.s32.totalorder %v2901, 16
    %vm3286 = vcmp.lt.s32.totalorder %v2902, 16
    %vm3287 = vcmp.lt.s32.totalorder %v2903, 16
    %vm3288 = vcmp.lt.s32.totalorder %v2904, 16
    %vm3289 = vcmp.lt.s32.totalorder %v2905, 16
    %vm3290 = vcmp.lt.s32.totalorder %v2906, 16
    %vm3291 = vcmp.lt.s32.totalorder %v2907, 16
    %vm3292 = vcmp.lt.s32.totalorder %v2908, 16
    %vm3293 = vcmp.lt.s32.totalorder %v2909, 16
    %vm3294 = vcmp.lt.s32.totalorder %v2910, 16
    %vm3295 = vcmp.lt.s32.totalorder %v2911, 16
    %vm3296 = vcmp.lt.s32.totalorder %v2912, 16
    %vm3297 = vcmp.lt.s32.totalorder %v2913, 16
    %vm3298 = vcmp.lt.s32.totalorder %v2914, 16
    %vm3299 = vcmp.lt.s32.totalorder %v2915, 16
    %vm3300 = vcmp.lt.s32.totalorder %v2916, 16
    %vm3301 = vcmp.lt.s32.totalorder %v2917, 16
    %vm3302 = vcmp.lt.s32.totalorder %v2918, 16
    %vm3303 = vcmp.lt.s32.totalorder %v2919, 16
    %vm3304 = vcmp.lt.s32.totalorder %v2920, 16
    %vm3305 = vcmp.lt.s32.totalorder %v2921, 16
    %vm3306 = vcmp.lt.s32.totalorder %v2922, 16
    %vm3307 = vcmp.lt.s32.totalorder %v2923, 16
    %vm3308 = vcmp.lt.s32.totalorder %v2924, 16
    %vm3309 = vcmp.lt.s32.totalorder %v2925, 16
    %vm3310 = vcmp.lt.s32.totalorder %v2926, 16
    %vm3311 = vcmp.lt.s32.totalorder %v2927, 16
    %vm3312 = vcmp.lt.s32.totalorder %v2928, 16
    %vm3313 = vcmp.lt.s32.totalorder %v2929, 16
    %vm3314 = vcmp.lt.s32.totalorder %v2930, 16
    %vm3315 = vcmp.lt.s32.totalorder %v2931, 16
    %vm3316 = vcmp.lt.s32.totalorder %v2932, 16
    %vm3317 = vcmp.lt.s32.totalorder %v2933, 16
    %vm3318 = vcmp.lt.s32.totalorder %v2934, 16
    %vm3319 = vcmp.lt.s32.totalorder %v2935, 16
    %vm3320 = vcmp.lt.s32.totalorder %v2936, 16
    %vm3321 = vcmp.lt.s32.totalorder %v2937, 16
    %vm3322 = vcmp.lt.s32.totalorder %v2938, 16
    %vm3323 = vcmp.lt.s32.totalorder %v2939, 16
    %vm3324 = vcmp.lt.s32.totalorder %v2940, 16
    %vm3325 = vcmp.lt.s32.totalorder %v2941, 16
    %vm3326 = vcmp.lt.s32.totalorder %v2942, 16
    %vm3327 = vcmp.lt.s32.totalorder %v2943, 16
    %vm3328 = vcmp.lt.s32.totalorder %v2944, 16
    %vm3329 = vcmp.lt.s32.totalorder %v2945, 16
    %vm3330 = vcmp.lt.s32.totalorder %v2946, 16
    %vm3331 = vcmp.lt.s32.totalorder %v2947, 16
    %vm3332 = vcmp.lt.s32.totalorder %v2948, 16
    %vm3333 = vcmp.lt.s32.totalorder %v2949, 16
    %vm3334 = vcmp.lt.s32.totalorder %v2950, 16
    %vm3335 = vcmp.lt.s32.totalorder %v2951, 16
    %vm3336 = vcmp.lt.s32.totalorder %v2952, 16
    %vm3337 = vcmp.lt.s32.totalorder %v2953, 16
    %vm3338 = vcmp.lt.s32.totalorder %v2954, 16
    %vm3339 = vcmp.lt.s32.totalorder %v2955, 16
    %vm3340 = vcmp.lt.s32.totalorder %v2956, 16
    %vm3341 = vcmp.lt.s32.totalorder %v2957, 16
    %vm3342 = vcmp.lt.s32.totalorder %v2958, 16
    %vm3343 = vcmp.lt.s32.totalorder %v2959, 16
    %vm3344 = vcmp.lt.s32.totalorder %v2960, 16
    %vm3345 = vcmp.lt.s32.totalorder %v2961, 16
    %vm3346 = vcmp.lt.s32.totalorder %v2962, 16
    %vm3347 = vmand %vm3219, %vm3283
    %vm3348 = vmand %vm3220, %vm3284
    %vm3349 = vmand %vm3221, %vm3285
    %vm3350 = vmand %vm3222, %vm3286
    %vm3351 = vmand %vm3223, %vm3287
    %vm3352 = vmand %vm3224, %vm3288
    %vm3353 = vmand %vm3225, %vm3289
    %vm3354 = vmand %vm3226, %vm3290
    %vm3355 = vmand %vm3227, %vm3291
    %vm3356 = vmand %vm3228, %vm3292
    %vm3357 = vmand %vm3229, %vm3293
    %vm3358 = vmand %vm3230, %vm3294
    %vm3359 = vmand %vm3231, %vm3295
    %vm3360 = vmand %vm3232, %vm3296
    %vm3361 = vmand %vm3233, %vm3297
    %vm3362 = vmand %vm3234, %vm3298
    %vm3363 = vmand %vm3235, %vm3299
    %vm3364 = vmand %vm3236, %vm3300
    %vm3365 = vmand %vm3237, %vm3301
    %vm3366 = vmand %vm3238, %vm3302
    %vm3367 = vmand %vm3239, %vm3303
    %vm3368 = vmand %vm3240, %vm3304
    %vm3369 = vmand %vm3241, %vm3305
    %vm3370 = vmand %vm3242, %vm3306
    %vm3371 = vmand %vm3243, %vm3307
    %vm3372 = vmand %vm3244, %vm3308
    %vm3373 = vmand %vm3245, %vm3309
    %vm3374 = vmand %vm3246, %vm3310
    %vm3375 = vmand %vm3247, %vm3311
    %vm3376 = vmand %vm3248, %vm3312
    %vm3377 = vmand %vm3249, %vm3313
    %vm3378 = vmand %vm3250, %vm3314
    %vm3379 = vmand %vm3251, %vm3315
    %vm3380 = vmand %vm3252, %vm3316
    %vm3381 = vmand %vm3253, %vm3317
    %vm3382 = vmand %vm3254, %vm3318
    %vm3383 = vmand %vm3255, %vm3319
    %vm3384 = vmand %vm3256, %vm3320
    %vm3385 = vmand %vm3257, %vm3321
    %vm3386 = vmand %vm3258, %vm3322
    %vm3387 = vmand %vm3259, %vm3323
    %vm3388 = vmand %vm3260, %vm3324
    %vm3389 = vmand %vm3261, %vm3325
    %vm3390 = vmand %vm3262, %vm3326
    %vm3391 = vmand %vm3263, %vm3327
    %vm3392 = vmand %vm3264, %vm3328
    %vm3393 = vmand %vm3265, %vm3329
    %vm3394 = vmand %vm3266, %vm3330
    %vm3395 = vmand %vm3267, %vm3331
    %vm3396 = vmand %vm3268, %vm3332
    %vm3397 = vmand %vm3269, %vm3333
    %vm3398 = vmand %vm3270, %vm3334
    %vm3399 = vmand %vm3271, %vm3335
    %vm3400 = vmand %vm3272, %vm3336
    %vm3401 = vmand %vm3273, %vm3337
    %vm3402 = vmand %vm3274, %vm3338
    %vm3403 = vmand %vm3275, %vm3339
    %vm3404 = vmand %vm3276, %vm3340
    %vm3405 = vmand %vm3277, %vm3341
    %vm3406 = vmand %vm3278, %vm3342
    %vm3407 = vmand %vm3279, %vm3343
    %vm3408 = vmand %vm3280, %vm3344
    %vm3409 = vmand %vm3281, %vm3345
    %vm3410 = vmand %vm3282, %vm3346
    %v3411 = vsel %vm3347, %v2482, 0.0
    %v3412 = vsel %vm3348, %v2483, 0.0
    %v3413 = vsel %vm3349, %v2484, 0.0
    %v3414 = vsel %vm3350, %v2485, 0.0
    %v3415 = vsel %vm3351, %v2486, 0.0
    %v3416 = vsel %vm3352, %v2487, 0.0
    %v3417 = vsel %vm3353, %v2488, 0.0
    %v3418 = vsel %vm3354, %v2489, 0.0
    %v3419 = vsel %vm3355, %v2490, 0.0
    %v3420 = vsel %vm3356, %v2491, 0.0
    %v3421 = vsel %vm3357, %v2492, 0.0
    %v3422 = vsel %vm3358, %v2493, 0.0
    %v3423 = vsel %vm3359, %v2494, 0.0
    %v3424 = vsel %vm3360, %v2495, 0.0
    %v3425 = vsel %vm3361, %v2496, 0.0
    %v3426 = vsel %vm3362, %v2497, 0.0
    %v3427 = vsel %vm3363, %v2498, 0.0
    %v3428 = vsel %vm3364, %v2499, 0.0
    %v3429 = vsel %vm3365, %v2500, 0.0
    %v3430 = vsel %vm3366, %v2501, 0.0
    %v3431 = vsel %vm3367, %v2502, 0.0
    %v3432 = vsel %vm3368, %v2503, 0.0
    %v3433 = vsel %vm3369, %v2504, 0.0
    %v3434 = vsel %vm3370, %v2505, 0.0
    %v3435 = vsel %vm3371, %v2506, 0.0
    %v3436 = vsel %vm3372, %v2507, 0.0
    %v3437 = vsel %vm3373, %v2508, 0.0
    %v3438 = vsel %vm3374, %v2509, 0.0
    %v3439 = vsel %vm3375, %v2510, 0.0
    %v3440 = vsel %vm3376, %v2511, 0.0
    %v3441 = vsel %vm3377, %v2512, 0.0
    %v3442 = vsel %vm3378, %v2513, 0.0
    %v3443 = vsel %vm3379, %v2514, 0.0
    %v3444 = vsel %vm3380, %v2515, 0.0
    %v3445 = vsel %vm3381, %v2516, 0.0
    %v3446 = vsel %vm3382, %v2517, 0.0
    %v3447 = vsel %vm3383, %v2518, 0.0
    %v3448 = vsel %vm3384, %v2519, 0.0
    %v3449 = vsel %vm3385, %v2520, 0.0
    %v3450 = vsel %vm3386, %v2521, 0.0
    %v3451 = vsel %vm3387, %v2522, 0.0
    %v3452 = vsel %vm3388, %v2523, 0.0
    %v3453 = vsel %vm3389, %v2524, 0.0
    %v3454 = vsel %vm3390, %v2525, 0.0
    %v3455 = vsel %vm3391, %v2526, 0.0
    %v3456 = vsel %vm3392, %v2527, 0.0
    %v3457 = vsel %vm3393, %v2528, 0.0
    %v3458 = vsel %vm3394, %v2529, 0.0
    %v3459 = vsel %vm3395, %v2530, 0.0
    %v3460 = vsel %vm3396, %v2531, 0.0
    %v3461 = vsel %vm3397, %v2532, 0.0
    %v3462 = vsel %vm3398, %v2533, 0.0
    %v3463 = vsel %vm3399, %v2534, 0.0
    %v3464 = vsel %vm3400, %v2535, 0.0
    %v3465 = vsel %vm3401, %v2536, 0.0
    %v3466 = vsel %vm3402, %v2537, 0.0
    %v3467 = vsel %vm3403, %v2538, 0.0
    %v3468 = vsel %vm3404, %v2539, 0.0
    %v3469 = vsel %vm3405, %v2540, 0.0
    %v3470 = vsel %vm3406, %v2541, 0.0
    %v3471 = vsel %vm3407, %v2542, 0.0
    %v3472 = vsel %vm3408, %v2543, 0.0
    %v3473 = vsel %vm3409, %v2544, 0.0
    %v3474 = vsel %vm3410, %v2545, 0.0
    %v3475 = vpack.c.bf16 %v3412, %v3411
    %v3476 = vpack.c.bf16 %v3414, %v3413
    %v3477 = vpack.c.bf16 %v3416, %v3415
    %v3478 = vpack.c.bf16 %v3418, %v3417
    %v3479 = vpack.c.bf16 %v3420, %v3419
    %v3480 = vpack.c.bf16 %v3422, %v3421
    %v3481 = vpack.c.bf16 %v3424, %v3423
    %v3482 = vpack.c.bf16 %v3426, %v3425
    %v3483 = vpack.c.bf16 %v3428, %v3427
    %v3484 = vpack.c.bf16 %v3430, %v3429
    %v3485 = vpack.c.bf16 %v3432, %v3431
    %v3486 = vpack.c.bf16 %v3434, %v3433
    %v3487 = vpack.c.bf16 %v3436, %v3435
    %v3488 = vpack.c.bf16 %v3438, %v3437
    %v3489 = vpack.c.bf16 %v3440, %v3439
    %v3490 = vpack.c.bf16 %v3442, %v3441
    %v3491 = vpack.c.bf16 %v3444, %v3443
    %v3492 = vpack.c.bf16 %v3446, %v3445
    %v3493 = vpack.c.bf16 %v3448, %v3447
    %v3494 = vpack.c.bf16 %v3450, %v3449
    %v3495 = vpack.c.bf16 %v3452, %v3451
    %v3496 = vpack.c.bf16 %v3454, %v3453
    %v3497 = vpack.c.bf16 %v3456, %v3455
    %v3498 = vpack.c.bf16 %v3458, %v3457
    %v3499 = vpack.c.bf16 %v3460, %v3459
    %v3500 = vpack.c.bf16 %v3462, %v3461
    %v3501 = vpack.c.bf16 %v3464, %v3463
    %v3502 = vpack.c.bf16 %v3466, %v3465
    %v3503 = vpack.c.bf16 %v3468, %v3467
    %v3504 = vpack.c.bf16 %v3470, %v3469
    %v3505 = vpack.c.bf16 %v3472, %v3471
    %v3506 = vpack.c.bf16 %v3474, %v3473
    %v3507 = vld [vmem:[#allocation5] sm:$0xf]
    %v3508 = vld [vmem:[#allocation5 + $0x4] sm:$0xf]
    %v3509 = vld [vmem:[#allocation5 + $0x8] sm:$0xf]
    %v3510 = vld [vmem:[#allocation5 + $0xc] sm:$0xf]
    %v3511 = vld [vmem:[#allocation5 + $0x10] sm:$0xf]
    %v3512 = vld [vmem:[#allocation5 + $0x14] sm:$0xf]
    %v3513 = vld [vmem:[#allocation5 + $0x18] sm:$0xf]
    %v3514 = vld [vmem:[#allocation5 + $0x1c] sm:$0xf]
    %v3515 = vld [vmem:[#allocation5 + $0x20] sm:$0xf]
    %v3516 = vld [vmem:[#allocation5 + $0x24] sm:$0xf]
    %v3517 = vld [vmem:[#allocation5 + $0x28] sm:$0xf]
    %v3518 = vld [vmem:[#allocation5 + $0x2c] sm:$0xf]
    %v3519 = vld [vmem:[#allocation5 + $0x30] sm:$0xf]
    %v3520 = vld [vmem:[#allocation5 + $0x34] sm:$0xf]
    %v3521 = vld [vmem:[#allocation5 + $0x38] sm:$0xf]
    %v3522 = vld [vmem:[#allocation5 + $0x3c] sm:$0xf]
    %v3523 = vld [vmem:[%s3] sm:$0x1]
    %v3525 = vperm.slane %v3523, 0
    %v3543 = vunpack.c.l.b16 %v3507
    %v3544 = vunpack.c.l.b16 %v3508
    %v3545 = vunpack.c.l.b16 %v3509
    %v3546 = vunpack.c.l.b16 %v3510
    %v3547 = vunpack.c.l.b16 %v3511
    %v3548 = vunpack.c.l.b16 %v3512
    %v3549 = vunpack.c.l.b16 %v3513
    %v3550 = vunpack.c.l.b16 %v3514
    %v3551 = vunpack.c.l.b16 %v3515
    %v3552 = vunpack.c.l.b16 %v3516
    %v3553 = vunpack.c.l.b16 %v3517
    %v3554 = vunpack.c.l.b16 %v3518
    %v3555 = vunpack.c.l.b16 %v3519
    %v3556 = vunpack.c.l.b16 %v3520
    %v3557 = vunpack.c.l.b16 %v3521
    %v3558 = vunpack.c.l.b16 %v3522
    %v3559 = vpack.c.b16 %v3544, %v3543
    %v3560 = vpack.c.b16 %v3546, %v3545
    %v3561 = vpack.c.b16 %v3548, %v3547
    %v3562 = vpack.c.b16 %v3550, %v3549
    %v3563 = vpack.c.b16 %v3552, %v3551
    %v3564 = vpack.c.b16 %v3554, %v3553
    %v3565 = vpack.c.b16 %v3556, %v3555
    %v3566 = vpack.c.b16 %v3558, %v3557
    %3575 = vmatpush.bf16.msra.mxu0 %v3566
    %3576 = vmatpush.bf16.msra.mxu0 %v3565
    %3577 = vmatpush.bf16.msra.mxu0 %v3564
    %3578 = vmatpush.bf16.msra.mxu0 %v3563
    %3579 = vmatpush.bf16.msra.mxu0 %v3562
    %3580 = vmatpush.bf16.msra.mxu0 %v3561
    %3581 = vmatpush.bf16.msra.mxu0 %v3560
    %3582 = vmatpush.bf16.msra.mxu0 %v3559
    %3583 = vmatmul.bf16.gmra.mxu0 %v3475
    %v3584 = vpop.f32.mrf.mxu0
    %v3585 = vadd.f32 %v3525, %v3584
    %v3586 = vpop.f32.mrf.mxu0
    %v3587 = vadd.f32 %v3525, %v3586
    %3588 = vmatmul.bf16.gmra.mxu0 %v3476
    %v3589 = vpop.f32.mrf.mxu0
    %v3590 = vadd.f32 %v3525, %v3589
    %v3591 = vpop.f32.mrf.mxu0
    %v3592 = vadd.f32 %v3525, %v3591
    %3593 = vmatmul.bf16.gmra.mxu0 %v3477
    %v3594 = vpop.f32.mrf.mxu0
    %v3595 = vadd.f32 %v3525, %v3594
    %v3596 = vpop.f32.mrf.mxu0
    %v3597 = vadd.f32 %v3525, %v3596
    %3598 = vmatmul.bf16.gmra.mxu0 %v3478
    %v3599 = vpop.f32.mrf.mxu0
    %v3600 = vadd.f32 %v3525, %v3599
    %v3601 = vpop.f32.mrf.mxu0
    %v3602 = vadd.f32 %v3525, %v3601
    %3603 = vmatmul.bf16.gmra.mxu0 %v3479
    %v3604 = vpop.f32.mrf.mxu0
    %v3605 = vadd.f32 %v3525, %v3604
    %v3606 = vpop.f32.mrf.mxu0
    %v3607 = vadd.f32 %v3525, %v3606
    %3608 = vmatmul.bf16.gmra.mxu0 %v3480
    %v3609 = vpop.f32.mrf.mxu0
    %v3610 = vadd.f32 %v3525, %v3609
    %v3611 = vpop.f32.mrf.mxu0
    %v3612 = vadd.f32 %v3525, %v3611
    %3613 = vmatmul.bf16.gmra.mxu0 %v3481
    %v3614 = vpop.f32.mrf.mxu0
    %v3615 = vadd.f32 %v3525, %v3614
    %v3616 = vpop.f32.mrf.mxu0
    %v3617 = vadd.f32 %v3525, %v3616
    %3618 = vmatmul.bf16.gmra.mxu0 %v3482
    %v3619 = vpop.f32.mrf.mxu0
    %v3620 = vadd.f32 %v3525, %v3619
    %v3621 = vpop.f32.mrf.mxu0
    %v3622 = vadd.f32 %v3525, %v3621
    %3623 = vmatmul.bf16.gmra.mxu0 %v3483
    %v3624 = vpop.f32.mrf.mxu0
    %v3625 = vadd.f32 %v3525, %v3624
    %v3626 = vpop.f32.mrf.mxu0
    %v3627 = vadd.f32 %v3525, %v3626
    %3628 = vmatmul.bf16.gmra.mxu0 %v3484
    %v3629 = vpop.f32.mrf.mxu0
    %v3630 = vadd.f32 %v3525, %v3629
    %v3631 = vpop.f32.mrf.mxu0
    %v3632 = vadd.f32 %v3525, %v3631
    %3633 = vmatmul.bf16.gmra.mxu0 %v3485
    %v3634 = vpop.f32.mrf.mxu0
    %v3635 = vadd.f32 %v3525, %v3634
    %v3636 = vpop.f32.mrf.mxu0
    %v3637 = vadd.f32 %v3525, %v3636
    %3638 = vmatmul.bf16.gmra.mxu0 %v3486
    %v3639 = vpop.f32.mrf.mxu0
    %v3640 = vadd.f32 %v3525, %v3639
    %v3641 = vpop.f32.mrf.mxu0
    %v3642 = vadd.f32 %v3525, %v3641
    %3643 = vmatmul.bf16.gmra.mxu0 %v3487
    %v3644 = vpop.f32.mrf.mxu0
    %v3645 = vadd.f32 %v3525, %v3644
    %v3646 = vpop.f32.mrf.mxu0
    %v3647 = vadd.f32 %v3525, %v3646
    %3648 = vmatmul.bf16.gmra.mxu0 %v3488
    %v3649 = vpop.f32.mrf.mxu0
    %v3650 = vadd.f32 %v3525, %v3649
    %v3651 = vpop.f32.mrf.mxu0
    %v3652 = vadd.f32 %v3525, %v3651
    %3653 = vmatmul.bf16.gmra.mxu0 %v3489
    %v3654 = vpop.f32.mrf.mxu0
    %v3655 = vadd.f32 %v3525, %v3654
    %v3656 = vpop.f32.mrf.mxu0
    %v3657 = vadd.f32 %v3525, %v3656
    %3658 = vmatmul.bf16.gmra.mxu0 %v3490
    %v3659 = vpop.f32.mrf.mxu0
    %v3660 = vadd.f32 %v3525, %v3659
    %v3661 = vpop.f32.mrf.mxu0
    %v3662 = vadd.f32 %v3525, %v3661
    %3663 = vmatmul.bf16.gmra.mxu0 %v3491
    %v3664 = vpop.f32.mrf.mxu0
    %v3665 = vadd.f32 %v3525, %v3664
    %v3666 = vpop.f32.mrf.mxu0
    %v3667 = vadd.f32 %v3525, %v3666
    %3668 = vmatmul.bf16.gmra.mxu0 %v3492
    %v3669 = vpop.f32.mrf.mxu0
    %v3670 = vadd.f32 %v3525, %v3669
    %v3671 = vpop.f32.mrf.mxu0
    %v3672 = vadd.f32 %v3525, %v3671
    %3673 = vmatmul.bf16.gmra.mxu0 %v3493
    %v3674 = vpop.f32.mrf.mxu0
    %v3675 = vadd.f32 %v3525, %v3674
    %v3676 = vpop.f32.mrf.mxu0
    %v3677 = vadd.f32 %v3525, %v3676
    %3678 = vmatmul.bf16.gmra.mxu0 %v3494
    %v3679 = vpop.f32.mrf.mxu0
    %v3680 = vadd.f32 %v3525, %v3679
    %v3681 = vpop.f32.mrf.mxu0
    %v3682 = vadd.f32 %v3525, %v3681
    %3683 = vmatmul.bf16.gmra.mxu0 %v3495
    %v3684 = vpop.f32.mrf.mxu0
    %v3685 = vadd.f32 %v3525, %v3684
    %v3686 = vpop.f32.mrf.mxu0
    %v3687 = vadd.f32 %v3525, %v3686
    %3688 = vmatmul.bf16.gmra.mxu0 %v3496
    %v3689 = vpop.f32.mrf.mxu0
    %v3690 = vadd.f32 %v3525, %v3689
    %v3691 = vpop.f32.mrf.mxu0
    %v3692 = vadd.f32 %v3525, %v3691
    %3693 = vmatmul.bf16.gmra.mxu0 %v3497
    %v3694 = vpop.f32.mrf.mxu0
    %v3695 = vadd.f32 %v3525, %v3694
    %v3696 = vpop.f32.mrf.mxu0
    %v3697 = vadd.f32 %v3525, %v3696
    %3698 = vmatmul.bf16.gmra.mxu0 %v3498
    %v3699 = vpop.f32.mrf.mxu0
    %v3700 = vadd.f32 %v3525, %v3699
    %v3701 = vpop.f32.mrf.mxu0
    %v3702 = vadd.f32 %v3525, %v3701
    %3703 = vmatmul.bf16.gmra.mxu0 %v3499
    %v3704 = vpop.f32.mrf.mxu0
    %v3705 = vadd.f32 %v3525, %v3704
    %v3706 = vpop.f32.mrf.mxu0
    %v3707 = vadd.f32 %v3525, %v3706
    %3708 = vmatmul.bf16.gmra.mxu0 %v3500
    %v3709 = vpop.f32.mrf.mxu0
    %v3710 = vadd.f32 %v3525, %v3709
    %v3711 = vpop.f32.mrf.mxu0
    %v3712 = vadd.f32 %v3525, %v3711
    %3713 = vmatmul.bf16.gmra.mxu0 %v3501
    %v3714 = vpop.f32.mrf.mxu0
    %v3715 = vadd.f32 %v3525, %v3714
    %v3716 = vpop.f32.mrf.mxu0
    %v3717 = vadd.f32 %v3525, %v3716
    %3718 = vmatmul.bf16.gmra.mxu0 %v3502
    %v3719 = vpop.f32.mrf.mxu0
    %v3720 = vadd.f32 %v3525, %v3719
    %v3721 = vpop.f32.mrf.mxu0
    %v3722 = vadd.f32 %v3525, %v3721
    %3723 = vmatmul.bf16.gmra.mxu0 %v3503
    %v3724 = vpop.f32.mrf.mxu0
    %v3725 = vadd.f32 %v3525, %v3724
    %v3726 = vpop.f32.mrf.mxu0
    %v3727 = vadd.f32 %v3525, %v3726
    %3728 = vmatmul.bf16.gmra.mxu0 %v3504
    %v3729 = vpop.f32.mrf.mxu0
    %v3730 = vadd.f32 %v3525, %v3729
    %v3731 = vpop.f32.mrf.mxu0
    %v3732 = vadd.f32 %v3525, %v3731
    %3733 = vmatmul.bf16.gmra.mxu0 %v3505
    %v3734 = vpop.f32.mrf.mxu0
    %v3735 = vadd.f32 %v3525, %v3734
    %v3736 = vpop.f32.mrf.mxu0
    %v3737 = vadd.f32 %v3525, %v3736
    %3738 = vmatmul.bf16.gmra.mxu0 %v3506
    %v3739 = vpop.f32.mrf.mxu0
    %v3740 = vadd.f32 %v3525, %v3739
    %v3741 = vpop.f32.mrf.mxu0
    %v3742 = vadd.f32 %v3525, %v3741
    %3743 = vdwg.mxu0
    %v3744 = vld [vmem:[%s7] sm:$0x1]
    %v3745 = vld [vmem:[%s8] sm:$0x1]
    %v3746 = vadd.f32 %v3585, %v3587
    %v3747 = vadd.f32 %v3746, %v3590
    %v3748 = vadd.f32 %v3747, %v3592
    %v3749 = vadd.f32 %v3748, %v3595
    %v3750 = vadd.f32 %v3749, %v3597
    %v3751 = vadd.f32 %v3750, %v3600
    %v3752 = vadd.f32 %v3751, %v3602
    %v3753 = vadd.f32 %v3752, %v3605
    %v3754 = vadd.f32 %v3753, %v3607
    %v3755 = vadd.f32 %v3754, %v3610
    %v3756 = vadd.f32 %v3755, %v3612
    %v3757 = vadd.f32 %v3756, %v3615
    %v3758 = vadd.f32 %v3757, %v3617
    %v3759 = vadd.f32 %v3758, %v3620
    %v3760 = vadd.f32 %v3759, %v3622
    %v3761 = vadd.f32 %v3760, %v3625
    %v3762 = vadd.f32 %v3761, %v3627
    %v3763 = vadd.f32 %v3762, %v3630
    %v3764 = vadd.f32 %v3763, %v3632
    %v3765 = vadd.f32 %v3764, %v3635
    %v3766 = vadd.f32 %v3765, %v3637
    %v3767 = vadd.f32 %v3766, %v3640
    %v3768 = vadd.f32 %v3767, %v3642
    %v3769 = vadd.f32 %v3768, %v3645
    %v3770 = vadd.f32 %v3769, %v3647
    %v3771 = vadd.f32 %v3770, %v3650
    %v3772 = vadd.f32 %v3771, %v3652
    %v3773 = vadd.f32 %v3772, %v3655
    %v3774 = vadd.f32 %v3773, %v3657
    %v3775 = vadd.f32 %v3774, %v3660
    %v3776 = vadd.f32 %v3775, %v3662
    %v3777 = vadd.f32 %v3776, %v3665
    %v3778 = vadd.f32 %v3777, %v3667
    %v3779 = vadd.f32 %v3778, %v3670
    %v3780 = vadd.f32 %v3779, %v3672
    %v3781 = vadd.f32 %v3780, %v3675
    %v3782 = vadd.f32 %v3781, %v3677
    %v3783 = vadd.f32 %v3782, %v3680
    %v3784 = vadd.f32 %v3783, %v3682
    %v3785 = vadd.f32 %v3784, %v3685
    %v3786 = vadd.f32 %v3785, %v3687
    %v3787 = vadd.f32 %v3786, %v3690
    %v3788 = vadd.f32 %v3787, %v3692
    %v3789 = vadd.f32 %v3788, %v3695
    %v3790 = vadd.f32 %v3789, %v3697
    %v3791 = vadd.f32 %v3790, %v3700
    %v3792 = vadd.f32 %v3791, %v3702
    %v3793 = vadd.f32 %v3792, %v3705
    %v3794 = vadd.f32 %v3793, %v3707
    %v3795 = vadd.f32 %v3794, %v3710
    %v3796 = vadd.f32 %v3795, %v3712
    %v3797 = vadd.f32 %v3796, %v3715
    %v3798 = vadd.f32 %v3797, %v3717
    %v3799 = vadd.f32 %v3798, %v3720
    %v3800 = vadd.f32 %v3799, %v3722
    %v3801 = vadd.f32 %v3800, %v3725
    %v3802 = vadd.f32 %v3801, %v3727
    %v3803 = vadd.f32 %v3802, %v3730
    %v3804 = vadd.f32 %v3803, %v3732
    %v3805 = vadd.f32 %v3804, %v3735
    %v3806 = vadd.f32 %v3805, %v3737
    %v3807 = vadd.f32 %v3806, %v3740
    %v3808 = vadd.f32 %v3807, %v3742
    %v3809 = vrot.slane %v3808, 4
    %v3810 = vadd.f32 %v3808, %v3809
    %v3811 = vrot.slane %v3810, 2
    %v3812 = vadd.f32 %v3810, %v3811
    %v3813 = vrot.slane %v3812, 1
    %v3814 = vadd.f32 %v3812, %v3813
    %v3815 = vmul.f32 %v3814, 0.001953125
    %v3816 = vsub.f32 %v3585, %v3815
    %v3817 = vsub.f32 %v3587, %v3815
    %v3818 = vsub.f32 %v3590, %v3815
    %v3819 = vsub.f32 %v3592, %v3815
    %v3820 = vsub.f32 %v3595, %v3815
    %v3821 = vsub.f32 %v3597, %v3815
    %v3822 = vsub.f32 %v3600, %v3815
    %v3823 = vsub.f32 %v3602, %v3815
    %v3824 = vsub.f32 %v3605, %v3815
    %v3825 = vsub.f32 %v3607, %v3815
    %v3826 = vsub.f32 %v3610, %v3815
    %v3827 = vsub.f32 %v3612, %v3815
    %v3828 = vsub.f32 %v3615, %v3815
    %v3829 = vsub.f32 %v3617, %v3815
    %v3830 = vsub.f32 %v3620, %v3815
    %v3831 = vsub.f32 %v3622, %v3815
    %v3832 = vsub.f32 %v3625, %v3815
    %v3833 = vsub.f32 %v3627, %v3815
    %v3834 = vsub.f32 %v3630, %v3815
    %v3835 = vsub.f32 %v3632, %v3815
    %v3836 = vsub.f32 %v3635, %v3815
    %v3837 = vsub.f32 %v3637, %v3815
    %v3838 = vsub.f32 %v3640, %v3815
    %v3839 = vsub.f32 %v3642, %v3815
    %v3840 = vsub.f32 %v3645, %v3815
    %v3841 = vsub.f32 %v3647, %v3815
    %v3842 = vsub.f32 %v3650, %v3815
    %v3843 = vsub.f32 %v3652, %v3815
    %v3844 = vsub.f32 %v3655, %v3815
    %v3845 = vsub.f32 %v3657, %v3815
    %v3846 = vsub.f32 %v3660, %v3815
    %v3847 = vsub.f32 %v3662, %v3815
    %v3848 = vsub.f32 %v3665, %v3815
    %v3849 = vsub.f32 %v3667, %v3815
    %v3850 = vsub.f32 %v3670, %v3815
    %v3851 = vsub.f32 %v3672, %v3815
    %v3852 = vsub.f32 %v3675, %v3815
    %v3853 = vsub.f32 %v3677, %v3815
    %v3854 = vsub.f32 %v3680, %v3815
    %v3855 = vsub.f32 %v3682, %v3815
    %v3856 = vsub.f32 %v3685, %v3815
    %v3857 = vsub.f32 %v3687, %v3815
    %v3858 = vsub.f32 %v3690, %v3815
    %v3859 = vsub.f32 %v3692, %v3815
    %v3860 = vsub.f32 %v3695, %v3815
    %v3861 = vsub.f32 %v3697, %v3815
    %v3862 = vsub.f32 %v3700, %v3815
    %v3863 = vsub.f32 %v3702, %v3815
    %v3864 = vsub.f32 %v3705, %v3815
    %v3865 = vsub.f32 %v3707, %v3815
    %v3866 = vsub.f32 %v3710, %v3815
    %v3867 = vsub.f32 %v3712, %v3815
    %v3868 = vsub.f32 %v3715, %v3815
    %v3869 = vsub.f32 %v3717, %v3815
    %v3870 = vsub.f32 %v3720, %v3815
    %v3871 = vsub.f32 %v3722, %v3815
    %v3872 = vsub.f32 %v3725, %v3815
    %v3873 = vsub.f32 %v3727, %v3815
    %v3874 = vsub.f32 %v3730, %v3815
    %v3875 = vsub.f32 %v3732, %v3815
    %v3876 = vsub.f32 %v3735, %v3815
    %v3877 = vsub.f32 %v3737, %v3815
    %v3878 = vsub.f32 %v3740, %v3815
    %v3879 = vsub.f32 %v3742, %v3815
    %v3880 = vmul.f32 %v3816, %v3816
    %v3881 = vmul.f32 %v3817, %v3817
    %v3882 = vmul.f32 %v3818, %v3818
    %v3883 = vmul.f32 %v3819, %v3819
    %v3884 = vmul.f32 %v3820, %v3820
    %v3885 = vmul.f32 %v3821, %v3821
    %v3886 = vmul.f32 %v3822, %v3822
    %v3887 = vmul.f32 %v3823, %v3823
    %v3888 = vmul.f32 %v3824, %v3824
    %v3889 = vmul.f32 %v3825, %v3825
    %v3890 = vmul.f32 %v3826, %v3826
    %v3891 = vmul.f32 %v3827, %v3827
    %v3892 = vmul.f32 %v3828, %v3828
    %v3893 = vmul.f32 %v3829, %v3829
    %v3894 = vmul.f32 %v3830, %v3830
    %v3895 = vmul.f32 %v3831, %v3831
    %v3896 = vmul.f32 %v3832, %v3832
    %v3897 = vmul.f32 %v3833, %v3833
    %v3898 = vmul.f32 %v3834, %v3834
    %v3899 = vmul.f32 %v3835, %v3835
    %v3900 = vmul.f32 %v3836, %v3836
    %v3901 = vmul.f32 %v3837, %v3837
    %v3902 = vmul.f32 %v3838, %v3838
    %v3903 = vmul.f32 %v3839, %v3839
    %v3904 = vmul.f32 %v3840, %v3840
    %v3905 = vmul.f32 %v3841, %v3841
    %v3906 = vmul.f32 %v3842, %v3842
    %v3907 = vmul.f32 %v3843, %v3843
    %v3908 = vmul.f32 %v3844, %v3844
    %v3909 = vmul.f32 %v3845, %v3845
    %v3910 = vmul.f32 %v3846, %v3846
    %v3911 = vmul.f32 %v3847, %v3847
    %v3912 = vmul.f32 %v3848, %v3848
    %v3913 = vmul.f32 %v3849, %v3849
    %v3914 = vmul.f32 %v3850, %v3850
    %v3915 = vmul.f32 %v3851, %v3851
    %v3916 = vmul.f32 %v3852, %v3852
    %v3917 = vmul.f32 %v3853, %v3853
    %v3918 = vmul.f32 %v3854, %v3854
    %v3919 = vmul.f32 %v3855, %v3855
    %v3920 = vmul.f32 %v3856, %v3856
    %v3921 = vmul.f32 %v3857, %v3857
    %v3922 = vmul.f32 %v3858, %v3858
    %v3923 = vmul.f32 %v3859, %v3859
    %v3924 = vmul.f32 %v3860, %v3860
    %v3925 = vmul.f32 %v3861, %v3861
    %v3926 = vmul.f32 %v3862, %v3862
    %v3927 = vmul.f32 %v3863, %v3863
    %v3928 = vmul.f32 %v3864, %v3864
    %v3929 = vmul.f32 %v3865, %v3865
    %v3930 = vmul.f32 %v3866, %v3866
    %v3931 = vmul.f32 %v3867, %v3867
    %v3932 = vmul.f32 %v3868, %v3868
    %v3933 = vmul.f32 %v3869, %v3869
    %v3934 = vmul.f32 %v3870, %v3870
    %v3935 = vmul.f32 %v3871, %v3871
    %v3936 = vmul.f32 %v3872, %v3872
    %v3937 = vmul.f32 %v3873, %v3873
    %v3938 = vmul.f32 %v3874, %v3874
    %v3939 = vmul.f32 %v3875, %v3875
    %v3940 = vmul.f32 %v3876, %v3876
    %v3941 = vmul.f32 %v3877, %v3877
    %v3942 = vmul.f32 %v3878, %v3878
    %v3943 = vmul.f32 %v3879, %v3879
    %v3944 = vadd.f32 %v3880, %v3881
    %v3945 = vadd.f32 %v3944, %v3882
    %v3946 = vadd.f32 %v3945, %v3883
    %v3947 = vadd.f32 %v3946, %v3884
    %v3948 = vadd.f32 %v3947, %v3885
    %v3949 = vadd.f32 %v3948, %v3886
    %v3950 = vadd.f32 %v3949, %v3887
    %v3951 = vadd.f32 %v3950, %v3888
    %v3952 = vadd.f32 %v3951, %v3889
    %v3953 = vadd.f32 %v3952, %v3890
    %v3954 = vadd.f32 %v3953, %v3891
    %v3955 = vadd.f32 %v3954, %v3892
    %v3956 = vadd.f32 %v3955, %v3893
    %v3957 = vadd.f32 %v3956, %v3894
    %v3958 = vadd.f32 %v3957, %v3895
    %v3959 = vadd.f32 %v3958, %v3896
    %v3960 = vadd.f32 %v3959, %v3897
    %v3961 = vadd.f32 %v3960, %v3898
    %v3962 = vadd.f32 %v3961, %v3899
    %v3963 = vadd.f32 %v3962, %v3900
    %v3964 = vadd.f32 %v3963, %v3901
    %v3965 = vadd.f32 %v3964, %v3902
    %v3966 = vadd.f32 %v3965, %v3903
    %v3967 = vadd.f32 %v3966, %v3904
    %v3968 = vadd.f32 %v3967, %v3905
    %v3969 = vadd.f32 %v3968, %v3906
    %v3970 = vadd.f32 %v3969, %v3907
    %v3971 = vadd.f32 %v3970, %v3908
    %v3972 = vadd.f32 %v3971, %v3909
    %v3973 = vadd.f32 %v3972, %v3910
    %v3974 = vadd.f32 %v3973, %v3911
    %v3975 = vadd.f32 %v3974, %v3912
    %v3976 = vadd.f32 %v3975, %v3913
    %v3977 = vadd.f32 %v3976, %v3914
    %v3978 = vadd.f32 %v3977, %v3915
    %v3979 = vadd.f32 %v3978, %v3916
    %v3980 = vadd.f32 %v3979, %v3917
    %v3981 = vadd.f32 %v3980, %v3918
    %v3982 = vadd.f32 %v3981, %v3919
    %v3983 = vadd.f32 %v3982, %v3920
    %v3984 = vadd.f32 %v3983, %v3921
    %v3985 = vadd.f32 %v3984, %v3922
    %v3986 = vadd.f32 %v3985, %v3923
    %v3987 = vadd.f32 %v3986, %v3924
    %v3988 = vadd.f32 %v3987, %v3925
    %v3989 = vadd.f32 %v3988, %v3926
    %v3990 = vadd.f32 %v3989, %v3927
    %v3991 = vadd.f32 %v3990, %v3928
    %v3992 = vadd.f32 %v3991, %v3929
    %v3993 = vadd.f32 %v3992, %v3930
    %v3994 = vadd.f32 %v3993, %v3931
    %v3995 = vadd.f32 %v3994, %v3932
    %v3996 = vadd.f32 %v3995, %v3933
    %v3997 = vadd.f32 %v3996, %v3934
    %v3998 = vadd.f32 %v3997, %v3935
    %v3999 = vadd.f32 %v3998, %v3936
    %v4000 = vadd.f32 %v3999, %v3937
    %v4001 = vadd.f32 %v4000, %v3938
    %v4002 = vadd.f32 %v4001, %v3939
    %v4003 = vadd.f32 %v4002, %v3940
    %v4004 = vadd.f32 %v4003, %v3941
    %v4005 = vadd.f32 %v4004, %v3942
    %v4006 = vadd.f32 %v4005, %v3943
    %v4007 = vrot.slane %v4006, 4
    %v4008 = vadd.f32 %v4006, %v4007
    %v4009 = vrot.slane %v4008, 2
    %v4010 = vadd.f32 %v4008, %v4009
    %v4011 = vrot.slane %v4010, 1
    %v4012 = vadd.f32 %v4010, %v4011
    %v4013 = vmul.f32 %v4012, 0.001953125
    %v4014 = vadd.f32 %v4013, 1e-05
    %v4015 = vrsqrt.pop %v4014
    %v4016 = vmul.f32 %v4015, %v4014
    %v4017 = vmul.f32 %v4016, %v4015
    %v4018 = vmul.f32 0.5, %v4017
    %v4019 = vsub.f32 1.5, %v4018
    %v4020 = vmul.f32 %v4015, %v4019
    %vm4021 = vweird.f32 %v4014
    %vm4022 = vweird.f32 %v4015
    %vm4023 = vmor %vm4021, %vm4022
    %v4024 = vsel %vm4023, %v4015, %v4020
    %v4025 = vmul.f32 %v4024, %v3744
    %v4026 = vperm.slane %v4025, 0
    %v4027 = vmul.f32 %v3816, %v4026
    %v4028 = vmul.f32 %v3817, %v4026
    %v4029 = vmul.f32 %v3818, %v4026
    %v4030 = vmul.f32 %v3819, %v4026
    %v4031 = vmul.f32 %v3820, %v4026
    %v4032 = vmul.f32 %v3821, %v4026
    %v4033 = vmul.f32 %v3822, %v4026
    %v4034 = vmul.f32 %v3823, %v4026
    %v4035 = vmul.f32 %v3824, %v4026
    %v4036 = vmul.f32 %v3825, %v4026
    %v4037 = vmul.f32 %v3826, %v4026
    %v4038 = vmul.f32 %v3827, %v4026
    %v4039 = vmul.f32 %v3828, %v4026
    %v4040 = vmul.f32 %v3829, %v4026
    %v4041 = vmul.f32 %v3830, %v4026
    %v4042 = vmul.f32 %v3831, %v4026
    %v4043 = vmul.f32 %v3832, %v4026
    %v4044 = vmul.f32 %v3833, %v4026
    %v4045 = vmul.f32 %v3834, %v4026
    %v4046 = vmul.f32 %v3835, %v4026
    %v4047 = vmul.f32 %v3836, %v4026
    %v4048 = vmul.f32 %v3837, %v4026
    %v4049 = vmul.f32 %v3838, %v4026
    %v4050 = vmul.f32 %v3839, %v4026
    %v4051 = vmul.f32 %v3840, %v4026
    %v4052 = vmul.f32 %v3841, %v4026
    %v4053 = vmul.f32 %v3842, %v4026
    %v4054 = vmul.f32 %v3843, %v4026
    %v4055 = vmul.f32 %v3844, %v4026
    %v4056 = vmul.f32 %v3845, %v4026
    %v4057 = vmul.f32 %v3846, %v4026
    %v4058 = vmul.f32 %v3847, %v4026
    %v4059 = vmul.f32 %v3848, %v4026
    %v4060 = vmul.f32 %v3849, %v4026
    %v4061 = vmul.f32 %v3850, %v4026
    %v4062 = vmul.f32 %v3851, %v4026
    %v4063 = vmul.f32 %v3852, %v4026
    %v4064 = vmul.f32 %v3853, %v4026
    %v4065 = vmul.f32 %v3854, %v4026
    %v4066 = vmul.f32 %v3855, %v4026
    %v4067 = vmul.f32 %v3856, %v4026
    %v4068 = vmul.f32 %v3857, %v4026
    %v4069 = vmul.f32 %v3858, %v4026
    %v4070 = vmul.f32 %v3859, %v4026
    %v4071 = vmul.f32 %v3860, %v4026
    %v4072 = vmul.f32 %v3861, %v4026
    %v4073 = vmul.f32 %v3862, %v4026
    %v4074 = vmul.f32 %v3863, %v4026
    %v4075 = vmul.f32 %v3864, %v4026
    %v4076 = vmul.f32 %v3865, %v4026
    %v4077 = vmul.f32 %v3866, %v4026
    %v4078 = vmul.f32 %v3867, %v4026
    %v4079 = vmul.f32 %v3868, %v4026
    %v4080 = vmul.f32 %v3869, %v4026
    %v4081 = vmul.f32 %v3870, %v4026
    %v4082 = vmul.f32 %v3871, %v4026
    %v4083 = vmul.f32 %v3872, %v4026
    %v4084 = vmul.f32 %v3873, %v4026
    %v4085 = vmul.f32 %v3874, %v4026
    %v4086 = vmul.f32 %v3875, %v4026
    %v4087 = vmul.f32 %v3876, %v4026
    %v4088 = vmul.f32 %v3877, %v4026
    %v4089 = vmul.f32 %v3878, %v4026
    %v4090 = vmul.f32 %v3879, %v4026
    %v4092 = vperm.slane %v3745, 0
    %v4094 = vadd.f32 %v4027, %v4092
    %v4095 = vadd.f32 %v4028, %v4092
    %v4096 = vadd.f32 %v4029, %v4092
    %v4097 = vadd.f32 %v4030, %v4092
    %v4098 = vadd.f32 %v4031, %v4092
    %v4099 = vadd.f32 %v4032, %v4092
    %v4100 = vadd.f32 %v4033, %v4092
    %v4101 = vadd.f32 %v4034, %v4092
    %v4102 = vadd.f32 %v4035, %v4092
    %v4103 = vadd.f32 %v4036, %v4092
    %v4104 = vadd.f32 %v4037, %v4092
    %v4105 = vadd.f32 %v4038, %v4092
    %v4106 = vadd.f32 %v4039, %v4092
    %v4107 = vadd.f32 %v4040, %v4092
    %v4108 = vadd.f32 %v4041, %v4092
    %v4109 = vadd.f32 %v4042, %v4092
    %v4110 = vadd.f32 %v4043, %v4092
    %v4111 = vadd.f32 %v4044, %v4092
    %v4112 = vadd.f32 %v4045, %v4092
    %v4113 = vadd.f32 %v4046, %v4092
    %v4114 = vadd.f32 %v4047, %v4092
    %v4115 = vadd.f32 %v4048, %v4092
    %v4116 = vadd.f32 %v4049, %v4092
    %v4117 = vadd.f32 %v4050, %v4092
    %v4118 = vadd.f32 %v4051, %v4092
    %v4119 = vadd.f32 %v4052, %v4092
    %v4120 = vadd.f32 %v4053, %v4092
    %v4121 = vadd.f32 %v4054, %v4092
    %v4122 = vadd.f32 %v4055, %v4092
    %v4123 = vadd.f32 %v4056, %v4092
    %v4124 = vadd.f32 %v4057, %v4092
    %v4125 = vadd.f32 %v4058, %v4092
    %v4126 = vadd.f32 %v4059, %v4092
    %v4127 = vadd.f32 %v4060, %v4092
    %v4128 = vadd.f32 %v4061, %v4092
    %v4129 = vadd.f32 %v4062, %v4092
    %v4130 = vadd.f32 %v4063, %v4092
    %v4131 = vadd.f32 %v4064, %v4092
    %v4132 = vadd.f32 %v4065, %v4092
    %v4133 = vadd.f32 %v4066, %v4092
    %v4134 = vadd.f32 %v4067, %v4092
    %v4135 = vadd.f32 %v4068, %v4092
    %v4136 = vadd.f32 %v4069, %v4092
    %v4137 = vadd.f32 %v4070, %v4092
    %v4138 = vadd.f32 %v4071, %v4092
    %v4139 = vadd.f32 %v4072, %v4092
    %v4140 = vadd.f32 %v4073, %v4092
    %v4141 = vadd.f32 %v4074, %v4092
    %v4142 = vadd.f32 %v4075, %v4092
    %v4143 = vadd.f32 %v4076, %v4092
    %v4144 = vadd.f32 %v4077, %v4092
    %v4145 = vadd.f32 %v4078, %v4092
    %v4146 = vadd.f32 %v4079, %v4092
    %v4147 = vadd.f32 %v4080, %v4092
    %v4148 = vadd.f32 %v4081, %v4092
    %v4149 = vadd.f32 %v4082, %v4092
    %v4150 = vadd.f32 %v4083, %v4092
    %v4151 = vadd.f32 %v4084, %v4092
    %v4152 = vadd.f32 %v4085, %v4092
    %v4153 = vadd.f32 %v4086, %v4092
    %v4154 = vadd.f32 %v4087, %v4092
    %v4155 = vadd.f32 %v4088, %v4092
    %v4156 = vadd.f32 %v4089, %v4092
    %v4157 = vadd.f32 %v4090, %v4092
    %vm4158 = vcmp.gt.f32.partialorder %v4094, 0.0
    %vm4159 = vcmp.gt.f32.partialorder %v4095, 0.0
    %vm4160 = vcmp.gt.f32.partialorder %v4096, 0.0
    %vm4161 = vcmp.gt.f32.partialorder %v4097, 0.0
    %vm4162 = vcmp.gt.f32.partialorder %v4098, 0.0
    %vm4163 = vcmp.gt.f32.partialorder %v4099, 0.0
    %vm4164 = vcmp.gt.f32.partialorder %v4100, 0.0
    %vm4165 = vcmp.gt.f32.partialorder %v4101, 0.0
    %vm4166 = vcmp.gt.f32.partialorder %v4102, 0.0
    %vm4167 = vcmp.gt.f32.partialorder %v4103, 0.0
    %vm4168 = vcmp.gt.f32.partialorder %v4104, 0.0
    %vm4169 = vcmp.gt.f32.partialorder %v4105, 0.0
    %vm4170 = vcmp.gt.f32.partialorder %v4106, 0.0
    %vm4171 = vcmp.gt.f32.partialorder %v4107, 0.0
    %vm4172 = vcmp.gt.f32.partialorder %v4108, 0.0
    %vm4173 = vcmp.gt.f32.partialorder %v4109, 0.0
    %vm4174 = vcmp.gt.f32.partialorder %v4110, 0.0
    %vm4175 = vcmp.gt.f32.partialorder %v4111, 0.0
    %vm4176 = vcmp.gt.f32.partialorder %v4112, 0.0
    %vm4177 = vcmp.gt.f32.partialorder %v4113, 0.0
    %vm4178 = vcmp.gt.f32.partialorder %v4114, 0.0
    %vm4179 = vcmp.gt.f32.partialorder %v4115, 0.0
    %vm4180 = vcmp.gt.f32.partialorder %v4116, 0.0
    %vm4181 = vcmp.gt.f32.partialorder %v4117, 0.0
    %vm4182 = vcmp.gt.f32.partialorder %v4118, 0.0
    %vm4183 = vcmp.gt.f32.partialorder %v4119, 0.0
    %vm4184 = vcmp.gt.f32.partialorder %v4120, 0.0
    %vm4185 = vcmp.gt.f32.partialorder %v4121, 0.0
    %vm4186 = vcmp.gt.f32.partialorder %v4122, 0.0
    %vm4187 = vcmp.gt.f32.partialorder %v4123, 0.0
    %vm4188 = vcmp.gt.f32.partialorder %v4124, 0.0
    %vm4189 = vcmp.gt.f32.partialorder %v4125, 0.0
    %vm4190 = vcmp.gt.f32.partialorder %v4126, 0.0
    %vm4191 = vcmp.gt.f32.partialorder %v4127, 0.0
    %vm4192 = vcmp.gt.f32.partialorder %v4128, 0.0
    %vm4193 = vcmp.gt.f32.partialorder %v4129, 0.0
    %vm4194 = vcmp.gt.f32.partialorder %v4130, 0.0
    %vm4195 = vcmp.gt.f32.partialorder %v4131, 0.0
    %vm4196 = vcmp.gt.f32.partialorder %v4132, 0.0
    %vm4197 = vcmp.gt.f32.partialorder %v4133, 0.0
    %vm4198 = vcmp.gt.f32.partialorder %v4134, 0.0
    %vm4199 = vcmp.gt.f32.partialorder %v4135, 0.0
    %vm4200 = vcmp.gt.f32.partialorder %v4136, 0.0
    %vm4201 = vcmp.gt.f32.partialorder %v4137, 0.0
    %vm4202 = vcmp.gt.f32.partialorder %v4138, 0.0
    %vm4203 = vcmp.gt.f32.partialorder %v4139, 0.0
    %vm4204 = vcmp.gt.f32.partialorder %v4140, 0.0
    %vm4205 = vcmp.gt.f32.partialorder %v4141, 0.0
    %vm4206 = vcmp.gt.f32.partialorder %v4142, 0.0
    %vm4207 = vcmp.gt.f32.partialorder %v4143, 0.0
    %vm4208 = vcmp.gt.f32.partialorder %v4144, 0.0
    %vm4209 = vcmp.gt.f32.partialorder %v4145, 0.0
    %vm4210 = vcmp.gt.f32.partialorder %v4146, 0.0
    %vm4211 = vcmp.gt.f32.partialorder %v4147, 0.0
    %vm4212 = vcmp.gt.f32.partialorder %v4148, 0.0
    %vm4213 = vcmp.gt.f32.partialorder %v4149, 0.0
    %vm4214 = vcmp.gt.f32.partialorder %v4150, 0.0
    %vm4215 = vcmp.gt.f32.partialorder %v4151, 0.0
    %vm4216 = vcmp.gt.f32.partialorder %v4152, 0.0
    %vm4217 = vcmp.gt.f32.partialorder %v4153, 0.0
    %vm4218 = vcmp.gt.f32.partialorder %v4154, 0.0
    %vm4219 = vcmp.gt.f32.partialorder %v4155, 0.0
    %vm4220 = vcmp.gt.f32.partialorder %v4156, 0.0
    %vm4221 = vcmp.gt.f32.partialorder %v4157, 0.0
    %v4222 = vmul.f32 %v4094, 0.1
    %v4223 = vmul.f32 %v4095, 0.1
    %v4224 = vmul.f32 %v4096, 0.1
    %v4225 = vmul.f32 %v4097, 0.1
    %v4226 = vmul.f32 %v4098, 0.1
    %v4227 = vmul.f32 %v4099, 0.1
    %v4228 = vmul.f32 %v4100, 0.1
    %v4229 = vmul.f32 %v4101, 0.1
    %v4230 = vmul.f32 %v4102, 0.1
    %v4231 = vmul.f32 %v4103, 0.1
    %v4232 = vmul.f32 %v4104, 0.1
    %v4233 = vmul.f32 %v4105, 0.1
    %v4234 = vmul.f32 %v4106, 0.1
    %v4235 = vmul.f32 %v4107, 0.1
    %v4236 = vmul.f32 %v4108, 0.1
    %v4237 = vmul.f32 %v4109, 0.1
    %v4238 = vmul.f32 %v4110, 0.1
    %v4239 = vmul.f32 %v4111, 0.1
    %v4240 = vmul.f32 %v4112, 0.1
    %v4241 = vmul.f32 %v4113, 0.1
    %v4242 = vmul.f32 %v4114, 0.1
    %v4243 = vmul.f32 %v4115, 0.1
    %v4244 = vmul.f32 %v4116, 0.1
    %v4245 = vmul.f32 %v4117, 0.1
    %v4246 = vmul.f32 %v4118, 0.1
    %v4247 = vmul.f32 %v4119, 0.1
    %v4248 = vmul.f32 %v4120, 0.1
    %v4249 = vmul.f32 %v4121, 0.1
    %v4250 = vmul.f32 %v4122, 0.1
    %v4251 = vmul.f32 %v4123, 0.1
    %v4252 = vmul.f32 %v4124, 0.1
    %v4253 = vmul.f32 %v4125, 0.1
    %v4254 = vmul.f32 %v4126, 0.1
    %v4255 = vmul.f32 %v4127, 0.1
    %v4256 = vmul.f32 %v4128, 0.1
    %v4257 = vmul.f32 %v4129, 0.1
    %v4258 = vmul.f32 %v4130, 0.1
    %v4259 = vmul.f32 %v4131, 0.1
    %v4260 = vmul.f32 %v4132, 0.1
    %v4261 = vmul.f32 %v4133, 0.1
    %v4262 = vmul.f32 %v4134, 0.1
    %v4263 = vmul.f32 %v4135, 0.1
    %v4264 = vmul.f32 %v4136, 0.1
    %v4265 = vmul.f32 %v4137, 0.1
    %v4266 = vmul.f32 %v4138, 0.1
    %v4267 = vmul.f32 %v4139, 0.1
    %v4268 = vmul.f32 %v4140, 0.1
    %v4269 = vmul.f32 %v4141, 0.1
    %v4270 = vmul.f32 %v4142, 0.1
    %v4271 = vmul.f32 %v4143, 0.1
    %v4272 = vmul.f32 %v4144, 0.1
    %v4273 = vmul.f32 %v4145, 0.1
    %v4274 = vmul.f32 %v4146, 0.1
    %v4275 = vmul.f32 %v4147, 0.1
    %v4276 = vmul.f32 %v4148, 0.1
    %v4277 = vmul.f32 %v4149, 0.1
    %v4278 = vmul.f32 %v4150, 0.1
    %v4279 = vmul.f32 %v4151, 0.1
    %v4280 = vmul.f32 %v4152, 0.1
    %v4281 = vmul.f32 %v4153, 0.1
    %v4282 = vmul.f32 %v4154, 0.1
    %v4283 = vmul.f32 %v4155, 0.1
    %v4284 = vmul.f32 %v4156, 0.1
    %v4285 = vmul.f32 %v4157, 0.1
    %v4286 = vsel %vm4158, %v4094, %v4222
    %v4287 = vsel %vm4159, %v4095, %v4223
    %v4288 = vsel %vm4160, %v4096, %v4224
    %v4289 = vsel %vm4161, %v4097, %v4225
    %v4290 = vsel %vm4162, %v4098, %v4226
    %v4291 = vsel %vm4163, %v4099, %v4227
    %v4292 = vsel %vm4164, %v4100, %v4228
    %v4293 = vsel %vm4165, %v4101, %v4229
    %v4294 = vsel %vm4166, %v4102, %v4230
    %v4295 = vsel %vm4167, %v4103, %v4231
    %v4296 = vsel %vm4168, %v4104, %v4232
    %v4297 = vsel %vm4169, %v4105, %v4233
    %v4298 = vsel %vm4170, %v4106, %v4234
    %v4299 = vsel %vm4171, %v4107, %v4235
    %v4300 = vsel %vm4172, %v4108, %v4236
    %v4301 = vsel %vm4173, %v4109, %v4237
    %v4302 = vsel %vm4174, %v4110, %v4238
    %v4303 = vsel %vm4175, %v4111, %v4239
    %v4304 = vsel %vm4176, %v4112, %v4240
    %v4305 = vsel %vm4177, %v4113, %v4241
    %v4306 = vsel %vm4178, %v4114, %v4242
    %v4307 = vsel %vm4179, %v4115, %v4243
    %v4308 = vsel %vm4180, %v4116, %v4244
    %v4309 = vsel %vm4181, %v4117, %v4245
    %v4310 = vsel %vm4182, %v4118, %v4246
    %v4311 = vsel %vm4183, %v4119, %v4247
    %v4312 = vsel %vm4184, %v4120, %v4248
    %v4313 = vsel %vm4185, %v4121, %v4249
    %v4314 = vsel %vm4186, %v4122, %v4250
    %v4315 = vsel %vm4187, %v4123, %v4251
    %v4316 = vsel %vm4188, %v4124, %v4252
    %v4317 = vsel %vm4189, %v4125, %v4253
    %v4318 = vsel %vm4190, %v4126, %v4254
    %v4319 = vsel %vm4191, %v4127, %v4255
    %v4320 = vsel %vm4192, %v4128, %v4256
    %v4321 = vsel %vm4193, %v4129, %v4257
    %v4322 = vsel %vm4194, %v4130, %v4258
    %v4323 = vsel %vm4195, %v4131, %v4259
    %v4324 = vsel %vm4196, %v4132, %v4260
    %v4325 = vsel %vm4197, %v4133, %v4261
    %v4326 = vsel %vm4198, %v4134, %v4262
    %v4327 = vsel %vm4199, %v4135, %v4263
    %v4328 = vsel %vm4200, %v4136, %v4264
    %v4329 = vsel %vm4201, %v4137, %v4265
    %v4330 = vsel %vm4202, %v4138, %v4266
    %v4331 = vsel %vm4203, %v4139, %v4267
    %v4332 = vsel %vm4204, %v4140, %v4268
    %v4333 = vsel %vm4205, %v4141, %v4269
    %v4334 = vsel %vm4206, %v4142, %v4270
    %v4335 = vsel %vm4207, %v4143, %v4271
    %v4336 = vsel %vm4208, %v4144, %v4272
    %v4337 = vsel %vm4209, %v4145, %v4273
    %v4338 = vsel %vm4210, %v4146, %v4274
    %v4339 = vsel %vm4211, %v4147, %v4275
    %v4340 = vsel %vm4212, %v4148, %v4276
    %v4341 = vsel %vm4213, %v4149, %v4277
    %v4342 = vsel %vm4214, %v4150, %v4278
    %v4343 = vsel %vm4215, %v4151, %v4279
    %v4344 = vsel %vm4216, %v4152, %v4280
    %v4345 = vsel %vm4217, %v4153, %v4281
    %v4346 = vsel %vm4218, %v4154, %v4282
    %v4347 = vsel %vm4219, %v4155, %v4283
    %v4348 = vsel %vm4220, %v4156, %v4284
    %v4349 = vsel %vm4221, %v4157, %v4285
    %v4350 = vrot.slane %v4286, 7
    %v4351 = vrot.slane %v4287, 7
    %v4352 = vrot.slane %v4288, 7
    %v4353 = vrot.slane %v4289, 7
    %v4354 = vrot.slane %v4290, 7
    %v4355 = vrot.slane %v4291, 7
    %v4356 = vrot.slane %v4292, 7
    %v4357 = vrot.slane %v4293, 7
    %v4358 = vrot.slane %v4294, 7
    %v4359 = vrot.slane %v4295, 7
    %v4360 = vrot.slane %v4296, 7
    %v4361 = vrot.slane %v4297, 7
    %v4362 = vrot.slane %v4298, 7
    %v4363 = vrot.slane %v4299, 7
    %v4364 = vrot.slane %v4300, 7
    %v4365 = vrot.slane %v4301, 7
    %v4366 = vrot.slane %v4302, 7
    %v4367 = vrot.slane %v4303, 7
    %v4368 = vrot.slane %v4304, 7
    %v4369 = vrot.slane %v4305, 7
    %v4370 = vrot.slane %v4306, 7
    %v4371 = vrot.slane %v4307, 7
    %v4372 = vrot.slane %v4308, 7
    %v4373 = vrot.slane %v4309, 7
    %v4374 = vrot.slane %v4310, 7
    %v4375 = vrot.slane %v4311, 7
    %v4376 = vrot.slane %v4312, 7
    %v4377 = vrot.slane %v4313, 7
    %v4378 = vrot.slane %v4314, 7
    %v4379 = vrot.slane %v4315, 7
    %v4380 = vrot.slane %v4316, 7
    %v4381 = vrot.slane %v4317, 7
    %v4382 = vrot.slane %v4318, 7
    %v4383 = vrot.slane %v4319, 7
    %v4384 = vrot.slane %v4320, 7
    %v4385 = vrot.slane %v4321, 7
    %v4386 = vrot.slane %v4322, 7
    %v4387 = vrot.slane %v4323, 7
    %v4388 = vrot.slane %v4324, 7
    %v4389 = vrot.slane %v4325, 7
    %v4390 = vrot.slane %v4326, 7
    %v4391 = vrot.slane %v4327, 7
    %v4392 = vrot.slane %v4328, 7
    %v4393 = vrot.slane %v4329, 7
    %v4394 = vrot.slane %v4330, 7
    %v4395 = vrot.slane %v4331, 7
    %v4396 = vrot.slane %v4332, 7
    %v4397 = vrot.slane %v4333, 7
    %v4398 = vrot.slane %v4334, 7
    %v4399 = vrot.slane %v4335, 7
    %v4400 = vrot.slane %v4336, 7
    %v4401 = vrot.slane %v4337, 7
    %v4402 = vrot.slane %v4338, 7
    %v4403 = vrot.slane %v4339, 7
    %v4404 = vrot.slane %v4340, 7
    %v4405 = vrot.slane %v4341, 7
    %v4406 = vrot.slane %v4342, 7
    %v4407 = vrot.slane %v4343, 7
    %v4408 = vrot.slane %v4344, 7
    %v4409 = vrot.slane %v4345, 7
    %v4410 = vrot.slane %v4346, 7
    %v4411 = vrot.slane %v4347, 7
    %v4412 = vrot.slane %v4348, 7
    %v4413 = vrot.slane %v4349, 7
    %v4414 = vsel %vm816, %v4412, %v4413
    %v4415 = vsel %vm816, %v4411, %v4412
    %v4416 = vsel %vm816, %v4410, %v4411
    %v4417 = vsel %vm816, %v4409, %v4410
    %v4418 = vsel %vm816, %v4408, %v4409
    %v4419 = vsel %vm816, %v4407, %v4408
    %v4420 = vsel %vm816, %v4406, %v4407
    %v4421 = vsel %vm816, %v4405, %v4406
    %v4422 = vsel %vm816, %v4404, %v4405
    %v4423 = vsel %vm816, %v4403, %v4404
    %v4424 = vsel %vm816, %v4402, %v4403
    %v4425 = vsel %vm816, %v4401, %v4402
    %v4426 = vsel %vm816, %v4400, %v4401
    %v4427 = vsel %vm816, %v4399, %v4400
    %v4428 = vsel %vm816, %v4398, %v4399
    %v4429 = vsel %vm816, %v4397, %v4398
    %v4430 = vsel %vm816, %v4396, %v4397
    %v4431 = vsel %vm816, %v4395, %v4396
    %v4432 = vsel %vm816, %v4394, %v4395
    %v4433 = vsel %vm816, %v4393, %v4394
    %v4434 = vsel %vm816, %v4392, %v4393
    %v4435 = vsel %vm816, %v4391, %v4392
    %v4436 = vsel %vm816, %v4390, %v4391
    %v4437 = vsel %vm816, %v4389, %v4390
    %v4438 = vsel %vm816, %v4388, %v4389
    %v4439 = vsel %vm816, %v4387, %v4388
    %v4440 = vsel %vm816, %v4386, %v4387
    %v4441 = vsel %vm816, %v4385, %v4386
    %v4442 = vsel %vm816, %v4384, %v4385
    %v4443 = vsel %vm816, %v4383, %v4384
    %v4444 = vsel %vm816, %v4382, %v4383
    %v4445 = vsel %vm816, %v4381, %v4382
    %v4446 = vsel %vm816, %v4380, %v4381
    %v4447 = vsel %vm816, %v4379, %v4380
    %v4448 = vsel %vm816, %v4378, %v4379
    %v4449 = vsel %vm816, %v4377, %v4378
    %v4450 = vsel %vm816, %v4376, %v4377
    %v4451 = vsel %vm816, %v4375, %v4376
    %v4452 = vsel %vm816, %v4374, %v4375
    %v4453 = vsel %vm816, %v4373, %v4374
    %v4454 = vsel %vm816, %v4372, %v4373
    %v4455 = vsel %vm816, %v4371, %v4372
    %v4456 = vsel %vm816, %v4370, %v4371
    %v4457 = vsel %vm816, %v4369, %v4370
    %v4458 = vsel %vm816, %v4368, %v4369
    %v4459 = vsel %vm816, %v4367, %v4368
    %v4460 = vsel %vm816, %v4366, %v4367
    %v4461 = vsel %vm816, %v4365, %v4366
    %v4462 = vsel %vm816, %v4364, %v4365
    %v4463 = vsel %vm816, %v4363, %v4364
    %v4464 = vsel %vm816, %v4362, %v4363
    %v4465 = vsel %vm816, %v4361, %v4362
    %v4466 = vsel %vm816, %v4360, %v4361
    %v4467 = vsel %vm816, %v4359, %v4360
    %v4468 = vsel %vm816, %v4358, %v4359
    %v4469 = vsel %vm816, %v4357, %v4358
    %v4470 = vsel %vm816, %v4356, %v4357
    %v4471 = vsel %vm816, %v4355, %v4356
    %v4472 = vsel %vm816, %v4354, %v4355
    %v4473 = vsel %vm816, %v4353, %v4354
    %v4474 = vsel %vm816, %v4352, %v4353
    %v4475 = vsel %vm816, %v4351, %v4352
    %v4476 = vsel %vm816, %v4350, %v4351
    %v4477 = vsel %vm816, %v4413, %v4350
    %4478 = vrot.lane.b32.xlu0 %v4348, 8
    %v4479 = vpop.permute.xlu0 %4478
    %4480 = vrot.lane.b32.xlu0 %v4349, 8
    %v4481 = vpop.permute.xlu0 %4480
    %4482 = vrot.lane.b32.xlu0 %v4286, 8
    %v4483 = vpop.permute.xlu0 %4482
    %4484 = vrot.lane.b32.xlu0 %v4287, 8
    %v4485 = vpop.permute.xlu0 %4484
    %4486 = vrot.lane.b32.xlu0 %v4288, 8
    %v4487 = vpop.permute.xlu0 %4486
    %4488 = vrot.lane.b32.xlu0 %v4289, 8
    %v4489 = vpop.permute.xlu0 %4488
    %4490 = vrot.lane.b32.xlu0 %v4290, 8
    %v4491 = vpop.permute.xlu0 %4490
    %4492 = vrot.lane.b32.xlu0 %v4291, 8
    %v4493 = vpop.permute.xlu0 %4492
    %4494 = vrot.lane.b32.xlu0 %v4292, 8
    %v4495 = vpop.permute.xlu0 %4494
    %4496 = vrot.lane.b32.xlu0 %v4293, 8
    %v4497 = vpop.permute.xlu0 %4496
    %4498 = vrot.lane.b32.xlu0 %v4294, 8
    %v4499 = vpop.permute.xlu0 %4498
    %4500 = vrot.lane.b32.xlu0 %v4295, 8
    %v4501 = vpop.permute.xlu0 %4500
    %4502 = vrot.lane.b32.xlu0 %v4296, 8
    %v4503 = vpop.permute.xlu0 %4502
    %4504 = vrot.lane.b32.xlu0 %v4297, 8
    %v4505 = vpop.permute.xlu0 %4504
    %4506 = vrot.lane.b32.xlu0 %v4298, 8
    %v4507 = vpop.permute.xlu0 %4506
    %4508 = vrot.lane.b32.xlu0 %v4299, 8
    %v4509 = vpop.permute.xlu0 %4508
    %4510 = vrot.lane.b32.xlu0 %v4300, 8
    %v4511 = vpop.permute.xlu0 %4510
    %4512 = vrot.lane.b32.xlu0 %v4301, 8
    %v4513 = vpop.permute.xlu0 %4512
    %4514 = vrot.lane.b32.xlu0 %v4302, 8
    %v4515 = vpop.permute.xlu0 %4514
    %4516 = vrot.lane.b32.xlu0 %v4303, 8
    %v4517 = vpop.permute.xlu0 %4516
    %4518 = vrot.lane.b32.xlu0 %v4304, 8
    %v4519 = vpop.permute.xlu0 %4518
    %4520 = vrot.lane.b32.xlu0 %v4305, 8
    %v4521 = vpop.permute.xlu0 %4520
    %4522 = vrot.lane.b32.xlu0 %v4306, 8
    %v4523 = vpop.permute.xlu0 %4522
    %4524 = vrot.lane.b32.xlu0 %v4307, 8
    %v4525 = vpop.permute.xlu0 %4524
    %4526 = vrot.lane.b32.xlu0 %v4308, 8
    %v4527 = vpop.permute.xlu0 %4526
    %4528 = vrot.lane.b32.xlu0 %v4309, 8
    %v4529 = vpop.permute.xlu0 %4528
    %4530 = vrot.lane.b32.xlu0 %v4310, 8
    %v4531 = vpop.permute.xlu0 %4530
    %4532 = vrot.lane.b32.xlu0 %v4311, 8
    %v4533 = vpop.permute.xlu0 %4532
    %4534 = vrot.lane.b32.xlu0 %v4312, 8
    %v4535 = vpop.permute.xlu0 %4534
    %4536 = vrot.lane.b32.xlu0 %v4313, 8
    %v4537 = vpop.permute.xlu0 %4536
    %4538 = vrot.lane.b32.xlu0 %v4314, 8
    %v4539 = vpop.permute.xlu0 %4538
    %4540 = vrot.lane.b32.xlu0 %v4315, 8
    %v4541 = vpop.permute.xlu0 %4540
    %4542 = vrot.lane.b32.xlu0 %v4316, 8
    %v4543 = vpop.permute.xlu0 %4542
    %4544 = vrot.lane.b32.xlu0 %v4317, 8
    %v4545 = vpop.permute.xlu0 %4544
    %4546 = vrot.lane.b32.xlu0 %v4318, 8
    %v4547 = vpop.permute.xlu0 %4546
    %4548 = vrot.lane.b32.xlu0 %v4319, 8
    %v4549 = vpop.permute.xlu0 %4548
    %4550 = vrot.lane.b32.xlu0 %v4320, 8
    %v4551 = vpop.permute.xlu0 %4550
    %4552 = vrot.lane.b32.xlu0 %v4321, 8
    %v4553 = vpop.permute.xlu0 %4552
    %4554 = vrot.lane.b32.xlu0 %v4322, 8
    %v4555 = vpop.permute.xlu0 %4554
    %4556 = vrot.lane.b32.xlu0 %v4323, 8
    %v4557 = vpop.permute.xlu0 %4556
    %4558 = vrot.lane.b32.xlu0 %v4324, 8
    %v4559 = vpop.permute.xlu0 %4558
    %4560 = vrot.lane.b32.xlu0 %v4325, 8
    %v4561 = vpop.permute.xlu0 %4560
    %4562 = vrot.lane.b32.xlu0 %v4326, 8
    %v4563 = vpop.permute.xlu0 %4562
    %4564 = vrot.lane.b32.xlu0 %v4327, 8
    %v4565 = vpop.permute.xlu0 %4564
    %4566 = vrot.lane.b32.xlu0 %v4328, 8
    %v4567 = vpop.permute.xlu0 %4566
    %4568 = vrot.lane.b32.xlu0 %v4329, 8
    %v4569 = vpop.permute.xlu0 %4568
    %4570 = vrot.lane.b32.xlu0 %v4330, 8
    %v4571 = vpop.permute.xlu0 %4570
    %4572 = vrot.lane.b32.xlu0 %v4331, 8
    %v4573 = vpop.permute.xlu0 %4572
    %4574 = vrot.lane.b32.xlu0 %v4332, 8
    %v4575 = vpop.permute.xlu0 %4574
    %4576 = vrot.lane.b32.xlu0 %v4333, 8
    %v4577 = vpop.permute.xlu0 %4576
    %4578 = vrot.lane.b32.xlu0 %v4334, 8
    %v4579 = vpop.permute.xlu0 %4578
    %4580 = vrot.lane.b32.xlu0 %v4335, 8
    %v4581 = vpop.permute.xlu0 %4580
    %4582 = vrot.lane.b32.xlu0 %v4336, 8
    %v4583 = vpop.permute.xlu0 %4582
    %4584 = vrot.lane.b32.xlu0 %v4337, 8
    %v4585 = vpop.permute.xlu0 %4584
    %4586 = vrot.lane.b32.xlu0 %v4338, 8
    %v4587 = vpop.permute.xlu0 %4586
    %4588 = vrot.lane.b32.xlu0 %v4339, 8
    %v4589 = vpop.permute.xlu0 %4588
    %4590 = vrot.lane.b32.xlu0 %v4340, 8
    %v4591 = vpop.permute.xlu0 %4590
    %4592 = vrot.lane.b32.xlu0 %v4341, 8
    %v4593 = vpop.permute.xlu0 %4592
    %4594 = vrot.lane.b32.xlu0 %v4342, 8
    %v4595 = vpop.permute.xlu0 %4594
    %4596 = vrot.lane.b32.xlu0 %v4343, 8
    %v4597 = vpop.permute.xlu0 %4596
    %4598 = vrot.lane.b32.xlu0 %v4344, 8
    %v4599 = vpop.permute.xlu0 %4598
    %4600 = vrot.lane.b32.xlu0 %v4345, 8
    %v4601 = vpop.permute.xlu0 %4600
    %4602 = vrot.lane.b32.xlu0 %v4346, 8
    %v4603 = vpop.permute.xlu0 %4602
    %4604 = vrot.lane.b32.xlu0 %v4347, 8
    %v4605 = vpop.permute.xlu0 %4604
    %v4606 = vadd.f32 %v4415, %v4479
    %v4607 = vadd.f32 %v4414, %v4481
    %v4608 = vadd.f32 %v4477, %v4483
    %v4609 = vadd.f32 %v4476, %v4485
    %v4610 = vadd.f32 %v4475, %v4487
    %v4611 = vadd.f32 %v4474, %v4489
    %v4612 = vadd.f32 %v4473, %v4491
    %v4613 = vadd.f32 %v4472, %v4493
    %v4614 = vadd.f32 %v4471, %v4495
    %v4615 = vadd.f32 %v4470, %v4497
    %v4616 = vadd.f32 %v4469, %v4499
    %v4617 = vadd.f32 %v4468, %v4501
    %v4618 = vadd.f32 %v4467, %v4503
    %v4619 = vadd.f32 %v4466, %v4505
    %v4620 = vadd.f32 %v4465, %v4507
    %v4621 = vadd.f32 %v4464, %v4509
    %v4622 = vadd.f32 %v4463, %v4511
    %v4623 = vadd.f32 %v4462, %v4513
    %v4624 = vadd.f32 %v4461, %v4515
    %v4625 = vadd.f32 %v4460, %v4517
    %v4626 = vadd.f32 %v4459, %v4519
    %v4627 = vadd.f32 %v4458, %v4521
    %v4628 = vadd.f32 %v4457, %v4523
    %v4629 = vadd.f32 %v4456, %v4525
    %v4630 = vadd.f32 %v4455, %v4527
    %v4631 = vadd.f32 %v4454, %v4529
    %v4632 = vadd.f32 %v4453, %v4531
    %v4633 = vadd.f32 %v4452, %v4533
    %v4634 = vadd.f32 %v4451, %v4535
    %v4635 = vadd.f32 %v4450, %v4537
    %v4636 = vadd.f32 %v4449, %v4539
    %v4637 = vadd.f32 %v4448, %v4541
    %v4638 = vadd.f32 %v4447, %v4543
    %v4639 = vadd.f32 %v4446, %v4545
    %v4640 = vadd.f32 %v4445, %v4547
    %v4641 = vadd.f32 %v4444, %v4549
    %v4642 = vadd.f32 %v4443, %v4551
    %v4643 = vadd.f32 %v4442, %v4553
    %v4644 = vadd.f32 %v4441, %v4555
    %v4645 = vadd.f32 %v4440, %v4557
    %v4646 = vadd.f32 %v4439, %v4559
    %v4647 = vadd.f32 %v4438, %v4561
    %v4648 = vadd.f32 %v4437, %v4563
    %v4649 = vadd.f32 %v4436, %v4565
    %v4650 = vadd.f32 %v4435, %v4567
    %v4651 = vadd.f32 %v4434, %v4569
    %v4652 = vadd.f32 %v4433, %v4571
    %v4653 = vadd.f32 %v4432, %v4573
    %v4654 = vadd.f32 %v4431, %v4575
    %v4655 = vadd.f32 %v4430, %v4577
    %v4656 = vadd.f32 %v4429, %v4579
    %v4657 = vadd.f32 %v4428, %v4581
    %v4658 = vadd.f32 %v4427, %v4583
    %v4659 = vadd.f32 %v4426, %v4585
    %v4660 = vadd.f32 %v4425, %v4587
    %v4661 = vadd.f32 %v4424, %v4589
    %v4662 = vadd.f32 %v4423, %v4591
    %v4663 = vadd.f32 %v4422, %v4593
    %v4664 = vadd.f32 %v4421, %v4595
    %v4665 = vadd.f32 %v4420, %v4597
    %v4666 = vadd.f32 %v4419, %v4599
    %v4667 = vadd.f32 %v4418, %v4601
    %v4668 = vadd.f32 %v4417, %v4603
    %v4669 = vadd.f32 %v4416, %v4605
    %v4670 = vrot.slane %v4286, 1
    %v4671 = vrot.slane %v4287, 1
    %v4672 = vrot.slane %v4288, 1
    %v4673 = vrot.slane %v4289, 1
    %v4674 = vrot.slane %v4290, 1
    %v4675 = vrot.slane %v4291, 1
    %v4676 = vrot.slane %v4292, 1
    %v4677 = vrot.slane %v4293, 1
    %v4678 = vrot.slane %v4294, 1
    %v4679 = vrot.slane %v4295, 1
    %v4680 = vrot.slane %v4296, 1
    %v4681 = vrot.slane %v4297, 1
    %v4682 = vrot.slane %v4298, 1
    %v4683 = vrot.slane %v4299, 1
    %v4684 = vrot.slane %v4300, 1
    %v4685 = vrot.slane %v4301, 1
    %v4686 = vrot.slane %v4302, 1
    %v4687 = vrot.slane %v4303, 1
    %v4688 = vrot.slane %v4304, 1
    %v4689 = vrot.slane %v4305, 1
    %v4690 = vrot.slane %v4306, 1
    %v4691 = vrot.slane %v4307, 1
    %v4692 = vrot.slane %v4308, 1
    %v4693 = vrot.slane %v4309, 1
    %v4694 = vrot.slane %v4310, 1
    %v4695 = vrot.slane %v4311, 1
    %v4696 = vrot.slane %v4312, 1
    %v4697 = vrot.slane %v4313, 1
    %v4698 = vrot.slane %v4314, 1
    %v4699 = vrot.slane %v4315, 1
    %v4700 = vrot.slane %v4316, 1
    %v4701 = vrot.slane %v4317, 1
    %v4702 = vrot.slane %v4318, 1
    %v4703 = vrot.slane %v4319, 1
    %v4704 = vrot.slane %v4320, 1
    %v4705 = vrot.slane %v4321, 1
    %v4706 = vrot.slane %v4322, 1
    %v4707 = vrot.slane %v4323, 1
    %v4708 = vrot.slane %v4324, 1
    %v4709 = vrot.slane %v4325, 1
    %v4710 = vrot.slane %v4326, 1
    %v4711 = vrot.slane %v4327, 1
    %v4712 = vrot.slane %v4328, 1
    %v4713 = vrot.slane %v4329, 1
    %v4714 = vrot.slane %v4330, 1
    %v4715 = vrot.slane %v4331, 1
    %v4716 = vrot.slane %v4332, 1
    %v4717 = vrot.slane %v4333, 1
    %v4718 = vrot.slane %v4334, 1
    %v4719 = vrot.slane %v4335, 1
    %v4720 = vrot.slane %v4336, 1
    %v4721 = vrot.slane %v4337, 1
    %v4722 = vrot.slane %v4338, 1
    %v4723 = vrot.slane %v4339, 1
    %v4724 = vrot.slane %v4340, 1
    %v4725 = vrot.slane %v4341, 1
    %v4726 = vrot.slane %v4342, 1
    %v4727 = vrot.slane %v4343, 1
    %v4728 = vrot.slane %v4344, 1
    %v4729 = vrot.slane %v4345, 1
    %v4730 = vrot.slane %v4346, 1
    %v4731 = vrot.slane %v4347, 1
    %v4732 = vrot.slane %v4348, 1
    %v4733 = vrot.slane %v4349, 1
    %v4734 = vsel %vm1137, %v4732, %v4733
    %v4735 = vsel %vm1137, %v4731, %v4732
    %v4736 = vsel %vm1137, %v4730, %v4731
    %v4737 = vsel %vm1137, %v4729, %v4730
    %v4738 = vsel %vm1137, %v4728, %v4729
    %v4739 = vsel %vm1137, %v4727, %v4728
    %v4740 = vsel %vm1137, %v4726, %v4727
    %v4741 = vsel %vm1137, %v4725, %v4726
    %v4742 = vsel %vm1137, %v4724, %v4725
    %v4743 = vsel %vm1137, %v4723, %v4724
    %v4744 = vsel %vm1137, %v4722, %v4723
    %v4745 = vsel %vm1137, %v4721, %v4722
    %v4746 = vsel %vm1137, %v4720, %v4721
    %v4747 = vsel %vm1137, %v4719, %v4720
    %v4748 = vsel %vm1137, %v4718, %v4719
    %v4749 = vsel %vm1137, %v4717, %v4718
    %v4750 = vsel %vm1137, %v4716, %v4717
    %v4751 = vsel %vm1137, %v4715, %v4716
    %v4752 = vsel %vm1137, %v4714, %v4715
    %v4753 = vsel %vm1137, %v4713, %v4714
    %v4754 = vsel %vm1137, %v4712, %v4713
    %v4755 = vsel %vm1137, %v4711, %v4712
    %v4756 = vsel %vm1137, %v4710, %v4711
    %v4757 = vsel %vm1137, %v4709, %v4710
    %v4758 = vsel %vm1137, %v4708, %v4709
    %v4759 = vsel %vm1137, %v4707, %v4708
    %v4760 = vsel %vm1137, %v4706, %v4707
    %v4761 = vsel %vm1137, %v4705, %v4706
    %v4762 = vsel %vm1137, %v4704, %v4705
    %v4763 = vsel %vm1137, %v4703, %v4704
    %v4764 = vsel %vm1137, %v4702, %v4703
    %v4765 = vsel %vm1137, %v4701, %v4702
    %v4766 = vsel %vm1137, %v4700, %v4701
    %v4767 = vsel %vm1137, %v4699, %v4700
    %v4768 = vsel %vm1137, %v4698, %v4699
    %v4769 = vsel %vm1137, %v4697, %v4698
    %v4770 = vsel %vm1137, %v4696, %v4697
    %v4771 = vsel %vm1137, %v4695, %v4696
    %v4772 = vsel %vm1137, %v4694, %v4695
    %v4773 = vsel %vm1137, %v4693, %v4694
    %v4774 = vsel %vm1137, %v4692, %v4693
    %v4775 = vsel %vm1137, %v4691, %v4692
    %v4776 = vsel %vm1137, %v4690, %v4691
    %v4777 = vsel %vm1137, %v4689, %v4690
    %v4778 = vsel %vm1137, %v4688, %v4689
    %v4779 = vsel %vm1137, %v4687, %v4688
    %v4780 = vsel %vm1137, %v4686, %v4687
    %v4781 = vsel %vm1137, %v4685, %v4686
    %v4782 = vsel %vm1137, %v4684, %v4685
    %v4783 = vsel %vm1137, %v4683, %v4684
    %v4784 = vsel %vm1137, %v4682, %v4683
    %v4785 = vsel %vm1137, %v4681, %v4682
    %v4786 = vsel %vm1137, %v4680, %v4681
    %v4787 = vsel %vm1137, %v4679, %v4680
    %v4788 = vsel %vm1137, %v4678, %v4679
    %v4789 = vsel %vm1137, %v4677, %v4678
    %v4790 = vsel %vm1137, %v4676, %v4677
    %v4791 = vsel %vm1137, %v4675, %v4676
    %v4792 = vsel %vm1137, %v4674, %v4675
    %v4793 = vsel %vm1137, %v4673, %v4674
    %v4794 = vsel %vm1137, %v4672, %v4673
    %v4795 = vsel %vm1137, %v4671, %v4672
    %v4796 = vsel %vm1137, %v4670, %v4671
    %v4797 = vsel %vm1137, %v4733, %v4670
    %4798 = vrot.lane.b32.xlu0 %v4734, 16
    %v4799 = vpop.permute.xlu0 %4798
    %4800 = vrot.lane.b32.xlu0 %v4797, 16
    %v4801 = vpop.permute.xlu0 %4800
    %4802 = vrot.lane.b32.xlu0 %v4796, 16
    %v4803 = vpop.permute.xlu0 %4802
    %4804 = vrot.lane.b32.xlu0 %v4795, 16
    %v4805 = vpop.permute.xlu0 %4804
    %4806 = vrot.lane.b32.xlu0 %v4794, 16
    %v4807 = vpop.permute.xlu0 %4806
    %4808 = vrot.lane.b32.xlu0 %v4793, 16
    %v4809 = vpop.permute.xlu0 %4808
    %4810 = vrot.lane.b32.xlu0 %v4792, 16
    %v4811 = vpop.permute.xlu0 %4810
    %4812 = vrot.lane.b32.xlu0 %v4791, 16
    %v4813 = vpop.permute.xlu0 %4812
    %4814 = vrot.lane.b32.xlu0 %v4790, 16
    %v4815 = vpop.permute.xlu0 %4814
    %4816 = vrot.lane.b32.xlu0 %v4789, 16
    %v4817 = vpop.permute.xlu0 %4816
    %4818 = vrot.lane.b32.xlu0 %v4788, 16
    %v4819 = vpop.permute.xlu0 %4818
    %4820 = vrot.lane.b32.xlu0 %v4787, 16
    %v4821 = vpop.permute.xlu0 %4820
    %4822 = vrot.lane.b32.xlu0 %v4786, 16
    %v4823 = vpop.permute.xlu0 %4822
    %4824 = vrot.lane.b32.xlu0 %v4785, 16
    %v4825 = vpop.permute.xlu0 %4824
    %4826 = vrot.lane.b32.xlu0 %v4784, 16
    %v4827 = vpop.permute.xlu0 %4826
    %4828 = vrot.lane.b32.xlu0 %v4783, 16
    %v4829 = vpop.permute.xlu0 %4828
    %4830 = vrot.lane.b32.xlu0 %v4782, 16
    %v4831 = vpop.permute.xlu0 %4830
    %4832 = vrot.lane.b32.xlu0 %v4781, 16
    %v4833 = vpop.permute.xlu0 %4832
    %4834 = vrot.lane.b32.xlu0 %v4780, 16
    %v4835 = vpop.permute.xlu0 %4834
    %4836 = vrot.lane.b32.xlu0 %v4779, 16
    %v4837 = vpop.permute.xlu0 %4836
    %4838 = vrot.lane.b32.xlu0 %v4778, 16
    %v4839 = vpop.permute.xlu0 %4838
    %4840 = vrot.lane.b32.xlu0 %v4777, 16
    %v4841 = vpop.permute.xlu0 %4840
    %4842 = vrot.lane.b32.xlu0 %v4776, 16
    %v4843 = vpop.permute.xlu0 %4842
    %4844 = vrot.lane.b32.xlu0 %v4775, 16
    %v4845 = vpop.permute.xlu0 %4844
    %4846 = vrot.lane.b32.xlu0 %v4774, 16
    %v4847 = vpop.permute.xlu0 %4846
    %4848 = vrot.lane.b32.xlu0 %v4773, 16
    %v4849 = vpop.permute.xlu0 %4848
    %4850 = vrot.lane.b32.xlu0 %v4772, 16
    %v4851 = vpop.permute.xlu0 %4850
    %4852 = vrot.lane.b32.xlu0 %v4771, 16
    %v4853 = vpop.permute.xlu0 %4852
    %4854 = vrot.lane.b32.xlu0 %v4770, 16
    %v4855 = vpop.permute.xlu0 %4854
    %4856 = vrot.lane.b32.xlu0 %v4769, 16
    %v4857 = vpop.permute.xlu0 %4856
    %4858 = vrot.lane.b32.xlu0 %v4768, 16
    %v4859 = vpop.permute.xlu0 %4858
    %4860 = vrot.lane.b32.xlu0 %v4767, 16
    %v4861 = vpop.permute.xlu0 %4860
    %4862 = vrot.lane.b32.xlu0 %v4766, 16
    %v4863 = vpop.permute.xlu0 %4862
    %4864 = vrot.lane.b32.xlu0 %v4765, 16
    %v4865 = vpop.permute.xlu0 %4864
    %4866 = vrot.lane.b32.xlu0 %v4764, 16
    %v4867 = vpop.permute.xlu0 %4866
    %4868 = vrot.lane.b32.xlu0 %v4763, 16
    %v4869 = vpop.permute.xlu0 %4868
    %4870 = vrot.lane.b32.xlu0 %v4762, 16
    %v4871 = vpop.permute.xlu0 %4870
    %4872 = vrot.lane.b32.xlu0 %v4761, 16
    %v4873 = vpop.permute.xlu0 %4872
    %4874 = vrot.lane.b32.xlu0 %v4760, 16
    %v4875 = vpop.permute.xlu0 %4874
    %4876 = vrot.lane.b32.xlu0 %v4759, 16
    %v4877 = vpop.permute.xlu0 %4876
    %4878 = vrot.lane.b32.xlu0 %v4758, 16
    %v4879 = vpop.permute.xlu0 %4878
    %4880 = vrot.lane.b32.xlu0 %v4757, 16
    %v4881 = vpop.permute.xlu0 %4880
    %4882 = vrot.lane.b32.xlu0 %v4756, 16
    %v4883 = vpop.permute.xlu0 %4882
    %4884 = vrot.lane.b32.xlu0 %v4755, 16
    %v4885 = vpop.permute.xlu0 %4884
    %4886 = vrot.lane.b32.xlu0 %v4754, 16
    %v4887 = vpop.permute.xlu0 %4886
    %4888 = vrot.lane.b32.xlu0 %v4753, 16
    %v4889 = vpop.permute.xlu0 %4888
    %4890 = vrot.lane.b32.xlu0 %v4752, 16
    %v4891 = vpop.permute.xlu0 %4890
    %4892 = vrot.lane.b32.xlu0 %v4751, 16
    %v4893 = vpop.permute.xlu0 %4892
    %4894 = vrot.lane.b32.xlu0 %v4750, 16
    %v4895 = vpop.permute.xlu0 %4894
    %4896 = vrot.lane.b32.xlu0 %v4749, 16
    %v4897 = vpop.permute.xlu0 %4896
    %4898 = vrot.lane.b32.xlu0 %v4748, 16
    %v4899 = vpop.permute.xlu0 %4898
    %4900 = vrot.lane.b32.xlu0 %v4747, 16
    %v4901 = vpop.permute.xlu0 %4900
    %4902 = vrot.lane.b32.xlu0 %v4746, 16
    %v4903 = vpop.permute.xlu0 %4902
    %4904 = vrot.lane.b32.xlu0 %v4745, 16
    %v4905 = vpop.permute.xlu0 %4904
    %4906 = vrot.lane.b32.xlu0 %v4744, 16
    %v4907 = vpop.permute.xlu0 %4906
    %4908 = vrot.lane.b32.xlu0 %v4743, 16
    %v4909 = vpop.permute.xlu0 %4908
    %4910 = vrot.lane.b32.xlu0 %v4742, 16
    %v4911 = vpop.permute.xlu0 %4910
    %4912 = vrot.lane.b32.xlu0 %v4741, 16
    %v4913 = vpop.permute.xlu0 %4912
    %4914 = vrot.lane.b32.xlu0 %v4740, 16
    %v4915 = vpop.permute.xlu0 %4914
    %4916 = vrot.lane.b32.xlu0 %v4739, 16
    %v4917 = vpop.permute.xlu0 %4916
    %4918 = vrot.lane.b32.xlu0 %v4738, 16
    %v4919 = vpop.permute.xlu0 %4918
    %4920 = vrot.lane.b32.xlu0 %v4737, 16
    %v4921 = vpop.permute.xlu0 %4920
    %4922 = vrot.lane.b32.xlu0 %v4736, 16
    %v4923 = vpop.permute.xlu0 %4922
    %4924 = vrot.lane.b32.xlu0 %v4735, 16
    %v4925 = vpop.permute.xlu0 %4924
    %v4926 = vadd.f32 %v4606, %v4799
    %v4927 = vadd.f32 %v4607, %v4801
    %v4928 = vadd.f32 %v4608, %v4803
    %v4929 = vadd.f32 %v4609, %v4805
    %v4930 = vadd.f32 %v4610, %v4807
    %v4931 = vadd.f32 %v4611, %v4809
    %v4932 = vadd.f32 %v4612, %v4811
    %v4933 = vadd.f32 %v4613, %v4813
    %v4934 = vadd.f32 %v4614, %v4815
    %v4935 = vadd.f32 %v4615, %v4817
    %v4936 = vadd.f32 %v4616, %v4819
    %v4937 = vadd.f32 %v4617, %v4821
    %v4938 = vadd.f32 %v4618, %v4823
    %v4939 = vadd.f32 %v4619, %v4825
    %v4940 = vadd.f32 %v4620, %v4827
    %v4941 = vadd.f32 %v4621, %v4829
    %v4942 = vadd.f32 %v4622, %v4831
    %v4943 = vadd.f32 %v4623, %v4833
    %v4944 = vadd.f32 %v4624, %v4835
    %v4945 = vadd.f32 %v4625, %v4837
    %v4946 = vadd.f32 %v4626, %v4839
    %v4947 = vadd.f32 %v4627, %v4841
    %v4948 = vadd.f32 %v4628, %v4843
    %v4949 = vadd.f32 %v4629, %v4845
    %v4950 = vadd.f32 %v4630, %v4847
    %v4951 = vadd.f32 %v4631, %v4849
    %v4952 = vadd.f32 %v4632, %v4851
    %v4953 = vadd.f32 %v4633, %v4853
    %v4954 = vadd.f32 %v4634, %v4855
    %v4955 = vadd.f32 %v4635, %v4857
    %v4956 = vadd.f32 %v4636, %v4859
    %v4957 = vadd.f32 %v4637, %v4861
    %v4958 = vadd.f32 %v4638, %v4863
    %v4959 = vadd.f32 %v4639, %v4865
    %v4960 = vadd.f32 %v4640, %v4867
    %v4961 = vadd.f32 %v4641, %v4869
    %v4962 = vadd.f32 %v4642, %v4871
    %v4963 = vadd.f32 %v4643, %v4873
    %v4964 = vadd.f32 %v4644, %v4875
    %v4965 = vadd.f32 %v4645, %v4877
    %v4966 = vadd.f32 %v4646, %v4879
    %v4967 = vadd.f32 %v4647, %v4881
    %v4968 = vadd.f32 %v4648, %v4883
    %v4969 = vadd.f32 %v4649, %v4885
    %v4970 = vadd.f32 %v4650, %v4887
    %v4971 = vadd.f32 %v4651, %v4889
    %v4972 = vadd.f32 %v4652, %v4891
    %v4973 = vadd.f32 %v4653, %v4893
    %v4974 = vadd.f32 %v4654, %v4895
    %v4975 = vadd.f32 %v4655, %v4897
    %v4976 = vadd.f32 %v4656, %v4899
    %v4977 = vadd.f32 %v4657, %v4901
    %v4978 = vadd.f32 %v4658, %v4903
    %v4979 = vadd.f32 %v4659, %v4905
    %v4980 = vadd.f32 %v4660, %v4907
    %v4981 = vadd.f32 %v4661, %v4909
    %v4982 = vadd.f32 %v4662, %v4911
    %v4983 = vadd.f32 %v4663, %v4913
    %v4984 = vadd.f32 %v4664, %v4915
    %v4985 = vadd.f32 %v4665, %v4917
    %v4986 = vadd.f32 %v4666, %v4919
    %v4987 = vadd.f32 %v4667, %v4921
    %v4988 = vadd.f32 %v4668, %v4923
    %v4989 = vadd.f32 %v4669, %v4925
    %4990 = vrot.lane.b32.xlu0 %v4477, 24
    %v4991 = vpop.permute.xlu0 %4990
    %4992 = vrot.lane.b32.xlu0 %v4476, 24
    %v4993 = vpop.permute.xlu0 %4992
    %4994 = vrot.lane.b32.xlu0 %v4475, 24
    %v4995 = vpop.permute.xlu0 %4994
    %4996 = vrot.lane.b32.xlu0 %v4474, 24
    %v4997 = vpop.permute.xlu0 %4996
    %4998 = vrot.lane.b32.xlu0 %v4473, 24
    %v4999 = vpop.permute.xlu0 %4998
    %5000 = vrot.lane.b32.xlu0 %v4472, 24
    %v5001 = vpop.permute.xlu0 %5000
    %5002 = vrot.lane.b32.xlu0 %v4471, 24
    %v5003 = vpop.permute.xlu0 %5002
    %5004 = vrot.lane.b32.xlu0 %v4470, 24
    %v5005 = vpop.permute.xlu0 %5004
    %5006 = vrot.lane.b32.xlu0 %v4469, 24
    %v5007 = vpop.permute.xlu0 %5006
    %5008 = vrot.lane.b32.xlu0 %v4468, 24
    %v5009 = vpop.permute.xlu0 %5008
    %5010 = vrot.lane.b32.xlu0 %v4467, 24
    %v5011 = vpop.permute.xlu0 %5010
    %5012 = vrot.lane.b32.xlu0 %v4466, 24
    %v5013 = vpop.permute.xlu0 %5012
    %5014 = vrot.lane.b32.xlu0 %v4465, 24
    %v5015 = vpop.permute.xlu0 %5014
    %5016 = vrot.lane.b32.xlu0 %v4464, 24
    %v5017 = vpop.permute.xlu0 %5016
    %5018 = vrot.lane.b32.xlu0 %v4463, 24
    %v5019 = vpop.permute.xlu0 %5018
    %5020 = vrot.lane.b32.xlu0 %v4462, 24
    %v5021 = vpop.permute.xlu0 %5020
    %5022 = vrot.lane.b32.xlu0 %v4461, 24
    %v5023 = vpop.permute.xlu0 %5022
    %5024 = vrot.lane.b32.xlu0 %v4460, 24
    %v5025 = vpop.permute.xlu0 %5024
    %5026 = vrot.lane.b32.xlu0 %v4459, 24
    %v5027 = vpop.permute.xlu0 %5026
    %5028 = vrot.lane.b32.xlu0 %v4458, 24
    %v5029 = vpop.permute.xlu0 %5028
    %5030 = vrot.lane.b32.xlu0 %v4457, 24
    %v5031 = vpop.permute.xlu0 %5030
    %5032 = vrot.lane.b32.xlu0 %v4456, 24
    %v5033 = vpop.permute.xlu0 %5032
    %5034 = vrot.lane.b32.xlu0 %v4455, 24
    %v5035 = vpop.permute.xlu0 %5034
    %5036 = vrot.lane.b32.xlu0 %v4454, 24
    %v5037 = vpop.permute.xlu0 %5036
    %5038 = vrot.lane.b32.xlu0 %v4453, 24
    %v5039 = vpop.permute.xlu0 %5038
    %5040 = vrot.lane.b32.xlu0 %v4452, 24
    %v5041 = vpop.permute.xlu0 %5040
    %5042 = vrot.lane.b32.xlu0 %v4451, 24
    %v5043 = vpop.permute.xlu0 %5042
    %5044 = vrot.lane.b32.xlu0 %v4450, 24
    %v5045 = vpop.permute.xlu0 %5044
    %5046 = vrot.lane.b32.xlu0 %v4449, 24
    %v5047 = vpop.permute.xlu0 %5046
    %5048 = vrot.lane.b32.xlu0 %v4448, 24
    %v5049 = vpop.permute.xlu0 %5048
    %5050 = vrot.lane.b32.xlu0 %v4447, 24
    %v5051 = vpop.permute.xlu0 %5050
    %5052 = vrot.lane.b32.xlu0 %v4446, 24
    %v5053 = vpop.permute.xlu0 %5052
    %5054 = vrot.lane.b32.xlu0 %v4445, 24
    %v5055 = vpop.permute.xlu0 %5054
    %5056 = vrot.lane.b32.xlu0 %v4444, 24
    %v5057 = vpop.permute.xlu0 %5056
    %5058 = vrot.lane.b32.xlu0 %v4443, 24
    %v5059 = vpop.permute.xlu0 %5058
    %5060 = vrot.lane.b32.xlu0 %v4442, 24
    %v5061 = vpop.permute.xlu0 %5060
    %5062 = vrot.lane.b32.xlu0 %v4441, 24
    %v5063 = vpop.permute.xlu0 %5062
    %5064 = vrot.lane.b32.xlu0 %v4440, 24
    %v5065 = vpop.permute.xlu0 %5064
    %5066 = vrot.lane.b32.xlu0 %v4439, 24
    %v5067 = vpop.permute.xlu0 %5066
    %5068 = vrot.lane.b32.xlu0 %v4438, 24
    %v5069 = vpop.permute.xlu0 %5068
    %5070 = vrot.lane.b32.xlu0 %v4437, 24
    %v5071 = vpop.permute.xlu0 %5070
    %5072 = vrot.lane.b32.xlu0 %v4436, 24
    %v5073 = vpop.permute.xlu0 %5072
    %5074 = vrot.lane.b32.xlu0 %v4435, 24
    %v5075 = vpop.permute.xlu0 %5074
    %5076 = vrot.lane.b32.xlu0 %v4434, 24
    %v5077 = vpop.permute.xlu0 %5076
    %5078 = vrot.lane.b32.xlu0 %v4433, 24
    %v5079 = vpop.permute.xlu0 %5078
    %5080 = vrot.lane.b32.xlu0 %v4432, 24
    %v5081 = vpop.permute.xlu0 %5080
    %5082 = vrot.lane.b32.xlu0 %v4431, 24
    %v5083 = vpop.permute.xlu0 %5082
    %5084 = vrot.lane.b32.xlu0 %v4430, 24
    %v5085 = vpop.permute.xlu0 %5084
    %5086 = vrot.lane.b32.xlu0 %v4429, 24
    %v5087 = vpop.permute.xlu0 %5086
    %5088 = vrot.lane.b32.xlu0 %v4428, 24
    %v5089 = vpop.permute.xlu0 %5088
    %5090 = vrot.lane.b32.xlu0 %v4427, 24
    %v5091 = vpop.permute.xlu0 %5090
    %5092 = vrot.lane.b32.xlu0 %v4426, 24
    %v5093 = vpop.permute.xlu0 %5092
    %5094 = vrot.lane.b32.xlu0 %v4425, 24
    %v5095 = vpop.permute.xlu0 %5094
    %5096 = vrot.lane.b32.xlu0 %v4424, 24
    %v5097 = vpop.permute.xlu0 %5096
    %5098 = vrot.lane.b32.xlu0 %v4423, 24
    %v5099 = vpop.permute.xlu0 %5098
    %5100 = vrot.lane.b32.xlu0 %v4422, 24
    %v5101 = vpop.permute.xlu0 %5100
    %5102 = vrot.lane.b32.xlu0 %v4421, 24
    %v5103 = vpop.permute.xlu0 %5102
    %5104 = vrot.lane.b32.xlu0 %v4420, 24
    %v5105 = vpop.permute.xlu0 %5104
    %5106 = vrot.lane.b32.xlu0 %v4419, 24
    %v5107 = vpop.permute.xlu0 %5106
    %5108 = vrot.lane.b32.xlu0 %v4418, 24
    %v5109 = vpop.permute.xlu0 %5108
    %5110 = vrot.lane.b32.xlu0 %v4417, 24
    %v5111 = vpop.permute.xlu0 %5110
    %5112 = vrot.lane.b32.xlu0 %v4416, 24
    %v5113 = vpop.permute.xlu0 %5112
    %5114 = vrot.lane.b32.xlu0 %v4415, 24
    %v5115 = vpop.permute.xlu0 %5114
    %5116 = vrot.lane.b32.xlu0 %v4414, 24
    %v5117 = vpop.permute.xlu0 %5116
    %v5118 = vadd.f32 %v4926, %v4991
    %v5119 = vadd.f32 %v4927, %v4993
    %v5120 = vadd.f32 %v4928, %v4995
    %v5121 = vadd.f32 %v4929, %v4997
    %v5122 = vadd.f32 %v4930, %v4999
    %v5123 = vadd.f32 %v4931, %v5001
    %v5124 = vadd.f32 %v4932, %v5003
    %v5125 = vadd.f32 %v4933, %v5005
    %v5126 = vadd.f32 %v4934, %v5007
    %v5127 = vadd.f32 %v4935, %v5009
    %v5128 = vadd.f32 %v4936, %v5011
    %v5129 = vadd.f32 %v4937, %v5013
    %v5130 = vadd.f32 %v4938, %v5015
    %v5131 = vadd.f32 %v4939, %v5017
    %v5132 = vadd.f32 %v4940, %v5019
    %v5133 = vadd.f32 %v4941, %v5021
    %v5134 = vadd.f32 %v4942, %v5023
    %v5135 = vadd.f32 %v4943, %v5025
    %v5136 = vadd.f32 %v4944, %v5027
    %v5137 = vadd.f32 %v4945, %v5029
    %v5138 = vadd.f32 %v4946, %v5031
    %v5139 = vadd.f32 %v4947, %v5033
    %v5140 = vadd.f32 %v4948, %v5035
    %v5141 = vadd.f32 %v4949, %v5037
    %v5142 = vadd.f32 %v4950, %v5039
    %v5143 = vadd.f32 %v4951, %v5041
    %v5144 = vadd.f32 %v4952, %v5043
    %v5145 = vadd.f32 %v4953, %v5045
    %v5146 = vadd.f32 %v4954, %v5047
    %v5147 = vadd.f32 %v4955, %v5049
    %v5148 = vadd.f32 %v4956, %v5051
    %v5149 = vadd.f32 %v4957, %v5053
    %v5150 = vadd.f32 %v4958, %v5055
    %v5151 = vadd.f32 %v4959, %v5057
    %v5152 = vadd.f32 %v4960, %v5059
    %v5153 = vadd.f32 %v4961, %v5061
    %v5154 = vadd.f32 %v4962, %v5063
    %v5155 = vadd.f32 %v4963, %v5065
    %v5156 = vadd.f32 %v4964, %v5067
    %v5157 = vadd.f32 %v4965, %v5069
    %v5158 = vadd.f32 %v4966, %v5071
    %v5159 = vadd.f32 %v4967, %v5073
    %v5160 = vadd.f32 %v4968, %v5075
    %v5161 = vadd.f32 %v4969, %v5077
    %v5162 = vadd.f32 %v4970, %v5079
    %v5163 = vadd.f32 %v4971, %v5081
    %v5164 = vadd.f32 %v4972, %v5083
    %v5165 = vadd.f32 %v4973, %v5085
    %v5166 = vadd.f32 %v4974, %v5087
    %v5167 = vadd.f32 %v4975, %v5089
    %v5168 = vadd.f32 %v4976, %v5091
    %v5169 = vadd.f32 %v4977, %v5093
    %v5170 = vadd.f32 %v4978, %v5095
    %v5171 = vadd.f32 %v4979, %v5097
    %v5172 = vadd.f32 %v4980, %v5099
    %v5173 = vadd.f32 %v4981, %v5101
    %v5174 = vadd.f32 %v4982, %v5103
    %v5175 = vadd.f32 %v4983, %v5105
    %v5176 = vadd.f32 %v4984, %v5107
    %v5177 = vadd.f32 %v4985, %v5109
    %v5178 = vadd.f32 %v4986, %v5111
    %v5179 = vadd.f32 %v4987, %v5113
    %v5180 = vadd.f32 %v4988, %v5115
    %v5181 = vadd.f32 %v4989, %v5117
    %5182 = vrot.lane.b32.xlu0 %v4286, 32
    %v5183 = vpop.permute.xlu0 %5182
    %5184 = vrot.lane.b32.xlu0 %v4287, 32
    %v5185 = vpop.permute.xlu0 %5184
    %5186 = vrot.lane.b32.xlu0 %v4288, 32
    %v5187 = vpop.permute.xlu0 %5186
    %5188 = vrot.lane.b32.xlu0 %v4289, 32
    %v5189 = vpop.permute.xlu0 %5188
    %5190 = vrot.lane.b32.xlu0 %v4290, 32
    %v5191 = vpop.permute.xlu0 %5190
    %5192 = vrot.lane.b32.xlu0 %v4291, 32
    %v5193 = vpop.permute.xlu0 %5192
    %5194 = vrot.lane.b32.xlu0 %v4292, 32
    %v5195 = vpop.permute.xlu0 %5194
    %5196 = vrot.lane.b32.xlu0 %v4293, 32
    %v5197 = vpop.permute.xlu0 %5196
    %5198 = vrot.lane.b32.xlu0 %v4294, 32
    %v5199 = vpop.permute.xlu0 %5198
    %5200 = vrot.lane.b32.xlu0 %v4295, 32
    %v5201 = vpop.permute.xlu0 %5200
    %5202 = vrot.lane.b32.xlu0 %v4296, 32
    %v5203 = vpop.permute.xlu0 %5202
    %5204 = vrot.lane.b32.xlu0 %v4297, 32
    %v5205 = vpop.permute.xlu0 %5204
    %5206 = vrot.lane.b32.xlu0 %v4298, 32
    %v5207 = vpop.permute.xlu0 %5206
    %5208 = vrot.lane.b32.xlu0 %v4299, 32
    %v5209 = vpop.permute.xlu0 %5208
    %5210 = vrot.lane.b32.xlu0 %v4300, 32
    %v5211 = vpop.permute.xlu0 %5210
    %5212 = vrot.lane.b32.xlu0 %v4301, 32
    %v5213 = vpop.permute.xlu0 %5212
    %5214 = vrot.lane.b32.xlu0 %v4302, 32
    %v5215 = vpop.permute.xlu0 %5214
    %5216 = vrot.lane.b32.xlu0 %v4303, 32
    %v5217 = vpop.permute.xlu0 %5216
    %5218 = vrot.lane.b32.xlu0 %v4304, 32
    %v5219 = vpop.permute.xlu0 %5218
    %5220 = vrot.lane.b32.xlu0 %v4305, 32
    %v5221 = vpop.permute.xlu0 %5220
    %5222 = vrot.lane.b32.xlu0 %v4306, 32
    %v5223 = vpop.permute.xlu0 %5222
    %5224 = vrot.lane.b32.xlu0 %v4307, 32
    %v5225 = vpop.permute.xlu0 %5224
    %5226 = vrot.lane.b32.xlu0 %v4308, 32
    %v5227 = vpop.permute.xlu0 %5226
    %5228 = vrot.lane.b32.xlu0 %v4309, 32
    %v5229 = vpop.permute.xlu0 %5228
    %5230 = vrot.lane.b32.xlu0 %v4310, 32
    %v5231 = vpop.permute.xlu0 %5230
    %5232 = vrot.lane.b32.xlu0 %v4311, 32
    %v5233 = vpop.permute.xlu0 %5232
    %5234 = vrot.lane.b32.xlu0 %v4312, 32
    %v5235 = vpop.permute.xlu0 %5234
    %5236 = vrot.lane.b32.xlu0 %v4313, 32
    %v5237 = vpop.permute.xlu0 %5236
    %5238 = vrot.lane.b32.xlu0 %v4314, 32
    %v5239 = vpop.permute.xlu0 %5238
    %5240 = vrot.lane.b32.xlu0 %v4315, 32
    %v5241 = vpop.permute.xlu0 %5240
    %5242 = vrot.lane.b32.xlu0 %v4316, 32
    %v5243 = vpop.permute.xlu0 %5242
    %5244 = vrot.lane.b32.xlu0 %v4317, 32
    %v5245 = vpop.permute.xlu0 %5244
    %5246 = vrot.lane.b32.xlu0 %v4318, 32
    %v5247 = vpop.permute.xlu0 %5246
    %5248 = vrot.lane.b32.xlu0 %v4319, 32
    %v5249 = vpop.permute.xlu0 %5248
    %5250 = vrot.lane.b32.xlu0 %v4320, 32
    %v5251 = vpop.permute.xlu0 %5250
    %5252 = vrot.lane.b32.xlu0 %v4321, 32
    %v5253 = vpop.permute.xlu0 %5252
    %5254 = vrot.lane.b32.xlu0 %v4322, 32
    %v5255 = vpop.permute.xlu0 %5254
    %5256 = vrot.lane.b32.xlu0 %v4323, 32
    %v5257 = vpop.permute.xlu0 %5256
    %5258 = vrot.lane.b32.xlu0 %v4324, 32
    %v5259 = vpop.permute.xlu0 %5258
    %5260 = vrot.lane.b32.xlu0 %v4325, 32
    %v5261 = vpop.permute.xlu0 %5260
    %5262 = vrot.lane.b32.xlu0 %v4326, 32
    %v5263 = vpop.permute.xlu0 %5262
    %5264 = vrot.lane.b32.xlu0 %v4327, 32
    %v5265 = vpop.permute.xlu0 %5264
    %5266 = vrot.lane.b32.xlu0 %v4328, 32
    %v5267 = vpop.permute.xlu0 %5266
    %5268 = vrot.lane.b32.xlu0 %v4329, 32
    %v5269 = vpop.permute.xlu0 %5268
    %5270 = vrot.lane.b32.xlu0 %v4330, 32
    %v5271 = vpop.permute.xlu0 %5270
    %5272 = vrot.lane.b32.xlu0 %v4331, 32
    %v5273 = vpop.permute.xlu0 %5272
    %5274 = vrot.lane.b32.xlu0 %v4332, 32
    %v5275 = vpop.permute.xlu0 %5274
    %5276 = vrot.lane.b32.xlu0 %v4333, 32
    %v5277 = vpop.permute.xlu0 %5276
    %5278 = vrot.lane.b32.xlu0 %v4334, 32
    %v5279 = vpop.permute.xlu0 %5278
    %5280 = vrot.lane.b32.xlu0 %v4335, 32
    %v5281 = vpop.permute.xlu0 %5280
    %5282 = vrot.lane.b32.xlu0 %v4336, 32
    %v5283 = vpop.permute.xlu0 %5282
    %5284 = vrot.lane.b32.xlu0 %v4337, 32
    %v5285 = vpop.permute.xlu0 %5284
    %5286 = vrot.lane.b32.xlu0 %v4338, 32
    %v5287 = vpop.permute.xlu0 %5286
    %5288 = vrot.lane.b32.xlu0 %v4339, 32
    %v5289 = vpop.permute.xlu0 %5288
    %5290 = vrot.lane.b32.xlu0 %v4340, 32
    %v5291 = vpop.permute.xlu0 %5290
    %5292 = vrot.lane.b32.xlu0 %v4341, 32
    %v5293 = vpop.permute.xlu0 %5292
    %5294 = vrot.lane.b32.xlu0 %v4342, 32
    %v5295 = vpop.permute.xlu0 %5294
    %5296 = vrot.lane.b32.xlu0 %v4343, 32
    %v5297 = vpop.permute.xlu0 %5296
    %5298 = vrot.lane.b32.xlu0 %v4344, 32
    %v5299 = vpop.permute.xlu0 %5298
    %5300 = vrot.lane.b32.xlu0 %v4345, 32
    %v5301 = vpop.permute.xlu0 %5300
    %5302 = vrot.lane.b32.xlu0 %v4346, 32
    %v5303 = vpop.permute.xlu0 %5302
    %5304 = vrot.lane.b32.xlu0 %v4347, 32
    %v5305 = vpop.permute.xlu0 %5304
    %5306 = vrot.lane.b32.xlu0 %v4348, 32
    %v5307 = vpop.permute.xlu0 %5306
    %5308 = vrot.lane.b32.xlu0 %v4349, 32
    %v5309 = vpop.permute.xlu0 %5308
    %v5310 = vadd.f32 %v5118, %v5183
    %v5311 = vadd.f32 %v5119, %v5185
    %v5312 = vadd.f32 %v5120, %v5187
    %v5313 = vadd.f32 %v5121, %v5189
    %v5314 = vadd.f32 %v5122, %v5191
    %v5315 = vadd.f32 %v5123, %v5193
    %v5316 = vadd.f32 %v5124, %v5195
    %v5317 = vadd.f32 %v5125, %v5197
    %v5318 = vadd.f32 %v5126, %v5199
    %v5319 = vadd.f32 %v5127, %v5201
    %v5320 = vadd.f32 %v5128, %v5203
    %v5321 = vadd.f32 %v5129, %v5205
    %v5322 = vadd.f32 %v5130, %v5207
    %v5323 = vadd.f32 %v5131, %v5209
    %v5324 = vadd.f32 %v5132, %v5211
    %v5325 = vadd.f32 %v5133, %v5213
    %v5326 = vadd.f32 %v5134, %v5215
    %v5327 = vadd.f32 %v5135, %v5217
    %v5328 = vadd.f32 %v5136, %v5219
    %v5329 = vadd.f32 %v5137, %v5221
    %v5330 = vadd.f32 %v5138, %v5223
    %v5331 = vadd.f32 %v5139, %v5225
    %v5332 = vadd.f32 %v5140, %v5227
    %v5333 = vadd.f32 %v5141, %v5229
    %v5334 = vadd.f32 %v5142, %v5231
    %v5335 = vadd.f32 %v5143, %v5233
    %v5336 = vadd.f32 %v5144, %v5235
    %v5337 = vadd.f32 %v5145, %v5237
    %v5338 = vadd.f32 %v5146, %v5239
    %v5339 = vadd.f32 %v5147, %v5241
    %v5340 = vadd.f32 %v5148, %v5243
    %v5341 = vadd.f32 %v5149, %v5245
    %v5342 = vadd.f32 %v5150, %v5247
    %v5343 = vadd.f32 %v5151, %v5249
    %v5344 = vadd.f32 %v5152, %v5251
    %v5345 = vadd.f32 %v5153, %v5253
    %v5346 = vadd.f32 %v5154, %v5255
    %v5347 = vadd.f32 %v5155, %v5257
    %v5348 = vadd.f32 %v5156, %v5259
    %v5349 = vadd.f32 %v5157, %v5261
    %v5350 = vadd.f32 %v5158, %v5263
    %v5351 = vadd.f32 %v5159, %v5265
    %v5352 = vadd.f32 %v5160, %v5267
    %v5353 = vadd.f32 %v5161, %v5269
    %v5354 = vadd.f32 %v5162, %v5271
    %v5355 = vadd.f32 %v5163, %v5273
    %v5356 = vadd.f32 %v5164, %v5275
    %v5357 = vadd.f32 %v5165, %v5277
    %v5358 = vadd.f32 %v5166, %v5279
    %v5359 = vadd.f32 %v5167, %v5281
    %v5360 = vadd.f32 %v5168, %v5283
    %v5361 = vadd.f32 %v5169, %v5285
    %v5362 = vadd.f32 %v5170, %v5287
    %v5363 = vadd.f32 %v5171, %v5289
    %v5364 = vadd.f32 %v5172, %v5291
    %v5365 = vadd.f32 %v5173, %v5293
    %v5366 = vadd.f32 %v5174, %v5295
    %v5367 = vadd.f32 %v5175, %v5297
    %v5368 = vadd.f32 %v5176, %v5299
    %v5369 = vadd.f32 %v5177, %v5301
    %v5370 = vadd.f32 %v5178, %v5303
    %v5371 = vadd.f32 %v5179, %v5305
    %v5372 = vadd.f32 %v5180, %v5307
    %v5373 = vadd.f32 %v5181, %v5309
    %5374 = vrot.lane.b32.xlu0 %v4796, 40
    %v5375 = vpop.permute.xlu0 %5374
    %5376 = vrot.lane.b32.xlu0 %v4795, 40
    %v5377 = vpop.permute.xlu0 %5376
    %5378 = vrot.lane.b32.xlu0 %v4794, 40
    %v5379 = vpop.permute.xlu0 %5378
    %5380 = vrot.lane.b32.xlu0 %v4793, 40
    %v5381 = vpop.permute.xlu0 %5380
    %5382 = vrot.lane.b32.xlu0 %v4792, 40
    %v5383 = vpop.permute.xlu0 %5382
    %5384 = vrot.lane.b32.xlu0 %v4791, 40
    %v5385 = vpop.permute.xlu0 %5384
    %5386 = vrot.lane.b32.xlu0 %v4790, 40
    %v5387 = vpop.permute.xlu0 %5386
    %5388 = vrot.lane.b32.xlu0 %v4789, 40
    %v5389 = vpop.permute.xlu0 %5388
    %5390 = vrot.lane.b32.xlu0 %v4788, 40
    %v5391 = vpop.permute.xlu0 %5390
    %5392 = vrot.lane.b32.xlu0 %v4787, 40
    %v5393 = vpop.permute.xlu0 %5392
    %5394 = vrot.lane.b32.xlu0 %v4786, 40
    %v5395 = vpop.permute.xlu0 %5394
    %5396 = vrot.lane.b32.xlu0 %v4785, 40
    %v5397 = vpop.permute.xlu0 %5396
    %5398 = vrot.lane.b32.xlu0 %v4784, 40
    %v5399 = vpop.permute.xlu0 %5398
    %5400 = vrot.lane.b32.xlu0 %v4783, 40
    %v5401 = vpop.permute.xlu0 %5400
    %5402 = vrot.lane.b32.xlu0 %v4782, 40
    %v5403 = vpop.permute.xlu0 %5402
    %5404 = vrot.lane.b32.xlu0 %v4781, 40
    %v5405 = vpop.permute.xlu0 %5404
    %5406 = vrot.lane.b32.xlu0 %v4780, 40
    %v5407 = vpop.permute.xlu0 %5406
    %5408 = vrot.lane.b32.xlu0 %v4779, 40
    %v5409 = vpop.permute.xlu0 %5408
    %5410 = vrot.lane.b32.xlu0 %v4778, 40
    %v5411 = vpop.permute.xlu0 %5410
    %5412 = vrot.lane.b32.xlu0 %v4777, 40
    %v5413 = vpop.permute.xlu0 %5412
    %5414 = vrot.lane.b32.xlu0 %v4776, 40
    %v5415 = vpop.permute.xlu0 %5414
    %5416 = vrot.lane.b32.xlu0 %v4775, 40
    %v5417 = vpop.permute.xlu0 %5416
    %5418 = vrot.lane.b32.xlu0 %v4774, 40
    %v5419 = vpop.permute.xlu0 %5418
    %5420 = vrot.lane.b32.xlu0 %v4773, 40
    %v5421 = vpop.permute.xlu0 %5420
    %5422 = vrot.lane.b32.xlu0 %v4772, 40
    %v5423 = vpop.permute.xlu0 %5422
    %5424 = vrot.lane.b32.xlu0 %v4771, 40
    %v5425 = vpop.permute.xlu0 %5424
    %5426 = vrot.lane.b32.xlu0 %v4770, 40
    %v5427 = vpop.permute.xlu0 %5426
    %5428 = vrot.lane.b32.xlu0 %v4769, 40
    %v5429 = vpop.permute.xlu0 %5428
    %5430 = vrot.lane.b32.xlu0 %v4768, 40
    %v5431 = vpop.permute.xlu0 %5430
    %5432 = vrot.lane.b32.xlu0 %v4767, 40
    %v5433 = vpop.permute.xlu0 %5432
    %5434 = vrot.lane.b32.xlu0 %v4766, 40
    %v5435 = vpop.permute.xlu0 %5434
    %5436 = vrot.lane.b32.xlu0 %v4765, 40
    %v5437 = vpop.permute.xlu0 %5436
    %5438 = vrot.lane.b32.xlu0 %v4764, 40
    %v5439 = vpop.permute.xlu0 %5438
    %5440 = vrot.lane.b32.xlu0 %v4763, 40
    %v5441 = vpop.permute.xlu0 %5440
    %5442 = vrot.lane.b32.xlu0 %v4762, 40
    %v5443 = vpop.permute.xlu0 %5442
    %5444 = vrot.lane.b32.xlu0 %v4761, 40
    %v5445 = vpop.permute.xlu0 %5444
    %5446 = vrot.lane.b32.xlu0 %v4760, 40
    %v5447 = vpop.permute.xlu0 %5446
    %5448 = vrot.lane.b32.xlu0 %v4759, 40
    %v5449 = vpop.permute.xlu0 %5448
    %5450 = vrot.lane.b32.xlu0 %v4758, 40
    %v5451 = vpop.permute.xlu0 %5450
    %5452 = vrot.lane.b32.xlu0 %v4757, 40
    %v5453 = vpop.permute.xlu0 %5452
    %5454 = vrot.lane.b32.xlu0 %v4756, 40
    %v5455 = vpop.permute.xlu0 %5454
    %5456 = vrot.lane.b32.xlu0 %v4755, 40
    %v5457 = vpop.permute.xlu0 %5456
    %5458 = vrot.lane.b32.xlu0 %v4754, 40
    %v5459 = vpop.permute.xlu0 %5458
    %5460 = vrot.lane.b32.xlu0 %v4753, 40
    %v5461 = vpop.permute.xlu0 %5460
    %5462 = vrot.lane.b32.xlu0 %v4752, 40
    %v5463 = vpop.permute.xlu0 %5462
    %5464 = vrot.lane.b32.xlu0 %v4751, 40
    %v5465 = vpop.permute.xlu0 %5464
    %5466 = vrot.lane.b32.xlu0 %v4750, 40
    %v5467 = vpop.permute.xlu0 %5466
    %5468 = vrot.lane.b32.xlu0 %v4749, 40
    %v5469 = vpop.permute.xlu0 %5468
    %5470 = vrot.lane.b32.xlu0 %v4748, 40
    %v5471 = vpop.permute.xlu0 %5470
    %5472 = vrot.lane.b32.xlu0 %v4747, 40
    %v5473 = vpop.permute.xlu0 %5472
    %5474 = vrot.lane.b32.xlu0 %v4746, 40
    %v5475 = vpop.permute.xlu0 %5474
    %5476 = vrot.lane.b32.xlu0 %v4745, 40
    %v5477 = vpop.permute.xlu0 %5476
    %5478 = vrot.lane.b32.xlu0 %v4744, 40
    %v5479 = vpop.permute.xlu0 %5478
    %5480 = vrot.lane.b32.xlu0 %v4743, 40
    %v5481 = vpop.permute.xlu0 %5480
    %5482 = vrot.lane.b32.xlu0 %v4742, 40
    %v5483 = vpop.permute.xlu0 %5482
    %5484 = vrot.lane.b32.xlu0 %v4741, 40
    %v5485 = vpop.permute.xlu0 %5484
    %5486 = vrot.lane.b32.xlu0 %v4740, 40
    %v5487 = vpop.permute.xlu0 %5486
    %5488 = vrot.lane.b32.xlu0 %v4739, 40
    %v5489 = vpop.permute.xlu0 %5488
    %5490 = vrot.lane.b32.xlu0 %v4738, 40
    %v5491 = vpop.permute.xlu0 %5490
    %5492 = vrot.lane.b32.xlu0 %v4737, 40
    %v5493 = vpop.permute.xlu0 %5492
    %5494 = vrot.lane.b32.xlu0 %v4736, 40
    %v5495 = vpop.permute.xlu0 %5494
    %5496 = vrot.lane.b32.xlu0 %v4735, 40
    %v5497 = vpop.permute.xlu0 %5496
    %5498 = vrot.lane.b32.xlu0 %v4734, 40
    %v5499 = vpop.permute.xlu0 %5498
    %5500 = vrot.lane.b32.xlu0 %v4797, 40
    %v5501 = vpop.permute.xlu0 %5500
    %v5502 = vadd.f32 %v5310, %v5375
    %v5503 = vadd.f32 %v5311, %v5377
    %v5504 = vadd.f32 %v5312, %v5379
    %v5505 = vadd.f32 %v5313, %v5381
    %v5506 = vadd.f32 %v5314, %v5383
    %v5507 = vadd.f32 %v5315, %v5385
    %v5508 = vadd.f32 %v5316, %v5387
    %v5509 = vadd.f32 %v5317, %v5389
    %v5510 = vadd.f32 %v5318, %v5391
    %v5511 = vadd.f32 %v5319, %v5393
    %v5512 = vadd.f32 %v5320, %v5395
    %v5513 = vadd.f32 %v5321, %v5397
    %v5514 = vadd.f32 %v5322, %v5399
    %v5515 = vadd.f32 %v5323, %v5401
    %v5516 = vadd.f32 %v5324, %v5403
    %v5517 = vadd.f32 %v5325, %v5405
    %v5518 = vadd.f32 %v5326, %v5407
    %v5519 = vadd.f32 %v5327, %v5409
    %v5520 = vadd.f32 %v5328, %v5411
    %v5521 = vadd.f32 %v5329, %v5413
    %v5522 = vadd.f32 %v5330, %v5415
    %v5523 = vadd.f32 %v5331, %v5417
    %v5524 = vadd.f32 %v5332, %v5419
    %v5525 = vadd.f32 %v5333, %v5421
    %v5526 = vadd.f32 %v5334, %v5423
    %v5527 = vadd.f32 %v5335, %v5425
    %v5528 = vadd.f32 %v5336, %v5427
    %v5529 = vadd.f32 %v5337, %v5429
    %v5530 = vadd.f32 %v5338, %v5431
    %v5531 = vadd.f32 %v5339, %v5433
    %v5532 = vadd.f32 %v5340, %v5435
    %v5533 = vadd.f32 %v5341, %v5437
    %v5534 = vadd.f32 %v5342, %v5439
    %v5535 = vadd.f32 %v5343, %v5441
    %v5536 = vadd.f32 %v5344, %v5443
    %v5537 = vadd.f32 %v5345, %v5445
    %v5538 = vadd.f32 %v5346, %v5447
    %v5539 = vadd.f32 %v5347, %v5449
    %v5540 = vadd.f32 %v5348, %v5451
    %v5541 = vadd.f32 %v5349, %v5453
    %v5542 = vadd.f32 %v5350, %v5455
    %v5543 = vadd.f32 %v5351, %v5457
    %v5544 = vadd.f32 %v5352, %v5459
    %v5545 = vadd.f32 %v5353, %v5461
    %v5546 = vadd.f32 %v5354, %v5463
    %v5547 = vadd.f32 %v5355, %v5465
    %v5548 = vadd.f32 %v5356, %v5467
    %v5549 = vadd.f32 %v5357, %v5469
    %v5550 = vadd.f32 %v5358, %v5471
    %v5551 = vadd.f32 %v5359, %v5473
    %v5552 = vadd.f32 %v5360, %v5475
    %v5553 = vadd.f32 %v5361, %v5477
    %v5554 = vadd.f32 %v5362, %v5479
    %v5555 = vadd.f32 %v5363, %v5481
    %v5556 = vadd.f32 %v5364, %v5483
    %v5557 = vadd.f32 %v5365, %v5485
    %v5558 = vadd.f32 %v5366, %v5487
    %v5559 = vadd.f32 %v5367, %v5489
    %v5560 = vadd.f32 %v5368, %v5491
    %v5561 = vadd.f32 %v5369, %v5493
    %v5562 = vadd.f32 %v5370, %v5495
    %v5563 = vadd.f32 %v5371, %v5497
    %v5564 = vadd.f32 %v5372, %v5499
    %v5565 = vadd.f32 %v5373, %v5501
    %5566 = vrot.lane.b32.xlu0 %v4475, 48
    %v5567 = vpop.permute.xlu0 %5566
    %5568 = vrot.lane.b32.xlu0 %v4474, 48
    %v5569 = vpop.permute.xlu0 %5568
    %5570 = vrot.lane.b32.xlu0 %v4473, 48
    %v5571 = vpop.permute.xlu0 %5570
    %5572 = vrot.lane.b32.xlu0 %v4472, 48
    %v5573 = vpop.permute.xlu0 %5572
    %5574 = vrot.lane.b32.xlu0 %v4471, 48
    %v5575 = vpop.permute.xlu0 %5574
    %5576 = vrot.lane.b32.xlu0 %v4470, 48
    %v5577 = vpop.permute.xlu0 %5576
    %5578 = vrot.lane.b32.xlu0 %v4469, 48
    %v5579 = vpop.permute.xlu0 %5578
    %5580 = vrot.lane.b32.xlu0 %v4468, 48
    %v5581 = vpop.permute.xlu0 %5580
    %5582 = vrot.lane.b32.xlu0 %v4467, 48
    %v5583 = vpop.permute.xlu0 %5582
    %5584 = vrot.lane.b32.xlu0 %v4466, 48
    %v5585 = vpop.permute.xlu0 %5584
    %5586 = vrot.lane.b32.xlu0 %v4465, 48
    %v5587 = vpop.permute.xlu0 %5586
    %5588 = vrot.lane.b32.xlu0 %v4464, 48
    %v5589 = vpop.permute.xlu0 %5588
    %5590 = vrot.lane.b32.xlu0 %v4463, 48
    %v5591 = vpop.permute.xlu0 %5590
    %5592 = vrot.lane.b32.xlu0 %v4462, 48
    %v5593 = vpop.permute.xlu0 %5592
    %5594 = vrot.lane.b32.xlu0 %v4461, 48
    %v5595 = vpop.permute.xlu0 %5594
    %5596 = vrot.lane.b32.xlu0 %v4460, 48
    %v5597 = vpop.permute.xlu0 %5596
    %5598 = vrot.lane.b32.xlu0 %v4459, 48
    %v5599 = vpop.permute.xlu0 %5598
    %5600 = vrot.lane.b32.xlu0 %v4458, 48
    %v5601 = vpop.permute.xlu0 %5600
    %5602 = vrot.lane.b32.xlu0 %v4457, 48
    %v5603 = vpop.permute.xlu0 %5602
    %5604 = vrot.lane.b32.xlu0 %v4456, 48
    %v5605 = vpop.permute.xlu0 %5604
    %5606 = vrot.lane.b32.xlu0 %v4455, 48
    %v5607 = vpop.permute.xlu0 %5606
    %5608 = vrot.lane.b32.xlu0 %v4454, 48
    %v5609 = vpop.permute.xlu0 %5608
    %5610 = vrot.lane.b32.xlu0 %v4453, 48
    %v5611 = vpop.permute.xlu0 %5610
    %5612 = vrot.lane.b32.xlu0 %v4452, 48
    %v5613 = vpop.permute.xlu0 %5612
    %5614 = vrot.lane.b32.xlu0 %v4451, 48
    %v5615 = vpop.permute.xlu0 %5614
    %5616 = vrot.lane.b32.xlu0 %v4450, 48
    %v5617 = vpop.permute.xlu0 %5616
    %5618 = vrot.lane.b32.xlu0 %v4449, 48
    %v5619 = vpop.permute.xlu0 %5618
    %5620 = vrot.lane.b32.xlu0 %v4448, 48
    %v5621 = vpop.permute.xlu0 %5620
    %5622 = vrot.lane.b32.xlu0 %v4447, 48
    %v5623 = vpop.permute.xlu0 %5622
    %5624 = vrot.lane.b32.xlu0 %v4446, 48
    %v5625 = vpop.permute.xlu0 %5624
    %5626 = vrot.lane.b32.xlu0 %v4445, 48
    %v5627 = vpop.permute.xlu0 %5626
    %5628 = vrot.lane.b32.xlu0 %v4444, 48
    %v5629 = vpop.permute.xlu0 %5628
    %5630 = vrot.lane.b32.xlu0 %v4443, 48
    %v5631 = vpop.permute.xlu0 %5630
    %5632 = vrot.lane.b32.xlu0 %v4442, 48
    %v5633 = vpop.permute.xlu0 %5632
    %5634 = vrot.lane.b32.xlu0 %v4441, 48
    %v5635 = vpop.permute.xlu0 %5634
    %5636 = vrot.lane.b32.xlu0 %v4440, 48
    %v5637 = vpop.permute.xlu0 %5636
    %5638 = vrot.lane.b32.xlu0 %v4439, 48
    %v5639 = vpop.permute.xlu0 %5638
    %5640 = vrot.lane.b32.xlu0 %v4438, 48
    %v5641 = vpop.permute.xlu0 %5640
    %5642 = vrot.lane.b32.xlu0 %v4437, 48
    %v5643 = vpop.permute.xlu0 %5642
    %5644 = vrot.lane.b32.xlu0 %v4436, 48
    %v5645 = vpop.permute.xlu0 %5644
    %5646 = vrot.lane.b32.xlu0 %v4435, 48
    %v5647 = vpop.permute.xlu0 %5646
    %5648 = vrot.lane.b32.xlu0 %v4434, 48
    %v5649 = vpop.permute.xlu0 %5648
    %5650 = vrot.lane.b32.xlu0 %v4433, 48
    %v5651 = vpop.permute.xlu0 %5650
    %5652 = vrot.lane.b32.xlu0 %v4432, 48
    %v5653 = vpop.permute.xlu0 %5652
    %5654 = vrot.lane.b32.xlu0 %v4431, 48
    %v5655 = vpop.permute.xlu0 %5654
    %5656 = vrot.lane.b32.xlu0 %v4430, 48
    %v5657 = vpop.permute.xlu0 %5656
    %5658 = vrot.lane.b32.xlu0 %v4429, 48
    %v5659 = vpop.permute.xlu0 %5658
    %5660 = vrot.lane.b32.xlu0 %v4428, 48
    %v5661 = vpop.permute.xlu0 %5660
    %5662 = vrot.lane.b32.xlu0 %v4427, 48
    %v5663 = vpop.permute.xlu0 %5662
    %5664 = vrot.lane.b32.xlu0 %v4426, 48
    %v5665 = vpop.permute.xlu0 %5664
    %5666 = vrot.lane.b32.xlu0 %v4425, 48
    %v5667 = vpop.permute.xlu0 %5666
    %5668 = vrot.lane.b32.xlu0 %v4424, 48
    %v5669 = vpop.permute.xlu0 %5668
    %5670 = vrot.lane.b32.xlu0 %v4423, 48
    %v5671 = vpop.permute.xlu0 %5670
    %5672 = vrot.lane.b32.xlu0 %v4422, 48
    %v5673 = vpop.permute.xlu0 %5672
    %5674 = vrot.lane.b32.xlu0 %v4421, 48
    %v5675 = vpop.permute.xlu0 %5674
    %5676 = vrot.lane.b32.xlu0 %v4420, 48
    %v5677 = vpop.permute.xlu0 %5676
    %5678 = vrot.lane.b32.xlu0 %v4419, 48
    %v5679 = vpop.permute.xlu0 %5678
    %5680 = vrot.lane.b32.xlu0 %v4418, 48
    %v5681 = vpop.permute.xlu0 %5680
    %5682 = vrot.lane.b32.xlu0 %v4417, 48
    %v5683 = vpop.permute.xlu0 %5682
    %5684 = vrot.lane.b32.xlu0 %v4416, 48
    %v5685 = vpop.permute.xlu0 %5684
    %5686 = vrot.lane.b32.xlu0 %v4415, 48
    %v5687 = vpop.permute.xlu0 %5686
    %5688 = vrot.lane.b32.xlu0 %v4414, 48
    %v5689 = vpop.permute.xlu0 %5688
    %5690 = vrot.lane.b32.xlu0 %v4477, 48
    %v5691 = vpop.permute.xlu0 %5690
    %5692 = vrot.lane.b32.xlu0 %v4476, 48
    %v5693 = vpop.permute.xlu0 %5692
    %v5694 = vadd.f32 %v5502, %v5567
    %v5695 = vadd.f32 %v5503, %v5569
    %v5696 = vadd.f32 %v5504, %v5571
    %v5697 = vadd.f32 %v5505, %v5573
    %v5698 = vadd.f32 %v5506, %v5575
    %v5699 = vadd.f32 %v5507, %v5577
    %v5700 = vadd.f32 %v5508, %v5579
    %v5701 = vadd.f32 %v5509, %v5581
    %v5702 = vadd.f32 %v5510, %v5583
    %v5703 = vadd.f32 %v5511, %v5585
    %v5704 = vadd.f32 %v5512, %v5587
    %v5705 = vadd.f32 %v5513, %v5589
    %v5706 = vadd.f32 %v5514, %v5591
    %v5707 = vadd.f32 %v5515, %v5593
    %v5708 = vadd.f32 %v5516, %v5595
    %v5709 = vadd.f32 %v5517, %v5597
    %v5710 = vadd.f32 %v5518, %v5599
    %v5711 = vadd.f32 %v5519, %v5601
    %v5712 = vadd.f32 %v5520, %v5603
    %v5713 = vadd.f32 %v5521, %v5605
    %v5714 = vadd.f32 %v5522, %v5607
    %v5715 = vadd.f32 %v5523, %v5609
    %v5716 = vadd.f32 %v5524, %v5611
    %v5717 = vadd.f32 %v5525, %v5613
    %v5718 = vadd.f32 %v5526, %v5615
    %v5719 = vadd.f32 %v5527, %v5617
    %v5720 = vadd.f32 %v5528, %v5619
    %v5721 = vadd.f32 %v5529, %v5621
    %v5722 = vadd.f32 %v5530, %v5623
    %v5723 = vadd.f32 %v5531, %v5625
    %v5724 = vadd.f32 %v5532, %v5627
    %v5725 = vadd.f32 %v5533, %v5629
    %v5726 = vadd.f32 %v5534, %v5631
    %v5727 = vadd.f32 %v5535, %v5633
    %v5728 = vadd.f32 %v5536, %v5635
    %v5729 = vadd.f32 %v5537, %v5637
    %v5730 = vadd.f32 %v5538, %v5639
    %v5731 = vadd.f32 %v5539, %v5641
    %v5732 = vadd.f32 %v5540, %v5643
    %v5733 = vadd.f32 %v5541, %v5645
    %v5734 = vadd.f32 %v5542, %v5647
    %v5735 = vadd.f32 %v5543, %v5649
    %v5736 = vadd.f32 %v5544, %v5651
    %v5737 = vadd.f32 %v5545, %v5653
    %v5738 = vadd.f32 %v5546, %v5655
    %v5739 = vadd.f32 %v5547, %v5657
    %v5740 = vadd.f32 %v5548, %v5659
    %v5741 = vadd.f32 %v5549, %v5661
    %v5742 = vadd.f32 %v5550, %v5663
    %v5743 = vadd.f32 %v5551, %v5665
    %v5744 = vadd.f32 %v5552, %v5667
    %v5745 = vadd.f32 %v5553, %v5669
    %v5746 = vadd.f32 %v5554, %v5671
    %v5747 = vadd.f32 %v5555, %v5673
    %v5748 = vadd.f32 %v5556, %v5675
    %v5749 = vadd.f32 %v5557, %v5677
    %v5750 = vadd.f32 %v5558, %v5679
    %v5751 = vadd.f32 %v5559, %v5681
    %v5752 = vadd.f32 %v5560, %v5683
    %v5753 = vadd.f32 %v5561, %v5685
    %v5754 = vadd.f32 %v5562, %v5687
    %v5755 = vadd.f32 %v5563, %v5689
    %v5756 = vadd.f32 %v5564, %v5691
    %v5757 = vadd.f32 %v5565, %v5693
    %5758 = vrot.lane.b32.xlu0 %v4288, 56
    %v5759 = vpop.permute.xlu0 %5758
    %5760 = vrot.lane.b32.xlu0 %v4289, 56
    %v5761 = vpop.permute.xlu0 %5760
    %5762 = vrot.lane.b32.xlu0 %v4290, 56
    %v5763 = vpop.permute.xlu0 %5762
    %5764 = vrot.lane.b32.xlu0 %v4291, 56
    %v5765 = vpop.permute.xlu0 %5764
    %5766 = vrot.lane.b32.xlu0 %v4292, 56
    %v5767 = vpop.permute.xlu0 %5766
    %5768 = vrot.lane.b32.xlu0 %v4293, 56
    %v5769 = vpop.permute.xlu0 %5768
    %5770 = vrot.lane.b32.xlu0 %v4294, 56
    %v5771 = vpop.permute.xlu0 %5770
    %5772 = vrot.lane.b32.xlu0 %v4295, 56
    %v5773 = vpop.permute.xlu0 %5772
    %5774 = vrot.lane.b32.xlu0 %v4296, 56
    %v5775 = vpop.permute.xlu0 %5774
    %5776 = vrot.lane.b32.xlu0 %v4297, 56
    %v5777 = vpop.permute.xlu0 %5776
    %5778 = vrot.lane.b32.xlu0 %v4298, 56
    %v5779 = vpop.permute.xlu0 %5778
    %5780 = vrot.lane.b32.xlu0 %v4299, 56
    %v5781 = vpop.permute.xlu0 %5780
    %5782 = vrot.lane.b32.xlu0 %v4300, 56
    %v5783 = vpop.permute.xlu0 %5782
    %5784 = vrot.lane.b32.xlu0 %v4301, 56
    %v5785 = vpop.permute.xlu0 %5784
    %5786 = vrot.lane.b32.xlu0 %v4302, 56
    %v5787 = vpop.permute.xlu0 %5786
    %5788 = vrot.lane.b32.xlu0 %v4303, 56
    %v5789 = vpop.permute.xlu0 %5788
    %5790 = vrot.lane.b32.xlu0 %v4304, 56
    %v5791 = vpop.permute.xlu0 %5790
    %5792 = vrot.lane.b32.xlu0 %v4305, 56
    %v5793 = vpop.permute.xlu0 %5792
    %5794 = vrot.lane.b32.xlu0 %v4306, 56
    %v5795 = vpop.permute.xlu0 %5794
    %5796 = vrot.lane.b32.xlu0 %v4307, 56
    %v5797 = vpop.permute.xlu0 %5796
    %5798 = vrot.lane.b32.xlu0 %v4308, 56
    %v5799 = vpop.permute.xlu0 %5798
    %5800 = vrot.lane.b32.xlu0 %v4309, 56
    %v5801 = vpop.permute.xlu0 %5800
    %5802 = vrot.lane.b32.xlu0 %v4310, 56
    %v5803 = vpop.permute.xlu0 %5802
    %5804 = vrot.lane.b32.xlu0 %v4311, 56
    %v5805 = vpop.permute.xlu0 %5804
    %5806 = vrot.lane.b32.xlu0 %v4312, 56
    %v5807 = vpop.permute.xlu0 %5806
    %5808 = vrot.lane.b32.xlu0 %v4313, 56
    %v5809 = vpop.permute.xlu0 %5808
    %5810 = vrot.lane.b32.xlu0 %v4314, 56
    %v5811 = vpop.permute.xlu0 %5810
    %5812 = vrot.lane.b32.xlu0 %v4315, 56
    %v5813 = vpop.permute.xlu0 %5812
    %5814 = vrot.lane.b32.xlu0 %v4316, 56
    %v5815 = vpop.permute.xlu0 %5814
    %5816 = vrot.lane.b32.xlu0 %v4317, 56
    %v5817 = vpop.permute.xlu0 %5816
    %5818 = vrot.lane.b32.xlu0 %v4318, 56
    %v5819 = vpop.permute.xlu0 %5818
    %5820 = vrot.lane.b32.xlu0 %v4319, 56
    %v5821 = vpop.permute.xlu0 %5820
    %5822 = vrot.lane.b32.xlu0 %v4320, 56
    %v5823 = vpop.permute.xlu0 %5822
    %5824 = vrot.lane.b32.xlu0 %v4321, 56
    %v5825 = vpop.permute.xlu0 %5824
    %5826 = vrot.lane.b32.xlu0 %v4322, 56
    %v5827 = vpop.permute.xlu0 %5826
    %5828 = vrot.lane.b32.xlu0 %v4323, 56
    %v5829 = vpop.permute.xlu0 %5828
    %5830 = vrot.lane.b32.xlu0 %v4324, 56
    %v5831 = vpop.permute.xlu0 %5830
    %5832 = vrot.lane.b32.xlu0 %v4325, 56
    %v5833 = vpop.permute.xlu0 %5832
    %5834 = vrot.lane.b32.xlu0 %v4326, 56
    %v5835 = vpop.permute.xlu0 %5834
    %5836 = vrot.lane.b32.xlu0 %v4327, 56
    %v5837 = vpop.permute.xlu0 %5836
    %5838 = vrot.lane.b32.xlu0 %v4328, 56
    %v5839 = vpop.permute.xlu0 %5838
    %5840 = vrot.lane.b32.xlu0 %v4329, 56
    %v5841 = vpop.permute.xlu0 %5840
    %5842 = vrot.lane.b32.xlu0 %v4330, 56
    %v5843 = vpop.permute.xlu0 %5842
    %5844 = vrot.lane.b32.xlu0 %v4331, 56
    %v5845 = vpop.permute.xlu0 %5844
    %5846 = vrot.lane.b32.xlu0 %v4332, 56
    %v5847 = vpop.permute.xlu0 %5846
    %5848 = vrot.lane.b32.xlu0 %v4333, 56
    %v5849 = vpop.permute.xlu0 %5848
    %5850 = vrot.lane.b32.xlu0 %v4334, 56
    %v5851 = vpop.permute.xlu0 %5850
    %5852 = vrot.lane.b32.xlu0 %v4335, 56
    %v5853 = vpop.permute.xlu0 %5852
    %5854 = vrot.lane.b32.xlu0 %v4336, 56
    %v5855 = vpop.permute.xlu0 %5854
    %5856 = vrot.lane.b32.xlu0 %v4337, 56
    %v5857 = vpop.permute.xlu0 %5856
    %5858 = vrot.lane.b32.xlu0 %v4338, 56
    %v5859 = vpop.permute.xlu0 %5858
    %5860 = vrot.lane.b32.xlu0 %v4339, 56
    %v5861 = vpop.permute.xlu0 %5860
    %5862 = vrot.lane.b32.xlu0 %v4340, 56
    %v5863 = vpop.permute.xlu0 %5862
    %5864 = vrot.lane.b32.xlu0 %v4341, 56
    %v5865 = vpop.permute.xlu0 %5864
    %5866 = vrot.lane.b32.xlu0 %v4342, 56
    %v5867 = vpop.permute.xlu0 %5866
    %5868 = vrot.lane.b32.xlu0 %v4343, 56
    %v5869 = vpop.permute.xlu0 %5868
    %5870 = vrot.lane.b32.xlu0 %v4344, 56
    %v5871 = vpop.permute.xlu0 %5870
    %5872 = vrot.lane.b32.xlu0 %v4345, 56
    %v5873 = vpop.permute.xlu0 %5872
    %5874 = vrot.lane.b32.xlu0 %v4346, 56
    %v5875 = vpop.permute.xlu0 %5874
    %5876 = vrot.lane.b32.xlu0 %v4347, 56
    %v5877 = vpop.permute.xlu0 %5876
    %5878 = vrot.lane.b32.xlu0 %v4348, 56
    %v5879 = vpop.permute.xlu0 %5878
    %5880 = vrot.lane.b32.xlu0 %v4349, 56
    %v5881 = vpop.permute.xlu0 %5880
    %5882 = vrot.lane.b32.xlu0 %v4286, 56
    %v5883 = vpop.permute.xlu0 %5882
    %5884 = vrot.lane.b32.xlu0 %v4287, 56
    %v5885 = vpop.permute.xlu0 %5884
    %v5886 = vadd.f32 %v5694, %v5759
    %v5887 = vadd.f32 %v5695, %v5761
    %v5888 = vadd.f32 %v5696, %v5763
    %v5889 = vadd.f32 %v5697, %v5765
    %v5890 = vadd.f32 %v5698, %v5767
    %v5891 = vadd.f32 %v5699, %v5769
    %v5892 = vadd.f32 %v5700, %v5771
    %v5893 = vadd.f32 %v5701, %v5773
    %v5894 = vadd.f32 %v5702, %v5775
    %v5895 = vadd.f32 %v5703, %v5777
    %v5896 = vadd.f32 %v5704, %v5779
    %v5897 = vadd.f32 %v5705, %v5781
    %v5898 = vadd.f32 %v5706, %v5783
    %v5899 = vadd.f32 %v5707, %v5785
    %v5900 = vadd.f32 %v5708, %v5787
    %v5901 = vadd.f32 %v5709, %v5789
    %v5902 = vadd.f32 %v5710, %v5791
    %v5903 = vadd.f32 %v5711, %v5793
    %v5904 = vadd.f32 %v5712, %v5795
    %v5905 = vadd.f32 %v5713, %v5797
    %v5906 = vadd.f32 %v5714, %v5799
    %v5907 = vadd.f32 %v5715, %v5801
    %v5908 = vadd.f32 %v5716, %v5803
    %v5909 = vadd.f32 %v5717, %v5805
    %v5910 = vadd.f32 %v5718, %v5807
    %v5911 = vadd.f32 %v5719, %v5809
    %v5912 = vadd.f32 %v5720, %v5811
    %v5913 = vadd.f32 %v5721, %v5813
    %v5914 = vadd.f32 %v5722, %v5815
    %v5915 = vadd.f32 %v5723, %v5817
    %v5916 = vadd.f32 %v5724, %v5819
    %v5917 = vadd.f32 %v5725, %v5821
    %v5918 = vadd.f32 %v5726, %v5823
    %v5919 = vadd.f32 %v5727, %v5825
    %v5920 = vadd.f32 %v5728, %v5827
    %v5921 = vadd.f32 %v5729, %v5829
    %v5922 = vadd.f32 %v5730, %v5831
    %v5923 = vadd.f32 %v5731, %v5833
    %v5924 = vadd.f32 %v5732, %v5835
    %v5925 = vadd.f32 %v5733, %v5837
    %v5926 = vadd.f32 %v5734, %v5839
    %v5927 = vadd.f32 %v5735, %v5841
    %v5928 = vadd.f32 %v5736, %v5843
    %v5929 = vadd.f32 %v5737, %v5845
    %v5930 = vadd.f32 %v5738, %v5847
    %v5931 = vadd.f32 %v5739, %v5849
    %v5932 = vadd.f32 %v5740, %v5851
    %v5933 = vadd.f32 %v5741, %v5853
    %v5934 = vadd.f32 %v5742, %v5855
    %v5935 = vadd.f32 %v5743, %v5857
    %v5936 = vadd.f32 %v5744, %v5859
    %v5937 = vadd.f32 %v5745, %v5861
    %v5938 = vadd.f32 %v5746, %v5863
    %v5939 = vadd.f32 %v5747, %v5865
    %v5940 = vadd.f32 %v5748, %v5867
    %v5941 = vadd.f32 %v5749, %v5869
    %v5942 = vadd.f32 %v5750, %v5871
    %v5943 = vadd.f32 %v5751, %v5873
    %v5944 = vadd.f32 %v5752, %v5875
    %v5945 = vadd.f32 %v5753, %v5877
    %v5946 = vadd.f32 %v5754, %v5879
    %v5947 = vadd.f32 %v5755, %v5881
    %v5948 = vadd.f32 %v5756, %v5883
    %v5949 = vadd.f32 %v5757, %v5885
    %5950 = vrot.lane.b32.xlu0 %v4794, 64
    %v5951 = vpop.permute.xlu0 %5950
    %5952 = vrot.lane.b32.xlu0 %v4793, 64
    %v5953 = vpop.permute.xlu0 %5952
    %5954 = vrot.lane.b32.xlu0 %v4792, 64
    %v5955 = vpop.permute.xlu0 %5954
    %5956 = vrot.lane.b32.xlu0 %v4791, 64
    %v5957 = vpop.permute.xlu0 %5956
    %5958 = vrot.lane.b32.xlu0 %v4790, 64
    %v5959 = vpop.permute.xlu0 %5958
    %5960 = vrot.lane.b32.xlu0 %v4789, 64
    %v5961 = vpop.permute.xlu0 %5960
    %5962 = vrot.lane.b32.xlu0 %v4788, 64
    %v5963 = vpop.permute.xlu0 %5962
    %5964 = vrot.lane.b32.xlu0 %v4787, 64
    %v5965 = vpop.permute.xlu0 %5964
    %5966 = vrot.lane.b32.xlu0 %v4786, 64
    %v5967 = vpop.permute.xlu0 %5966
    %5968 = vrot.lane.b32.xlu0 %v4785, 64
    %v5969 = vpop.permute.xlu0 %5968
    %5970 = vrot.lane.b32.xlu0 %v4784, 64
    %v5971 = vpop.permute.xlu0 %5970
    %5972 = vrot.lane.b32.xlu0 %v4783, 64
    %v5973 = vpop.permute.xlu0 %5972
    %5974 = vrot.lane.b32.xlu0 %v4782, 64
    %v5975 = vpop.permute.xlu0 %5974
    %5976 = vrot.lane.b32.xlu0 %v4781, 64
    %v5977 = vpop.permute.xlu0 %5976
    %5978 = vrot.lane.b32.xlu0 %v4780, 64
    %v5979 = vpop.permute.xlu0 %5978
    %5980 = vrot.lane.b32.xlu0 %v4779, 64
    %v5981 = vpop.permute.xlu0 %5980
    %5982 = vrot.lane.b32.xlu0 %v4778, 64
    %v5983 = vpop.permute.xlu0 %5982
    %5984 = vrot.lane.b32.xlu0 %v4777, 64
    %v5985 = vpop.permute.xlu0 %5984
    %5986 = vrot.lane.b32.xlu0 %v4776, 64
    %v5987 = vpop.permute.xlu0 %5986
    %5988 = vrot.lane.b32.xlu0 %v4775, 64
    %v5989 = vpop.permute.xlu0 %5988
    %5990 = vrot.lane.b32.xlu0 %v4774, 64
    %v5991 = vpop.permute.xlu0 %5990
    %5992 = vrot.lane.b32.xlu0 %v4773, 64
    %v5993 = vpop.permute.xlu0 %5992
    %5994 = vrot.lane.b32.xlu0 %v4772, 64
    %v5995 = vpop.permute.xlu0 %5994
    %5996 = vrot.lane.b32.xlu0 %v4771, 64
    %v5997 = vpop.permute.xlu0 %5996
    %5998 = vrot.lane.b32.xlu0 %v4770, 64
    %v5999 = vpop.permute.xlu0 %5998
    %6000 = vrot.lane.b32.xlu0 %v4769, 64
    %v6001 = vpop.permute.xlu0 %6000
    %6002 = vrot.lane.b32.xlu0 %v4768, 64
    %v6003 = vpop.permute.xlu0 %6002
    %6004 = vrot.lane.b32.xlu0 %v4767, 64
    %v6005 = vpop.permute.xlu0 %6004
    %6006 = vrot.lane.b32.xlu0 %v4766, 64
    %v6007 = vpop.permute.xlu0 %6006
    %6008 = vrot.lane.b32.xlu0 %v4765, 64
    %v6009 = vpop.permute.xlu0 %6008
    %6010 = vrot.lane.b32.xlu0 %v4764, 64
    %v6011 = vpop.permute.xlu0 %6010
    %6012 = vrot.lane.b32.xlu0 %v4763, 64
    %v6013 = vpop.permute.xlu0 %6012
    %6014 = vrot.lane.b32.xlu0 %v4762, 64
    %v6015 = vpop.permute.xlu0 %6014
    %6016 = vrot.lane.b32.xlu0 %v4761, 64
    %v6017 = vpop.permute.xlu0 %6016
    %6018 = vrot.lane.b32.xlu0 %v4760, 64
    %v6019 = vpop.permute.xlu0 %6018
    %6020 = vrot.lane.b32.xlu0 %v4759, 64
    %v6021 = vpop.permute.xlu0 %6020
    %6022 = vrot.lane.b32.xlu0 %v4758, 64
    %v6023 = vpop.permute.xlu0 %6022
    %6024 = vrot.lane.b32.xlu0 %v4757, 64
    %v6025 = vpop.permute.xlu0 %6024
    %6026 = vrot.lane.b32.xlu0 %v4756, 64
    %v6027 = vpop.permute.xlu0 %6026
    %6028 = vrot.lane.b32.xlu0 %v4755, 64
    %v6029 = vpop.permute.xlu0 %6028
    %6030 = vrot.lane.b32.xlu0 %v4754, 64
    %v6031 = vpop.permute.xlu0 %6030
    %6032 = vrot.lane.b32.xlu0 %v4753, 64
    %v6033 = vpop.permute.xlu0 %6032
    %6034 = vrot.lane.b32.xlu0 %v4752, 64
    %v6035 = vpop.permute.xlu0 %6034
    %6036 = vrot.lane.b32.xlu0 %v4751, 64
    %v6037 = vpop.permute.xlu0 %6036
    %6038 = vrot.lane.b32.xlu0 %v4750, 64
    %v6039 = vpop.permute.xlu0 %6038
    %6040 = vrot.lane.b32.xlu0 %v4749, 64
    %v6041 = vpop.permute.xlu0 %6040
    %6042 = vrot.lane.b32.xlu0 %v4748, 64
    %v6043 = vpop.permute.xlu0 %6042
    %6044 = vrot.lane.b32.xlu0 %v4747, 64
    %v6045 = vpop.permute.xlu0 %6044
    %6046 = vrot.lane.b32.xlu0 %v4746, 64
    %v6047 = vpop.permute.xlu0 %6046
    %6048 = vrot.lane.b32.xlu0 %v4745, 64
    %v6049 = vpop.permute.xlu0 %6048
    %6050 = vrot.lane.b32.xlu0 %v4744, 64
    %v6051 = vpop.permute.xlu0 %6050
    %6052 = vrot.lane.b32.xlu0 %v4743, 64
    %v6053 = vpop.permute.xlu0 %6052
    %6054 = vrot.lane.b32.xlu0 %v4742, 64
    %v6055 = vpop.permute.xlu0 %6054
    %6056 = vrot.lane.b32.xlu0 %v4741, 64
    %v6057 = vpop.permute.xlu0 %6056
    %6058 = vrot.lane.b32.xlu0 %v4740, 64
    %v6059 = vpop.permute.xlu0 %6058
    %6060 = vrot.lane.b32.xlu0 %v4739, 64
    %v6061 = vpop.permute.xlu0 %6060
    %6062 = vrot.lane.b32.xlu0 %v4738, 64
    %v6063 = vpop.permute.xlu0 %6062
    %6064 = vrot.lane.b32.xlu0 %v4737, 64
    %v6065 = vpop.permute.xlu0 %6064
    %6066 = vrot.lane.b32.xlu0 %v4736, 64
    %v6067 = vpop.permute.xlu0 %6066
    %6068 = vrot.lane.b32.xlu0 %v4735, 64
    %v6069 = vpop.permute.xlu0 %6068
    %6070 = vrot.lane.b32.xlu0 %v4734, 64
    %v6071 = vpop.permute.xlu0 %6070
    %6072 = vrot.lane.b32.xlu0 %v4797, 64
    %v6073 = vpop.permute.xlu0 %6072
    %6074 = vrot.lane.b32.xlu0 %v4796, 64
    %v6075 = vpop.permute.xlu0 %6074
    %6076 = vrot.lane.b32.xlu0 %v4795, 64
    %v6077 = vpop.permute.xlu0 %6076
    %v6078 = vadd.f32 %v5886, %v5951
    %v6079 = vadd.f32 %v5887, %v5953
    %v6080 = vadd.f32 %v5888, %v5955
    %v6081 = vadd.f32 %v5889, %v5957
    %v6082 = vadd.f32 %v5890, %v5959
    %v6083 = vadd.f32 %v5891, %v5961
    %v6084 = vadd.f32 %v5892, %v5963
    %v6085 = vadd.f32 %v5893, %v5965
    %v6086 = vadd.f32 %v5894, %v5967
    %v6087 = vadd.f32 %v5895, %v5969
    %v6088 = vadd.f32 %v5896, %v5971
    %v6089 = vadd.f32 %v5897, %v5973
    %v6090 = vadd.f32 %v5898, %v5975
    %v6091 = vadd.f32 %v5899, %v5977
    %v6092 = vadd.f32 %v5900, %v5979
    %v6093 = vadd.f32 %v5901, %v5981
    %v6094 = vadd.f32 %v5902, %v5983
    %v6095 = vadd.f32 %v5903, %v5985
    %v6096 = vadd.f32 %v5904, %v5987
    %v6097 = vadd.f32 %v5905, %v5989
    %v6098 = vadd.f32 %v5906, %v5991
    %v6099 = vadd.f32 %v5907, %v5993
    %v6100 = vadd.f32 %v5908, %v5995
    %v6101 = vadd.f32 %v5909, %v5997
    %v6102 = vadd.f32 %v5910, %v5999
    %v6103 = vadd.f32 %v5911, %v6001
    %v6104 = vadd.f32 %v5912, %v6003
    %v6105 = vadd.f32 %v5913, %v6005
    %v6106 = vadd.f32 %v5914, %v6007
    %v6107 = vadd.f32 %v5915, %v6009
    %v6108 = vadd.f32 %v5916, %v6011
    %v6109 = vadd.f32 %v5917, %v6013
    %v6110 = vadd.f32 %v5918, %v6015
    %v6111 = vadd.f32 %v5919, %v6017
    %v6112 = vadd.f32 %v5920, %v6019
    %v6113 = vadd.f32 %v5921, %v6021
    %v6114 = vadd.f32 %v5922, %v6023
    %v6115 = vadd.f32 %v5923, %v6025
    %v6116 = vadd.f32 %v5924, %v6027
    %v6117 = vadd.f32 %v5925, %v6029
    %v6118 = vadd.f32 %v5926, %v6031
    %v6119 = vadd.f32 %v5927, %v6033
    %v6120 = vadd.f32 %v5928, %v6035
    %v6121 = vadd.f32 %v5929, %v6037
    %v6122 = vadd.f32 %v5930, %v6039
    %v6123 = vadd.f32 %v5931, %v6041
    %v6124 = vadd.f32 %v5932, %v6043
    %v6125 = vadd.f32 %v5933, %v6045
    %v6126 = vadd.f32 %v5934, %v6047
    %v6127 = vadd.f32 %v5935, %v6049
    %v6128 = vadd.f32 %v5936, %v6051
    %v6129 = vadd.f32 %v5937, %v6053
    %v6130 = vadd.f32 %v5938, %v6055
    %v6131 = vadd.f32 %v5939, %v6057
    %v6132 = vadd.f32 %v5940, %v6059
    %v6133 = vadd.f32 %v5941, %v6061
    %v6134 = vadd.f32 %v5942, %v6063
    %v6135 = vadd.f32 %v5943, %v6065
    %v6136 = vadd.f32 %v5944, %v6067
    %v6137 = vadd.f32 %v5945, %v6069
    %v6138 = vadd.f32 %v5946, %v6071
    %v6139 = vadd.f32 %v5947, %v6073
    %v6140 = vadd.f32 %v5948, %v6075
    %v6141 = vadd.f32 %v5949, %v6077
    %v6142 = vadd.s32 %v2806, %v2812
    %v6143 = vadd.s32 %v6142, %v2818
    %v6144 = vadd.s32 %v6143, %v2824
    %vm6145 = vcmp.ge.s32.totalorder %v2802, 40
    %v6146 = vsel %vm6145, 1, 0
    %v6147 = vadd.s32 %v6144, %v6146
    %vm6148 = vcmp.ge.s32.totalorder %v2802, 48
    %v6149 = vsel %vm6148, 1, 0
    %v6150 = vadd.s32 %v6147, %v6149
    %vm6151 = vcmp.ge.s32.totalorder %v2802, 56
    %v6152 = vsel %vm6151, 1, 0
    %v6153 = vadd.s32 %v6150, %v6152
    %vm6154 = vcmp.ge.s32.totalorder %v2802, 64
    %v6155 = vsel %vm6154, 1, 0
    %v6156 = vadd.s32 %v6153, %v6155
    %vm6157 = vcmp.ge.s32.totalorder %v6156, 3
    %v6158 = vsel %vm6157, 1, 0
    %vm6159 = vcmp.ge.s32.totalorder %v6156, 6
    %v6160 = vsel %vm6159, 1, 0
    %v6161 = vadd.s32 %v6158, %v6160
    %v6162 = vsub.s32 %v6161, 1
    %v6163 = vmul.u32 %v6161, 3
    %v6164 = vsub.s32 %v6156, %v6163
    %v6165 = vsub.s32 %v6164, 1
    %v6166 = vadd.s32 %v2673, %v6162
    %v6167 = vadd.s32 %v2674, %v6162
    %v6168 = vadd.s32 %v2675, %v6162
    %v6169 = vadd.s32 %v2676, %v6162
    %v6170 = vadd.s32 %v2677, %v6162
    %v6171 = vadd.s32 %v2678, %v6162
    %v6172 = vadd.s32 %v2679, %v6162
    %v6173 = vadd.s32 %v2680, %v6162
    %v6174 = vadd.s32 %v2681, %v6162
    %v6175 = vadd.s32 %v2682, %v6162
    %v6176 = vadd.s32 %v2683, %v6162
    %v6177 = vadd.s32 %v2684, %v6162
    %v6178 = vadd.s32 %v2685, %v6162
    %v6179 = vadd.s32 %v2686, %v6162
    %v6180 = vadd.s32 %v2687, %v6162
    %v6181 = vadd.s32 %v2688, %v6162
    %v6182 = vadd.s32 %v2689, %v6162
    %v6183 = vadd.s32 %v2690, %v6162
    %v6184 = vadd.s32 %v2691, %v6162
    %v6185 = vadd.s32 %v2692, %v6162
    %v6186 = vadd.s32 %v2693, %v6162
    %v6187 = vadd.s32 %v2694, %v6162
    %v6188 = vadd.s32 %v2695, %v6162
    %v6189 = vadd.s32 %v2696, %v6162
    %v6190 = vadd.s32 %v2697, %v6162
    %v6191 = vadd.s32 %v2698, %v6162
    %v6192 = vadd.s32 %v2699, %v6162
    %v6193 = vadd.s32 %v2700, %v6162
    %v6194 = vadd.s32 %v2701, %v6162
    %v6195 = vadd.s32 %v2702, %v6162
    %v6196 = vadd.s32 %v2703, %v6162
    %v6197 = vadd.s32 %v2704, %v6162
    %v6198 = vadd.s32 %v2705, %v6162
    %v6199 = vadd.s32 %v2706, %v6162
    %v6200 = vadd.s32 %v2707, %v6162
    %v6201 = vadd.s32 %v2708, %v6162
    %v6202 = vadd.s32 %v2709, %v6162
    %v6203 = vadd.s32 %v2710, %v6162
    %v6204 = vadd.s32 %v2711, %v6162
    %v6205 = vadd.s32 %v2712, %v6162
    %v6206 = vadd.s32 %v2713, %v6162
    %v6207 = vadd.s32 %v2714, %v6162
    %v6208 = vadd.s32 %v2715, %v6162
    %v6209 = vadd.s32 %v2716, %v6162
    %v6210 = vadd.s32 %v2717, %v6162
    %v6211 = vadd.s32 %v2718, %v6162
    %v6212 = vadd.s32 %v2719, %v6162
    %v6213 = vadd.s32 %v2720, %v6162
    %v6214 = vadd.s32 %v2721, %v6162
    %v6215 = vadd.s32 %v2722, %v6162
    %v6216 = vadd.s32 %v2723, %v6162
    %v6217 = vadd.s32 %v2724, %v6162
    %v6218 = vadd.s32 %v2725, %v6162
    %v6219 = vadd.s32 %v2726, %v6162
    %v6220 = vadd.s32 %v2727, %v6162
    %v6221 = vadd.s32 %v2728, %v6162
    %v6222 = vadd.s32 %v2729, %v6162
    %v6223 = vadd.s32 %v2730, %v6162
    %v6224 = vadd.s32 %v2731, %v6162
    %v6225 = vadd.s32 %v2732, %v6162
    %v6226 = vadd.s32 %v2733, %v6162
    %v6227 = vadd.s32 %v2734, %v6162
    %v6228 = vadd.s32 %v2735, %v6162
    %v6229 = vadd.s32 %v2736, %v6162
    %v6230 = vadd.s32 %v2737, %v6165
    %v6231 = vadd.s32 %v2738, %v6165
    %v6232 = vadd.s32 %v2739, %v6165
    %v6233 = vadd.s32 %v2740, %v6165
    %v6234 = vadd.s32 %v2741, %v6165
    %v6235 = vadd.s32 %v2742, %v6165
    %v6236 = vadd.s32 %v2743, %v6165
    %v6237 = vadd.s32 %v2744, %v6165
    %v6238 = vadd.s32 %v2745, %v6165
    %v6239 = vadd.s32 %v2746, %v6165
    %v6240 = vadd.s32 %v2747, %v6165
    %v6241 = vadd.s32 %v2748, %v6165
    %v6242 = vadd.s32 %v2749, %v6165
    %v6243 = vadd.s32 %v2750, %v6165
    %v6244 = vadd.s32 %v2751, %v6165
    %v6245 = vadd.s32 %v2752, %v6165
    %v6246 = vadd.s32 %v2753, %v6165
    %v6247 = vadd.s32 %v2754, %v6165
    %v6248 = vadd.s32 %v2755, %v6165
    %v6249 = vadd.s32 %v2756, %v6165
    %v6250 = vadd.s32 %v2757, %v6165
    %v6251 = vadd.s32 %v2758, %v6165
    %v6252 = vadd.s32 %v2759, %v6165
    %v6253 = vadd.s32 %v2760, %v6165
    %v6254 = vadd.s32 %v2761, %v6165
    %v6255 = vadd.s32 %v2762, %v6165
    %v6256 = vadd.s32 %v2763, %v6165
    %v6257 = vadd.s32 %v2764, %v6165
    %v6258 = vadd.s32 %v2765, %v6165
    %v6259 = vadd.s32 %v2766, %v6165
    %v6260 = vadd.s32 %v2767, %v6165
    %v6261 = vadd.s32 %v2768, %v6165
    %v6262 = vadd.s32 %v2769, %v6165
    %v6263 = vadd.s32 %v2770, %v6165
    %v6264 = vadd.s32 %v2771, %v6165
    %v6265 = vadd.s32 %v2772, %v6165
    %v6266 = vadd.s32 %v2773, %v6165
    %v6267 = vadd.s32 %v2774, %v6165
    %v6268 = vadd.s32 %v2775, %v6165
    %v6269 = vadd.s32 %v2776, %v6165
    %v6270 = vadd.s32 %v2777, %v6165
    %v6271 = vadd.s32 %v2778, %v6165
    %v6272 = vadd.s32 %v2779, %v6165
    %v6273 = vadd.s32 %v2780, %v6165
    %v6274 = vadd.s32 %v2781, %v6165
    %v6275 = vadd.s32 %v2782, %v6165
    %v6276 = vadd.s32 %v2783, %v6165
    %v6277 = vadd.s32 %v2784, %v6165
    %v6278 = vadd.s32 %v2785, %v6165
    %v6279 = vadd.s32 %v2786, %v6165
    %v6280 = vadd.s32 %v2787, %v6165
    %v6281 = vadd.s32 %v2788, %v6165
    %v6282 = vadd.s32 %v2789, %v6165
    %v6283 = vadd.s32 %v2790, %v6165
    %v6284 = vadd.s32 %v2791, %v6165
    %v6285 = vadd.s32 %v2792, %v6165
    %v6286 = vadd.s32 %v2793, %v6165
    %v6287 = vadd.s32 %v2794, %v6165
    %v6288 = vadd.s32 %v2795, %v6165
    %v6289 = vadd.s32 %v2796, %v6165
    %v6290 = vadd.s32 %v2797, %v6165
    %v6291 = vadd.s32 %v2798, %v6165
    %v6292 = vadd.s32 %v2799, %v6165
    %v6293 = vadd.s32 %v2800, %v6165
    %vm6294 = vcmp.ge.s32.totalorder %v6166, 0
    %vm6295 = vcmp.ge.s32.totalorder %v6167, 0
    %vm6296 = vcmp.ge.s32.totalorder %v6168, 0
    %vm6297 = vcmp.ge.s32.totalorder %v6169, 0
    %vm6298 = vcmp.ge.s32.totalorder %v6170, 0
    %vm6299 = vcmp.ge.s32.totalorder %v6171, 0
    %vm6300 = vcmp.ge.s32.totalorder %v6172, 0
    %vm6301 = vcmp.ge.s32.totalorder %v6173, 0
    %vm6302 = vcmp.ge.s32.totalorder %v6174, 0
    %vm6303 = vcmp.ge.s32.totalorder %v6175, 0
    %vm6304 = vcmp.ge.s32.totalorder %v6176, 0
    %vm6305 = vcmp.ge.s32.totalorder %v6177, 0
    %vm6306 = vcmp.ge.s32.totalorder %v6178, 0
    %vm6307 = vcmp.ge.s32.totalorder %v6179, 0
    %vm6308 = vcmp.ge.s32.totalorder %v6180, 0
    %vm6309 = vcmp.ge.s32.totalorder %v6181, 0
    %vm6310 = vcmp.ge.s32.totalorder %v6182, 0
    %vm6311 = vcmp.ge.s32.totalorder %v6183, 0
    %vm6312 = vcmp.ge.s32.totalorder %v6184, 0
    %vm6313 = vcmp.ge.s32.totalorder %v6185, 0
    %vm6314 = vcmp.ge.s32.totalorder %v6186, 0
    %vm6315 = vcmp.ge.s32.totalorder %v6187, 0
    %vm6316 = vcmp.ge.s32.totalorder %v6188, 0
    %vm6317 = vcmp.ge.s32.totalorder %v6189, 0
    %vm6318 = vcmp.ge.s32.totalorder %v6190, 0
    %vm6319 = vcmp.ge.s32.totalorder %v6191, 0
    %vm6320 = vcmp.ge.s32.totalorder %v6192, 0
    %vm6321 = vcmp.ge.s32.totalorder %v6193, 0
    %vm6322 = vcmp.ge.s32.totalorder %v6194, 0
    %vm6323 = vcmp.ge.s32.totalorder %v6195, 0
    %vm6324 = vcmp.ge.s32.totalorder %v6196, 0
    %vm6325 = vcmp.ge.s32.totalorder %v6197, 0
    %vm6326 = vcmp.ge.s32.totalorder %v6198, 0
    %vm6327 = vcmp.ge.s32.totalorder %v6199, 0
    %vm6328 = vcmp.ge.s32.totalorder %v6200, 0
    %vm6329 = vcmp.ge.s32.totalorder %v6201, 0
    %vm6330 = vcmp.ge.s32.totalorder %v6202, 0
    %vm6331 = vcmp.ge.s32.totalorder %v6203, 0
    %vm6332 = vcmp.ge.s32.totalorder %v6204, 0
    %vm6333 = vcmp.ge.s32.totalorder %v6205, 0
    %vm6334 = vcmp.ge.s32.totalorder %v6206, 0
    %vm6335 = vcmp.ge.s32.totalorder %v6207, 0
    %vm6336 = vcmp.ge.s32.totalorder %v6208, 0
    %vm6337 = vcmp.ge.s32.totalorder %v6209, 0
    %vm6338 = vcmp.ge.s32.totalorder %v6210, 0
    %vm6339 = vcmp.ge.s32.totalorder %v6211, 0
    %vm6340 = vcmp.ge.s32.totalorder %v6212, 0
    %vm6341 = vcmp.ge.s32.totalorder %v6213, 0
    %vm6342 = vcmp.ge.s32.totalorder %v6214, 0
    %vm6343 = vcmp.ge.s32.totalorder %v6215, 0
    %vm6344 = vcmp.ge.s32.totalorder %v6216, 0
    %vm6345 = vcmp.ge.s32.totalorder %v6217, 0
    %vm6346 = vcmp.ge.s32.totalorder %v6218, 0
    %vm6347 = vcmp.ge.s32.totalorder %v6219, 0
    %vm6348 = vcmp.ge.s32.totalorder %v6220, 0
    %vm6349 = vcmp.ge.s32.totalorder %v6221, 0
    %vm6350 = vcmp.ge.s32.totalorder %v6222, 0
    %vm6351 = vcmp.ge.s32.totalorder %v6223, 0
    %vm6352 = vcmp.ge.s32.totalorder %v6224, 0
    %vm6353 = vcmp.ge.s32.totalorder %v6225, 0
    %vm6354 = vcmp.ge.s32.totalorder %v6226, 0
    %vm6355 = vcmp.ge.s32.totalorder %v6227, 0
    %vm6356 = vcmp.ge.s32.totalorder %v6228, 0
    %vm6357 = vcmp.ge.s32.totalorder %v6229, 0
    %vm6358 = vcmp.lt.s32.totalorder %v6166, 16
    %vm6359 = vcmp.lt.s32.totalorder %v6167, 16
    %vm6360 = vcmp.lt.s32.totalorder %v6168, 16
    %vm6361 = vcmp.lt.s32.totalorder %v6169, 16
    %vm6362 = vcmp.lt.s32.totalorder %v6170, 16
    %vm6363 = vcmp.lt.s32.totalorder %v6171, 16
    %vm6364 = vcmp.lt.s32.totalorder %v6172, 16
    %vm6365 = vcmp.lt.s32.totalorder %v6173, 16
    %vm6366 = vcmp.lt.s32.totalorder %v6174, 16
    %vm6367 = vcmp.lt.s32.totalorder %v6175, 16
    %vm6368 = vcmp.lt.s32.totalorder %v6176, 16
    %vm6369 = vcmp.lt.s32.totalorder %v6177, 16
    %vm6370 = vcmp.lt.s32.totalorder %v6178, 16
    %vm6371 = vcmp.lt.s32.totalorder %v6179, 16
    %vm6372 = vcmp.lt.s32.totalorder %v6180, 16
    %vm6373 = vcmp.lt.s32.totalorder %v6181, 16
    %vm6374 = vcmp.lt.s32.totalorder %v6182, 16
    %vm6375 = vcmp.lt.s32.totalorder %v6183, 16
    %vm6376 = vcmp.lt.s32.totalorder %v6184, 16
    %vm6377 = vcmp.lt.s32.totalorder %v6185, 16
    %vm6378 = vcmp.lt.s32.totalorder %v6186, 16
    %vm6379 = vcmp.lt.s32.totalorder %v6187, 16
    %vm6380 = vcmp.lt.s32.totalorder %v6188, 16
    %vm6381 = vcmp.lt.s32.totalorder %v6189, 16
    %vm6382 = vcmp.lt.s32.totalorder %v6190, 16
    %vm6383 = vcmp.lt.s32.totalorder %v6191, 16
    %vm6384 = vcmp.lt.s32.totalorder %v6192, 16
    %vm6385 = vcmp.lt.s32.totalorder %v6193, 16
    %vm6386 = vcmp.lt.s32.totalorder %v6194, 16
    %vm6387 = vcmp.lt.s32.totalorder %v6195, 16
    %vm6388 = vcmp.lt.s32.totalorder %v6196, 16
    %vm6389 = vcmp.lt.s32.totalorder %v6197, 16
    %vm6390 = vcmp.lt.s32.totalorder %v6198, 16
    %vm6391 = vcmp.lt.s32.totalorder %v6199, 16
    %vm6392 = vcmp.lt.s32.totalorder %v6200, 16
    %vm6393 = vcmp.lt.s32.totalorder %v6201, 16
    %vm6394 = vcmp.lt.s32.totalorder %v6202, 16
    %vm6395 = vcmp.lt.s32.totalorder %v6203, 16
    %vm6396 = vcmp.lt.s32.totalorder %v6204, 16
    %vm6397 = vcmp.lt.s32.totalorder %v6205, 16
    %vm6398 = vcmp.lt.s32.totalorder %v6206, 16
    %vm6399 = vcmp.lt.s32.totalorder %v6207, 16
    %vm6400 = vcmp.lt.s32.totalorder %v6208, 16
    %vm6401 = vcmp.lt.s32.totalorder %v6209, 16
    %vm6402 = vcmp.lt.s32.totalorder %v6210, 16
    %vm6403 = vcmp.lt.s32.totalorder %v6211, 16
    %vm6404 = vcmp.lt.s32.totalorder %v6212, 16
    %vm6405 = vcmp.lt.s32.totalorder %v6213, 16
    %vm6406 = vcmp.lt.s32.totalorder %v6214, 16
    %vm6407 = vcmp.lt.s32.totalorder %v6215, 16
    %vm6408 = vcmp.lt.s32.totalorder %v6216, 16
    %vm6409 = vcmp.lt.s32.totalorder %v6217, 16
    %vm6410 = vcmp.lt.s32.totalorder %v6218, 16
    %vm6411 = vcmp.lt.s32.totalorder %v6219, 16
    %vm6412 = vcmp.lt.s32.totalorder %v6220, 16
    %vm6413 = vcmp.lt.s32.totalorder %v6221, 16
    %vm6414 = vcmp.lt.s32.totalorder %v6222, 16
    %vm6415 = vcmp.lt.s32.totalorder %v6223, 16
    %vm6416 = vcmp.lt.s32.totalorder %v6224, 16
    %vm6417 = vcmp.lt.s32.totalorder %v6225, 16
    %vm6418 = vcmp.lt.s32.totalorder %v6226, 16
    %vm6419 = vcmp.lt.s32.totalorder %v6227, 16
    %vm6420 = vcmp.lt.s32.totalorder %v6228, 16
    %vm6421 = vcmp.lt.s32.totalorder %v6229, 16
    %vm6422 = vmand %vm6294, %vm6358
    %vm6423 = vmand %vm6295, %vm6359
    %vm6424 = vmand %vm6296, %vm6360
    %vm6425 = vmand %vm6297, %vm6361
    %vm6426 = vmand %vm6298, %vm6362
    %vm6427 = vmand %vm6299, %vm6363
    %vm6428 = vmand %vm6300, %vm6364
    %vm6429 = vmand %vm6301, %vm6365
    %vm6430 = vmand %vm6302, %vm6366
    %vm6431 = vmand %vm6303, %vm6367
    %vm6432 = vmand %vm6304, %vm6368
    %vm6433 = vmand %vm6305, %vm6369
    %vm6434 = vmand %vm6306, %vm6370
    %vm6435 = vmand %vm6307, %vm6371
    %vm6436 = vmand %vm6308, %vm6372
    %vm6437 = vmand %vm6309, %vm6373
    %vm6438 = vmand %vm6310, %vm6374
    %vm6439 = vmand %vm6311, %vm6375
    %vm6440 = vmand %vm6312, %vm6376
    %vm6441 = vmand %vm6313, %vm6377
    %vm6442 = vmand %vm6314, %vm6378
    %vm6443 = vmand %vm6315, %vm6379
    %vm6444 = vmand %vm6316, %vm6380
    %vm6445 = vmand %vm6317, %vm6381
    %vm6446 = vmand %vm6318, %vm6382
    %vm6447 = vmand %vm6319, %vm6383
    %vm6448 = vmand %vm6320, %vm6384
    %vm6449 = vmand %vm6321, %vm6385
    %vm6450 = vmand %vm6322, %vm6386
    %vm6451 = vmand %vm6323, %vm6387
    %vm6452 = vmand %vm6324, %vm6388
    %vm6453 = vmand %vm6325, %vm6389
    %vm6454 = vmand %vm6326, %vm6390
    %vm6455 = vmand %vm6327, %vm6391
    %vm6456 = vmand %vm6328, %vm6392
    %vm6457 = vmand %vm6329, %vm6393
    %vm6458 = vmand %vm6330, %vm6394
    %vm6459 = vmand %vm6331, %vm6395
    %vm6460 = vmand %vm6332, %vm6396
    %vm6461 = vmand %vm6333, %vm6397
    %vm6462 = vmand %vm6334, %vm6398
    %vm6463 = vmand %vm6335, %vm6399
    %vm6464 = vmand %vm6336, %vm6400
    %vm6465 = vmand %vm6337, %vm6401
    %vm6466 = vmand %vm6338, %vm6402
    %vm6467 = vmand %vm6339, %vm6403
    %vm6468 = vmand %vm6340, %vm6404
    %vm6469 = vmand %vm6341, %vm6405
    %vm6470 = vmand %vm6342, %vm6406
    %vm6471 = vmand %vm6343, %vm6407
    %vm6472 = vmand %vm6344, %vm6408
    %vm6473 = vmand %vm6345, %vm6409
    %vm6474 = vmand %vm6346, %vm6410
    %vm6475 = vmand %vm6347, %vm6411
    %vm6476 = vmand %vm6348, %vm6412
    %vm6477 = vmand %vm6349, %vm6413
    %vm6478 = vmand %vm6350, %vm6414
    %vm6479 = vmand %vm6351, %vm6415
    %vm6480 = vmand %vm6352, %vm6416
    %vm6481 = vmand %vm6353, %vm6417
    %vm6482 = vmand %vm6354, %vm6418
    %vm6483 = vmand %vm6355, %vm6419
    %vm6484 = vmand %vm6356, %vm6420
    %vm6485 = vmand %vm6357, %vm6421
    %vm6486 = vcmp.ge.s32.totalorder %v6230, 0
    %vm6487 = vcmp.ge.s32.totalorder %v6231, 0
    %vm6488 = vcmp.ge.s32.totalorder %v6232, 0
    %vm6489 = vcmp.ge.s32.totalorder %v6233, 0
    %vm6490 = vcmp.ge.s32.totalorder %v6234, 0
    %vm6491 = vcmp.ge.s32.totalorder %v6235, 0
    %vm6492 = vcmp.ge.s32.totalorder %v6236, 0
    %vm6493 = vcmp.ge.s32.totalorder %v6237, 0
    %vm6494 = vcmp.ge.s32.totalorder %v6238, 0
    %vm6495 = vcmp.ge.s32.totalorder %v6239, 0
    %vm6496 = vcmp.ge.s32.totalorder %v6240, 0
    %vm6497 = vcmp.ge.s32.totalorder %v6241, 0
    %vm6498 = vcmp.ge.s32.totalorder %v6242, 0
    %vm6499 = vcmp.ge.s32.totalorder %v6243, 0
    %vm6500 = vcmp.ge.s32.totalorder %v6244, 0
    %vm6501 = vcmp.ge.s32.totalorder %v6245, 0
    %vm6502 = vcmp.ge.s32.totalorder %v6246, 0
    %vm6503 = vcmp.ge.s32.totalorder %v6247, 0
    %vm6504 = vcmp.ge.s32.totalorder %v6248, 0
    %vm6505 = vcmp.ge.s32.totalorder %v6249, 0
    %vm6506 = vcmp.ge.s32.totalorder %v6250, 0
    %vm6507 = vcmp.ge.s32.totalorder %v6251, 0
    %vm6508 = vcmp.ge.s32.totalorder %v6252, 0
    %vm6509 = vcmp.ge.s32.totalorder %v6253, 0
    %vm6510 = vcmp.ge.s32.totalorder %v6254, 0
    %vm6511 = vcmp.ge.s32.totalorder %v6255, 0
    %vm6512 = vcmp.ge.s32.totalorder %v6256, 0
    %vm6513 = vcmp.ge.s32.totalorder %v6257, 0
    %vm6514 = vcmp.ge.s32.totalorder %v6258, 0
    %vm6515 = vcmp.ge.s32.totalorder %v6259, 0
    %vm6516 = vcmp.ge.s32.totalorder %v6260, 0
    %vm6517 = vcmp.ge.s32.totalorder %v6261, 0
    %vm6518 = vcmp.ge.s32.totalorder %v6262, 0
    %vm6519 = vcmp.ge.s32.totalorder %v6263, 0
    %vm6520 = vcmp.ge.s32.totalorder %v6264, 0
    %vm6521 = vcmp.ge.s32.totalorder %v6265, 0
    %vm6522 = vcmp.ge.s32.totalorder %v6266, 0
    %vm6523 = vcmp.ge.s32.totalorder %v6267, 0
    %vm6524 = vcmp.ge.s32.totalorder %v6268, 0
    %vm6525 = vcmp.ge.s32.totalorder %v6269, 0
    %vm6526 = vcmp.ge.s32.totalorder %v6270, 0
    %vm6527 = vcmp.ge.s32.totalorder %v6271, 0
    %vm6528 = vcmp.ge.s32.totalorder %v6272, 0
    %vm6529 = vcmp.ge.s32.totalorder %v6273, 0
    %vm6530 = vcmp.ge.s32.totalorder %v6274, 0
    %vm6531 = vcmp.ge.s32.totalorder %v6275, 0
    %vm6532 = vcmp.ge.s32.totalorder %v6276, 0
    %vm6533 = vcmp.ge.s32.totalorder %v6277, 0
    %vm6534 = vcmp.ge.s32.totalorder %v6278, 0
    %vm6535 = vcmp.ge.s32.totalorder %v6279, 0
    %vm6536 = vcmp.ge.s32.totalorder %v6280, 0
    %vm6537 = vcmp.ge.s32.totalorder %v6281, 0
    %vm6538 = vcmp.ge.s32.totalorder %v6282, 0
    %vm6539 = vcmp.ge.s32.totalorder %v6283, 0
    %vm6540 = vcmp.ge.s32.totalorder %v6284, 0
    %vm6541 = vcmp.ge.s32.totalorder %v6285, 0
    %vm6542 = vcmp.ge.s32.totalorder %v6286, 0
    %vm6543 = vcmp.ge.s32.totalorder %v6287, 0
    %vm6544 = vcmp.ge.s32.totalorder %v6288, 0
    %vm6545 = vcmp.ge.s32.totalorder %v6289, 0
    %vm6546 = vcmp.ge.s32.totalorder %v6290, 0
    %vm6547 = vcmp.ge.s32.totalorder %v6291, 0
    %vm6548 = vcmp.ge.s32.totalorder %v6292, 0
    %vm6549 = vcmp.ge.s32.totalorder %v6293, 0
    %vm6550 = vmand %vm6422, %vm6486
    %vm6551 = vmand %vm6423, %vm6487
    %vm6552 = vmand %vm6424, %vm6488
    %vm6553 = vmand %vm6425, %vm6489
    %vm6554 = vmand %vm6426, %vm6490
    %vm6555 = vmand %vm6427, %vm6491
    %vm6556 = vmand %vm6428, %vm6492
    %vm6557 = vmand %vm6429, %vm6493
    %vm6558 = vmand %vm6430, %vm6494
    %vm6559 = vmand %vm6431, %vm6495
    %vm6560 = vmand %vm6432, %vm6496
    %vm6561 = vmand %vm6433, %vm6497
    %vm6562 = vmand %vm6434, %vm6498
    %vm6563 = vmand %vm6435, %vm6499
    %vm6564 = vmand %vm6436, %vm6500
    %vm6565 = vmand %vm6437, %vm6501
    %vm6566 = vmand %vm6438, %vm6502
    %vm6567 = vmand %vm6439, %vm6503
    %vm6568 = vmand %vm6440, %vm6504
    %vm6569 = vmand %vm6441, %vm6505
    %vm6570 = vmand %vm6442, %vm6506
    %vm6571 = vmand %vm6443, %vm6507
    %vm6572 = vmand %vm6444, %vm6508
    %vm6573 = vmand %vm6445, %vm6509
    %vm6574 = vmand %vm6446, %vm6510
    %vm6575 = vmand %vm6447, %vm6511
    %vm6576 = vmand %vm6448, %vm6512
    %vm6577 = vmand %vm6449, %vm6513
    %vm6578 = vmand %vm6450, %vm6514
    %vm6579 = vmand %vm6451, %vm6515
    %vm6580 = vmand %vm6452, %vm6516
    %vm6581 = vmand %vm6453, %vm6517
    %vm6582 = vmand %vm6454, %vm6518
    %vm6583 = vmand %vm6455, %vm6519
    %vm6584 = vmand %vm6456, %vm6520
    %vm6585 = vmand %vm6457, %vm6521
    %vm6586 = vmand %vm6458, %vm6522
    %vm6587 = vmand %vm6459, %vm6523
    %vm6588 = vmand %vm6460, %vm6524
    %vm6589 = vmand %vm6461, %vm6525
    %vm6590 = vmand %vm6462, %vm6526
    %vm6591 = vmand %vm6463, %vm6527
    %vm6592 = vmand %vm6464, %vm6528
    %vm6593 = vmand %vm6465, %vm6529
    %vm6594 = vmand %vm6466, %vm6530
    %vm6595 = vmand %vm6467, %vm6531
    %vm6596 = vmand %vm6468, %vm6532
    %vm6597 = vmand %vm6469, %vm6533
    %vm6598 = vmand %vm6470, %vm6534
    %vm6599 = vmand %vm6471, %vm6535
    %vm6600 = vmand %vm6472, %vm6536
    %vm6601 = vmand %vm6473, %vm6537
    %vm6602 = vmand %vm6474, %vm6538
    %vm6603 = vmand %vm6475, %vm6539
    %vm6604 = vmand %vm6476, %vm6540
    %vm6605 = vmand %vm6477, %vm6541
    %vm6606 = vmand %vm6478, %vm6542
    %vm6607 = vmand %vm6479, %vm6543
    %vm6608 = vmand %vm6480, %vm6544
    %vm6609 = vmand %vm6481, %vm6545
    %vm6610 = vmand %vm6482, %vm6546
    %vm6611 = vmand %vm6483, %vm6547
    %vm6612 = vmand %vm6484, %vm6548
    %vm6613 = vmand %vm6485, %vm6549
    %vm6614 = vcmp.lt.s32.totalorder %v6230, 16
    %vm6615 = vcmp.lt.s32.totalorder %v6231, 16
    %vm6616 = vcmp.lt.s32.totalorder %v6232, 16
    %vm6617 = vcmp.lt.s32.totalorder %v6233, 16
    %vm6618 = vcmp.lt.s32.totalorder %v6234, 16
    %vm6619 = vcmp.lt.s32.totalorder %v6235, 16
    %vm6620 = vcmp.lt.s32.totalorder %v6236, 16
    %vm6621 = vcmp.lt.s32.totalorder %v6237, 16
    %vm6622 = vcmp.lt.s32.totalorder %v6238, 16
    %vm6623 = vcmp.lt.s32.totalorder %v6239, 16
    %vm6624 = vcmp.lt.s32.totalorder %v6240, 16
    %vm6625 = vcmp.lt.s32.totalorder %v6241, 16
    %vm6626 = vcmp.lt.s32.totalorder %v6242, 16
    %vm6627 = vcmp.lt.s32.totalorder %v6243, 16
    %vm6628 = vcmp.lt.s32.totalorder %v6244, 16
    %vm6629 = vcmp.lt.s32.totalorder %v6245, 16
    %vm6630 = vcmp.lt.s32.totalorder %v6246, 16
    %vm6631 = vcmp.lt.s32.totalorder %v6247, 16
    %vm6632 = vcmp.lt.s32.totalorder %v6248, 16
    %vm6633 = vcmp.lt.s32.totalorder %v6249, 16
    %vm6634 = vcmp.lt.s32.totalorder %v6250, 16
    %vm6635 = vcmp.lt.s32.totalorder %v6251, 16
    %vm6636 = vcmp.lt.s32.totalorder %v6252, 16
    %vm6637 = vcmp.lt.s32.totalorder %v6253, 16
    %vm6638 = vcmp.lt.s32.totalorder %v6254, 16
    %vm6639 = vcmp.lt.s32.totalorder %v6255, 16
    %vm6640 = vcmp.lt.s32.totalorder %v6256, 16
    %vm6641 = vcmp.lt.s32.totalorder %v6257, 16
    %vm6642 = vcmp.lt.s32.totalorder %v6258, 16
    %vm6643 = vcmp.lt.s32.totalorder %v6259, 16
    %vm6644 = vcmp.lt.s32.totalorder %v6260, 16
    %vm6645 = vcmp.lt.s32.totalorder %v6261, 16
    %vm6646 = vcmp.lt.s32.totalorder %v6262, 16
    %vm6647 = vcmp.lt.s32.totalorder %v6263, 16
    %vm6648 = vcmp.lt.s32.totalorder %v6264, 16
    %vm6649 = vcmp.lt.s32.totalorder %v6265, 16
    %vm6650 = vcmp.lt.s32.totalorder %v6266, 16
    %vm6651 = vcmp.lt.s32.totalorder %v6267, 16
    %vm6652 = vcmp.lt.s32.totalorder %v6268, 16
    %vm6653 = vcmp.lt.s32.totalorder %v6269, 16
    %vm6654 = vcmp.lt.s32.totalorder %v6270, 16
    %vm6655 = vcmp.lt.s32.totalorder %v6271, 16
    %vm6656 = vcmp.lt.s32.totalorder %v6272, 16
    %vm6657 = vcmp.lt.s32.totalorder %v6273, 16
    %vm6658 = vcmp.lt.s32.totalorder %v6274, 16
    %vm6659 = vcmp.lt.s32.totalorder %v6275, 16
    %vm6660 = vcmp.lt.s32.totalorder %v6276, 16
    %vm6661 = vcmp.lt.s32.totalorder %v6277, 16
    %vm6662 = vcmp.lt.s32.totalorder %v6278, 16
    %vm6663 = vcmp.lt.s32.totalorder %v6279, 16
    %vm6664 = vcmp.lt.s32.totalorder %v6280, 16
    %vm6665 = vcmp.lt.s32.totalorder %v6281, 16
    %vm6666 = vcmp.lt.s32.totalorder %v6282, 16
    %vm6667 = vcmp.lt.s32.totalorder %v6283, 16
    %vm6668 = vcmp.lt.s32.totalorder %v6284, 16
    %vm6669 = vcmp.lt.s32.totalorder %v6285, 16
    %vm6670 = vcmp.lt.s32.totalorder %v6286, 16
    %vm6671 = vcmp.lt.s32.totalorder %v6287, 16
    %vm6672 = vcmp.lt.s32.totalorder %v6288, 16
    %vm6673 = vcmp.lt.s32.totalorder %v6289, 16
    %vm6674 = vcmp.lt.s32.totalorder %v6290, 16
    %vm6675 = vcmp.lt.s32.totalorder %v6291, 16
    %vm6676 = vcmp.lt.s32.totalorder %v6292, 16
    %vm6677 = vcmp.lt.s32.totalorder %v6293, 16
    %vm6678 = vmand %vm6550, %vm6614
    %vm6679 = vmand %vm6551, %vm6615
    %vm6680 = vmand %vm6552, %vm6616
    %vm6681 = vmand %vm6553, %vm6617
    %vm6682 = vmand %vm6554, %vm6618
    %vm6683 = vmand %vm6555, %vm6619
    %vm6684 = vmand %vm6556, %vm6620
    %vm6685 = vmand %vm6557, %vm6621
    %vm6686 = vmand %vm6558, %vm6622
    %vm6687 = vmand %vm6559, %vm6623
    %vm6688 = vmand %vm6560, %vm6624
    %vm6689 = vmand %vm6561, %vm6625
    %vm6690 = vmand %vm6562, %vm6626
    %vm6691 = vmand %vm6563, %vm6627
    %vm6692 = vmand %vm6564, %vm6628
    %vm6693 = vmand %vm6565, %vm6629
    %vm6694 = vmand %vm6566, %vm6630
    %vm6695 = vmand %vm6567, %vm6631
    %vm6696 = vmand %vm6568, %vm6632
    %vm6697 = vmand %vm6569, %vm6633
    %vm6698 = vmand %vm6570, %vm6634
    %vm6699 = vmand %vm6571, %vm6635
    %vm6700 = vmand %vm6572, %vm6636
    %vm6701 = vmand %vm6573, %vm6637
    %vm6702 = vmand %vm6574, %vm6638
    %vm6703 = vmand %vm6575, %vm6639
    %vm6704 = vmand %vm6576, %vm6640
    %vm6705 = vmand %vm6577, %vm6641
    %vm6706 = vmand %vm6578, %vm6642
    %vm6707 = vmand %vm6579, %vm6643
    %vm6708 = vmand %vm6580, %vm6644
    %vm6709 = vmand %vm6581, %vm6645
    %vm6710 = vmand %vm6582, %vm6646
    %vm6711 = vmand %vm6583, %vm6647
    %vm6712 = vmand %vm6584, %vm6648
    %vm6713 = vmand %vm6585, %vm6649
    %vm6714 = vmand %vm6586, %vm6650
    %vm6715 = vmand %vm6587, %vm6651
    %vm6716 = vmand %vm6588, %vm6652
    %vm6717 = vmand %vm6589, %vm6653
    %vm6718 = vmand %vm6590, %vm6654
    %vm6719 = vmand %vm6591, %vm6655
    %vm6720 = vmand %vm6592, %vm6656
    %vm6721 = vmand %vm6593, %vm6657
    %vm6722 = vmand %vm6594, %vm6658
    %vm6723 = vmand %vm6595, %vm6659
    %vm6724 = vmand %vm6596, %vm6660
    %vm6725 = vmand %vm6597, %vm6661
    %vm6726 = vmand %vm6598, %vm6662
    %vm6727 = vmand %vm6599, %vm6663
    %vm6728 = vmand %vm6600, %vm6664
    %vm6729 = vmand %vm6601, %vm6665
    %vm6730 = vmand %vm6602, %vm6666
    %vm6731 = vmand %vm6603, %vm6667
    %vm6732 = vmand %vm6604, %vm6668
    %vm6733 = vmand %vm6605, %vm6669
    %vm6734 = vmand %vm6606, %vm6670
    %vm6735 = vmand %vm6607, %vm6671
    %vm6736 = vmand %vm6608, %vm6672
    %vm6737 = vmand %vm6609, %vm6673
    %vm6738 = vmand %vm6610, %vm6674
    %vm6739 = vmand %vm6611, %vm6675
    %vm6740 = vmand %vm6612, %vm6676
    %vm6741 = vmand %vm6613, %vm6677
    %v6742 = vsel %vm6678, %v6078, 0.0
    %v6743 = vsel %vm6679, %v6079, 0.0
    %v6744 = vsel %vm6680, %v6080, 0.0
    %v6745 = vsel %vm6681, %v6081, 0.0
    %v6746 = vsel %vm6682, %v6082, 0.0
    %v6747 = vsel %vm6683, %v6083, 0.0
    %v6748 = vsel %vm6684, %v6084, 0.0
    %v6749 = vsel %vm6685, %v6085, 0.0
    %v6750 = vsel %vm6686, %v6086, 0.0
    %v6751 = vsel %vm6687, %v6087, 0.0
    %v6752 = vsel %vm6688, %v6088, 0.0
    %v6753 = vsel %vm6689, %v6089, 0.0
    %v6754 = vsel %vm6690, %v6090, 0.0
    %v6755 = vsel %vm6691, %v6091, 0.0
    %v6756 = vsel %vm6692, %v6092, 0.0
    %v6757 = vsel %vm6693, %v6093, 0.0
    %v6758 = vsel %vm6694, %v6094, 0.0
    %v6759 = vsel %vm6695, %v6095, 0.0
    %v6760 = vsel %vm6696, %v6096, 0.0
    %v6761 = vsel %vm6697, %v6097, 0.0
    %v6762 = vsel %vm6698, %v6098, 0.0
    %v6763 = vsel %vm6699, %v6099, 0.0
    %v6764 = vsel %vm6700, %v6100, 0.0
    %v6765 = vsel %vm6701, %v6101, 0.0
    %v6766 = vsel %vm6702, %v6102, 0.0
    %v6767 = vsel %vm6703, %v6103, 0.0
    %v6768 = vsel %vm6704, %v6104, 0.0
    %v6769 = vsel %vm6705, %v6105, 0.0
    %v6770 = vsel %vm6706, %v6106, 0.0
    %v6771 = vsel %vm6707, %v6107, 0.0
    %v6772 = vsel %vm6708, %v6108, 0.0
    %v6773 = vsel %vm6709, %v6109, 0.0
    %v6774 = vsel %vm6710, %v6110, 0.0
    %v6775 = vsel %vm6711, %v6111, 0.0
    %v6776 = vsel %vm6712, %v6112, 0.0
    %v6777 = vsel %vm6713, %v6113, 0.0
    %v6778 = vsel %vm6714, %v6114, 0.0
    %v6779 = vsel %vm6715, %v6115, 0.0
    %v6780 = vsel %vm6716, %v6116, 0.0
    %v6781 = vsel %vm6717, %v6117, 0.0
    %v6782 = vsel %vm6718, %v6118, 0.0
    %v6783 = vsel %vm6719, %v6119, 0.0
    %v6784 = vsel %vm6720, %v6120, 0.0
    %v6785 = vsel %vm6721, %v6121, 0.0
    %v6786 = vsel %vm6722, %v6122, 0.0
    %v6787 = vsel %vm6723, %v6123, 0.0
    %v6788 = vsel %vm6724, %v6124, 0.0
    %v6789 = vsel %vm6725, %v6125, 0.0
    %v6790 = vsel %vm6726, %v6126, 0.0
    %v6791 = vsel %vm6727, %v6127, 0.0
    %v6792 = vsel %vm6728, %v6128, 0.0
    %v6793 = vsel %vm6729, %v6129, 0.0
    %v6794 = vsel %vm6730, %v6130, 0.0
    %v6795 = vsel %vm6731, %v6131, 0.0
    %v6796 = vsel %vm6732, %v6132, 0.0
    %v6797 = vsel %vm6733, %v6133, 0.0
    %v6798 = vsel %vm6734, %v6134, 0.0
    %v6799 = vsel %vm6735, %v6135, 0.0
    %v6800 = vsel %vm6736, %v6136, 0.0
    %v6801 = vsel %vm6737, %v6137, 0.0
    %v6802 = vsel %vm6738, %v6138, 0.0
    %v6803 = vsel %vm6739, %v6139, 0.0
    %v6804 = vsel %vm6740, %v6140, 0.0
    %v6805 = vsel %vm6741, %v6141, 0.0
    %6806 = vrot.lane.b32.xlu0 %v80, 72
    %v6807 = vpop.permute.xlu0 %6806
    %6808 = vrot.lane.b32.xlu0 %v81, 72
    %v6809 = vpop.permute.xlu0 %6808
    %6810 = vrot.lane.b32.xlu0 %v82, 72
    %v6811 = vpop.permute.xlu0 %6810
    %6812 = vrot.lane.b32.xlu0 %v83, 72
    %v6813 = vpop.permute.xlu0 %6812
    %6814 = vrot.lane.b32.xlu0 %v84, 72
    %v6815 = vpop.permute.xlu0 %6814
    %6816 = vrot.lane.b32.xlu0 %v85, 72
    %v6817 = vpop.permute.xlu0 %6816
    %6818 = vrot.lane.b32.xlu0 %v86, 72
    %v6819 = vpop.permute.xlu0 %6818
    %6820 = vrot.lane.b32.xlu0 %v87, 72
    %v6821 = vpop.permute.xlu0 %6820
    %6822 = vrot.lane.b32.xlu0 %v88, 72
    %v6823 = vpop.permute.xlu0 %6822
    %6824 = vrot.lane.b32.xlu0 %v89, 72
    %v6825 = vpop.permute.xlu0 %6824
    %6826 = vrot.lane.b32.xlu0 %v90, 72
    %v6827 = vpop.permute.xlu0 %6826
    %6828 = vrot.lane.b32.xlu0 %v91, 72
    %v6829 = vpop.permute.xlu0 %6828
    %6830 = vrot.lane.b32.xlu0 %v92, 72
    %v6831 = vpop.permute.xlu0 %6830
    %6832 = vrot.lane.b32.xlu0 %v93, 72
    %v6833 = vpop.permute.xlu0 %6832
    %6834 = vrot.lane.b32.xlu0 %v94, 72
    %v6835 = vpop.permute.xlu0 %6834
    %6836 = vrot.lane.b32.xlu0 %v95, 72
    %v6837 = vpop.permute.xlu0 %6836
    %6838 = vrot.lane.b32.xlu0 %v96, 72
    %v6839 = vpop.permute.xlu0 %6838
    %6840 = vrot.lane.b32.xlu0 %v97, 72
    %v6841 = vpop.permute.xlu0 %6840
    %6842 = vrot.lane.b32.xlu0 %v98, 72
    %v6843 = vpop.permute.xlu0 %6842
    %6844 = vrot.lane.b32.xlu0 %v99, 72
    %v6845 = vpop.permute.xlu0 %6844
    %6846 = vrot.lane.b32.xlu0 %v100, 72
    %v6847 = vpop.permute.xlu0 %6846
    %6848 = vrot.lane.b32.xlu0 %v101, 72
    %v6849 = vpop.permute.xlu0 %6848
    %6850 = vrot.lane.b32.xlu0 %v102, 72
    %v6851 = vpop.permute.xlu0 %6850
    %6852 = vrot.lane.b32.xlu0 %v103, 72
    %v6853 = vpop.permute.xlu0 %6852
    %6854 = vrot.lane.b32.xlu0 %v104, 72
    %v6855 = vpop.permute.xlu0 %6854
    %6856 = vrot.lane.b32.xlu0 %v105, 72
    %v6857 = vpop.permute.xlu0 %6856
    %6858 = vrot.lane.b32.xlu0 %v106, 72
    %v6859 = vpop.permute.xlu0 %6858
    %6860 = vrot.lane.b32.xlu0 %v107, 72
    %v6861 = vpop.permute.xlu0 %6860
    %6862 = vrot.lane.b32.xlu0 %v108, 72
    %v6863 = vpop.permute.xlu0 %6862
    %6864 = vrot.lane.b32.xlu0 %v109, 72
    %v6865 = vpop.permute.xlu0 %6864
    %6866 = vrot.lane.b32.xlu0 %v110, 72
    %v6867 = vpop.permute.xlu0 %6866
    %6868 = vrot.lane.b32.xlu0 %v111, 72
    %v6869 = vpop.permute.xlu0 %6868
    %6870 = vrot.lane.b32.xlu0 %v112, 72
    %v6871 = vpop.permute.xlu0 %6870
    %6872 = vrot.lane.b32.xlu0 %v113, 72
    %v6873 = vpop.permute.xlu0 %6872
    %6874 = vrot.lane.b32.xlu0 %v114, 72
    %v6875 = vpop.permute.xlu0 %6874
    %6876 = vrot.lane.b32.xlu0 %v115, 72
    %v6877 = vpop.permute.xlu0 %6876
    %6878 = vrot.lane.b32.xlu0 %v116, 72
    %v6879 = vpop.permute.xlu0 %6878
    %6880 = vrot.lane.b32.xlu0 %v117, 72
    %v6881 = vpop.permute.xlu0 %6880
    %6882 = vrot.lane.b32.xlu0 %v118, 72
    %v6883 = vpop.permute.xlu0 %6882
    %6884 = vrot.lane.b32.xlu0 %v119, 72
    %v6885 = vpop.permute.xlu0 %6884
    %6886 = vrot.lane.b32.xlu0 %v120, 72
    %v6887 = vpop.permute.xlu0 %6886
    %6888 = vrot.lane.b32.xlu0 %v121, 72
    %v6889 = vpop.permute.xlu0 %6888
    %6890 = vrot.lane.b32.xlu0 %v122, 72
    %v6891 = vpop.permute.xlu0 %6890
    %6892 = vrot.lane.b32.xlu0 %v123, 72
    %v6893 = vpop.permute.xlu0 %6892
    %6894 = vrot.lane.b32.xlu0 %v124, 72
    %v6895 = vpop.permute.xlu0 %6894
    %6896 = vrot.lane.b32.xlu0 %v125, 72
    %v6897 = vpop.permute.xlu0 %6896
    %6898 = vrot.lane.b32.xlu0 %v126, 72
    %v6899 = vpop.permute.xlu0 %6898
    %6900 = vrot.lane.b32.xlu0 %v127, 72
    %v6901 = vpop.permute.xlu0 %6900
    %6902 = vrot.lane.b32.xlu0 %v128, 72
    %v6903 = vpop.permute.xlu0 %6902
    %6904 = vrot.lane.b32.xlu0 %v129, 72
    %v6905 = vpop.permute.xlu0 %6904
    %6906 = vrot.lane.b32.xlu0 %v130, 72
    %v6907 = vpop.permute.xlu0 %6906
    %6908 = vrot.lane.b32.xlu0 %v131, 72
    %v6909 = vpop.permute.xlu0 %6908
    %6910 = vrot.lane.b32.xlu0 %v132, 72
    %v6911 = vpop.permute.xlu0 %6910
    %6912 = vrot.lane.b32.xlu0 %v133, 72
    %v6913 = vpop.permute.xlu0 %6912
    %6914 = vrot.lane.b32.xlu0 %v134, 72
    %v6915 = vpop.permute.xlu0 %6914
    %6916 = vrot.lane.b32.xlu0 %v135, 72
    %v6917 = vpop.permute.xlu0 %6916
    %6918 = vrot.lane.b32.xlu0 %v136, 72
    %v6919 = vpop.permute.xlu0 %6918
    %6920 = vrot.lane.b32.xlu0 %v137, 72
    %v6921 = vpop.permute.xlu0 %6920
    %6922 = vrot.lane.b32.xlu0 %v138, 72
    %v6923 = vpop.permute.xlu0 %6922
    %6924 = vrot.lane.b32.xlu0 %v139, 72
    %v6925 = vpop.permute.xlu0 %6924
    %6926 = vrot.lane.b32.xlu0 %v140, 72
    %v6927 = vpop.permute.xlu0 %6926
    %6928 = vrot.lane.b32.xlu0 %v141, 72
    %v6929 = vpop.permute.xlu0 %6928
    %6930 = vrot.lane.b32.xlu0 %v142, 72
    %v6931 = vpop.permute.xlu0 %6930
    %6932 = vrot.lane.b32.xlu0 %v143, 72
    %v6933 = vpop.permute.xlu0 %6932
    %v6934 = vadd.f32 %v6742, %v6807
    %v6935 = vadd.f32 %v6743, %v6809
    %v6936 = vadd.f32 %v6744, %v6811
    %v6937 = vadd.f32 %v6745, %v6813
    %v6938 = vadd.f32 %v6746, %v6815
    %v6939 = vadd.f32 %v6747, %v6817
    %v6940 = vadd.f32 %v6748, %v6819
    %v6941 = vadd.f32 %v6749, %v6821
    %v6942 = vadd.f32 %v6750, %v6823
    %v6943 = vadd.f32 %v6751, %v6825
    %v6944 = vadd.f32 %v6752, %v6827
    %v6945 = vadd.f32 %v6753, %v6829
    %v6946 = vadd.f32 %v6754, %v6831
    %v6947 = vadd.f32 %v6755, %v6833
    %v6948 = vadd.f32 %v6756, %v6835
    %v6949 = vadd.f32 %v6757, %v6837
    %v6950 = vadd.f32 %v6758, %v6839
    %v6951 = vadd.f32 %v6759, %v6841
    %v6952 = vadd.f32 %v6760, %v6843
    %v6953 = vadd.f32 %v6761, %v6845
    %v6954 = vadd.f32 %v6762, %v6847
    %v6955 = vadd.f32 %v6763, %v6849
    %v6956 = vadd.f32 %v6764, %v6851
    %v6957 = vadd.f32 %v6765, %v6853
    %v6958 = vadd.f32 %v6766, %v6855
    %v6959 = vadd.f32 %v6767, %v6857
    %v6960 = vadd.f32 %v6768, %v6859
    %v6961 = vadd.f32 %v6769, %v6861
    %v6962 = vadd.f32 %v6770, %v6863
    %v6963 = vadd.f32 %v6771, %v6865
    %v6964 = vadd.f32 %v6772, %v6867
    %v6965 = vadd.f32 %v6773, %v6869
    %v6966 = vadd.f32 %v6774, %v6871
    %v6967 = vadd.f32 %v6775, %v6873
    %v6968 = vadd.f32 %v6776, %v6875
    %v6969 = vadd.f32 %v6777, %v6877
    %v6970 = vadd.f32 %v6778, %v6879
    %v6971 = vadd.f32 %v6779, %v6881
    %v6972 = vadd.f32 %v6780, %v6883
    %v6973 = vadd.f32 %v6781, %v6885
    %v6974 = vadd.f32 %v6782, %v6887
    %v6975 = vadd.f32 %v6783, %v6889
    %v6976 = vadd.f32 %v6784, %v6891
    %v6977 = vadd.f32 %v6785, %v6893
    %v6978 = vadd.f32 %v6786, %v6895
    %v6979 = vadd.f32 %v6787, %v6897
    %v6980 = vadd.f32 %v6788, %v6899
    %v6981 = vadd.f32 %v6789, %v6901
    %v6982 = vadd.f32 %v6790, %v6903
    %v6983 = vadd.f32 %v6791, %v6905
    %v6984 = vadd.f32 %v6792, %v6907
    %v6985 = vadd.f32 %v6793, %v6909
    %v6986 = vadd.f32 %v6794, %v6911
    %v6987 = vadd.f32 %v6795, %v6913
    %v6988 = vadd.f32 %v6796, %v6915
    %v6989 = vadd.f32 %v6797, %v6917
    %v6990 = vadd.f32 %v6798, %v6919
    %v6991 = vadd.f32 %v6799, %v6921
    %v6992 = vadd.f32 %v6800, %v6923
    %v6993 = vadd.f32 %v6801, %v6925
    %v6994 = vadd.f32 %v6802, %v6927
    %v6995 = vadd.f32 %v6803, %v6929
    %v6996 = vadd.f32 %v6804, %v6931
    %v6997 = vadd.f32 %v6805, %v6933
    %v6998 = vpack.c.bf16 %v6935, %v6934
    %v6999 = vpack.c.bf16 %v6937, %v6936
    %v7000 = vpack.c.bf16 %v6939, %v6938
    %v7001 = vpack.c.bf16 %v6941, %v6940
    %v7002 = vpack.c.bf16 %v6943, %v6942
    %v7003 = vpack.c.bf16 %v6945, %v6944
    %v7004 = vpack.c.bf16 %v6947, %v6946
    %v7005 = vpack.c.bf16 %v6949, %v6948
    %v7006 = vpack.c.bf16 %v6951, %v6950
    %v7007 = vpack.c.bf16 %v6953, %v6952
    %v7008 = vpack.c.bf16 %v6955, %v6954
    %v7009 = vpack.c.bf16 %v6957, %v6956
    %v7010 = vpack.c.bf16 %v6959, %v6958
    %v7011 = vpack.c.bf16 %v6961, %v6960
    %v7012 = vpack.c.bf16 %v6963, %v6962
    %v7013 = vpack.c.bf16 %v6965, %v6964
    %v7014 = vpack.c.bf16 %v6967, %v6966
    %v7015 = vpack.c.bf16 %v6969, %v6968
    %v7016 = vpack.c.bf16 %v6971, %v6970
    %v7017 = vpack.c.bf16 %v6973, %v6972
    %v7018 = vpack.c.bf16 %v6975, %v6974
    %v7019 = vpack.c.bf16 %v6977, %v6976
    %v7020 = vpack.c.bf16 %v6979, %v6978
    %v7021 = vpack.c.bf16 %v6981, %v6980
    %v7022 = vpack.c.bf16 %v6983, %v6982
    %v7023 = vpack.c.bf16 %v6985, %v6984
    %v7024 = vpack.c.bf16 %v6987, %v6986
    %v7025 = vpack.c.bf16 %v6989, %v6988
    %v7026 = vpack.c.bf16 %v6991, %v6990
    %v7027 = vpack.c.bf16 %v6993, %v6992
    %v7028 = vpack.c.bf16 %v6995, %v6994
    %v7029 = vpack.c.bf16 %v6997, %v6996
    %v7030 = vld [vmem:[#allocation7] sm:$0xf]
    %v7031 = vld [vmem:[#allocation7 + $0x4] sm:$0xf]
    %v7032 = vld [vmem:[#allocation7 + $0x8] sm:$0xf]
    %v7033 = vld [vmem:[#allocation7 + $0xc] sm:$0xf]
    %v7034 = vld [vmem:[#allocation7 + $0x10] sm:$0xf]
    %v7035 = vld [vmem:[#allocation7 + $0x14] sm:$0xf]
    %v7036 = vld [vmem:[#allocation7 + $0x18] sm:$0xf]
    %v7037 = vld [vmem:[#allocation7 + $0x1c] sm:$0xf]
    %v7038 = vld [vmem:[#allocation7 + $0x20] sm:$0xf]
    %v7039 = vld [vmem:[#allocation7 + $0x24] sm:$0xf]
    %v7040 = vld [vmem:[#allocation7 + $0x28] sm:$0xf]
    %v7041 = vld [vmem:[#allocation7 + $0x2c] sm:$0xf]
    %v7042 = vld [vmem:[#allocation7 + $0x30] sm:$0xf]
    %v7043 = vld [vmem:[#allocation7 + $0x34] sm:$0xf]
    %v7044 = vld [vmem:[#allocation7 + $0x38] sm:$0xf]
    %v7045 = vld [vmem:[#allocation7 + $0x3c] sm:$0xf]
    %v7046 = vld [vmem:[%s4] sm:$0x1]
    %v7048 = vperm.slane %v7046, 0
    %v7066 = vunpack.c.l.b16 %v7030
    %v7067 = vunpack.c.l.b16 %v7031
    %v7068 = vunpack.c.l.b16 %v7032
    %v7069 = vunpack.c.l.b16 %v7033
    %v7070 = vunpack.c.l.b16 %v7034
    %v7071 = vunpack.c.l.b16 %v7035
    %v7072 = vunpack.c.l.b16 %v7036
    %v7073 = vunpack.c.l.b16 %v7037
    %v7074 = vunpack.c.l.b16 %v7038
    %v7075 = vunpack.c.l.b16 %v7039
    %v7076 = vunpack.c.l.b16 %v7040
    %v7077 = vunpack.c.l.b16 %v7041
    %v7078 = vunpack.c.l.b16 %v7042
    %v7079 = vunpack.c.l.b16 %v7043
    %v7080 = vunpack.c.l.b16 %v7044
    %v7081 = vunpack.c.l.b16 %v7045
    %v7082 = vpack.c.b16 %v7067, %v7066
    %v7083 = vpack.c.b16 %v7069, %v7068
    %v7084 = vpack.c.b16 %v7071, %v7070
    %v7085 = vpack.c.b16 %v7073, %v7072
    %v7086 = vpack.c.b16 %v7075, %v7074
    %v7087 = vpack.c.b16 %v7077, %v7076
    %v7088 = vpack.c.b16 %v7079, %v7078
    %v7089 = vpack.c.b16 %v7081, %v7080
    %7098 = vmatpush.bf16.msra.mxu0 %v7089
    %7099 = vmatpush.bf16.msra.mxu0 %v7088
    %7100 = vmatpush.bf16.msra.mxu0 %v7087
    %7101 = vmatpush.bf16.msra.mxu0 %v7086
    %7102 = vmatpush.bf16.msra.mxu0 %v7085
    %7103 = vmatpush.bf16.msra.mxu0 %v7084
    %7104 = vmatpush.bf16.msra.mxu0 %v7083
    %7105 = vmatpush.bf16.msra.mxu0 %v7082
    %7106 = vmatmul.bf16.gmra.mxu0 %v6998
    %v7107 = vpop.f32.mrf.mxu0
    %v7108 = vadd.f32 %v7048, %v7107
    %v7109 = vpop.f32.mrf.mxu0
    %v7110 = vadd.f32 %v7048, %v7109
    %7111 = vmatmul.bf16.gmra.mxu0 %v6999
    %v7112 = vpop.f32.mrf.mxu0
    %v7113 = vadd.f32 %v7048, %v7112
    %v7114 = vpop.f32.mrf.mxu0
    %v7115 = vadd.f32 %v7048, %v7114
    %7116 = vmatmul.bf16.gmra.mxu0 %v7000
    %v7117 = vpop.f32.mrf.mxu0
    %v7118 = vadd.f32 %v7048, %v7117
    %v7119 = vpop.f32.mrf.mxu0
    %v7120 = vadd.f32 %v7048, %v7119
    %7121 = vmatmul.bf16.gmra.mxu0 %v7001
    %v7122 = vpop.f32.mrf.mxu0
    %v7123 = vadd.f32 %v7048, %v7122
    %v7124 = vpop.f32.mrf.mxu0
    %v7125 = vadd.f32 %v7048, %v7124
    %7126 = vmatmul.bf16.gmra.mxu0 %v7002
    %v7127 = vpop.f32.mrf.mxu0
    %v7128 = vadd.f32 %v7048, %v7127
    %v7129 = vpop.f32.mrf.mxu0
    %v7130 = vadd.f32 %v7048, %v7129
    %7131 = vmatmul.bf16.gmra.mxu0 %v7003
    %v7132 = vpop.f32.mrf.mxu0
    %v7133 = vadd.f32 %v7048, %v7132
    %v7134 = vpop.f32.mrf.mxu0
    %v7135 = vadd.f32 %v7048, %v7134
    %7136 = vmatmul.bf16.gmra.mxu0 %v7004
    %v7137 = vpop.f32.mrf.mxu0
    %v7138 = vadd.f32 %v7048, %v7137
    %v7139 = vpop.f32.mrf.mxu0
    %v7140 = vadd.f32 %v7048, %v7139
    %7141 = vmatmul.bf16.gmra.mxu0 %v7005
    %v7142 = vpop.f32.mrf.mxu0
    %v7143 = vadd.f32 %v7048, %v7142
    %v7144 = vpop.f32.mrf.mxu0
    %v7145 = vadd.f32 %v7048, %v7144
    %7146 = vmatmul.bf16.gmra.mxu0 %v7006
    %v7147 = vpop.f32.mrf.mxu0
    %v7148 = vadd.f32 %v7048, %v7147
    %v7149 = vpop.f32.mrf.mxu0
    %v7150 = vadd.f32 %v7048, %v7149
    %7151 = vmatmul.bf16.gmra.mxu0 %v7007
    %v7152 = vpop.f32.mrf.mxu0
    %v7153 = vadd.f32 %v7048, %v7152
    %v7154 = vpop.f32.mrf.mxu0
    %v7155 = vadd.f32 %v7048, %v7154
    %7156 = vmatmul.bf16.gmra.mxu0 %v7008
    %v7157 = vpop.f32.mrf.mxu0
    %v7158 = vadd.f32 %v7048, %v7157
    %v7159 = vpop.f32.mrf.mxu0
    %v7160 = vadd.f32 %v7048, %v7159
    %7161 = vmatmul.bf16.gmra.mxu0 %v7009
    %v7162 = vpop.f32.mrf.mxu0
    %v7163 = vadd.f32 %v7048, %v7162
    %v7164 = vpop.f32.mrf.mxu0
    %v7165 = vadd.f32 %v7048, %v7164
    %7166 = vmatmul.bf16.gmra.mxu0 %v7010
    %v7167 = vpop.f32.mrf.mxu0
    %v7168 = vadd.f32 %v7048, %v7167
    %v7169 = vpop.f32.mrf.mxu0
    %v7170 = vadd.f32 %v7048, %v7169
    %7171 = vmatmul.bf16.gmra.mxu0 %v7011
    %v7172 = vpop.f32.mrf.mxu0
    %v7173 = vadd.f32 %v7048, %v7172
    %v7174 = vpop.f32.mrf.mxu0
    %v7175 = vadd.f32 %v7048, %v7174
    %7176 = vmatmul.bf16.gmra.mxu0 %v7012
    %v7177 = vpop.f32.mrf.mxu0
    %v7178 = vadd.f32 %v7048, %v7177
    %v7179 = vpop.f32.mrf.mxu0
    %v7180 = vadd.f32 %v7048, %v7179
    %7181 = vmatmul.bf16.gmra.mxu0 %v7013
    %v7182 = vpop.f32.mrf.mxu0
    %v7183 = vadd.f32 %v7048, %v7182
    %v7184 = vpop.f32.mrf.mxu0
    %v7185 = vadd.f32 %v7048, %v7184
    %7186 = vmatmul.bf16.gmra.mxu0 %v7014
    %v7187 = vpop.f32.mrf.mxu0
    %v7188 = vadd.f32 %v7048, %v7187
    %v7189 = vpop.f32.mrf.mxu0
    %v7190 = vadd.f32 %v7048, %v7189
    %7191 = vmatmul.bf16.gmra.mxu0 %v7015
    %v7192 = vpop.f32.mrf.mxu0
    %v7193 = vadd.f32 %v7048, %v7192
    %v7194 = vpop.f32.mrf.mxu0
    %v7195 = vadd.f32 %v7048, %v7194
    %7196 = vmatmul.bf16.gmra.mxu0 %v7016
    %v7197 = vpop.f32.mrf.mxu0
    %v7198 = vadd.f32 %v7048, %v7197
    %v7199 = vpop.f32.mrf.mxu0
    %v7200 = vadd.f32 %v7048, %v7199
    %7201 = vmatmul.bf16.gmra.mxu0 %v7017
    %v7202 = vpop.f32.mrf.mxu0
    %v7203 = vadd.f32 %v7048, %v7202
    %v7204 = vpop.f32.mrf.mxu0
    %v7205 = vadd.f32 %v7048, %v7204
    %7206 = vmatmul.bf16.gmra.mxu0 %v7018
    %v7207 = vpop.f32.mrf.mxu0
    %v7208 = vadd.f32 %v7048, %v7207
    %v7209 = vpop.f32.mrf.mxu0
    %v7210 = vadd.f32 %v7048, %v7209
    %7211 = vmatmul.bf16.gmra.mxu0 %v7019
    %v7212 = vpop.f32.mrf.mxu0
    %v7213 = vadd.f32 %v7048, %v7212
    %v7214 = vpop.f32.mrf.mxu0
    %v7215 = vadd.f32 %v7048, %v7214
    %7216 = vmatmul.bf16.gmra.mxu0 %v7020
    %v7217 = vpop.f32.mrf.mxu0
    %v7218 = vadd.f32 %v7048, %v7217
    %v7219 = vpop.f32.mrf.mxu0
    %v7220 = vadd.f32 %v7048, %v7219
    %7221 = vmatmul.bf16.gmra.mxu0 %v7021
    %v7222 = vpop.f32.mrf.mxu0
    %v7223 = vadd.f32 %v7048, %v7222
    %v7224 = vpop.f32.mrf.mxu0
    %v7225 = vadd.f32 %v7048, %v7224
    %7226 = vmatmul.bf16.gmra.mxu0 %v7022
    %v7227 = vpop.f32.mrf.mxu0
    %v7228 = vadd.f32 %v7048, %v7227
    %v7229 = vpop.f32.mrf.mxu0
    %v7230 = vadd.f32 %v7048, %v7229
    %7231 = vmatmul.bf16.gmra.mxu0 %v7023
    %v7232 = vpop.f32.mrf.mxu0
    %v7233 = vadd.f32 %v7048, %v7232
    %v7234 = vpop.f32.mrf.mxu0
    %v7235 = vadd.f32 %v7048, %v7234
    %7236 = vmatmul.bf16.gmra.mxu0 %v7024
    %v7237 = vpop.f32.mrf.mxu0
    %v7238 = vadd.f32 %v7048, %v7237
    %v7239 = vpop.f32.mrf.mxu0
    %v7240 = vadd.f32 %v7048, %v7239
    %7241 = vmatmul.bf16.gmra.mxu0 %v7025
    %v7242 = vpop.f32.mrf.mxu0
    %v7243 = vadd.f32 %v7048, %v7242
    %v7244 = vpop.f32.mrf.mxu0
    %v7245 = vadd.f32 %v7048, %v7244
    %7246 = vmatmul.bf16.gmra.mxu0 %v7026
    %v7247 = vpop.f32.mrf.mxu0
    %v7248 = vadd.f32 %v7048, %v7247
    %v7249 = vpop.f32.mrf.mxu0
    %v7250 = vadd.f32 %v7048, %v7249
    %7251 = vmatmul.bf16.gmra.mxu0 %v7027
    %v7252 = vpop.f32.mrf.mxu0
    %v7253 = vadd.f32 %v7048, %v7252
    %v7254 = vpop.f32.mrf.mxu0
    %v7255 = vadd.f32 %v7048, %v7254
    %7256 = vmatmul.bf16.gmra.mxu0 %v7028
    %v7257 = vpop.f32.mrf.mxu0
    %v7258 = vadd.f32 %v7048, %v7257
    %v7259 = vpop.f32.mrf.mxu0
    %v7260 = vadd.f32 %v7048, %v7259
    %7261 = vmatmul.bf16.gmra.mxu0 %v7029
    %v7262 = vpop.f32.mrf.mxu0
    %v7263 = vadd.f32 %v7048, %v7262
    %v7264 = vpop.f32.mrf.mxu0
    %v7265 = vadd.f32 %v7048, %v7264
    %7266 = vdwg.mxu0
    %7267 = vst [vmem:[#allocation8] sm:$0xff] %v7108
    %7268 = vst [vmem:[#allocation8 + $0x8] sm:$0xff] %v7110
    %7269 = vst [vmem:[#allocation8 + $0x10] sm:$0xff] %v7113
    %7270 = vst [vmem:[#allocation8 + $0x18] sm:$0xff] %v7115
    %7271 = vst [vmem:[#allocation8 + $0x20] sm:$0xff] %v7118
    %7272 = vst [vmem:[#allocation8 + $0x28] sm:$0xff] %v7120
    %7273 = vst [vmem:[#allocation8 + $0x30] sm:$0xff] %v7123
    %7274 = vst [vmem:[#allocation8 + $0x38] sm:$0xff] %v7125
    %7275 = vst [vmem:[#allocation8 + $0x40] sm:$0xff] %v7128
    %7276 = vst [vmem:[#allocation8 + $0x48] sm:$0xff] %v7130
    %7277 = vst [vmem:[#allocation8 + $0x50] sm:$0xff] %v7133
    %7278 = vst [vmem:[#allocation8 + $0x58] sm:$0xff] %v7135
    %7279 = vst [vmem:[#allocation8 + $0x60] sm:$0xff] %v7138
    %7280 = vst [vmem:[#allocation8 + $0x68] sm:$0xff] %v7140
    %7281 = vst [vmem:[#allocation8 + $0x70] sm:$0xff] %v7143
    %7282 = vst [vmem:[#allocation8 + $0x78] sm:$0xff] %v7145
    %7283 = vst [vmem:[#allocation8 + $0x80] sm:$0xff] %v7148
    %7284 = vst [vmem:[#allocation8 + $0x88] sm:$0xff] %v7150
    %7285 = vst [vmem:[#allocation8 + $0x90] sm:$0xff] %v7153
    %7286 = vst [vmem:[#allocation8 + $0x98] sm:$0xff] %v7155
    %7287 = vst [vmem:[#allocation8 + $0xa0] sm:$0xff] %v7158
    %7288 = vst [vmem:[#allocation8 + $0xa8] sm:$0xff] %v7160
    %7289 = vst [vmem:[#allocation8 + $0xb0] sm:$0xff] %v7163
    %7290 = vst [vmem:[#allocation8 + $0xb8] sm:$0xff] %v7165
    %7291 = vst [vmem:[#allocation8 + $0xc0] sm:$0xff] %v7168
    %7292 = vst [vmem:[#allocation8 + $0xc8] sm:$0xff] %v7170
    %7293 = vst [vmem:[#allocation8 + $0xd0] sm:$0xff] %v7173
    %7294 = vst [vmem:[#allocation8 + $0xd8] sm:$0xff] %v7175
    %7295 = vst [vmem:[#allocation8 + $0xe0] sm:$0xff] %v7178
    %7296 = vst [vmem:[#allocation8 + $0xe8] sm:$0xff] %v7180
    %7297 = vst [vmem:[#allocation8 + $0xf0] sm:$0xff] %v7183
    %7298 = vst [vmem:[#allocation8 + $0xf8] sm:$0xff] %v7185
    %7299 = vst [vmem:[#allocation8 + $0x100] sm:$0xff] %v7188
    %7300 = vst [vmem:[#allocation8 + $0x108] sm:$0xff] %v7190
    %7301 = vst [vmem:[#allocation8 + $0x110] sm:$0xff] %v7193
    %7302 = vst [vmem:[#allocation8 + $0x118] sm:$0xff] %v7195
    %7303 = vst [vmem:[#allocation8 + $0x120] sm:$0xff] %v7198
    %7304 = vst [vmem:[#allocation8 + $0x128] sm:$0xff] %v7200
    %7305 = vst [vmem:[#allocation8 + $0x130] sm:$0xff] %v7203
    %7306 = vst [vmem:[#allocation8 + $0x138] sm:$0xff] %v7205
    %7307 = vst [vmem:[#allocation8 + $0x140] sm:$0xff] %v7208
    %7308 = vst [vmem:[#allocation8 + $0x148] sm:$0xff] %v7210
    %7309 = vst [vmem:[#allocation8 + $0x150] sm:$0xff] %v7213
    %7310 = vst [vmem:[#allocation8 + $0x158] sm:$0xff] %v7215
    %7311 = vst [vmem:[#allocation8 + $0x160] sm:$0xff] %v7218
    %7312 = vst [vmem:[#allocation8 + $0x168] sm:$0xff] %v7220
    %7313 = vst [vmem:[#allocation8 + $0x170] sm:$0xff] %v7223
    %7314 = vst [vmem:[#allocation8 + $0x178] sm:$0xff] %v7225
    %7315 = vst [vmem:[#allocation8 + $0x180] sm:$0xff] %v7228
    %7316 = vst [vmem:[#allocation8 + $0x188] sm:$0xff] %v7230
    %7317 = vst [vmem:[#allocation8 + $0x190] sm:$0xff] %v7233
    %7318 = vst [vmem:[#allocation8 + $0x198] sm:$0xff] %v7235
    %7319 = vst [vmem:[#allocation8 + $0x1a0] sm:$0xff] %v7238
    %7320 = vst [vmem:[#allocation8 + $0x1a8] sm:$0xff] %v7240
    %7321 = vst [vmem:[#allocation8 + $0x1b0] sm:$0xff] %v7243
    %7322 = vst [vmem:[#allocation8 + $0x1b8] sm:$0xff] %v7245
    %7323 = vst [vmem:[#allocation8 + $0x1c0] sm:$0xff] %v7248
    %7324 = vst [vmem:[#allocation8 + $0x1c8] sm:$0xff] %v7250
    %7325 = vst [vmem:[#allocation8 + $0x1d0] sm:$0xff] %v7253
    %7326 = vst [vmem:[#allocation8 + $0x1d8] sm:$0xff] %v7255
    %7327 = vst [vmem:[#allocation8 + $0x1e0] sm:$0xff] %v7258
    %7328 = vst [vmem:[#allocation8 + $0x1e8] sm:$0xff] %v7260
    %7329 = vst [vmem:[#allocation8 + $0x1f0] sm:$0xff] %v7263
    %7330 = vst [vmem:[#allocation8 + $0x1f8] sm:$0xff] %v7265
    // Predicated region
    $region50: #{tpu_custom_call.1} parent=1 // pred_check
      _
    $region51: #{tpu_custom_call.1} parent=1 // pred_check_branch
      %7332 = sbr.rel (0) target = $region53
    $region52: #{tpu_custom_call.1} parent=1 // pred_region
      %7334 = vsyncadd [#allocation4], 0
      %s7335 = sshll.u32 [#allocation8], 4
      %s7336 = int_to_ptr.vmem [resolvable:$true] %s7335
      %s7337 = sshll.u32 %s9, 4
      %s7338 = int_to_ptr.hbm [resolvable:$true] %s7337
      %7343 = dma.vmem_to_hbm [thread:$0]  %s7336, 8192, %s7338, [#allocation4], 128, 128, 8
    $region53: #{tpu_custom_call.1} parent=1 // pred_fallthru
      _
    // Predicated region
    $region54: #{tpu_custom_call.1} parent=1 // pred_check
      _
    $region55: #{tpu_custom_call.1} parent=1 // pred_check_branch
      %7345 = sbr.rel (0) target = $region57
    $region56: #{tpu_custom_call.1} parent=1 // pred_region
      %7347 = dma.done [#allocation4], 8192
    $region57: #{tpu_custom_call.1} parent=1 // pred_fallthru
      _
    %7348 = vsyncpa [#allocation3], 1
    %7349 = vsyncpa [#allocation6], 1
    %7350 = vsyncpa [#allocation4], 1

</llo_original>
